<compile_context>
chip_gen: v7x
topology: tpu7x:2x2x1
jax: 0.10.0
libtpu: 0.0.40
codegen_flags: <defaults>
</compile_context>

<pallas_src>
import jax
import jax.numpy as jnp
from jax.experimental import pallas as pl
from jax.experimental.pallas import tpu as pltpu

_EPS = 1e-5
_CP = 128  # lane-dense padded channel width (multiple of 128 on all TPU gens)


# ---------------------------------------------------------------------------
# Fused Pallas kernel
# ---------------------------------------------------------------------------
def _bottleneck_kernel(x_ref, w1_ref, w2_ref, w3_ref,
                       g1_ref, b1_ref, g2_ref, b2_ref, g3_ref, b3_ref,
                       o_ref, pad_ref, acc_ref):
    """Fully fused Bottleneck forward (stride=1, downsample=None).

    x_ref   : (M, CP)            flattened NHWC input, channels padded to CP
    w1_ref  : (CP, CP)           conv1 (1x1) weights, [cin, cout] layout
    w2_ref  : (9, CP, CP)        conv2 (3x3) weights, taps in (dh*3+dw) order
    w3_ref  : (CP, CP)           conv3 (1x1) weights
    g*/b*   : (1, CP)            BN affine params, zero-padded to CP lanes
    o_ref   : (M, CP)            output (channels padded to CP)
    pad_ref : (N, H+2, W+2, CP)  VMEM scratch: zero-padded stage-1 activations
    acc_ref : (M, CP)            VMEM scratch: 3x3 tap accumulator
    """
    n, hp2, wp2, _ = pad_ref.shape
    h, w = hp2 - 2, wp2 - 2
    m = n * h * w
    inv_m = 1.0 / m

    def bn(y, g, b):
        # One-pass batch statistics: var = E[y^2] - mean^2 (biased, like PyTorch
        # training-mode BN). Folded into per-channel scale/shift -> single FMA.
        s = jnp.sum(y, axis=0, keepdims=True)
        sq = jnp.sum(y * y, axis=0, keepdims=True)
        mean = s * inv_m
        var = sq * inv_m - mean * mean
        scale = g * jax.lax.rsqrt(var + _EPS)
        shift = b - mean * scale
        return y * scale + shift

    x = x_ref[...]  # stays VMEM-resident; reused as the residual at the end

    # ---- stage 1: 1x1 conv + BN + ReLU -----------------------------------
    y1 = jnp.dot(x, w1_ref[...], preferred_element_type=jnp.float32)
    a1 = jnp.maximum(bn(y1, g1_ref[...], b1_ref[...]), 0.0)

    # ---- stage 2: 3x3 conv (pad=1, stride=1) via 9-tap accumulation -------
    pad_ref[...] = jnp.zeros_like(pad_ref)
    pad_ref[:, 1:h + 1, 1:w + 1, :] = a1.reshape(n, h, w, _CP)
    acc_ref[...] = jnp.zeros_like(acc_ref)
    for t in range(9):  # static unroll
        dh, dw = t // 3, t % 3
        tap = pad_ref[:, dh:dh + h, dw:dw + w, :].reshape(m, _CP)
        acc_ref[...] += jnp.dot(tap, w2_ref[t],
                                preferred_element_type=jnp.float32)
    a2 = jnp.maximum(bn(acc_ref[...], g2_ref[...], b2_ref[...]), 0.0)

    # ---- stage 3: 1x1 conv + BN + residual add + ReLU ---------------------
    y3 = jnp.dot(a2, w3_ref[...], preferred_element_type=jnp.float32)
    o_ref[...] = jnp.maximum(bn(y3, g3_ref[...], b3_ref[...]) + x, 0.0)


# ---------------------------------------------------------------------------
# Wrapper: layout conversion, lane-dense padding, weight packing
# ---------------------------------------------------------------------------
def bottleneck_forward(x_nchw, params, stride=1):
    """Pallas implementation of Bottleneck.forward (downsample=None)."""
    # TODO(synk): stride>1 / downsample branch not implemented (module default
    # is stride=1, downsample=None; residual shapes only match in that case).
    assert stride == 1, "only stride=1 / downsample=None is implemented"

    n, cin, h, w = x_nchw.shape
    planes = params["w1"].shape[0]
    cout = 2 * planes
    m = n * h * w

    x_nhwc = jnp.transpose(x_nchw, (0, 2, 3, 1)).astype(jnp.float32)
    x2d = jnp.pad(x_nhwc.reshape(m, cin), ((0, 0), (0, _CP - cin)))

    def pack_1x1(wt):  # (O, I, 1, 1) -> (CP, CP) in [cin, cout] layout
        o_, i_ = wt.shape[0], wt.shape[1]
        w2d = jnp.transpose(wt[:, :, 0, 0], (1, 0)).astype(jnp.float32)
        return jnp.pad(w2d, ((0, _CP - i_), (0, _CP - o_)))

    w1p = pack_1x1(params["w1"])
    w3p = pack_1x1(params["w3"])

    # (O, I, 3, 3) -> (9, CP, CP): tap index = dh*3 + dw, inner = [cin, cout]
    w2 = jnp.transpose(params["w2"], (2, 3, 1, 0)).astype(jnp.float32)
    w2 = w2.reshape(9, planes, planes)
    w2p = jnp.pad(w2, ((0, 0), (0, _CP - planes), (0, _CP - planes)))

    def pad_vec(v):  # (1, c) -> (1, CP), zero-padded
        return jnp.pad(v.astype(jnp.float32), ((0, 0), (0, _CP - v.shape[1])))

    g1, b1 = pad_vec(params["g1"]), pad_vec(params["b1"])
    g2, b2 = pad_vec(params["g2"]), pad_vec(params["b2"])
    g3, b3 = pad_vec(params["g3"]), pad_vec(params["b3"])

    vmem = pl.BlockSpec(memory_space=pltpu.VMEM)
    out2d = pl.pallas_call(
        _bottleneck_kernel,
        out_shape=jax.ShapeDtypeStruct((m, _CP), jnp.float32),
        in_specs=[vmem] * 10,
        out_specs=vmem,
        scratch_shapes=[
            pltpu.VMEM((n, h + 2, w + 2, _CP), jnp.float32),  # padded stage-1 map
            pltpu.VMEM((m, _CP), jnp.float32),                # 3x3 accumulator
        ],
    )(x2d, w1p, w2p, w3p, g1, b1, g2, b2, g3, b3)

    out_nhwc = out2d[:, :cout].reshape(n, h, w, cout)
    return jnp.transpose(out_nhwc, (0, 3, 1, 2))  # back to NCHW


# ---------------------------------------------------------------------------
# Pure-JAX reference (sanity check)
# ---------------------------------------------------------------------------
def _bn_train(y_nchw, gamma, beta):
    mean = jnp.mean(y_nchw, axis=(0, 2, 3), keepdims=True)
    var = jnp.mean((y_nchw - mean) ** 2, axis=(0, 2, 3), keepdims=True)
    g = gamma.reshape(1, -1, 1, 1)
    b = beta.reshape(1, -1, 1, 1)
    return (y_nchw - mean) * jax.lax.rsqrt(var + _EPS) * g + b


def bottleneck_reference(x, params, stride=1):
    dn = jax.lax.conv_dimension_numbers(x.shape, params["w1"].shape,
                                        ("NCHW", "OIHW", "NCHW"))
    out = jax.lax.conv_general_dilated(x, params["w1"], (1, 1), "VALID",
                                       dimension_numbers=dn)
    out = jax.nn.relu(_bn_train(out, params["g1"][0], params["b1"][0]))
    dn2 = jax.lax.conv_dimension_numbers(out.shape, params["w2"].shape,
                                         ("NCHW", "OIHW", "NCHW"))
    out = jax.lax.conv_general_dilated(out, params["w2"], (stride, stride),
                                       ((1, 1), (1, 1)), dimension_numbers=dn2)
    out = jax.nn.relu(_bn_train(out, params["g2"][0], params["b2"][0]))
    dn3 = jax.lax.conv_dimension_numbers(out.shape, params["w3"].shape,
                                         ("NCHW", "OIHW", "NCHW"))
    out = jax.lax.conv_general_dilated(out, params["w3"], (1, 1), "VALID",
                                       dimension_numbers=dn3)
    out = _bn_train(out, params["g3"][0], params["b3"][0])
    return jax.nn.relu(out + x)


# ---------------------------------------------------------------------------
# Main
# ---------------------------------------------------------------------------
if __name__ == "__main__":
    key = jax.random.PRNGKey(0)
    k_x, k1, k2, k3 = jax.random.split(key, 4)

    N, H, W = 2, 16, 16
    planes = 4
    inplanes = planes * 2          # expansion=2, downsample=None => in == out channels
    stride = 1

    x = jax.random.normal(k_x, (N, inplanes, H, W), dtype=jnp.float32)

    params = {
        # conv weights in PyTorch OIHW layout, deterministic init
        "w1": 0.2 * jax.random.normal(k1, (planes, inplanes, 1, 1), jnp.float32),
        "w2": 0.1 * jax.random.normal(k2, (planes, planes, 3, 3), jnp.float32),
        "w3": 0.2 * jax.random.normal(k3, (planes * 2, planes, 1, 1), jnp.float32),
        # BatchNorm affine params at PyTorch defaults (weight=1, bias=0)
        "g1": jnp.ones((1, planes), jnp.float32),
        "b1": jnp.zeros((1, planes), jnp.float32),
        "g2": jnp.ones((1, planes), jnp.float32),
        "b2": jnp.zeros((1, planes), jnp.float32),
        "g3": jnp.ones((1, planes * 2), jnp.float32),
        "b3": jnp.zeros((1, planes * 2), jnp.float32),
    }

    out = jax.block_until_ready(bottleneck_forward(x, params, stride=stride))
    ref = jax.block_until_ready(bottleneck_reference(x, params, stride=stride))

    assert out.shape == (N, planes * 2, H, W), out.shape
    assert jnp.allclose(out, ref, atol=2e-3, rtol=2e-3), \
        float(jnp.max(jnp.abs(out - ref)))

    print("KERNEL_OK")
</pallas_src>

<mosaic_0001>
module attributes {stable_mosaic.version = 11 : i64} {
  func.func @_bottleneck_kernel(%arg0: memref<512x128xf32, #tpu.memory_space<vmem>>, %arg1: memref<128x128xf32, #tpu.memory_space<vmem>>, %arg2: memref<9x128x128xf32, #tpu.memory_space<vmem>>, %arg3: memref<128x128xf32, #tpu.memory_space<vmem>>, %arg4: memref<1x128xf32, #tpu.memory_space<vmem>>, %arg5: memref<1x128xf32, #tpu.memory_space<vmem>>, %arg6: memref<1x128xf32, #tpu.memory_space<vmem>>, %arg7: memref<1x128xf32, #tpu.memory_space<vmem>>, %arg8: memref<1x128xf32, #tpu.memory_space<vmem>>, %arg9: memref<1x128xf32, #tpu.memory_space<vmem>>, %arg10: memref<512x128xf32, #tpu.memory_space<vmem>>, %arg11: memref<2x18x18x128xf32, #tpu.memory_space<vmem>>, %arg12: memref<512x128xf32, #tpu.memory_space<vmem>>) attributes {dimension_semantics = [], scalar_prefetch = 0 : i64, scratch_operands = 2 : i64, tpu.core_type = #tpu.core_type<tc>} {
    %c0 = arith.constant 0 : index
    %c0_0 = arith.constant 0 : index
    %0 = vector.load %arg0[%c0, %c0_0] : memref<512x128xf32, #tpu.memory_space<vmem>>, vector<512x128xf32>
    %c0_1 = arith.constant 0 : index
    %c0_2 = arith.constant 0 : index
    %1 = vector.load %arg1[%c0_1, %c0_2] : memref<128x128xf32, #tpu.memory_space<vmem>>, vector<128x128xf32>
    %cst = arith.constant dense<0.000000e+00> : vector<512x128xf32>
    %2 = tpu.matmul %0, %1, %cst {dimension_numbers = #tpu.dot_dimension_numbers<[1], [0], [0], [1], [0, 0, 1, 1], [], []>} : vector<512x128xf32>, vector<128x128xf32>, vector<512x128xf32> -> vector<512x128xf32>
    %c0_3 = arith.constant 0 : index
    %c0_4 = arith.constant 0 : index
    %3 = vector.load %arg4[%c0_3, %c0_4] : memref<1x128xf32, #tpu.memory_space<vmem>>, vector<1x128xf32>
    %c0_5 = arith.constant 0 : index
    %c0_6 = arith.constant 0 : index
    %4 = vector.load %arg5[%c0_5, %c0_6] : memref<1x128xf32, #tpu.memory_space<vmem>>, vector<1x128xf32>
    %cst_7 = arith.constant dense<0.000000e+00> : vector<128xf32>
    %5 = vector.multi_reduction <add>, %2, %cst_7 [0] : vector<512x128xf32> to vector<128xf32>
    %6 = vector.shape_cast %5 : vector<128xf32> to vector<1x128xf32>
    %7 = arith.mulf %2, %2 : vector<512x128xf32>
    %cst_8 = arith.constant dense<0.000000e+00> : vector<128xf32>
    %8 = vector.multi_reduction <add>, %7, %cst_8 [0] : vector<512x128xf32> to vector<128xf32>
    %9 = vector.shape_cast %8 : vector<128xf32> to vector<1x128xf32>
    %cst_9 = arith.constant 0.001953125 : f32
    %10 = vector.broadcast %cst_9 : f32 to vector<1x128xf32>
    %11 = arith.mulf %6, %10 : vector<1x128xf32>
    %cst_10 = arith.constant 0.001953125 : f32
    %12 = vector.broadcast %cst_10 : f32 to vector<1x128xf32>
    %13 = arith.mulf %9, %12 : vector<1x128xf32>
    %14 = arith.mulf %11, %11 : vector<1x128xf32>
    %15 = arith.subf %13, %14 : vector<1x128xf32>
    %cst_11 = arith.constant 9.99999974E-6 : f32
    %16 = vector.broadcast %cst_11 : f32 to vector<1x128xf32>
    %17 = arith.addf %15, %16 : vector<1x128xf32>
    %18 = math.rsqrt %17 : vector<1x128xf32>
    %19 = arith.mulf %3, %18 : vector<1x128xf32>
    %20 = arith.mulf %11, %19 : vector<1x128xf32>
    %21 = arith.subf %4, %20 : vector<1x128xf32>
    %22 = vector.broadcast %19 : vector<1x128xf32> to vector<512x128xf32>
    %23 = arith.mulf %2, %22 : vector<512x128xf32>
    %24 = vector.broadcast %21 : vector<1x128xf32> to vector<512x128xf32>
    %25 = arith.addf %23, %24 : vector<512x128xf32>
    %cst_12 = arith.constant 0.000000e+00 : f32
    %26 = vector.broadcast %cst_12 : f32 to vector<512x128xf32>
    %27 = arith.maximumf %25, %26 : vector<512x128xf32>
    %cst_13 = arith.constant 0.000000e+00 : f32
    %28 = vector.broadcast %cst_13 : f32 to vector<2x18x18x128xf32>
    %c0_14 = arith.constant 0 : index
    %c0_15 = arith.constant 0 : index
    %c0_16 = arith.constant 0 : index
    %c0_17 = arith.constant 0 : index
    %29 = vector.load %arg11[%c0_14, %c0_15, %c0_16, %c0_17] : memref<2x18x18x128xf32, #tpu.memory_space<vmem>>, vector<2x18x18x128xf32>
    tpu.vector_store %arg11[%c0_14, %c0_15, %c0_16, %c0_17], %28 {strides = array<i32>} : memref<2x18x18x128xf32, #tpu.memory_space<vmem>>, vector<2x18x18x128xf32>,
    %30 = vector.shape_cast %27 : vector<512x128xf32> to vector<2x16x16x128xf32>
    %c0_18 = arith.constant 0 : index
    %c1 = arith.constant 1 : index
    %c1_19 = arith.constant 1 : index
    %c0_20 = arith.constant 0 : index
    %31 = vector.load %arg11[%c0_18, %c1, %c1_19, %c0_20] : memref<2x18x18x128xf32, #tpu.memory_space<vmem>>, vector<2x16x16x128xf32>
    tpu.vector_store %arg11[%c0_18, %c1, %c1_19, %c0_20], %30 {strides = array<i32>} : memref<2x18x18x128xf32, #tpu.memory_space<vmem>>, vector<2x16x16x128xf32>,
    %cst_21 = arith.constant 0.000000e+00 : f32
    %32 = vector.broadcast %cst_21 : f32 to vector<512x128xf32>
    %c0_22 = arith.constant 0 : index
    %c0_23 = arith.constant 0 : index
    %33 = vector.load %arg12[%c0_22, %c0_23] : memref<512x128xf32, #tpu.memory_space<vmem>>, vector<512x128xf32>
    tpu.vector_store %arg12[%c0_22, %c0_23], %32 {strides = array<i32>} : memref<512x128xf32, #tpu.memory_space<vmem>>, vector<512x128xf32>,
    %c0_24 = arith.constant 0 : index
    %c0_25 = arith.constant 0 : index
    %c0_26 = arith.constant 0 : index
    %c0_27 = arith.constant 0 : index
    %34 = vector.load %arg11[%c0_24, %c0_25, %c0_26, %c0_27] : memref<2x18x18x128xf32, #tpu.memory_space<vmem>>, vector<2x16x16x128xf32>
    %35 = vector.shape_cast %34 : vector<2x16x16x128xf32> to vector<512x128xf32>
    %c0_28 = arith.constant 0 : index
    %c0_29 = arith.constant 0 : index
    %36 = vector.load %arg12[%c0_28, %c0_29] : memref<512x128xf32, #tpu.memory_space<vmem>>, vector<512x128xf32>
    %c0_30 = arith.constant 0 : index
    %c0_31 = arith.constant 0 : index
    %c0_32 = arith.constant 0 : index
    %37 = vector.load %arg2[%c0_30, %c0_31, %c0_32] : memref<9x128x128xf32, #tpu.memory_space<vmem>>, vector<1x128x128xf32>
    %38 = vector.shape_cast %37 : vector<1x128x128xf32> to vector<128x128xf32>
    %cst_33 = arith.constant dense<0.000000e+00> : vector<512x128xf32>
    %39 = tpu.matmul %35, %38, %cst_33 {dimension_numbers = #tpu.dot_dimension_numbers<[1], [0], [0], [1], [0, 0, 1, 1], [], []>} : vector<512x128xf32>, vector<128x128xf32>, vector<512x128xf32> -> vector<512x128xf32>
    %40 = arith.addf %36, %39 : vector<512x128xf32>
    %c0_34 = arith.constant 0 : index
    %c0_35 = arith.constant 0 : index
    %41 = vector.load %arg12[%c0_34, %c0_35] : memref<512x128xf32, #tpu.memory_space<vmem>>, vector<512x128xf32>
    tpu.vector_store %arg12[%c0_34, %c0_35], %40 {strides = array<i32>} : memref<512x128xf32, #tpu.memory_space<vmem>>, vector<512x128xf32>,
    %c0_36 = arith.constant 0 : index
    %c0_37 = arith.constant 0 : index
    %c1_38 = arith.constant 1 : index
    %c0_39 = arith.constant 0 : index
    %42 = vector.load %arg11[%c0_36, %c0_37, %c1_38, %c0_39] : memref<2x18x18x128xf32, #tpu.memory_space<vmem>>, vector<2x16x16x128xf32>
    %43 = vector.shape_cast %42 : vector<2x16x16x128xf32> to vector<512x128xf32>
    %c0_40 = arith.constant 0 : index
    %c0_41 = arith.constant 0 : index
    %44 = vector.load %arg12[%c0_40, %c0_41] : memref<512x128xf32, #tpu.memory_space<vmem>>, vector<512x128xf32>
    %c1_42 = arith.constant 1 : index
    %c0_43 = arith.constant 0 : index
    %c0_44 = arith.constant 0 : index
    %45 = vector.load %arg2[%c1_42, %c0_43, %c0_44] : memref<9x128x128xf32, #tpu.memory_space<vmem>>, vector<1x128x128xf32>
    %46 = vector.shape_cast %45 : vector<1x128x128xf32> to vector<128x128xf32>
    %cst_45 = arith.constant dense<0.000000e+00> : vector<512x128xf32>
    %47 = tpu.matmul %43, %46, %cst_45 {dimension_numbers = #tpu.dot_dimension_numbers<[1], [0], [0], [1], [0, 0, 1, 1], [], []>} : vector<512x128xf32>, vector<128x128xf32>, vector<512x128xf32> -> vector<512x128xf32>
    %48 = arith.addf %44, %47 : vector<512x128xf32>
    %c0_46 = arith.constant 0 : index
    %c0_47 = arith.constant 0 : index
    %49 = vector.load %arg12[%c0_46, %c0_47] : memref<512x128xf32, #tpu.memory_space<vmem>>, vector<512x128xf32>
    tpu.vector_store %arg12[%c0_46, %c0_47], %48 {strides = array<i32>} : memref<512x128xf32, #tpu.memory_space<vmem>>, vector<512x128xf32>,
    %c0_48 = arith.constant 0 : index
    %c0_49 = arith.constant 0 : index
    %c2 = arith.constant 2 : index
    %c0_50 = arith.constant 0 : index
    %50 = vector.load %arg11[%c0_48, %c0_49, %c2, %c0_50] : memref<2x18x18x128xf32, #tpu.memory_space<vmem>>, vector<2x16x16x128xf32>
    %51 = vector.shape_cast %50 : vector<2x16x16x128xf32> to vector<512x128xf32>
    %c0_51 = arith.constant 0 : index
    %c0_52 = arith.constant 0 : index
    %52 = vector.load %arg12[%c0_51, %c0_52] : memref<512x128xf32, #tpu.memory_space<vmem>>, vector<512x128xf32>
    %c2_53 = arith.constant 2 : index
    %c0_54 = arith.constant 0 : index
    %c0_55 = arith.constant 0 : index
    %53 = vector.load %arg2[%c2_53, %c0_54, %c0_55] : memref<9x128x128xf32, #tpu.memory_space<vmem>>, vector<1x128x128xf32>
    %54 = vector.shape_cast %53 : vector<1x128x128xf32> to vector<128x128xf32>
    %cst_56 = arith.constant dense<0.000000e+00> : vector<512x128xf32>
    %55 = tpu.matmul %51, %54, %cst_56 {dimension_numbers = #tpu.dot_dimension_numbers<[1], [0], [0], [1], [0, 0, 1, 1], [], []>} : vector<512x128xf32>, vector<128x128xf32>, vector<512x128xf32> -> vector<512x128xf32>
    %56 = arith.addf %52, %55 : vector<512x128xf32>
    %c0_57 = arith.constant 0 : index
    %c0_58 = arith.constant 0 : index
    %57 = vector.load %arg12[%c0_57, %c0_58] : memref<512x128xf32, #tpu.memory_space<vmem>>, vector<512x128xf32>
    tpu.vector_store %arg12[%c0_57, %c0_58], %56 {strides = array<i32>} : memref<512x128xf32, #tpu.memory_space<vmem>>, vector<512x128xf32>,
    %c0_59 = arith.constant 0 : index
    %c1_60 = arith.constant 1 : index
    %c0_61 = arith.constant 0 : index
    %c0_62 = arith.constant 0 : index
    %58 = vector.load %arg11[%c0_59, %c1_60, %c0_61, %c0_62] : memref<2x18x18x128xf32, #tpu.memory_space<vmem>>, vector<2x16x16x128xf32>
    %59 = vector.shape_cast %58 : vector<2x16x16x128xf32> to vector<512x128xf32>
    %c0_63 = arith.constant 0 : index
    %c0_64 = arith.constant 0 : index
    %60 = vector.load %arg12[%c0_63, %c0_64] : memref<512x128xf32, #tpu.memory_space<vmem>>, vector<512x128xf32>
    %c3 = arith.constant 3 : index
    %c0_65 = arith.constant 0 : index
    %c0_66 = arith.constant 0 : index
    %61 = vector.load %arg2[%c3, %c0_65, %c0_66] : memref<9x128x128xf32, #tpu.memory_space<vmem>>, vector<1x128x128xf32>
    %62 = vector.shape_cast %61 : vector<1x128x128xf32> to vector<128x128xf32>
    %cst_67 = arith.constant dense<0.000000e+00> : vector<512x128xf32>
    %63 = tpu.matmul %59, %62, %cst_67 {dimension_numbers = #tpu.dot_dimension_numbers<[1], [0], [0], [1], [0, 0, 1, 1], [], []>} : vector<512x128xf32>, vector<128x128xf32>, vector<512x128xf32> -> vector<512x128xf32>
    %64 = arith.addf %60, %63 : vector<512x128xf32>
    %c0_68 = arith.constant 0 : index
    %c0_69 = arith.constant 0 : index
    %65 = vector.load %arg12[%c0_68, %c0_69] : memref<512x128xf32, #tpu.memory_space<vmem>>, vector<512x128xf32>
    tpu.vector_store %arg12[%c0_68, %c0_69], %64 {strides = array<i32>} : memref<512x128xf32, #tpu.memory_space<vmem>>, vector<512x128xf32>,
    %c0_70 = arith.constant 0 : index
    %c1_71 = arith.constant 1 : index
    %c1_72 = arith.constant 1 : index
    %c0_73 = arith.constant 0 : index
    %66 = vector.load %arg11[%c0_70, %c1_71, %c1_72, %c0_73] : memref<2x18x18x128xf32, #tpu.memory_space<vmem>>, vector<2x16x16x128xf32>
    %67 = vector.shape_cast %66 : vector<2x16x16x128xf32> to vector<512x128xf32>
    %c0_74 = arith.constant 0 : index
    %c0_75 = arith.constant 0 : index
    %68 = vector.load %arg12[%c0_74, %c0_75] : memref<512x128xf32, #tpu.memory_space<vmem>>, vector<512x128xf32>
    %c4 = arith.constant 4 : index
    %c0_76 = arith.constant 0 : index
    %c0_77 = arith.constant 0 : index
    %69 = vector.load %arg2[%c4, %c0_76, %c0_77] : memref<9x128x128xf32, #tpu.memory_space<vmem>>, vector<1x128x128xf32>
    %70 = vector.shape_cast %69 : vector<1x128x128xf32> to vector<128x128xf32>
    %cst_78 = arith.constant dense<0.000000e+00> : vector<512x128xf32>
    %71 = tpu.matmul %67, %70, %cst_78 {dimension_numbers = #tpu.dot_dimension_numbers<[1], [0], [0], [1], [0, 0, 1, 1], [], []>} : vector<512x128xf32>, vector<128x128xf32>, vector<512x128xf32> -> vector<512x128xf32>
    %72 = arith.addf %68, %71 : vector<512x128xf32>
    %c0_79 = arith.constant 0 : index
    %c0_80 = arith.constant 0 : index
    %73 = vector.load %arg12[%c0_79, %c0_80] : memref<512x128xf32, #tpu.memory_space<vmem>>, vector<512x128xf32>
    tpu.vector_store %arg12[%c0_79, %c0_80], %72 {strides = array<i32>} : memref<512x128xf32, #tpu.memory_space<vmem>>, vector<512x128xf32>,
    %c0_81 = arith.constant 0 : index
    %c1_82 = arith.constant 1 : index
    %c2_83 = arith.constant 2 : index
    %c0_84 = arith.constant 0 : index
    %74 = vector.load %arg11[%c0_81, %c1_82, %c2_83, %c0_84] : memref<2x18x18x128xf32, #tpu.memory_space<vmem>>, vector<2x16x16x128xf32>
    %75 = vector.shape_cast %74 : vector<2x16x16x128xf32> to vector<512x128xf32>
    %c0_85 = arith.constant 0 : index
    %c0_86 = arith.constant 0 : index
    %76 = vector.load %arg12[%c0_85, %c0_86] : memref<512x128xf32, #tpu.memory_space<vmem>>, vector<512x128xf32>
    %c5 = arith.constant 5 : index
    %c0_87 = arith.constant 0 : index
    %c0_88 = arith.constant 0 : index
    %77 = vector.load %arg2[%c5, %c0_87, %c0_88] : memref<9x128x128xf32, #tpu.memory_space<vmem>>, vector<1x128x128xf32>
    %78 = vector.shape_cast %77 : vector<1x128x128xf32> to vector<128x128xf32>
    %cst_89 = arith.constant dense<0.000000e+00> : vector<512x128xf32>
    %79 = tpu.matmul %75, %78, %cst_89 {dimension_numbers = #tpu.dot_dimension_numbers<[1], [0], [0], [1], [0, 0, 1, 1], [], []>} : vector<512x128xf32>, vector<128x128xf32>, vector<512x128xf32> -> vector<512x128xf32>
    %80 = arith.addf %76, %79 : vector<512x128xf32>
    %c0_90 = arith.constant 0 : index
    %c0_91 = arith.constant 0 : index
    %81 = vector.load %arg12[%c0_90, %c0_91] : memref<512x128xf32, #tpu.memory_space<vmem>>, vector<512x128xf32>
    tpu.vector_store %arg12[%c0_90, %c0_91], %80 {strides = array<i32>} : memref<512x128xf32, #tpu.memory_space<vmem>>, vector<512x128xf32>,
    %c0_92 = arith.constant 0 : index
    %c2_93 = arith.constant 2 : index
    %c0_94 = arith.constant 0 : index
    %c0_95 = arith.constant 0 : index
    %82 = vector.load %arg11[%c0_92, %c2_93, %c0_94, %c0_95] : memref<2x18x18x128xf32, #tpu.memory_space<vmem>>, vector<2x16x16x128xf32>
    %83 = vector.shape_cast %82 : vector<2x16x16x128xf32> to vector<512x128xf32>
    %c0_96 = arith.constant 0 : index
    %c0_97 = arith.constant 0 : index
    %84 = vector.load %arg12[%c0_96, %c0_97] : memref<512x128xf32, #tpu.memory_space<vmem>>, vector<512x128xf32>
    %c6 = arith.constant 6 : index
    %c0_98 = arith.constant 0 : index
    %c0_99 = arith.constant 0 : index
    %85 = vector.load %arg2[%c6, %c0_98, %c0_99] : memref<9x128x128xf32, #tpu.memory_space<vmem>>, vector<1x128x128xf32>
    %86 = vector.shape_cast %85 : vector<1x128x128xf32> to vector<128x128xf32>
    %cst_100 = arith.constant dense<0.000000e+00> : vector<512x128xf32>
    %87 = tpu.matmul %83, %86, %cst_100 {dimension_numbers = #tpu.dot_dimension_numbers<[1], [0], [0], [1], [0, 0, 1, 1], [], []>} : vector<512x128xf32>, vector<128x128xf32>, vector<512x128xf32> -> vector<512x128xf32>
    %88 = arith.addf %84, %87 : vector<512x128xf32>
    %c0_101 = arith.constant 0 : index
    %c0_102 = arith.constant 0 : index
    %89 = vector.load %arg12[%c0_101, %c0_102] : memref<512x128xf32, #tpu.memory_space<vmem>>, vector<512x128xf32>
    tpu.vector_store %arg12[%c0_101, %c0_102], %88 {strides = array<i32>} : memref<512x128xf32, #tpu.memory_space<vmem>>, vector<512x128xf32>,
    %c0_103 = arith.constant 0 : index
    %c2_104 = arith.constant 2 : index
    %c1_105 = arith.constant 1 : index
    %c0_106 = arith.constant 0 : index
    %90 = vector.load %arg11[%c0_103, %c2_104, %c1_105, %c0_106] : memref<2x18x18x128xf32, #tpu.memory_space<vmem>>, vector<2x16x16x128xf32>
    %91 = vector.shape_cast %90 : vector<2x16x16x128xf32> to vector<512x128xf32>
    %c0_107 = arith.constant 0 : index
    %c0_108 = arith.constant 0 : index
    %92 = vector.load %arg12[%c0_107, %c0_108] : memref<512x128xf32, #tpu.memory_space<vmem>>, vector<512x128xf32>
    %c7 = arith.constant 7 : index
    %c0_109 = arith.constant 0 : index
    %c0_110 = arith.constant 0 : index
    %93 = vector.load %arg2[%c7, %c0_109, %c0_110] : memref<9x128x128xf32, #tpu.memory_space<vmem>>, vector<1x128x128xf32>
    %94 = vector.shape_cast %93 : vector<1x128x128xf32> to vector<128x128xf32>
    %cst_111 = arith.constant dense<0.000000e+00> : vector<512x128xf32>
    %95 = tpu.matmul %91, %94, %cst_111 {dimension_numbers = #tpu.dot_dimension_numbers<[1], [0], [0], [1], [0, 0, 1, 1], [], []>} : vector<512x128xf32>, vector<128x128xf32>, vector<512x128xf32> -> vector<512x128xf32>
    %96 = arith.addf %92, %95 : vector<512x128xf32>
    %c0_112 = arith.constant 0 : index
    %c0_113 = arith.constant 0 : index
    %97 = vector.load %arg12[%c0_112, %c0_113] : memref<512x128xf32, #tpu.memory_space<vmem>>, vector<512x128xf32>
    tpu.vector_store %arg12[%c0_112, %c0_113], %96 {strides = array<i32>} : memref<512x128xf32, #tpu.memory_space<vmem>>, vector<512x128xf32>,
    %c0_114 = arith.constant 0 : index
    %c2_115 = arith.constant 2 : index
    %c2_116 = arith.constant 2 : index
    %c0_117 = arith.constant 0 : index
    %98 = vector.load %arg11[%c0_114, %c2_115, %c2_116, %c0_117] : memref<2x18x18x128xf32, #tpu.memory_space<vmem>>, vector<2x16x16x128xf32>
    %99 = vector.shape_cast %98 : vector<2x16x16x128xf32> to vector<512x128xf32>
    %c0_118 = arith.constant 0 : index
    %c0_119 = arith.constant 0 : index
    %100 = vector.load %arg12[%c0_118, %c0_119] : memref<512x128xf32, #tpu.memory_space<vmem>>, vector<512x128xf32>
    %c8 = arith.constant 8 : index
    %c0_120 = arith.constant 0 : index
    %c0_121 = arith.constant 0 : index
    %101 = vector.load %arg2[%c8, %c0_120, %c0_121] : memref<9x128x128xf32, #tpu.memory_space<vmem>>, vector<1x128x128xf32>
    %102 = vector.shape_cast %101 : vector<1x128x128xf32> to vector<128x128xf32>
    %cst_122 = arith.constant dense<0.000000e+00> : vector<512x128xf32>
    %103 = tpu.matmul %99, %102, %cst_122 {dimension_numbers = #tpu.dot_dimension_numbers<[1], [0], [0], [1], [0, 0, 1, 1], [], []>} : vector<512x128xf32>, vector<128x128xf32>, vector<512x128xf32> -> vector<512x128xf32>
    %104 = arith.addf %100, %103 : vector<512x128xf32>
    %c0_123 = arith.constant 0 : index
    %c0_124 = arith.constant 0 : index
    %105 = vector.load %arg12[%c0_123, %c0_124] : memref<512x128xf32, #tpu.memory_space<vmem>>, vector<512x128xf32>
    tpu.vector_store %arg12[%c0_123, %c0_124], %104 {strides = array<i32>} : memref<512x128xf32, #tpu.memory_space<vmem>>, vector<512x128xf32>,
    %c0_125 = arith.constant 0 : index
    %c0_126 = arith.constant 0 : index
    %106 = vector.load %arg12[%c0_125, %c0_126] : memref<512x128xf32, #tpu.memory_space<vmem>>, vector<512x128xf32>
    %c0_127 = arith.constant 0 : index
    %c0_128 = arith.constant 0 : index
    %107 = vector.load %arg6[%c0_127, %c0_128] : memref<1x128xf32, #tpu.memory_space<vmem>>, vector<1x128xf32>
    %c0_129 = arith.constant 0 : index
    %c0_130 = arith.constant 0 : index
    %108 = vector.load %arg7[%c0_129, %c0_130] : memref<1x128xf32, #tpu.memory_space<vmem>>, vector<1x128xf32>
    %cst_131 = arith.constant dense<0.000000e+00> : vector<128xf32>
    %109 = vector.multi_reduction <add>, %106, %cst_131 [0] : vector<512x128xf32> to vector<128xf32>
    %110 = vector.shape_cast %109 : vector<128xf32> to vector<1x128xf32>
    %111 = arith.mulf %106, %106 : vector<512x128xf32>
    %cst_132 = arith.constant dense<0.000000e+00> : vector<128xf32>
    %112 = vector.multi_reduction <add>, %111, %cst_132 [0] : vector<512x128xf32> to vector<128xf32>
    %113 = vector.shape_cast %112 : vector<128xf32> to vector<1x128xf32>
    %cst_133 = arith.constant 0.001953125 : f32
    %114 = vector.broadcast %cst_133 : f32 to vector<1x128xf32>
    %115 = arith.mulf %110, %114 : vector<1x128xf32>
    %cst_134 = arith.constant 0.001953125 : f32
    %116 = vector.broadcast %cst_134 : f32 to vector<1x128xf32>
    %117 = arith.mulf %113, %116 : vector<1x128xf32>
    %118 = arith.mulf %115, %115 : vector<1x128xf32>
    %119 = arith.subf %117, %118 : vector<1x128xf32>
    %cst_135 = arith.constant 9.99999974E-6 : f32
    %120 = vector.broadcast %cst_135 : f32 to vector<1x128xf32>
    %121 = arith.addf %119, %120 : vector<1x128xf32>
    %122 = math.rsqrt %121 : vector<1x128xf32>
    %123 = arith.mulf %107, %122 : vector<1x128xf32>
    %124 = arith.mulf %115, %123 : vector<1x128xf32>
    %125 = arith.subf %108, %124 : vector<1x128xf32>
    %126 = vector.broadcast %123 : vector<1x128xf32> to vector<512x128xf32>
    %127 = arith.mulf %106, %126 : vector<512x128xf32>
    %128 = vector.broadcast %125 : vector<1x128xf32> to vector<512x128xf32>
    %129 = arith.addf %127, %128 : vector<512x128xf32>
    %cst_136 = arith.constant 0.000000e+00 : f32
    %130 = vector.broadcast %cst_136 : f32 to vector<512x128xf32>
    %131 = arith.maximumf %129, %130 : vector<512x128xf32>
    %c0_137 = arith.constant 0 : index
    %c0_138 = arith.constant 0 : index
    %132 = vector.load %arg3[%c0_137, %c0_138] : memref<128x128xf32, #tpu.memory_space<vmem>>, vector<128x128xf32>
    %cst_139 = arith.constant dense<0.000000e+00> : vector<512x128xf32>
    %133 = tpu.matmul %131, %132, %cst_139 {dimension_numbers = #tpu.dot_dimension_numbers<[1], [0], [0], [1], [0, 0, 1, 1], [], []>} : vector<512x128xf32>, vector<128x128xf32>, vector<512x128xf32> -> vector<512x128xf32>
    %c0_140 = arith.constant 0 : index
    %c0_141 = arith.constant 0 : index
    %134 = vector.load %arg8[%c0_140, %c0_141] : memref<1x128xf32, #tpu.memory_space<vmem>>, vector<1x128xf32>
    %c0_142 = arith.constant 0 : index
    %c0_143 = arith.constant 0 : index
    %135 = vector.load %arg9[%c0_142, %c0_143] : memref<1x128xf32, #tpu.memory_space<vmem>>, vector<1x128xf32>
    %cst_144 = arith.constant dense<0.000000e+00> : vector<128xf32>
    %136 = vector.multi_reduction <add>, %133, %cst_144 [0] : vector<512x128xf32> to vector<128xf32>
    %137 = vector.shape_cast %136 : vector<128xf32> to vector<1x128xf32>
    %138 = arith.mulf %133, %133 : vector<512x128xf32>
    %cst_145 = arith.constant dense<0.000000e+00> : vector<128xf32>
    %139 = vector.multi_reduction <add>, %138, %cst_145 [0] : vector<512x128xf32> to vector<128xf32>
    %140 = vector.shape_cast %139 : vector<128xf32> to vector<1x128xf32>
    %cst_146 = arith.constant 0.001953125 : f32
    %141 = vector.broadcast %cst_146 : f32 to vector<1x128xf32>
    %142 = arith.mulf %137, %141 : vector<1x128xf32>
    %cst_147 = arith.constant 0.001953125 : f32
    %143 = vector.broadcast %cst_147 : f32 to vector<1x128xf32>
    %144 = arith.mulf %140, %143 : vector<1x128xf32>
    %145 = arith.mulf %142, %142 : vector<1x128xf32>
    %146 = arith.subf %144, %145 : vector<1x128xf32>
    %cst_148 = arith.constant 9.99999974E-6 : f32
    %147 = vector.broadcast %cst_148 : f32 to vector<1x128xf32>
    %148 = arith.addf %146, %147 : vector<1x128xf32>
    %149 = math.rsqrt %148 : vector<1x128xf32>
    %150 = arith.mulf %134, %149 : vector<1x128xf32>
    %151 = arith.mulf %142, %150 : vector<1x128xf32>
    %152 = arith.subf %135, %151 : vector<1x128xf32>
    %153 = vector.broadcast %150 : vector<1x128xf32> to vector<512x128xf32>
    %154 = arith.mulf %133, %153 : vector<512x128xf32>
    %155 = vector.broadcast %152 : vector<1x128xf32> to vector<512x128xf32>
    %156 = arith.addf %154, %155 : vector<512x128xf32>
    %157 = arith.addf %156, %0 : vector<512x128xf32>
    %cst_149 = arith.constant 0.000000e+00 : f32
    %158 = vector.broadcast %cst_149 : f32 to vector<512x128xf32>
    %159 = arith.maximumf %157, %158 : vector<512x128xf32>
    %c0_150 = arith.constant 0 : index
    %c0_151 = arith.constant 0 : index
    %160 = vector.load %arg10[%c0_150, %c0_151] : memref<512x128xf32, #tpu.memory_space<vmem>>, vector<512x128xf32>
    tpu.vector_store %arg10[%c0_150, %c0_151], %159 {strides = array<i32>} : memref<512x128xf32, #tpu.memory_space<vmem>>, vector<512x128xf32>,
    return
  }
}

</mosaic_0001>

<llo_original>
// kernel: tpu_custom_call.1
$region0: #{tpu_custom_call.1}
  #allocation0 [shape = 'u32[]', space=smem, size = 0x4, offset = 0x4, fixed_abs, tag = 'smem constant byte address 0x4 - core index']
  #allocation1 [shape = 'u32[144,128]{1,0:T(1,128)}', space=vmem, size = 0x12000, scoped, tag = 'internal scratch']
  #allocation2 [shape = 'f32[2,18,18,128]{3,2,1,0:T(8,128)}', space=vmem, size = 0x6c000, scoped, tag = 'scratch operand']
  #allocation3 [shape = 'f32[512,128]{1,0:T(8,128)}', space=vmem, size = 0x40000, scoped, tag = 'scratch operand']
  %s0 = inlined_call_operand.hbm [shape: f32[512,128], index: 0, kind: input, shape index: {}]
  %s1 = inlined_call_operand.hbm [shape: f32[128,128], index: 1, kind: input, shape index: {}]
  %s2 = inlined_call_operand.hbm [shape: f32[9,128,128], index: 2, kind: input, shape index: {}]
  %s3 = inlined_call_operand.hbm [shape: f32[128,128], index: 3, kind: input, shape index: {}]
  %s4 = inlined_call_operand.vmem [shape: f32[1,128], index: 4, kind: input, shape index: {}]
  %s5 = inlined_call_operand.vmem [shape: f32[1,128], index: 5, kind: input, shape index: {}]
  %s6 = inlined_call_operand.vmem [shape: f32[1,128], index: 6, kind: input, shape index: {}]
  %s7 = inlined_call_operand.vmem [shape: f32[1,128], index: 7, kind: input, shape index: {}]
  %s8 = inlined_call_operand.vmem [shape: f32[1,128], index: 8, kind: input, shape index: {}]
  %s9 = inlined_call_operand.vmem [shape: f32[1,128], index: 9, kind: input, shape index: {}]
  %s10 = inlined_call_operand.hbm [shape: f32[512,128], index: 10, kind: output, shape index: {}]
  %s11 = sld [smem:[#allocation0]]
  $region66: #{tpu_custom_call.1} parent=0
    _
  %s13 = ssub.s32 1, %s11
  %s14 = scalar_select 0, %s13, %s11
  $region1: #{tpu_custom_call.1} parent=0
    #allocation4 [shape = 'u8[262144]{0}', space=vmem, size = 0x40000, scoped, tag = 'input window, operand 0, single buffered']
    #allocation5 [shape = 's32[1]{0}', space=sflag, size = 0x4, scoped, tag = 'scoped memory for tpu_custom_call.1']
    #allocation6 [shape = 's32[1]{0}', space=sflag, size = 0x4, scoped, tag = 'scoped memory for tpu_custom_call.1']
    #allocation7 [shape = 'u8[65536]{0}', space=vmem, size = 0x10000, scoped, tag = 'input window, operand 1, single buffered']
    #allocation8 [shape = 's32[1]{0}', space=sflag, size = 0x4, scoped, tag = 'scoped memory for tpu_custom_call.1']
    #allocation9 [shape = 'u8[589824]{0}', space=vmem, size = 0x90000, scoped, tag = 'input window, operand 2, single buffered']
    #allocation10 [shape = 'u8[65536]{0}', space=vmem, size = 0x10000, scoped, tag = 'input window, operand 3, single buffered']
    #allocation11 [shape = 's32[1]{0}', space=sflag, size = 0x4, scoped, tag = 'scoped memory for tpu_custom_call.1']
    #allocation12 [shape = 'u8[262144]{0}', space=vmem, size = 0x40000, scoped, tag = 'output window, operand 0, single buffered']
    %15 = vsyncpa [#allocation5], 0
    %16 = vsyncpa [#allocation8], 0
    %17 = vsyncpa [#allocation11], 0
    %18 = vsyncpa [#allocation6], 0
    // Predicated region
    $region2: #{tpu_custom_call.1} parent=1 // pred_check
      _
    $region3: #{tpu_custom_call.1} parent=1 // pred_check_branch
      %20 = sbr.rel (0) target = $region5
    $region4: #{tpu_custom_call.1} parent=1 // pred_region
      %s22 = ssub.s32 8192, 8192
      %23 = vsyncadd [#allocation5], %s22
      %s24 = sshll.u32 [#allocation4], 4
      %s25 = int_to_ptr.vmem [resolvable:$true] %s24
      %30 = dma.hbm_to_vmem [thread:$0]  %s0, 8192, %s25, [#allocation5], 128, 128, 8
    $region5: #{tpu_custom_call.1} parent=1 // pred_fallthru
      _
    // Predicated region
    $region6: #{tpu_custom_call.1} parent=1 // pred_check
      _
    $region7: #{tpu_custom_call.1} parent=1 // pred_check_branch
      %32 = sbr.rel (0) target = $region9
    $region8: #{tpu_custom_call.1} parent=1 // pred_region
      %s34 = ssub.s32 2048, 2048
      %35 = vsyncadd [#allocation8], %s34
      %s36 = sshll.u32 [#allocation7], 4
      %s37 = int_to_ptr.vmem [resolvable:$true] %s36
      %42 = dma.hbm_to_vmem [thread:$0]  %s1, 2048, %s37, [#allocation8], 128, 128, 8
    $region9: #{tpu_custom_call.1} parent=1 // pred_fallthru
      _
    // Predicated region
    $region10: #{tpu_custom_call.1} parent=1 // pred_check
      _
    $region11: #{tpu_custom_call.1} parent=1 // pred_check_branch
      %44 = sbr.rel (0) target = $region13
    $region12: #{tpu_custom_call.1} parent=1 // pred_region
      %s46 = ssub.s32 18432, 18432
      %47 = vsyncadd [#allocation8], %s46
      %s48 = sshll.u32 [#allocation9], 4
      %s49 = int_to_ptr.vmem [resolvable:$true] %s48
      %54 = dma.hbm_to_vmem [thread:$0]  %s2, 18432, %s49, [#allocation8], 128, 128, 8
    $region13: #{tpu_custom_call.1} parent=1 // pred_fallthru
      _
    // Predicated region
    $region14: #{tpu_custom_call.1} parent=1 // pred_check
      _
    $region15: #{tpu_custom_call.1} parent=1 // pred_check_branch
      %56 = sbr.rel (0) target = $region17
    $region16: #{tpu_custom_call.1} parent=1 // pred_region
      %s58 = ssub.s32 2048, 2048
      %59 = vsyncadd [#allocation11], %s58
      %s60 = sshll.u32 [#allocation10], 4
      %s61 = int_to_ptr.vmem [resolvable:$true] %s60
      %66 = dma.hbm_to_vmem [thread:$0]  %s3, 2048, %s61, [#allocation11], 128, 128, 8
    $region17: #{tpu_custom_call.1} parent=1 // pred_fallthru
      _
    // Predicated region
    $region18: #{tpu_custom_call.1} parent=1 // pred_check
      _
    $region19: #{tpu_custom_call.1} parent=1 // pred_check_branch
      %68 = sbr.rel (0) target = $region21
    $region20: #{tpu_custom_call.1} parent=1 // pred_region
      _
    $region21: #{tpu_custom_call.1} parent=1 // pred_fallthru
      _
    // Predicated region
    $region22: #{tpu_custom_call.1} parent=1 // pred_check
      _
    $region23: #{tpu_custom_call.1} parent=1 // pred_check_branch
      %70 = sbr.rel (0) target = $region25
    $region24: #{tpu_custom_call.1} parent=1 // pred_region
      _
    $region25: #{tpu_custom_call.1} parent=1 // pred_fallthru
      _
    // Predicated region
    $region26: #{tpu_custom_call.1} parent=1 // pred_check
      _
    $region27: #{tpu_custom_call.1} parent=1 // pred_check_branch
      %72 = sbr.rel (0) target = $region29
    $region28: #{tpu_custom_call.1} parent=1 // pred_region
      _
    $region29: #{tpu_custom_call.1} parent=1 // pred_fallthru
      _
    // Predicated region
    $region30: #{tpu_custom_call.1} parent=1 // pred_check
      _
    $region31: #{tpu_custom_call.1} parent=1 // pred_check_branch
      %74 = sbr.rel (0) target = $region33
    $region32: #{tpu_custom_call.1} parent=1 // pred_region
      _
    $region33: #{tpu_custom_call.1} parent=1 // pred_fallthru
      _
    // Predicated region
    $region34: #{tpu_custom_call.1} parent=1 // pred_check
      _
    $region35: #{tpu_custom_call.1} parent=1 // pred_check_branch
      %76 = sbr.rel (0) target = $region37
    $region36: #{tpu_custom_call.1} parent=1 // pred_region
      _
    $region37: #{tpu_custom_call.1} parent=1 // pred_fallthru
      _
    // Predicated region
    $region38: #{tpu_custom_call.1} parent=1 // pred_check
      _
    $region39: #{tpu_custom_call.1} parent=1 // pred_check_branch
      %78 = sbr.rel (0) target = $region41
    $region40: #{tpu_custom_call.1} parent=1 // pred_region
      _
    $region41: #{tpu_custom_call.1} parent=1 // pred_fallthru
      _
    // Predicated region
    $region42: #{tpu_custom_call.1} parent=1 // pred_check
      _
    $region43: #{tpu_custom_call.1} parent=1 // pred_check_branch
      %80 = sbr.rel (0) target = $region45
    $region44: #{tpu_custom_call.1} parent=1 // pred_region
      %81 = dma.done [#allocation5], 8192
    $region45: #{tpu_custom_call.1} parent=1 // pred_fallthru
      _
    // Predicated region
    $region46: #{tpu_custom_call.1} parent=1 // pred_check
      _
    $region47: #{tpu_custom_call.1} parent=1 // pred_check_branch
      %83 = sbr.rel (0) target = $region49
    $region48: #{tpu_custom_call.1} parent=1 // pred_region
      %84 = dma.done [#allocation8], 2048
    $region49: #{tpu_custom_call.1} parent=1 // pred_fallthru
      _
    // Predicated region
    $region50: #{tpu_custom_call.1} parent=1 // pred_check
      _
    $region51: #{tpu_custom_call.1} parent=1 // pred_check_branch
      %86 = sbr.rel (0) target = $region53
    $region52: #{tpu_custom_call.1} parent=1 // pred_region
      %87 = dma.done [#allocation8], 18432
    $region53: #{tpu_custom_call.1} parent=1 // pred_fallthru
      _
    // Predicated region
    $region54: #{tpu_custom_call.1} parent=1 // pred_check
      _
    $region55: #{tpu_custom_call.1} parent=1 // pred_check_branch
      %89 = sbr.rel (0) target = $region57
    $region56: #{tpu_custom_call.1} parent=1 // pred_region
      %90 = dma.done [#allocation11], 2048
    $region57: #{tpu_custom_call.1} parent=1 // pred_fallthru
      _
    %v91 = vld [vmem:[#allocation4] sm:$0xff]
    %v92 = vld [vmem:[#allocation4 + $0x8] sm:$0xff]
    %v93 = vld [vmem:[#allocation4 + $0x10] sm:$0xff]
    %v94 = vld [vmem:[#allocation4 + $0x18] sm:$0xff]
    %v95 = vld [vmem:[#allocation4 + $0x20] sm:$0xff]
    %v96 = vld [vmem:[#allocation4 + $0x28] sm:$0xff]
    %v97 = vld [vmem:[#allocation4 + $0x30] sm:$0xff]
    %v98 = vld [vmem:[#allocation4 + $0x38] sm:$0xff]
    %v99 = vld [vmem:[#allocation4 + $0x40] sm:$0xff]
    %v100 = vld [vmem:[#allocation4 + $0x48] sm:$0xff]
    %v101 = vld [vmem:[#allocation4 + $0x50] sm:$0xff]
    %v102 = vld [vmem:[#allocation4 + $0x58] sm:$0xff]
    %v103 = vld [vmem:[#allocation4 + $0x60] sm:$0xff]
    %v104 = vld [vmem:[#allocation4 + $0x68] sm:$0xff]
    %v105 = vld [vmem:[#allocation4 + $0x70] sm:$0xff]
    %v106 = vld [vmem:[#allocation4 + $0x78] sm:$0xff]
    %v107 = vld [vmem:[#allocation4 + $0x80] sm:$0xff]
    %v108 = vld [vmem:[#allocation4 + $0x88] sm:$0xff]
    %v109 = vld [vmem:[#allocation4 + $0x90] sm:$0xff]
    %v110 = vld [vmem:[#allocation4 + $0x98] sm:$0xff]
    %v111 = vld [vmem:[#allocation4 + $0xa0] sm:$0xff]
    %v112 = vld [vmem:[#allocation4 + $0xa8] sm:$0xff]
    %v113 = vld [vmem:[#allocation4 + $0xb0] sm:$0xff]
    %v114 = vld [vmem:[#allocation4 + $0xb8] sm:$0xff]
    %v115 = vld [vmem:[#allocation4 + $0xc0] sm:$0xff]
    %v116 = vld [vmem:[#allocation4 + $0xc8] sm:$0xff]
    %v117 = vld [vmem:[#allocation4 + $0xd0] sm:$0xff]
    %v118 = vld [vmem:[#allocation4 + $0xd8] sm:$0xff]
    %v119 = vld [vmem:[#allocation4 + $0xe0] sm:$0xff]
    %v120 = vld [vmem:[#allocation4 + $0xe8] sm:$0xff]
    %v121 = vld [vmem:[#allocation4 + $0xf0] sm:$0xff]
    %v122 = vld [vmem:[#allocation4 + $0xf8] sm:$0xff]
    %v123 = vld [vmem:[#allocation4 + $0x100] sm:$0xff]
    %v124 = vld [vmem:[#allocation4 + $0x108] sm:$0xff]
    %v125 = vld [vmem:[#allocation4 + $0x110] sm:$0xff]
    %v126 = vld [vmem:[#allocation4 + $0x118] sm:$0xff]
    %v127 = vld [vmem:[#allocation4 + $0x120] sm:$0xff]
    %v128 = vld [vmem:[#allocation4 + $0x128] sm:$0xff]
    %v129 = vld [vmem:[#allocation4 + $0x130] sm:$0xff]
    %v130 = vld [vmem:[#allocation4 + $0x138] sm:$0xff]
    %v131 = vld [vmem:[#allocation4 + $0x140] sm:$0xff]
    %v132 = vld [vmem:[#allocation4 + $0x148] sm:$0xff]
    %v133 = vld [vmem:[#allocation4 + $0x150] sm:$0xff]
    %v134 = vld [vmem:[#allocation4 + $0x158] sm:$0xff]
    %v135 = vld [vmem:[#allocation4 + $0x160] sm:$0xff]
    %v136 = vld [vmem:[#allocation4 + $0x168] sm:$0xff]
    %v137 = vld [vmem:[#allocation4 + $0x170] sm:$0xff]
    %v138 = vld [vmem:[#allocation4 + $0x178] sm:$0xff]
    %v139 = vld [vmem:[#allocation4 + $0x180] sm:$0xff]
    %v140 = vld [vmem:[#allocation4 + $0x188] sm:$0xff]
    %v141 = vld [vmem:[#allocation4 + $0x190] sm:$0xff]
    %v142 = vld [vmem:[#allocation4 + $0x198] sm:$0xff]
    %v143 = vld [vmem:[#allocation4 + $0x1a0] sm:$0xff]
    %v144 = vld [vmem:[#allocation4 + $0x1a8] sm:$0xff]
    %v145 = vld [vmem:[#allocation4 + $0x1b0] sm:$0xff]
    %v146 = vld [vmem:[#allocation4 + $0x1b8] sm:$0xff]
    %v147 = vld [vmem:[#allocation4 + $0x1c0] sm:$0xff]
    %v148 = vld [vmem:[#allocation4 + $0x1c8] sm:$0xff]
    %v149 = vld [vmem:[#allocation4 + $0x1d0] sm:$0xff]
    %v150 = vld [vmem:[#allocation4 + $0x1d8] sm:$0xff]
    %v151 = vld [vmem:[#allocation4 + $0x1e0] sm:$0xff]
    %v152 = vld [vmem:[#allocation4 + $0x1e8] sm:$0xff]
    %v153 = vld [vmem:[#allocation4 + $0x1f0] sm:$0xff]
    %v154 = vld [vmem:[#allocation4 + $0x1f8] sm:$0xff]
    %v155 = vld [vmem:[#allocation7] sm:$0xff]
    %v156 = vld [vmem:[#allocation7 + $0x8] sm:$0xff]
    %v157 = vld [vmem:[#allocation7 + $0x10] sm:$0xff]
    %v158 = vld [vmem:[#allocation7 + $0x18] sm:$0xff]
    %v159 = vld [vmem:[#allocation7 + $0x20] sm:$0xff]
    %v160 = vld [vmem:[#allocation7 + $0x28] sm:$0xff]
    %v161 = vld [vmem:[#allocation7 + $0x30] sm:$0xff]
    %v162 = vld [vmem:[#allocation7 + $0x38] sm:$0xff]
    %v163 = vld [vmem:[#allocation7 + $0x40] sm:$0xff]
    %v164 = vld [vmem:[#allocation7 + $0x48] sm:$0xff]
    %v165 = vld [vmem:[#allocation7 + $0x50] sm:$0xff]
    %v166 = vld [vmem:[#allocation7 + $0x58] sm:$0xff]
    %v167 = vld [vmem:[#allocation7 + $0x60] sm:$0xff]
    %v168 = vld [vmem:[#allocation7 + $0x68] sm:$0xff]
    %v169 = vld [vmem:[#allocation7 + $0x70] sm:$0xff]
    %v170 = vld [vmem:[#allocation7 + $0x78] sm:$0xff]
    %171 = vmatprep.subr.mxu0 0.0
    %172 = vmatpush1.msra.mxu0 %v155
    %173 = vmatprep.subr.mxu0 0.0
    %174 = vmatpush1.msra.mxu0 %v156
    %175 = vmatprep.subr.mxu0 0.0
    %176 = vmatpush1.msra.mxu0 %v157
    %177 = vmatprep.subr.mxu0 0.0
    %178 = vmatpush1.msra.mxu0 %v158
    %179 = vmatprep.subr.mxu0 0.0
    %180 = vmatpush1.msra.mxu0 %v159
    %181 = vmatprep.subr.mxu0 0.0
    %182 = vmatpush1.msra.mxu0 %v160
    %183 = vmatprep.subr.mxu0 0.0
    %184 = vmatpush1.msra.mxu0 %v161
    %185 = vmatprep.subr.mxu0 0.0
    %186 = vmatpush1.msra.mxu0 %v162
    %187 = vmatprep.subr.mxu0 0.0
    %188 = vmatpush1.msra.mxu0 %v163
    %189 = vmatprep.subr.mxu0 0.0
    %190 = vmatpush1.msra.mxu0 %v164
    %191 = vmatprep.subr.mxu0 0.0
    %192 = vmatpush1.msra.mxu0 %v165
    %193 = vmatprep.subr.mxu0 0.0
    %194 = vmatpush1.msra.mxu0 %v166
    %195 = vmatprep.subr.mxu0 0.0
    %196 = vmatpush1.msra.mxu0 %v167
    %197 = vmatprep.subr.mxu0 0.0
    %198 = vmatpush1.msra.mxu0 %v168
    %199 = vmatprep.subr.mxu0 0.0
    %200 = vmatpush1.msra.mxu0 %v169
    %201 = vmatprep.subr.mxu0 0.0
    %202 = vmatpush1.msra.mxu0 %v170
    %203 = vmatprep.subr.mxu0 0.0
    %204 = vmatpush1.msra.mxu0 0.0
    %205 = vmatprep.subr.mxu0 0.0
    %206 = vmatpush1.msra.mxu0 0.0
    %207 = vmatprep.subr.mxu0 0.0
    %208 = vmatpush1.msra.mxu0 0.0
    %209 = vmatprep.subr.mxu0 0.0
    %210 = vmatpush1.msra.mxu0 0.0
    %211 = vmatprep.subr.mxu0 0.0
    %212 = vmatpush1.msra.mxu0 0.0
    %213 = vmatprep.subr.mxu0 0.0
    %214 = vmatpush1.msra.mxu0 0.0
    %215 = vmatprep.subr.mxu0 0.0
    %216 = vmatpush1.msra.mxu0 0.0
    %217 = vmatprep.subr.mxu0 0.0
    %218 = vmatpush1.msra.mxu0 0.0
    %219 = vmatprep.subr.mxu0 0.0
    %220 = vmatpush1.msra.mxu0 0.0
    %221 = vmatprep.subr.mxu0 0.0
    %222 = vmatpush1.msra.mxu0 0.0
    %223 = vmatprep.subr.mxu0 0.0
    %224 = vmatpush1.msra.mxu0 0.0
    %225 = vmatprep.subr.mxu0 0.0
    %226 = vmatpush1.msra.mxu0 0.0
    %227 = vmatprep.subr.mxu0 0.0
    %228 = vmatpush1.msra.mxu0 0.0
    %229 = vmatprep.subr.mxu0 0.0
    %230 = vmatpush1.msra.mxu0 0.0
    %231 = vmatprep.subr.mxu0 0.0
    %232 = vmatpush1.msra.mxu0 0.0
    %233 = vmatprep.subr.mxu0 0.0
    %234 = vmatpush1.msra.mxu0 0.0
    %235 = vmatprep.mubr.f32.mxu0 0.0
    %236 = vmatmul.mubr.f32.gmra.mrb[0].mxu0 %v91
    %v237 = vpop.f32.mrb[0].mxu0
    %v238 = vadd.f32 0.0, %v237
    %v239 = vpop.f32.mrb[0].mxu0
    %240 = vmatprep.mubr.f32.mxu0 0.0
    %241 = vmatmul.mubr.f32.gmra.mrb[0].mxu0 %v92
    %v242 = vpop.f32.mrb[0].mxu0
    %v243 = vadd.f32 0.0, %v242
    %v244 = vpop.f32.mrb[0].mxu0
    %245 = vmatprep.mubr.f32.mxu0 0.0
    %246 = vmatmul.mubr.f32.gmra.mrb[0].mxu0 %v93
    %v247 = vpop.f32.mrb[0].mxu0
    %v248 = vadd.f32 0.0, %v247
    %v249 = vpop.f32.mrb[0].mxu0
    %250 = vmatprep.mubr.f32.mxu0 0.0
    %251 = vmatmul.mubr.f32.gmra.mrb[0].mxu0 %v94
    %v252 = vpop.f32.mrb[0].mxu0
    %v253 = vadd.f32 0.0, %v252
    %v254 = vpop.f32.mrb[0].mxu0
    %255 = vmatprep.mubr.f32.mxu0 0.0
    %256 = vmatmul.mubr.f32.gmra.mrb[0].mxu0 %v95
    %v257 = vpop.f32.mrb[0].mxu0
    %v258 = vadd.f32 0.0, %v257
    %v259 = vpop.f32.mrb[0].mxu0
    %260 = vmatprep.mubr.f32.mxu0 0.0
    %261 = vmatmul.mubr.f32.gmra.mrb[0].mxu0 %v96
    %v262 = vpop.f32.mrb[0].mxu0
    %v263 = vadd.f32 0.0, %v262
    %v264 = vpop.f32.mrb[0].mxu0
    %265 = vmatprep.mubr.f32.mxu0 0.0
    %266 = vmatmul.mubr.f32.gmra.mrb[0].mxu0 %v97
    %v267 = vpop.f32.mrb[0].mxu0
    %v268 = vadd.f32 0.0, %v267
    %v269 = vpop.f32.mrb[0].mxu0
    %270 = vmatprep.mubr.f32.mxu0 0.0
    %271 = vmatmul.mubr.f32.gmra.mrb[0].mxu0 %v98
    %v272 = vpop.f32.mrb[0].mxu0
    %v273 = vadd.f32 0.0, %v272
    %v274 = vpop.f32.mrb[0].mxu0
    %275 = vmatprep.mubr.f32.mxu0 0.0
    %276 = vmatmul.mubr.f32.gmra.mrb[0].mxu0 %v99
    %v277 = vpop.f32.mrb[0].mxu0
    %v278 = vadd.f32 0.0, %v277
    %v279 = vpop.f32.mrb[0].mxu0
    %280 = vmatprep.mubr.f32.mxu0 0.0
    %281 = vmatmul.mubr.f32.gmra.mrb[0].mxu0 %v100
    %v282 = vpop.f32.mrb[0].mxu0
    %v283 = vadd.f32 0.0, %v282
    %v284 = vpop.f32.mrb[0].mxu0
    %285 = vmatprep.mubr.f32.mxu0 0.0
    %286 = vmatmul.mubr.f32.gmra.mrb[0].mxu0 %v101
    %v287 = vpop.f32.mrb[0].mxu0
    %v288 = vadd.f32 0.0, %v287
    %v289 = vpop.f32.mrb[0].mxu0
    %290 = vmatprep.mubr.f32.mxu0 0.0
    %291 = vmatmul.mubr.f32.gmra.mrb[0].mxu0 %v102
    %v292 = vpop.f32.mrb[0].mxu0
    %v293 = vadd.f32 0.0, %v292
    %v294 = vpop.f32.mrb[0].mxu0
    %295 = vmatprep.mubr.f32.mxu0 0.0
    %296 = vmatmul.mubr.f32.gmra.mrb[0].mxu0 %v103
    %v297 = vpop.f32.mrb[0].mxu0
    %v298 = vadd.f32 0.0, %v297
    %v299 = vpop.f32.mrb[0].mxu0
    %300 = vmatprep.mubr.f32.mxu0 0.0
    %301 = vmatmul.mubr.f32.gmra.mrb[0].mxu0 %v104
    %v302 = vpop.f32.mrb[0].mxu0
    %v303 = vadd.f32 0.0, %v302
    %v304 = vpop.f32.mrb[0].mxu0
    %305 = vmatprep.mubr.f32.mxu0 0.0
    %306 = vmatmul.mubr.f32.gmra.mrb[0].mxu0 %v105
    %v307 = vpop.f32.mrb[0].mxu0
    %v308 = vadd.f32 0.0, %v307
    %v309 = vpop.f32.mrb[0].mxu0
    %310 = vmatprep.mubr.f32.mxu0 0.0
    %311 = vmatmul.mubr.f32.gmra.mrb[0].mxu0 %v106
    %v312 = vpop.f32.mrb[0].mxu0
    %v313 = vadd.f32 0.0, %v312
    %v314 = vpop.f32.mrb[0].mxu0
    %315 = vmatprep.mubr.f32.mxu0 0.0
    %316 = vmatmul.mubr.f32.gmra.mrb[0].mxu0 %v107
    %v317 = vpop.f32.mrb[0].mxu0
    %v318 = vadd.f32 0.0, %v317
    %v319 = vpop.f32.mrb[0].mxu0
    %320 = vmatprep.mubr.f32.mxu0 0.0
    %321 = vmatmul.mubr.f32.gmra.mrb[0].mxu0 %v108
    %v322 = vpop.f32.mrb[0].mxu0
    %v323 = vadd.f32 0.0, %v322
    %v324 = vpop.f32.mrb[0].mxu0
    %325 = vmatprep.mubr.f32.mxu0 0.0
    %326 = vmatmul.mubr.f32.gmra.mrb[0].mxu0 %v109
    %v327 = vpop.f32.mrb[0].mxu0
    %v328 = vadd.f32 0.0, %v327
    %v329 = vpop.f32.mrb[0].mxu0
    %330 = vmatprep.mubr.f32.mxu0 0.0
    %331 = vmatmul.mubr.f32.gmra.mrb[0].mxu0 %v110
    %v332 = vpop.f32.mrb[0].mxu0
    %v333 = vadd.f32 0.0, %v332
    %v334 = vpop.f32.mrb[0].mxu0
    %335 = vmatprep.mubr.f32.mxu0 0.0
    %336 = vmatmul.mubr.f32.gmra.mrb[0].mxu0 %v111
    %v337 = vpop.f32.mrb[0].mxu0
    %v338 = vadd.f32 0.0, %v337
    %v339 = vpop.f32.mrb[0].mxu0
    %340 = vmatprep.mubr.f32.mxu0 0.0
    %341 = vmatmul.mubr.f32.gmra.mrb[0].mxu0 %v112
    %v342 = vpop.f32.mrb[0].mxu0
    %v343 = vadd.f32 0.0, %v342
    %v344 = vpop.f32.mrb[0].mxu0
    %345 = vmatprep.mubr.f32.mxu0 0.0
    %346 = vmatmul.mubr.f32.gmra.mrb[0].mxu0 %v113
    %v347 = vpop.f32.mrb[0].mxu0
    %v348 = vadd.f32 0.0, %v347
    %v349 = vpop.f32.mrb[0].mxu0
    %350 = vmatprep.mubr.f32.mxu0 0.0
    %351 = vmatmul.mubr.f32.gmra.mrb[0].mxu0 %v114
    %v352 = vpop.f32.mrb[0].mxu0
    %v353 = vadd.f32 0.0, %v352
    %v354 = vpop.f32.mrb[0].mxu0
    %355 = vmatprep.mubr.f32.mxu0 0.0
    %356 = vmatmul.mubr.f32.gmra.mrb[0].mxu0 %v115
    %v357 = vpop.f32.mrb[0].mxu0
    %v358 = vadd.f32 0.0, %v357
    %v359 = vpop.f32.mrb[0].mxu0
    %360 = vmatprep.mubr.f32.mxu0 0.0
    %361 = vmatmul.mubr.f32.gmra.mrb[0].mxu0 %v116
    %v362 = vpop.f32.mrb[0].mxu0
    %v363 = vadd.f32 0.0, %v362
    %v364 = vpop.f32.mrb[0].mxu0
    %365 = vmatprep.mubr.f32.mxu0 0.0
    %366 = vmatmul.mubr.f32.gmra.mrb[0].mxu0 %v117
    %v367 = vpop.f32.mrb[0].mxu0
    %v368 = vadd.f32 0.0, %v367
    %v369 = vpop.f32.mrb[0].mxu0
    %370 = vmatprep.mubr.f32.mxu0 0.0
    %371 = vmatmul.mubr.f32.gmra.mrb[0].mxu0 %v118
    %v372 = vpop.f32.mrb[0].mxu0
    %v373 = vadd.f32 0.0, %v372
    %v374 = vpop.f32.mrb[0].mxu0
    %375 = vmatprep.mubr.f32.mxu0 0.0
    %376 = vmatmul.mubr.f32.gmra.mrb[0].mxu0 %v119
    %v377 = vpop.f32.mrb[0].mxu0
    %v378 = vadd.f32 0.0, %v377
    %v379 = vpop.f32.mrb[0].mxu0
    %380 = vmatprep.mubr.f32.mxu0 0.0
    %381 = vmatmul.mubr.f32.gmra.mrb[0].mxu0 %v120
    %v382 = vpop.f32.mrb[0].mxu0
    %v383 = vadd.f32 0.0, %v382
    %v384 = vpop.f32.mrb[0].mxu0
    %385 = vmatprep.mubr.f32.mxu0 0.0
    %386 = vmatmul.mubr.f32.gmra.mrb[0].mxu0 %v121
    %v387 = vpop.f32.mrb[0].mxu0
    %v388 = vadd.f32 0.0, %v387
    %v389 = vpop.f32.mrb[0].mxu0
    %390 = vmatprep.mubr.f32.mxu0 0.0
    %391 = vmatmul.mubr.f32.gmra.mrb[0].mxu0 %v122
    %v392 = vpop.f32.mrb[0].mxu0
    %v393 = vadd.f32 0.0, %v392
    %v394 = vpop.f32.mrb[0].mxu0
    %395 = vmatprep.mubr.f32.mxu0 0.0
    %396 = vmatmul.mubr.f32.gmra.mrb[0].mxu0 %v123
    %v397 = vpop.f32.mrb[0].mxu0
    %v398 = vadd.f32 0.0, %v397
    %v399 = vpop.f32.mrb[0].mxu0
    %400 = vmatprep.mubr.f32.mxu0 0.0
    %401 = vmatmul.mubr.f32.gmra.mrb[0].mxu0 %v124
    %v402 = vpop.f32.mrb[0].mxu0
    %v403 = vadd.f32 0.0, %v402
    %v404 = vpop.f32.mrb[0].mxu0
    %405 = vmatprep.mubr.f32.mxu0 0.0
    %406 = vmatmul.mubr.f32.gmra.mrb[0].mxu0 %v125
    %v407 = vpop.f32.mrb[0].mxu0
    %v408 = vadd.f32 0.0, %v407
    %v409 = vpop.f32.mrb[0].mxu0
    %410 = vmatprep.mubr.f32.mxu0 0.0
    %411 = vmatmul.mubr.f32.gmra.mrb[0].mxu0 %v126
    %v412 = vpop.f32.mrb[0].mxu0
    %v413 = vadd.f32 0.0, %v412
    %v414 = vpop.f32.mrb[0].mxu0
    %415 = vmatprep.mubr.f32.mxu0 0.0
    %416 = vmatmul.mubr.f32.gmra.mrb[0].mxu0 %v127
    %v417 = vpop.f32.mrb[0].mxu0
    %v418 = vadd.f32 0.0, %v417
    %v419 = vpop.f32.mrb[0].mxu0
    %420 = vmatprep.mubr.f32.mxu0 0.0
    %421 = vmatmul.mubr.f32.gmra.mrb[0].mxu0 %v128
    %v422 = vpop.f32.mrb[0].mxu0
    %v423 = vadd.f32 0.0, %v422
    %v424 = vpop.f32.mrb[0].mxu0
    %425 = vmatprep.mubr.f32.mxu0 0.0
    %426 = vmatmul.mubr.f32.gmra.mrb[0].mxu0 %v129
    %v427 = vpop.f32.mrb[0].mxu0
    %v428 = vadd.f32 0.0, %v427
    %v429 = vpop.f32.mrb[0].mxu0
    %430 = vmatprep.mubr.f32.mxu0 0.0
    %431 = vmatmul.mubr.f32.gmra.mrb[0].mxu0 %v130
    %v432 = vpop.f32.mrb[0].mxu0
    %v433 = vadd.f32 0.0, %v432
    %v434 = vpop.f32.mrb[0].mxu0
    %435 = vmatprep.mubr.f32.mxu0 0.0
    %436 = vmatmul.mubr.f32.gmra.mrb[0].mxu0 %v131
    %v437 = vpop.f32.mrb[0].mxu0
    %v438 = vadd.f32 0.0, %v437
    %v439 = vpop.f32.mrb[0].mxu0
    %440 = vmatprep.mubr.f32.mxu0 0.0
    %441 = vmatmul.mubr.f32.gmra.mrb[0].mxu0 %v132
    %v442 = vpop.f32.mrb[0].mxu0
    %v443 = vadd.f32 0.0, %v442
    %v444 = vpop.f32.mrb[0].mxu0
    %445 = vmatprep.mubr.f32.mxu0 0.0
    %446 = vmatmul.mubr.f32.gmra.mrb[0].mxu0 %v133
    %v447 = vpop.f32.mrb[0].mxu0
    %v448 = vadd.f32 0.0, %v447
    %v449 = vpop.f32.mrb[0].mxu0
    %450 = vmatprep.mubr.f32.mxu0 0.0
    %451 = vmatmul.mubr.f32.gmra.mrb[0].mxu0 %v134
    %v452 = vpop.f32.mrb[0].mxu0
    %v453 = vadd.f32 0.0, %v452
    %v454 = vpop.f32.mrb[0].mxu0
    %455 = vmatprep.mubr.f32.mxu0 0.0
    %456 = vmatmul.mubr.f32.gmra.mrb[0].mxu0 %v135
    %v457 = vpop.f32.mrb[0].mxu0
    %v458 = vadd.f32 0.0, %v457
    %v459 = vpop.f32.mrb[0].mxu0
    %460 = vmatprep.mubr.f32.mxu0 0.0
    %461 = vmatmul.mubr.f32.gmra.mrb[0].mxu0 %v136
    %v462 = vpop.f32.mrb[0].mxu0
    %v463 = vadd.f32 0.0, %v462
    %v464 = vpop.f32.mrb[0].mxu0
    %465 = vmatprep.mubr.f32.mxu0 0.0
    %466 = vmatmul.mubr.f32.gmra.mrb[0].mxu0 %v137
    %v467 = vpop.f32.mrb[0].mxu0
    %v468 = vadd.f32 0.0, %v467
    %v469 = vpop.f32.mrb[0].mxu0
    %470 = vmatprep.mubr.f32.mxu0 0.0
    %471 = vmatmul.mubr.f32.gmra.mrb[0].mxu0 %v138
    %v472 = vpop.f32.mrb[0].mxu0
    %v473 = vadd.f32 0.0, %v472
    %v474 = vpop.f32.mrb[0].mxu0
    %475 = vmatprep.mubr.f32.mxu0 0.0
    %476 = vmatmul.mubr.f32.gmra.mrb[0].mxu0 %v139
    %v477 = vpop.f32.mrb[0].mxu0
    %v478 = vadd.f32 0.0, %v477
    %v479 = vpop.f32.mrb[0].mxu0
    %480 = vmatprep.mubr.f32.mxu0 0.0
    %481 = vmatmul.mubr.f32.gmra.mrb[0].mxu0 %v140
    %v482 = vpop.f32.mrb[0].mxu0
    %v483 = vadd.f32 0.0, %v482
    %v484 = vpop.f32.mrb[0].mxu0
    %485 = vmatprep.mubr.f32.mxu0 0.0
    %486 = vmatmul.mubr.f32.gmra.mrb[0].mxu0 %v141
    %v487 = vpop.f32.mrb[0].mxu0
    %v488 = vadd.f32 0.0, %v487
    %v489 = vpop.f32.mrb[0].mxu0
    %490 = vmatprep.mubr.f32.mxu0 0.0
    %491 = vmatmul.mubr.f32.gmra.mrb[0].mxu0 %v142
    %v492 = vpop.f32.mrb[0].mxu0
    %v493 = vadd.f32 0.0, %v492
    %v494 = vpop.f32.mrb[0].mxu0
    %495 = vmatprep.mubr.f32.mxu0 0.0
    %496 = vmatmul.mubr.f32.gmra.mrb[0].mxu0 %v143
    %v497 = vpop.f32.mrb[0].mxu0
    %v498 = vadd.f32 0.0, %v497
    %v499 = vpop.f32.mrb[0].mxu0
    %500 = vmatprep.mubr.f32.mxu0 0.0
    %501 = vmatmul.mubr.f32.gmra.mrb[0].mxu0 %v144
    %v502 = vpop.f32.mrb[0].mxu0
    %v503 = vadd.f32 0.0, %v502
    %v504 = vpop.f32.mrb[0].mxu0
    %505 = vmatprep.mubr.f32.mxu0 0.0
    %506 = vmatmul.mubr.f32.gmra.mrb[0].mxu0 %v145
    %v507 = vpop.f32.mrb[0].mxu0
    %v508 = vadd.f32 0.0, %v507
    %v509 = vpop.f32.mrb[0].mxu0
    %510 = vmatprep.mubr.f32.mxu0 0.0
    %511 = vmatmul.mubr.f32.gmra.mrb[0].mxu0 %v146
    %v512 = vpop.f32.mrb[0].mxu0
    %v513 = vadd.f32 0.0, %v512
    %v514 = vpop.f32.mrb[0].mxu0
    %515 = vmatprep.mubr.f32.mxu0 0.0
    %516 = vmatmul.mubr.f32.gmra.mrb[0].mxu0 %v147
    %v517 = vpop.f32.mrb[0].mxu0
    %v518 = vadd.f32 0.0, %v517
    %v519 = vpop.f32.mrb[0].mxu0
    %520 = vmatprep.mubr.f32.mxu0 0.0
    %521 = vmatmul.mubr.f32.gmra.mrb[0].mxu0 %v148
    %v522 = vpop.f32.mrb[0].mxu0
    %v523 = vadd.f32 0.0, %v522
    %v524 = vpop.f32.mrb[0].mxu0
    %525 = vmatprep.mubr.f32.mxu0 0.0
    %526 = vmatmul.mubr.f32.gmra.mrb[0].mxu0 %v149
    %v527 = vpop.f32.mrb[0].mxu0
    %v528 = vadd.f32 0.0, %v527
    %v529 = vpop.f32.mrb[0].mxu0
    %530 = vmatprep.mubr.f32.mxu0 0.0
    %531 = vmatmul.mubr.f32.gmra.mrb[0].mxu0 %v150
    %v532 = vpop.f32.mrb[0].mxu0
    %v533 = vadd.f32 0.0, %v532
    %v534 = vpop.f32.mrb[0].mxu0
    %535 = vmatprep.mubr.f32.mxu0 0.0
    %536 = vmatmul.mubr.f32.gmra.mrb[0].mxu0 %v151
    %v537 = vpop.f32.mrb[0].mxu0
    %v538 = vadd.f32 0.0, %v537
    %v539 = vpop.f32.mrb[0].mxu0
    %540 = vmatprep.mubr.f32.mxu0 0.0
    %541 = vmatmul.mubr.f32.gmra.mrb[0].mxu0 %v152
    %v542 = vpop.f32.mrb[0].mxu0
    %v543 = vadd.f32 0.0, %v542
    %v544 = vpop.f32.mrb[0].mxu0
    %545 = vmatprep.mubr.f32.mxu0 0.0
    %546 = vmatmul.mubr.f32.gmra.mrb[0].mxu0 %v153
    %v547 = vpop.f32.mrb[0].mxu0
    %v548 = vadd.f32 0.0, %v547
    %v549 = vpop.f32.mrb[0].mxu0
    %550 = vmatprep.mubr.f32.mxu0 0.0
    %551 = vmatmul.mubr.f32.gmra.mrb[0].mxu0 %v154
    %v552 = vpop.f32.mrb[0].mxu0
    %v553 = vadd.f32 0.0, %v552
    %v554 = vpop.f32.mrb[0].mxu0
    %555 = vdwg.mxu0
    %v556 = vld [vmem:[%s4] sm:$0x1]
    %v557 = vld [vmem:[%s5] sm:$0x1]
    %v558 = vadd.f32 %v238, %v243
    %v559 = vadd.f32 %v558, %v248
    %v560 = vadd.f32 %v559, %v253
    %v561 = vadd.f32 %v560, %v258
    %v562 = vadd.f32 %v561, %v263
    %v563 = vadd.f32 %v562, %v268
    %v564 = vadd.f32 %v563, %v273
    %v565 = vadd.f32 %v564, %v278
    %v566 = vadd.f32 %v565, %v283
    %v567 = vadd.f32 %v566, %v288
    %v568 = vadd.f32 %v567, %v293
    %v569 = vadd.f32 %v568, %v298
    %v570 = vadd.f32 %v569, %v303
    %v571 = vadd.f32 %v570, %v308
    %v572 = vadd.f32 %v571, %v313
    %v573 = vadd.f32 %v572, %v318
    %v574 = vadd.f32 %v573, %v323
    %v575 = vadd.f32 %v574, %v328
    %v576 = vadd.f32 %v575, %v333
    %v577 = vadd.f32 %v576, %v338
    %v578 = vadd.f32 %v577, %v343
    %v579 = vadd.f32 %v578, %v348
    %v580 = vadd.f32 %v579, %v353
    %v581 = vadd.f32 %v580, %v358
    %v582 = vadd.f32 %v581, %v363
    %v583 = vadd.f32 %v582, %v368
    %v584 = vadd.f32 %v583, %v373
    %v585 = vadd.f32 %v584, %v378
    %v586 = vadd.f32 %v585, %v383
    %v587 = vadd.f32 %v586, %v388
    %v588 = vadd.f32 %v587, %v393
    %v589 = vadd.f32 %v588, %v398
    %v590 = vadd.f32 %v589, %v403
    %v591 = vadd.f32 %v590, %v408
    %v592 = vadd.f32 %v591, %v413
    %v593 = vadd.f32 %v592, %v418
    %v594 = vadd.f32 %v593, %v423
    %v595 = vadd.f32 %v594, %v428
    %v596 = vadd.f32 %v595, %v433
    %v597 = vadd.f32 %v596, %v438
    %v598 = vadd.f32 %v597, %v443
    %v599 = vadd.f32 %v598, %v448
    %v600 = vadd.f32 %v599, %v453
    %v601 = vadd.f32 %v600, %v458
    %v602 = vadd.f32 %v601, %v463
    %v603 = vadd.f32 %v602, %v468
    %v604 = vadd.f32 %v603, %v473
    %v605 = vadd.f32 %v604, %v478
    %v606 = vadd.f32 %v605, %v483
    %v607 = vadd.f32 %v606, %v488
    %v608 = vadd.f32 %v607, %v493
    %v609 = vadd.f32 %v608, %v498
    %v610 = vadd.f32 %v609, %v503
    %v611 = vadd.f32 %v610, %v508
    %v612 = vadd.f32 %v611, %v513
    %v613 = vadd.f32 %v612, %v518
    %v614 = vadd.f32 %v613, %v523
    %v615 = vadd.f32 %v614, %v528
    %v616 = vadd.f32 %v615, %v533
    %v617 = vadd.f32 %v616, %v538
    %v618 = vadd.f32 %v617, %v543
    %v619 = vadd.f32 %v618, %v548
    %v620 = vadd.f32 %v619, %v553
    %v621 = vrot.slane %v620, 4
    %v622 = vadd.f32 %v620, %v621
    %v623 = vrot.slane %v622, 2
    %v624 = vadd.f32 %v622, %v623
    %v625 = vrot.slane %v624, 1
    %v626 = vadd.f32 %v624, %v625
    %v627 = vmul.f32 %v238, %v238
    %v628 = vmul.f32 %v243, %v243
    %v629 = vmul.f32 %v248, %v248
    %v630 = vmul.f32 %v253, %v253
    %v631 = vmul.f32 %v258, %v258
    %v632 = vmul.f32 %v263, %v263
    %v633 = vmul.f32 %v268, %v268
    %v634 = vmul.f32 %v273, %v273
    %v635 = vmul.f32 %v278, %v278
    %v636 = vmul.f32 %v283, %v283
    %v637 = vmul.f32 %v288, %v288
    %v638 = vmul.f32 %v293, %v293
    %v639 = vmul.f32 %v298, %v298
    %v640 = vmul.f32 %v303, %v303
    %v641 = vmul.f32 %v308, %v308
    %v642 = vmul.f32 %v313, %v313
    %v643 = vmul.f32 %v318, %v318
    %v644 = vmul.f32 %v323, %v323
    %v645 = vmul.f32 %v328, %v328
    %v646 = vmul.f32 %v333, %v333
    %v647 = vmul.f32 %v338, %v338
    %v648 = vmul.f32 %v343, %v343
    %v649 = vmul.f32 %v348, %v348
    %v650 = vmul.f32 %v353, %v353
    %v651 = vmul.f32 %v358, %v358
    %v652 = vmul.f32 %v363, %v363
    %v653 = vmul.f32 %v368, %v368
    %v654 = vmul.f32 %v373, %v373
    %v655 = vmul.f32 %v378, %v378
    %v656 = vmul.f32 %v383, %v383
    %v657 = vmul.f32 %v388, %v388
    %v658 = vmul.f32 %v393, %v393
    %v659 = vmul.f32 %v398, %v398
    %v660 = vmul.f32 %v403, %v403
    %v661 = vmul.f32 %v408, %v408
    %v662 = vmul.f32 %v413, %v413
    %v663 = vmul.f32 %v418, %v418
    %v664 = vmul.f32 %v423, %v423
    %v665 = vmul.f32 %v428, %v428
    %v666 = vmul.f32 %v433, %v433
    %v667 = vmul.f32 %v438, %v438
    %v668 = vmul.f32 %v443, %v443
    %v669 = vmul.f32 %v448, %v448
    %v670 = vmul.f32 %v453, %v453
    %v671 = vmul.f32 %v458, %v458
    %v672 = vmul.f32 %v463, %v463
    %v673 = vmul.f32 %v468, %v468
    %v674 = vmul.f32 %v473, %v473
    %v675 = vmul.f32 %v478, %v478
    %v676 = vmul.f32 %v483, %v483
    %v677 = vmul.f32 %v488, %v488
    %v678 = vmul.f32 %v493, %v493
    %v679 = vmul.f32 %v498, %v498
    %v680 = vmul.f32 %v503, %v503
    %v681 = vmul.f32 %v508, %v508
    %v682 = vmul.f32 %v513, %v513
    %v683 = vmul.f32 %v518, %v518
    %v684 = vmul.f32 %v523, %v523
    %v685 = vmul.f32 %v528, %v528
    %v686 = vmul.f32 %v533, %v533
    %v687 = vmul.f32 %v538, %v538
    %v688 = vmul.f32 %v543, %v543
    %v689 = vmul.f32 %v548, %v548
    %v690 = vmul.f32 %v553, %v553
    %v691 = vadd.f32 %v627, %v628
    %v692 = vadd.f32 %v691, %v629
    %v693 = vadd.f32 %v692, %v630
    %v694 = vadd.f32 %v693, %v631
    %v695 = vadd.f32 %v694, %v632
    %v696 = vadd.f32 %v695, %v633
    %v697 = vadd.f32 %v696, %v634
    %v698 = vadd.f32 %v697, %v635
    %v699 = vadd.f32 %v698, %v636
    %v700 = vadd.f32 %v699, %v637
    %v701 = vadd.f32 %v700, %v638
    %v702 = vadd.f32 %v701, %v639
    %v703 = vadd.f32 %v702, %v640
    %v704 = vadd.f32 %v703, %v641
    %v705 = vadd.f32 %v704, %v642
    %v706 = vadd.f32 %v705, %v643
    %v707 = vadd.f32 %v706, %v644
    %v708 = vadd.f32 %v707, %v645
    %v709 = vadd.f32 %v708, %v646
    %v710 = vadd.f32 %v709, %v647
    %v711 = vadd.f32 %v710, %v648
    %v712 = vadd.f32 %v711, %v649
    %v713 = vadd.f32 %v712, %v650
    %v714 = vadd.f32 %v713, %v651
    %v715 = vadd.f32 %v714, %v652
    %v716 = vadd.f32 %v715, %v653
    %v717 = vadd.f32 %v716, %v654
    %v718 = vadd.f32 %v717, %v655
    %v719 = vadd.f32 %v718, %v656
    %v720 = vadd.f32 %v719, %v657
    %v721 = vadd.f32 %v720, %v658
    %v722 = vadd.f32 %v721, %v659
    %v723 = vadd.f32 %v722, %v660
    %v724 = vadd.f32 %v723, %v661
    %v725 = vadd.f32 %v724, %v662
    %v726 = vadd.f32 %v725, %v663
    %v727 = vadd.f32 %v726, %v664
    %v728 = vadd.f32 %v727, %v665
    %v729 = vadd.f32 %v728, %v666
    %v730 = vadd.f32 %v729, %v667
    %v731 = vadd.f32 %v730, %v668
    %v732 = vadd.f32 %v731, %v669
    %v733 = vadd.f32 %v732, %v670
    %v734 = vadd.f32 %v733, %v671
    %v735 = vadd.f32 %v734, %v672
    %v736 = vadd.f32 %v735, %v673
    %v737 = vadd.f32 %v736, %v674
    %v738 = vadd.f32 %v737, %v675
    %v739 = vadd.f32 %v738, %v676
    %v740 = vadd.f32 %v739, %v677
    %v741 = vadd.f32 %v740, %v678
    %v742 = vadd.f32 %v741, %v679
    %v743 = vadd.f32 %v742, %v680
    %v744 = vadd.f32 %v743, %v681
    %v745 = vadd.f32 %v744, %v682
    %v746 = vadd.f32 %v745, %v683
    %v747 = vadd.f32 %v746, %v684
    %v748 = vadd.f32 %v747, %v685
    %v749 = vadd.f32 %v748, %v686
    %v750 = vadd.f32 %v749, %v687
    %v751 = vadd.f32 %v750, %v688
    %v752 = vadd.f32 %v751, %v689
    %v753 = vadd.f32 %v752, %v690
    %v754 = vrot.slane %v753, 4
    %v755 = vadd.f32 %v753, %v754
    %v756 = vrot.slane %v755, 2
    %v757 = vadd.f32 %v755, %v756
    %v758 = vrot.slane %v757, 1
    %v759 = vadd.f32 %v757, %v758
    %v760 = vmul.f32 %v626, 0.001953125
    %v761 = vmul.f32 %v759, 0.001953125
    %v762 = vmul.f32 %v760, %v760
    %v763 = vsub.f32 %v761, %v762
    %v764 = vadd.f32 %v763, 1e-05
    %v765 = vrsqrt.pop %v764
    %v766 = vmul.f32 %v556, %v765
    %v767 = vmul.f32 %v760, %v766
    %v768 = vsub.f32 %v557, %v767
    %v770 = vlaneseq
    %v771 = vshrl.u32 %v770, 7
    %v772 = vsub.s32 0, %v771
    %v773 = vrot.slane %v766, %v772
    %v775 = vmul.f32 %v238, %v773
    %v776 = vmul.f32 %v243, %v773
    %v777 = vmul.f32 %v248, %v773
    %v778 = vmul.f32 %v253, %v773
    %v779 = vmul.f32 %v258, %v773
    %v780 = vmul.f32 %v263, %v773
    %v781 = vmul.f32 %v268, %v773
    %v782 = vmul.f32 %v273, %v773
    %v783 = vmul.f32 %v278, %v773
    %v784 = vmul.f32 %v283, %v773
    %v785 = vmul.f32 %v288, %v773
    %v786 = vmul.f32 %v293, %v773
    %v787 = vmul.f32 %v298, %v773
    %v788 = vmul.f32 %v303, %v773
    %v789 = vmul.f32 %v308, %v773
    %v790 = vmul.f32 %v313, %v773
    %v791 = vmul.f32 %v318, %v773
    %v792 = vmul.f32 %v323, %v773
    %v793 = vmul.f32 %v328, %v773
    %v794 = vmul.f32 %v333, %v773
    %v795 = vmul.f32 %v338, %v773
    %v796 = vmul.f32 %v343, %v773
    %v797 = vmul.f32 %v348, %v773
    %v798 = vmul.f32 %v353, %v773
    %v799 = vmul.f32 %v358, %v773
    %v800 = vmul.f32 %v363, %v773
    %v801 = vmul.f32 %v368, %v773
    %v802 = vmul.f32 %v373, %v773
    %v803 = vmul.f32 %v378, %v773
    %v804 = vmul.f32 %v383, %v773
    %v805 = vmul.f32 %v388, %v773
    %v806 = vmul.f32 %v393, %v773
    %v807 = vmul.f32 %v398, %v773
    %v808 = vmul.f32 %v403, %v773
    %v809 = vmul.f32 %v408, %v773
    %v810 = vmul.f32 %v413, %v773
    %v811 = vmul.f32 %v418, %v773
    %v812 = vmul.f32 %v423, %v773
    %v813 = vmul.f32 %v428, %v773
    %v814 = vmul.f32 %v433, %v773
    %v815 = vmul.f32 %v438, %v773
    %v816 = vmul.f32 %v443, %v773
    %v817 = vmul.f32 %v448, %v773
    %v818 = vmul.f32 %v453, %v773
    %v819 = vmul.f32 %v458, %v773
    %v820 = vmul.f32 %v463, %v773
    %v821 = vmul.f32 %v468, %v773
    %v822 = vmul.f32 %v473, %v773
    %v823 = vmul.f32 %v478, %v773
    %v824 = vmul.f32 %v483, %v773
    %v825 = vmul.f32 %v488, %v773
    %v826 = vmul.f32 %v493, %v773
    %v827 = vmul.f32 %v498, %v773
    %v828 = vmul.f32 %v503, %v773
    %v829 = vmul.f32 %v508, %v773
    %v830 = vmul.f32 %v513, %v773
    %v831 = vmul.f32 %v518, %v773
    %v832 = vmul.f32 %v523, %v773
    %v833 = vmul.f32 %v528, %v773
    %v834 = vmul.f32 %v533, %v773
    %v835 = vmul.f32 %v538, %v773
    %v836 = vmul.f32 %v543, %v773
    %v837 = vmul.f32 %v548, %v773
    %v838 = vmul.f32 %v553, %v773
    %v840 = vlaneseq
    %v841 = vshrl.u32 %v840, 7
    %v842 = vsub.s32 0, %v841
    %v843 = vrot.slane %v768, %v842
    %v845 = vadd.f32 %v775, %v843
    %v846 = vadd.f32 %v776, %v843
    %v847 = vadd.f32 %v777, %v843
    %v848 = vadd.f32 %v778, %v843
    %v849 = vadd.f32 %v779, %v843
    %v850 = vadd.f32 %v780, %v843
    %v851 = vadd.f32 %v781, %v843
    %v852 = vadd.f32 %v782, %v843
    %v853 = vadd.f32 %v783, %v843
    %v854 = vadd.f32 %v784, %v843
    %v855 = vadd.f32 %v785, %v843
    %v856 = vadd.f32 %v786, %v843
    %v857 = vadd.f32 %v787, %v843
    %v858 = vadd.f32 %v788, %v843
    %v859 = vadd.f32 %v789, %v843
    %v860 = vadd.f32 %v790, %v843
    %v861 = vadd.f32 %v791, %v843
    %v862 = vadd.f32 %v792, %v843
    %v863 = vadd.f32 %v793, %v843
    %v864 = vadd.f32 %v794, %v843
    %v865 = vadd.f32 %v795, %v843
    %v866 = vadd.f32 %v796, %v843
    %v867 = vadd.f32 %v797, %v843
    %v868 = vadd.f32 %v798, %v843
    %v869 = vadd.f32 %v799, %v843
    %v870 = vadd.f32 %v800, %v843
    %v871 = vadd.f32 %v801, %v843
    %v872 = vadd.f32 %v802, %v843
    %v873 = vadd.f32 %v803, %v843
    %v874 = vadd.f32 %v804, %v843
    %v875 = vadd.f32 %v805, %v843
    %v876 = vadd.f32 %v806, %v843
    %v877 = vadd.f32 %v807, %v843
    %v878 = vadd.f32 %v808, %v843
    %v879 = vadd.f32 %v809, %v843
    %v880 = vadd.f32 %v810, %v843
    %v881 = vadd.f32 %v811, %v843
    %v882 = vadd.f32 %v812, %v843
    %v883 = vadd.f32 %v813, %v843
    %v884 = vadd.f32 %v814, %v843
    %v885 = vadd.f32 %v815, %v843
    %v886 = vadd.f32 %v816, %v843
    %v887 = vadd.f32 %v817, %v843
    %v888 = vadd.f32 %v818, %v843
    %v889 = vadd.f32 %v819, %v843
    %v890 = vadd.f32 %v820, %v843
    %v891 = vadd.f32 %v821, %v843
    %v892 = vadd.f32 %v822, %v843
    %v893 = vadd.f32 %v823, %v843
    %v894 = vadd.f32 %v824, %v843
    %v895 = vadd.f32 %v825, %v843
    %v896 = vadd.f32 %v826, %v843
    %v897 = vadd.f32 %v827, %v843
    %v898 = vadd.f32 %v828, %v843
    %v899 = vadd.f32 %v829, %v843
    %v900 = vadd.f32 %v830, %v843
    %v901 = vadd.f32 %v831, %v843
    %v902 = vadd.f32 %v832, %v843
    %v903 = vadd.f32 %v833, %v843
    %v904 = vadd.f32 %v834, %v843
    %v905 = vadd.f32 %v835, %v843
    %v906 = vadd.f32 %v836, %v843
    %v907 = vadd.f32 %v837, %v843
    %v908 = vadd.f32 %v838, %v843
    %v909 = vmax.f32 %v845, 0.0
    %v910 = vmax.f32 %v846, 0.0
    %v911 = vmax.f32 %v847, 0.0
    %v912 = vmax.f32 %v848, 0.0
    %v913 = vmax.f32 %v849, 0.0
    %v914 = vmax.f32 %v850, 0.0
    %v915 = vmax.f32 %v851, 0.0
    %v916 = vmax.f32 %v852, 0.0
    %v917 = vmax.f32 %v853, 0.0
    %v918 = vmax.f32 %v854, 0.0
    %v919 = vmax.f32 %v855, 0.0
    %v920 = vmax.f32 %v856, 0.0
    %v921 = vmax.f32 %v857, 0.0
    %v922 = vmax.f32 %v858, 0.0
    %v923 = vmax.f32 %v859, 0.0
    %v924 = vmax.f32 %v860, 0.0
    %v925 = vmax.f32 %v861, 0.0
    %v926 = vmax.f32 %v862, 0.0
    %v927 = vmax.f32 %v863, 0.0
    %v928 = vmax.f32 %v864, 0.0
    %v929 = vmax.f32 %v865, 0.0
    %v930 = vmax.f32 %v866, 0.0
    %v931 = vmax.f32 %v867, 0.0
    %v932 = vmax.f32 %v868, 0.0
    %v933 = vmax.f32 %v869, 0.0
    %v934 = vmax.f32 %v870, 0.0
    %v935 = vmax.f32 %v871, 0.0
    %v936 = vmax.f32 %v872, 0.0
    %v937 = vmax.f32 %v873, 0.0
    %v938 = vmax.f32 %v874, 0.0
    %v939 = vmax.f32 %v875, 0.0
    %v940 = vmax.f32 %v876, 0.0
    %v941 = vmax.f32 %v877, 0.0
    %v942 = vmax.f32 %v878, 0.0
    %v943 = vmax.f32 %v879, 0.0
    %v944 = vmax.f32 %v880, 0.0
    %v945 = vmax.f32 %v881, 0.0
    %v946 = vmax.f32 %v882, 0.0
    %v947 = vmax.f32 %v883, 0.0
    %v948 = vmax.f32 %v884, 0.0
    %v949 = vmax.f32 %v885, 0.0
    %v950 = vmax.f32 %v886, 0.0
    %v951 = vmax.f32 %v887, 0.0
    %v952 = vmax.f32 %v888, 0.0
    %v953 = vmax.f32 %v889, 0.0
    %v954 = vmax.f32 %v890, 0.0
    %v955 = vmax.f32 %v891, 0.0
    %v956 = vmax.f32 %v892, 0.0
    %v957 = vmax.f32 %v893, 0.0
    %v958 = vmax.f32 %v894, 0.0
    %v959 = vmax.f32 %v895, 0.0
    %v960 = vmax.f32 %v896, 0.0
    %v961 = vmax.f32 %v897, 0.0
    %v962 = vmax.f32 %v898, 0.0
    %v963 = vmax.f32 %v899, 0.0
    %v964 = vmax.f32 %v900, 0.0
    %v965 = vmax.f32 %v901, 0.0
    %v966 = vmax.f32 %v902, 0.0
    %v967 = vmax.f32 %v903, 0.0
    %v968 = vmax.f32 %v904, 0.0
    %v969 = vmax.f32 %v905, 0.0
    %v970 = vmax.f32 %v906, 0.0
    %v971 = vmax.f32 %v907, 0.0
    %v972 = vmax.f32 %v908, 0.0
    %973 = vst [vmem:[#allocation2] sm:$0xff] 0.0
    %974 = vst [vmem:[#allocation2 + $0x8] sm:$0xff] 0.0
    %975 = vst [vmem:[#allocation2 + $0x10] sm:$0x3] 0.0
    %976 = vst [vmem:[#allocation2 + $0x18] sm:$0xff] 0.0
    %977 = vst [vmem:[#allocation2 + $0x20] sm:$0xff] 0.0
    %978 = vst [vmem:[#allocation2 + $0x28] sm:$0x3] 0.0
    %979 = vst [vmem:[#allocation2 + $0x30] sm:$0xff] 0.0
    %980 = vst [vmem:[#allocation2 + $0x38] sm:$0xff] 0.0
    %981 = vst [vmem:[#allocation2 + $0x40] sm:$0x3] 0.0
    %982 = vst [vmem:[#allocation2 + $0x48] sm:$0xff] 0.0
    %983 = vst [vmem:[#allocation2 + $0x50] sm:$0xff] 0.0
    %984 = vst [vmem:[#allocation2 + $0x58] sm:$0x3] 0.0
    %985 = vst [vmem:[#allocation2 + $0x60] sm:$0xff] 0.0
    %986 = vst [vmem:[#allocation2 + $0x68] sm:$0xff] 0.0
    %987 = vst [vmem:[#allocation2 + $0x70] sm:$0x3] 0.0
    %988 = vst [vmem:[#allocation2 + $0x78] sm:$0xff] 0.0
    %989 = vst [vmem:[#allocation2 + $0x80] sm:$0xff] 0.0
    %990 = vst [vmem:[#allocation2 + $0x88] sm:$0x3] 0.0
    %991 = vst [vmem:[#allocation2 + $0x90] sm:$0xff] 0.0
    %992 = vst [vmem:[#allocation2 + $0x98] sm:$0xff] 0.0
    %993 = vst [vmem:[#allocation2 + $0xa0] sm:$0x3] 0.0
    %994 = vst [vmem:[#allocation2 + $0xa8] sm:$0xff] 0.0
    %995 = vst [vmem:[#allocation2 + $0xb0] sm:$0xff] 0.0
    %996 = vst [vmem:[#allocation2 + $0xb8] sm:$0x3] 0.0
    %997 = vst [vmem:[#allocation2 + $0xc0] sm:$0xff] 0.0
    %998 = vst [vmem:[#allocation2 + $0xc8] sm:$0xff] 0.0
    %999 = vst [vmem:[#allocation2 + $0xd0] sm:$0x3] 0.0
    %1000 = vst [vmem:[#allocation2 + $0xd8] sm:$0xff] 0.0
    %1001 = vst [vmem:[#allocation2 + $0xe0] sm:$0xff] 0.0
    %1002 = vst [vmem:[#allocation2 + $0xe8] sm:$0x3] 0.0
    %1003 = vst [vmem:[#allocation2 + $0xf0] sm:$0xff] 0.0
    %1004 = vst [vmem:[#allocation2 + $0xf8] sm:$0xff] 0.0
    %1005 = vst [vmem:[#allocation2 + $0x100] sm:$0x3] 0.0
    %1006 = vst [vmem:[#allocation2 + $0x108] sm:$0xff] 0.0
    %1007 = vst [vmem:[#allocation2 + $0x110] sm:$0xff] 0.0
    %1008 = vst [vmem:[#allocation2 + $0x118] sm:$0x3] 0.0
    %1009 = vst [vmem:[#allocation2 + $0x120] sm:$0xff] 0.0
    %1010 = vst [vmem:[#allocation2 + $0x128] sm:$0xff] 0.0
    %1011 = vst [vmem:[#allocation2 + $0x130] sm:$0x3] 0.0
    %1012 = vst [vmem:[#allocation2 + $0x138] sm:$0xff] 0.0
    %1013 = vst [vmem:[#allocation2 + $0x140] sm:$0xff] 0.0
    %1014 = vst [vmem:[#allocation2 + $0x148] sm:$0x3] 0.0
    %1015 = vst [vmem:[#allocation2 + $0x150] sm:$0xff] 0.0
    %1016 = vst [vmem:[#allocation2 + $0x158] sm:$0xff] 0.0
    %1017 = vst [vmem:[#allocation2 + $0x160] sm:$0x3] 0.0
    %1018 = vst [vmem:[#allocation2 + $0x168] sm:$0xff] 0.0
    %1019 = vst [vmem:[#allocation2 + $0x170] sm:$0xff] 0.0
    %1020 = vst [vmem:[#allocation2 + $0x178] sm:$0x3] 0.0
    %1021 = vst [vmem:[#allocation2 + $0x180] sm:$0xff] 0.0
    %1022 = vst [vmem:[#allocation2 + $0x188] sm:$0xff] 0.0
    %1023 = vst [vmem:[#allocation2 + $0x190] sm:$0x3] 0.0
    %1024 = vst [vmem:[#allocation2 + $0x198] sm:$0xff] 0.0
    %1025 = vst [vmem:[#allocation2 + $0x1a0] sm:$0xff] 0.0
    %1026 = vst [vmem:[#allocation2 + $0x1a8] sm:$0x3] 0.0
    %1027 = vst [vmem:[#allocation2 + $0x1b0] sm:$0xff] 0.0
    %1028 = vst [vmem:[#allocation2 + $0x1b8] sm:$0xff] 0.0
    %1029 = vst [vmem:[#allocation2 + $0x1c0] sm:$0x3] 0.0
    %1030 = vst [vmem:[#allocation2 + $0x1c8] sm:$0xff] 0.0
    %1031 = vst [vmem:[#allocation2 + $0x1d0] sm:$0xff] 0.0
    %1032 = vst [vmem:[#allocation2 + $0x1d8] sm:$0x3] 0.0
    %1033 = vst [vmem:[#allocation2 + $0x1e0] sm:$0xff] 0.0
    %1034 = vst [vmem:[#allocation2 + $0x1e8] sm:$0xff] 0.0
    %1035 = vst [vmem:[#allocation2 + $0x1f0] sm:$0x3] 0.0
    %1036 = vst [vmem:[#allocation2 + $0x1f8] sm:$0xff] 0.0
    %1037 = vst [vmem:[#allocation2 + $0x200] sm:$0xff] 0.0
    %1038 = vst [vmem:[#allocation2 + $0x208] sm:$0x3] 0.0
    %1039 = vst [vmem:[#allocation2 + $0x210] sm:$0xff] 0.0
    %1040 = vst [vmem:[#allocation2 + $0x218] sm:$0xff] 0.0
    %1041 = vst [vmem:[#allocation2 + $0x220] sm:$0x3] 0.0
    %1042 = vst [vmem:[#allocation2 + $0x228] sm:$0xff] 0.0
    %1043 = vst [vmem:[#allocation2 + $0x230] sm:$0xff] 0.0
    %1044 = vst [vmem:[#allocation2 + $0x238] sm:$0x3] 0.0
    %1045 = vst [vmem:[#allocation2 + $0x240] sm:$0xff] 0.0
    %1046 = vst [vmem:[#allocation2 + $0x248] sm:$0xff] 0.0
    %1047 = vst [vmem:[#allocation2 + $0x250] sm:$0x3] 0.0
    %1048 = vst [vmem:[#allocation2 + $0x258] sm:$0xff] 0.0
    %1049 = vst [vmem:[#allocation2 + $0x260] sm:$0xff] 0.0
    %1050 = vst [vmem:[#allocation2 + $0x268] sm:$0x3] 0.0
    %1051 = vst [vmem:[#allocation2 + $0x270] sm:$0xff] 0.0
    %1052 = vst [vmem:[#allocation2 + $0x278] sm:$0xff] 0.0
    %1053 = vst [vmem:[#allocation2 + $0x280] sm:$0x3] 0.0
    %1054 = vst [vmem:[#allocation2 + $0x288] sm:$0xff] 0.0
    %1055 = vst [vmem:[#allocation2 + $0x290] sm:$0xff] 0.0
    %1056 = vst [vmem:[#allocation2 + $0x298] sm:$0x3] 0.0
    %1057 = vst [vmem:[#allocation2 + $0x2a0] sm:$0xff] 0.0
    %1058 = vst [vmem:[#allocation2 + $0x2a8] sm:$0xff] 0.0
    %1059 = vst [vmem:[#allocation2 + $0x2b0] sm:$0x3] 0.0
    %1060 = vst [vmem:[#allocation2 + $0x2b8] sm:$0xff] 0.0
    %1061 = vst [vmem:[#allocation2 + $0x2c0] sm:$0xff] 0.0
    %1062 = vst [vmem:[#allocation2 + $0x2c8] sm:$0x3] 0.0
    %1063 = vst [vmem:[#allocation2 + $0x2d0] sm:$0xff] 0.0
    %1064 = vst [vmem:[#allocation2 + $0x2d8] sm:$0xff] 0.0
    %1065 = vst [vmem:[#allocation2 + $0x2e0] sm:$0x3] 0.0
    %1066 = vst [vmem:[#allocation2 + $0x2e8] sm:$0xff] 0.0
    %1067 = vst [vmem:[#allocation2 + $0x2f0] sm:$0xff] 0.0
    %1068 = vst [vmem:[#allocation2 + $0x2f8] sm:$0x3] 0.0
    %1069 = vst [vmem:[#allocation2 + $0x300] sm:$0xff] 0.0
    %1070 = vst [vmem:[#allocation2 + $0x308] sm:$0xff] 0.0
    %1071 = vst [vmem:[#allocation2 + $0x310] sm:$0x3] 0.0
    %1072 = vst [vmem:[#allocation2 + $0x318] sm:$0xff] 0.0
    %1073 = vst [vmem:[#allocation2 + $0x320] sm:$0xff] 0.0
    %1074 = vst [vmem:[#allocation2 + $0x328] sm:$0x3] 0.0
    %1075 = vst [vmem:[#allocation2 + $0x330] sm:$0xff] 0.0
    %1076 = vst [vmem:[#allocation2 + $0x338] sm:$0xff] 0.0
    %1077 = vst [vmem:[#allocation2 + $0x340] sm:$0x3] 0.0
    %1078 = vst [vmem:[#allocation2 + $0x348] sm:$0xff] 0.0
    %1079 = vst [vmem:[#allocation2 + $0x350] sm:$0xff] 0.0
    %1080 = vst [vmem:[#allocation2 + $0x358] sm:$0x3] 0.0
    %s1081 = scalar_lea.vmem [#allocation2], 24
    %1082 = vst [vmem:[%s1081 + $0x1] sm:$0xff] %v909
    %1083 = vst [vmem:[%s1081 + $0x9] sm:$0xff] %v910
    %1084 = vst [vmem:[%s1081 + $0x19] sm:$0xff] %v911
    %1085 = vst [vmem:[%s1081 + $0x21] sm:$0xff] %v912
    %1086 = vst [vmem:[%s1081 + $0x31] sm:$0xff] %v913
    %1087 = vst [vmem:[%s1081 + $0x39] sm:$0xff] %v914
    %1088 = vst [vmem:[%s1081 + $0x49] sm:$0xff] %v915
    %1089 = vst [vmem:[%s1081 + $0x51] sm:$0xff] %v916
    %1090 = vst [vmem:[%s1081 + $0x61] sm:$0xff] %v917
    %1091 = vst [vmem:[%s1081 + $0x69] sm:$0xff] %v918
    %1092 = vst [vmem:[%s1081 + $0x79] sm:$0xff] %v919
    %1093 = vst [vmem:[%s1081 + $0x81] sm:$0xff] %v920
    %1094 = vst [vmem:[%s1081 + $0x91] sm:$0xff] %v921
    %1095 = vst [vmem:[%s1081 + $0x99] sm:$0xff] %v922
    %1096 = vst [vmem:[%s1081 + $0xa9] sm:$0xff] %v923
    %1097 = vst [vmem:[%s1081 + $0xb1] sm:$0xff] %v924
    %1098 = vst [vmem:[%s1081 + $0xc1] sm:$0xff] %v925
    %1099 = vst [vmem:[%s1081 + $0xc9] sm:$0xff] %v926
    %1100 = vst [vmem:[%s1081 + $0xd9] sm:$0xff] %v927
    %1101 = vst [vmem:[%s1081 + $0xe1] sm:$0xff] %v928
    %1102 = vst [vmem:[%s1081 + $0xf1] sm:$0xff] %v929
    %1103 = vst [vmem:[%s1081 + $0xf9] sm:$0xff] %v930
    %1104 = vst [vmem:[%s1081 + $0x109] sm:$0xff] %v931
    %1105 = vst [vmem:[%s1081 + $0x111] sm:$0xff] %v932
    %1106 = vst [vmem:[%s1081 + $0x121] sm:$0xff] %v933
    %1107 = vst [vmem:[%s1081 + $0x129] sm:$0xff] %v934
    %1108 = vst [vmem:[%s1081 + $0x139] sm:$0xff] %v935
    %1109 = vst [vmem:[%s1081 + $0x141] sm:$0xff] %v936
    %1110 = vst [vmem:[%s1081 + $0x151] sm:$0xff] %v937
    %1111 = vst [vmem:[%s1081 + $0x159] sm:$0xff] %v938
    %1112 = vst [vmem:[%s1081 + $0x169] sm:$0xff] %v939
    %1113 = vst [vmem:[%s1081 + $0x171] sm:$0xff] %v940
    %1114 = vst [vmem:[%s1081 + $0x1b1] sm:$0xff] %v941
    %1115 = vst [vmem:[%s1081 + $0x1b9] sm:$0xff] %v942
    %1116 = vst [vmem:[%s1081 + $0x1c9] sm:$0xff] %v943
    %1117 = vst [vmem:[%s1081 + $0x1d1] sm:$0xff] %v944
    %1118 = vst [vmem:[%s1081 + $0x1e1] sm:$0xff] %v945
    %1119 = vst [vmem:[%s1081 + $0x1e9] sm:$0xff] %v946
    %1120 = vst [vmem:[%s1081 + $0x1f9] sm:$0xff] %v947
    %1121 = vst [vmem:[%s1081 + $0x201] sm:$0xff] %v948
    %1122 = vst [vmem:[%s1081 + $0x211] sm:$0xff] %v949
    %1123 = vst [vmem:[%s1081 + $0x219] sm:$0xff] %v950
    %1124 = vst [vmem:[%s1081 + $0x229] sm:$0xff] %v951
    %1125 = vst [vmem:[%s1081 + $0x231] sm:$0xff] %v952
    %1126 = vst [vmem:[%s1081 + $0x241] sm:$0xff] %v953
    %1127 = vst [vmem:[%s1081 + $0x249] sm:$0xff] %v954
    %1128 = vst [vmem:[%s1081 + $0x259] sm:$0xff] %v955
    %1129 = vst [vmem:[%s1081 + $0x261] sm:$0xff] %v956
    %1130 = vst [vmem:[%s1081 + $0x271] sm:$0xff] %v957
    %1131 = vst [vmem:[%s1081 + $0x279] sm:$0xff] %v958
    %1132 = vst [vmem:[%s1081 + $0x289] sm:$0xff] %v959
    %1133 = vst [vmem:[%s1081 + $0x291] sm:$0xff] %v960
    %1134 = vst [vmem:[%s1081 + $0x2a1] sm:$0xff] %v961
    %1135 = vst [vmem:[%s1081 + $0x2a9] sm:$0xff] %v962
    %1136 = vst [vmem:[%s1081 + $0x2b9] sm:$0xff] %v963
    %1137 = vst [vmem:[%s1081 + $0x2c1] sm:$0xff] %v964
    %1138 = vst [vmem:[%s1081 + $0x2d1] sm:$0xff] %v965
    %1139 = vst [vmem:[%s1081 + $0x2d9] sm:$0xff] %v966
    %1140 = vst [vmem:[%s1081 + $0x2e9] sm:$0xff] %v967
    %1141 = vst [vmem:[%s1081 + $0x2f1] sm:$0xff] %v968
    %1142 = vst [vmem:[%s1081 + $0x301] sm:$0xff] %v969
    %1143 = vst [vmem:[%s1081 + $0x309] sm:$0xff] %v970
    %1144 = vst [vmem:[%s1081 + $0x319] sm:$0xff] %v971
    %1145 = vst [vmem:[%s1081 + $0x321] sm:$0xff] %v972
    %1146 = vst [vmem:[#allocation3] sm:$0xff] 0.0
    %1147 = vst [vmem:[#allocation3 + $0x8] sm:$0xff] 0.0
    %1148 = vst [vmem:[#allocation3 + $0x10] sm:$0xff] 0.0
    %1149 = vst [vmem:[#allocation3 + $0x18] sm:$0xff] 0.0
    %1150 = vst [vmem:[#allocation3 + $0x20] sm:$0xff] 0.0
    %1151 = vst [vmem:[#allocation3 + $0x28] sm:$0xff] 0.0
    %1152 = vst [vmem:[#allocation3 + $0x30] sm:$0xff] 0.0
    %1153 = vst [vmem:[#allocation3 + $0x38] sm:$0xff] 0.0
    %1154 = vst [vmem:[#allocation3 + $0x40] sm:$0xff] 0.0
    %1155 = vst [vmem:[#allocation3 + $0x48] sm:$0xff] 0.0
    %1156 = vst [vmem:[#allocation3 + $0x50] sm:$0xff] 0.0
    %1157 = vst [vmem:[#allocation3 + $0x58] sm:$0xff] 0.0
    %1158 = vst [vmem:[#allocation3 + $0x60] sm:$0xff] 0.0
    %1159 = vst [vmem:[#allocation3 + $0x68] sm:$0xff] 0.0
    %1160 = vst [vmem:[#allocation3 + $0x70] sm:$0xff] 0.0
    %1161 = vst [vmem:[#allocation3 + $0x78] sm:$0xff] 0.0
    %1162 = vst [vmem:[#allocation3 + $0x80] sm:$0xff] 0.0
    %1163 = vst [vmem:[#allocation3 + $0x88] sm:$0xff] 0.0
    %1164 = vst [vmem:[#allocation3 + $0x90] sm:$0xff] 0.0
    %1165 = vst [vmem:[#allocation3 + $0x98] sm:$0xff] 0.0
    %1166 = vst [vmem:[#allocation3 + $0xa0] sm:$0xff] 0.0
    %1167 = vst [vmem:[#allocation3 + $0xa8] sm:$0xff] 0.0
    %1168 = vst [vmem:[#allocation3 + $0xb0] sm:$0xff] 0.0
    %1169 = vst [vmem:[#allocation3 + $0xb8] sm:$0xff] 0.0
    %1170 = vst [vmem:[#allocation3 + $0xc0] sm:$0xff] 0.0
    %1171 = vst [vmem:[#allocation3 + $0xc8] sm:$0xff] 0.0
    %1172 = vst [vmem:[#allocation3 + $0xd0] sm:$0xff] 0.0
    %1173 = vst [vmem:[#allocation3 + $0xd8] sm:$0xff] 0.0
    %1174 = vst [vmem:[#allocation3 + $0xe0] sm:$0xff] 0.0
    %1175 = vst [vmem:[#allocation3 + $0xe8] sm:$0xff] 0.0
    %1176 = vst [vmem:[#allocation3 + $0xf0] sm:$0xff] 0.0
    %1177 = vst [vmem:[#allocation3 + $0xf8] sm:$0xff] 0.0
    %1178 = vst [vmem:[#allocation3 + $0x100] sm:$0xff] 0.0
    %1179 = vst [vmem:[#allocation3 + $0x108] sm:$0xff] 0.0
    %1180 = vst [vmem:[#allocation3 + $0x110] sm:$0xff] 0.0
    %1181 = vst [vmem:[#allocation3 + $0x118] sm:$0xff] 0.0
    %1182 = vst [vmem:[#allocation3 + $0x120] sm:$0xff] 0.0
    %1183 = vst [vmem:[#allocation3 + $0x128] sm:$0xff] 0.0
    %1184 = vst [vmem:[#allocation3 + $0x130] sm:$0xff] 0.0
    %1185 = vst [vmem:[#allocation3 + $0x138] sm:$0xff] 0.0
    %1186 = vst [vmem:[#allocation3 + $0x140] sm:$0xff] 0.0
    %1187 = vst [vmem:[#allocation3 + $0x148] sm:$0xff] 0.0
    %1188 = vst [vmem:[#allocation3 + $0x150] sm:$0xff] 0.0
    %1189 = vst [vmem:[#allocation3 + $0x158] sm:$0xff] 0.0
    %1190 = vst [vmem:[#allocation3 + $0x160] sm:$0xff] 0.0
    %1191 = vst [vmem:[#allocation3 + $0x168] sm:$0xff] 0.0
    %1192 = vst [vmem:[#allocation3 + $0x170] sm:$0xff] 0.0
    %1193 = vst [vmem:[#allocation3 + $0x178] sm:$0xff] 0.0
    %1194 = vst [vmem:[#allocation3 + $0x180] sm:$0xff] 0.0
    %1195 = vst [vmem:[#allocation3 + $0x188] sm:$0xff] 0.0
    %1196 = vst [vmem:[#allocation3 + $0x190] sm:$0xff] 0.0
    %1197 = vst [vmem:[#allocation3 + $0x198] sm:$0xff] 0.0
    %1198 = vst [vmem:[#allocation3 + $0x1a0] sm:$0xff] 0.0
    %1199 = vst [vmem:[#allocation3 + $0x1a8] sm:$0xff] 0.0
    %1200 = vst [vmem:[#allocation3 + $0x1b0] sm:$0xff] 0.0
    %1201 = vst [vmem:[#allocation3 + $0x1b8] sm:$0xff] 0.0
    %1202 = vst [vmem:[#allocation3 + $0x1c0] sm:$0xff] 0.0
    %1203 = vst [vmem:[#allocation3 + $0x1c8] sm:$0xff] 0.0
    %1204 = vst [vmem:[#allocation3 + $0x1d0] sm:$0xff] 0.0
    %1205 = vst [vmem:[#allocation3 + $0x1d8] sm:$0xff] 0.0
    %1206 = vst [vmem:[#allocation3 + $0x1e0] sm:$0xff] 0.0
    %1207 = vst [vmem:[#allocation3 + $0x1e8] sm:$0xff] 0.0
    %1208 = vst [vmem:[#allocation3 + $0x1f0] sm:$0xff] 0.0
    %1209 = vst [vmem:[#allocation3 + $0x1f8] sm:$0xff] 0.0
    %v1210 = vld [vmem:[#allocation2] sm:$0xff]
    %v1211 = vld [vmem:[#allocation2 + $0x8] sm:$0xff]
    %v1212 = vld [vmem:[#allocation2 + $0x18] sm:$0xff]
    %v1213 = vld [vmem:[#allocation2 + $0x20] sm:$0xff]
    %v1214 = vld [vmem:[#allocation2 + $0x30] sm:$0xff]
    %v1215 = vld [vmem:[#allocation2 + $0x38] sm:$0xff]
    %v1216 = vld [vmem:[#allocation2 + $0x48] sm:$0xff]
    %v1217 = vld [vmem:[#allocation2 + $0x50] sm:$0xff]
    %v1218 = vld [vmem:[#allocation2 + $0x60] sm:$0xff]
    %v1219 = vld [vmem:[#allocation2 + $0x68] sm:$0xff]
    %v1220 = vld [vmem:[#allocation2 + $0x78] sm:$0xff]
    %v1221 = vld [vmem:[#allocation2 + $0x80] sm:$0xff]
    %v1222 = vld [vmem:[#allocation2 + $0x90] sm:$0xff]
    %v1223 = vld [vmem:[#allocation2 + $0x98] sm:$0xff]
    %v1224 = vld [vmem:[#allocation2 + $0xa8] sm:$0xff]
    %v1225 = vld [vmem:[#allocation2 + $0xb0] sm:$0xff]
    %v1226 = vld [vmem:[#allocation2 + $0xc0] sm:$0xff]
    %v1227 = vld [vmem:[#allocation2 + $0xc8] sm:$0xff]
    %v1228 = vld [vmem:[#allocation2 + $0xd8] sm:$0xff]
    %v1229 = vld [vmem:[#allocation2 + $0xe0] sm:$0xff]
    %v1230 = vld [vmem:[#allocation2 + $0xf0] sm:$0xff]
    %v1231 = vld [vmem:[#allocation2 + $0xf8] sm:$0xff]
    %v1232 = vld [vmem:[#allocation2 + $0x108] sm:$0xff]
    %v1233 = vld [vmem:[#allocation2 + $0x110] sm:$0xff]
    %v1234 = vld [vmem:[#allocation2 + $0x120] sm:$0xff]
    %v1235 = vld [vmem:[#allocation2 + $0x128] sm:$0xff]
    %v1236 = vld [vmem:[#allocation2 + $0x138] sm:$0xff]
    %v1237 = vld [vmem:[#allocation2 + $0x140] sm:$0xff]
    %v1238 = vld [vmem:[#allocation2 + $0x150] sm:$0xff]
    %v1239 = vld [vmem:[#allocation2 + $0x158] sm:$0xff]
    %v1240 = vld [vmem:[#allocation2 + $0x168] sm:$0xff]
    %v1241 = vld [vmem:[#allocation2 + $0x170] sm:$0xff]
    %v1242 = vld [vmem:[#allocation2 + $0x1b0] sm:$0xff]
    %v1243 = vld [vmem:[#allocation2 + $0x1b8] sm:$0xff]
    %v1244 = vld [vmem:[#allocation2 + $0x1c8] sm:$0xff]
    %v1245 = vld [vmem:[#allocation2 + $0x1d0] sm:$0xff]
    %v1246 = vld [vmem:[#allocation2 + $0x1e0] sm:$0xff]
    %v1247 = vld [vmem:[#allocation2 + $0x1e8] sm:$0xff]
    %v1248 = vld [vmem:[#allocation2 + $0x1f8] sm:$0xff]
    %v1249 = vld [vmem:[#allocation2 + $0x200] sm:$0xff]
    %v1250 = vld [vmem:[#allocation2 + $0x210] sm:$0xff]
    %v1251 = vld [vmem:[#allocation2 + $0x218] sm:$0xff]
    %v1252 = vld [vmem:[#allocation2 + $0x228] sm:$0xff]
    %v1253 = vld [vmem:[#allocation2 + $0x230] sm:$0xff]
    %v1254 = vld [vmem:[#allocation2 + $0x240] sm:$0xff]
    %v1255 = vld [vmem:[#allocation2 + $0x248] sm:$0xff]
    %v1256 = vld [vmem:[#allocation2 + $0x258] sm:$0xff]
    %v1257 = vld [vmem:[#allocation2 + $0x260] sm:$0xff]
    %v1258 = vld [vmem:[#allocation2 + $0x270] sm:$0xff]
    %v1259 = vld [vmem:[#allocation2 + $0x278] sm:$0xff]
    %v1260 = vld [vmem:[#allocation2 + $0x288] sm:$0xff]
    %v1261 = vld [vmem:[#allocation2 + $0x290] sm:$0xff]
    %v1262 = vld [vmem:[#allocation2 + $0x2a0] sm:$0xff]
    %v1263 = vld [vmem:[#allocation2 + $0x2a8] sm:$0xff]
    %v1264 = vld [vmem:[#allocation2 + $0x2b8] sm:$0xff]
    %v1265 = vld [vmem:[#allocation2 + $0x2c0] sm:$0xff]
    %v1266 = vld [vmem:[#allocation2 + $0x2d0] sm:$0xff]
    %v1267 = vld [vmem:[#allocation2 + $0x2d8] sm:$0xff]
    %v1268 = vld [vmem:[#allocation2 + $0x2e8] sm:$0xff]
    %v1269 = vld [vmem:[#allocation2 + $0x2f0] sm:$0xff]
    %v1270 = vld [vmem:[#allocation2 + $0x300] sm:$0xff]
    %v1271 = vld [vmem:[#allocation2 + $0x308] sm:$0xff]
    %v1272 = vld [vmem:[#allocation2 + $0x318] sm:$0xff]
    %v1273 = vld [vmem:[#allocation2 + $0x320] sm:$0xff]
    %v1274 = vld [vmem:[#allocation3] sm:$0xff]
    %v1275 = vld [vmem:[#allocation3 + $0x8] sm:$0xff]
    %v1276 = vld [vmem:[#allocation3 + $0x10] sm:$0xff]
    %v1277 = vld [vmem:[#allocation3 + $0x18] sm:$0xff]
    %v1278 = vld [vmem:[#allocation3 + $0x20] sm:$0xff]
    %v1279 = vld [vmem:[#allocation3 + $0x28] sm:$0xff]
    %v1280 = vld [vmem:[#allocation3 + $0x30] sm:$0xff]
    %v1281 = vld [vmem:[#allocation3 + $0x38] sm:$0xff]
    %v1282 = vld [vmem:[#allocation3 + $0x40] sm:$0xff]
    %v1283 = vld [vmem:[#allocation3 + $0x48] sm:$0xff]
    %v1284 = vld [vmem:[#allocation3 + $0x50] sm:$0xff]
    %v1285 = vld [vmem:[#allocation3 + $0x58] sm:$0xff]
    %v1286 = vld [vmem:[#allocation3 + $0x60] sm:$0xff]
    %v1287 = vld [vmem:[#allocation3 + $0x68] sm:$0xff]
    %v1288 = vld [vmem:[#allocation3 + $0x70] sm:$0xff]
    %v1289 = vld [vmem:[#allocation3 + $0x78] sm:$0xff]
    %v1290 = vld [vmem:[#allocation3 + $0x80] sm:$0xff]
    %v1291 = vld [vmem:[#allocation3 + $0x88] sm:$0xff]
    %v1292 = vld [vmem:[#allocation3 + $0x90] sm:$0xff]
    %v1293 = vld [vmem:[#allocation3 + $0x98] sm:$0xff]
    %v1294 = vld [vmem:[#allocation3 + $0xa0] sm:$0xff]
    %v1295 = vld [vmem:[#allocation3 + $0xa8] sm:$0xff]
    %v1296 = vld [vmem:[#allocation3 + $0xb0] sm:$0xff]
    %v1297 = vld [vmem:[#allocation3 + $0xb8] sm:$0xff]
    %v1298 = vld [vmem:[#allocation3 + $0xc0] sm:$0xff]
    %v1299 = vld [vmem:[#allocation3 + $0xc8] sm:$0xff]
    %v1300 = vld [vmem:[#allocation3 + $0xd0] sm:$0xff]
    %v1301 = vld [vmem:[#allocation3 + $0xd8] sm:$0xff]
    %v1302 = vld [vmem:[#allocation3 + $0xe0] sm:$0xff]
    %v1303 = vld [vmem:[#allocation3 + $0xe8] sm:$0xff]
    %v1304 = vld [vmem:[#allocation3 + $0xf0] sm:$0xff]
    %v1305 = vld [vmem:[#allocation3 + $0xf8] sm:$0xff]
    %v1306 = vld [vmem:[#allocation3 + $0x100] sm:$0xff]
    %v1307 = vld [vmem:[#allocation3 + $0x108] sm:$0xff]
    %v1308 = vld [vmem:[#allocation3 + $0x110] sm:$0xff]
    %v1309 = vld [vmem:[#allocation3 + $0x118] sm:$0xff]
    %v1310 = vld [vmem:[#allocation3 + $0x120] sm:$0xff]
    %v1311 = vld [vmem:[#allocation3 + $0x128] sm:$0xff]
    %v1312 = vld [vmem:[#allocation3 + $0x130] sm:$0xff]
    %v1313 = vld [vmem:[#allocation3 + $0x138] sm:$0xff]
    %v1314 = vld [vmem:[#allocation3 + $0x140] sm:$0xff]
    %v1315 = vld [vmem:[#allocation3 + $0x148] sm:$0xff]
    %v1316 = vld [vmem:[#allocation3 + $0x150] sm:$0xff]
    %v1317 = vld [vmem:[#allocation3 + $0x158] sm:$0xff]
    %v1318 = vld [vmem:[#allocation3 + $0x160] sm:$0xff]
    %v1319 = vld [vmem:[#allocation3 + $0x168] sm:$0xff]
    %v1320 = vld [vmem:[#allocation3 + $0x170] sm:$0xff]
    %v1321 = vld [vmem:[#allocation3 + $0x178] sm:$0xff]
    %v1322 = vld [vmem:[#allocation3 + $0x180] sm:$0xff]
    %v1323 = vld [vmem:[#allocation3 + $0x188] sm:$0xff]
    %v1324 = vld [vmem:[#allocation3 + $0x190] sm:$0xff]
    %v1325 = vld [vmem:[#allocation3 + $0x198] sm:$0xff]
    %v1326 = vld [vmem:[#allocation3 + $0x1a0] sm:$0xff]
    %v1327 = vld [vmem:[#allocation3 + $0x1a8] sm:$0xff]
    %v1328 = vld [vmem:[#allocation3 + $0x1b0] sm:$0xff]
    %v1329 = vld [vmem:[#allocation3 + $0x1b8] sm:$0xff]
    %v1330 = vld [vmem:[#allocation3 + $0x1c0] sm:$0xff]
    %v1331 = vld [vmem:[#allocation3 + $0x1c8] sm:$0xff]
    %v1332 = vld [vmem:[#allocation3 + $0x1d0] sm:$0xff]
    %v1333 = vld [vmem:[#allocation3 + $0x1d8] sm:$0xff]
    %v1334 = vld [vmem:[#allocation3 + $0x1e0] sm:$0xff]
    %v1335 = vld [vmem:[#allocation3 + $0x1e8] sm:$0xff]
    %v1336 = vld [vmem:[#allocation3 + $0x1f0] sm:$0xff]
    %v1337 = vld [vmem:[#allocation3 + $0x1f8] sm:$0xff]
    %v1338 = vld [vmem:[#allocation9] sm:$0xff]
    %v1339 = vld [vmem:[#allocation9 + $0x8] sm:$0xff]
    %v1340 = vld [vmem:[#allocation9 + $0x10] sm:$0xff]
    %v1341 = vld [vmem:[#allocation9 + $0x18] sm:$0xff]
    %v1342 = vld [vmem:[#allocation9 + $0x20] sm:$0xff]
    %v1343 = vld [vmem:[#allocation9 + $0x28] sm:$0xff]
    %v1344 = vld [vmem:[#allocation9 + $0x30] sm:$0xff]
    %v1345 = vld [vmem:[#allocation9 + $0x38] sm:$0xff]
    %v1346 = vld [vmem:[#allocation9 + $0x40] sm:$0xff]
    %v1347 = vld [vmem:[#allocation9 + $0x48] sm:$0xff]
    %v1348 = vld [vmem:[#allocation9 + $0x50] sm:$0xff]
    %v1349 = vld [vmem:[#allocation9 + $0x58] sm:$0xff]
    %v1350 = vld [vmem:[#allocation9 + $0x60] sm:$0xff]
    %v1351 = vld [vmem:[#allocation9 + $0x68] sm:$0xff]
    %v1352 = vld [vmem:[#allocation9 + $0x70] sm:$0xff]
    %v1353 = vld [vmem:[#allocation9 + $0x78] sm:$0xff]
    %1354 = vmatprep.subr.mxu0 0.0
    %1355 = vmatpush1.msra.mxu0 %v1338
    %1356 = vmatprep.subr.mxu0 0.0
    %1357 = vmatpush1.msra.mxu0 %v1339
    %1358 = vmatprep.subr.mxu0 0.0
    %1359 = vmatpush1.msra.mxu0 %v1340
    %1360 = vmatprep.subr.mxu0 0.0
    %1361 = vmatpush1.msra.mxu0 %v1341
    %1362 = vmatprep.subr.mxu0 0.0
    %1363 = vmatpush1.msra.mxu0 %v1342
    %1364 = vmatprep.subr.mxu0 0.0
    %1365 = vmatpush1.msra.mxu0 %v1343
    %1366 = vmatprep.subr.mxu0 0.0
    %1367 = vmatpush1.msra.mxu0 %v1344
    %1368 = vmatprep.subr.mxu0 0.0
    %1369 = vmatpush1.msra.mxu0 %v1345
    %1370 = vmatprep.subr.mxu0 0.0
    %1371 = vmatpush1.msra.mxu0 %v1346
    %1372 = vmatprep.subr.mxu0 0.0
    %1373 = vmatpush1.msra.mxu0 %v1347
    %1374 = vmatprep.subr.mxu0 0.0
    %1375 = vmatpush1.msra.mxu0 %v1348
    %1376 = vmatprep.subr.mxu0 0.0
    %1377 = vmatpush1.msra.mxu0 %v1349
    %1378 = vmatprep.subr.mxu0 0.0
    %1379 = vmatpush1.msra.mxu0 %v1350
    %1380 = vmatprep.subr.mxu0 0.0
    %1381 = vmatpush1.msra.mxu0 %v1351
    %1382 = vmatprep.subr.mxu0 0.0
    %1383 = vmatpush1.msra.mxu0 %v1352
    %1384 = vmatprep.subr.mxu0 0.0
    %1385 = vmatpush1.msra.mxu0 %v1353
    %1386 = vmatprep.subr.mxu0 0.0
    %1387 = vmatpush1.msra.mxu0 0.0
    %1388 = vmatprep.subr.mxu0 0.0
    %1389 = vmatpush1.msra.mxu0 0.0
    %1390 = vmatprep.subr.mxu0 0.0
    %1391 = vmatpush1.msra.mxu0 0.0
    %1392 = vmatprep.subr.mxu0 0.0
    %1393 = vmatpush1.msra.mxu0 0.0
    %1394 = vmatprep.subr.mxu0 0.0
    %1395 = vmatpush1.msra.mxu0 0.0
    %1396 = vmatprep.subr.mxu0 0.0
    %1397 = vmatpush1.msra.mxu0 0.0
    %1398 = vmatprep.subr.mxu0 0.0
    %1399 = vmatpush1.msra.mxu0 0.0
    %1400 = vmatprep.subr.mxu0 0.0
    %1401 = vmatpush1.msra.mxu0 0.0
    %1402 = vmatprep.subr.mxu0 0.0
    %1403 = vmatpush1.msra.mxu0 0.0
    %1404 = vmatprep.subr.mxu0 0.0
    %1405 = vmatpush1.msra.mxu0 0.0
    %1406 = vmatprep.subr.mxu0 0.0
    %1407 = vmatpush1.msra.mxu0 0.0
    %1408 = vmatprep.subr.mxu0 0.0
    %1409 = vmatpush1.msra.mxu0 0.0
    %1410 = vmatprep.subr.mxu0 0.0
    %1411 = vmatpush1.msra.mxu0 0.0
    %1412 = vmatprep.subr.mxu0 0.0
    %1413 = vmatpush1.msra.mxu0 0.0
    %1414 = vmatprep.subr.mxu0 0.0
    %1415 = vmatpush1.msra.mxu0 0.0
    %1416 = vmatprep.subr.mxu0 0.0
    %1417 = vmatpush1.msra.mxu0 0.0
    %1418 = vmatprep.mubr.f32.mxu0 0.0
    %1419 = vmatmul.mubr.f32.gmra.mrb[0].mxu0 %v1210
    %v1420 = vpop.f32.mrb[0].mxu0
    %v1421 = vadd.f32 0.0, %v1420
    %v1422 = vpop.f32.mrb[0].mxu0
    %1423 = vmatprep.mubr.f32.mxu0 0.0
    %1424 = vmatmul.mubr.f32.gmra.mrb[0].mxu0 %v1211
    %v1425 = vpop.f32.mrb[0].mxu0
    %v1426 = vadd.f32 0.0, %v1425
    %v1427 = vpop.f32.mrb[0].mxu0
    %1428 = vmatprep.mubr.f32.mxu0 0.0
    %1429 = vmatmul.mubr.f32.gmra.mrb[0].mxu0 %v1212
    %v1430 = vpop.f32.mrb[0].mxu0
    %v1431 = vadd.f32 0.0, %v1430
    %v1432 = vpop.f32.mrb[0].mxu0
    %1433 = vmatprep.mubr.f32.mxu0 0.0
    %1434 = vmatmul.mubr.f32.gmra.mrb[0].mxu0 %v1213
    %v1435 = vpop.f32.mrb[0].mxu0
    %v1436 = vadd.f32 0.0, %v1435
    %v1437 = vpop.f32.mrb[0].mxu0
    %1438 = vmatprep.mubr.f32.mxu0 0.0
    %1439 = vmatmul.mubr.f32.gmra.mrb[0].mxu0 %v1214
    %v1440 = vpop.f32.mrb[0].mxu0
    %v1441 = vadd.f32 0.0, %v1440
    %v1442 = vpop.f32.mrb[0].mxu0
    %1443 = vmatprep.mubr.f32.mxu0 0.0
    %1444 = vmatmul.mubr.f32.gmra.mrb[0].mxu0 %v1215
    %v1445 = vpop.f32.mrb[0].mxu0
    %v1446 = vadd.f32 0.0, %v1445
    %v1447 = vpop.f32.mrb[0].mxu0
    %1448 = vmatprep.mubr.f32.mxu0 0.0
    %1449 = vmatmul.mubr.f32.gmra.mrb[0].mxu0 %v1216
    %v1450 = vpop.f32.mrb[0].mxu0
    %v1451 = vadd.f32 0.0, %v1450
    %v1452 = vpop.f32.mrb[0].mxu0
    %1453 = vmatprep.mubr.f32.mxu0 0.0
    %1454 = vmatmul.mubr.f32.gmra.mrb[0].mxu0 %v1217
    %v1455 = vpop.f32.mrb[0].mxu0
    %v1456 = vadd.f32 0.0, %v1455
    %v1457 = vpop.f32.mrb[0].mxu0
    %1458 = vmatprep.mubr.f32.mxu0 0.0
    %1459 = vmatmul.mubr.f32.gmra.mrb[0].mxu0 %v1218
    %v1460 = vpop.f32.mrb[0].mxu0
    %v1461 = vadd.f32 0.0, %v1460
    %v1462 = vpop.f32.mrb[0].mxu0
    %1463 = vmatprep.mubr.f32.mxu0 0.0
    %1464 = vmatmul.mubr.f32.gmra.mrb[0].mxu0 %v1219
    %v1465 = vpop.f32.mrb[0].mxu0
    %v1466 = vadd.f32 0.0, %v1465
    %v1467 = vpop.f32.mrb[0].mxu0
    %1468 = vmatprep.mubr.f32.mxu0 0.0
    %1469 = vmatmul.mubr.f32.gmra.mrb[0].mxu0 %v1220
    %v1470 = vpop.f32.mrb[0].mxu0
    %v1471 = vadd.f32 0.0, %v1470
    %v1472 = vpop.f32.mrb[0].mxu0
    %1473 = vmatprep.mubr.f32.mxu0 0.0
    %1474 = vmatmul.mubr.f32.gmra.mrb[0].mxu0 %v1221
    %v1475 = vpop.f32.mrb[0].mxu0
    %v1476 = vadd.f32 0.0, %v1475
    %v1477 = vpop.f32.mrb[0].mxu0
    %1478 = vmatprep.mubr.f32.mxu0 0.0
    %1479 = vmatmul.mubr.f32.gmra.mrb[0].mxu0 %v1222
    %v1480 = vpop.f32.mrb[0].mxu0
    %v1481 = vadd.f32 0.0, %v1480
    %v1482 = vpop.f32.mrb[0].mxu0
    %1483 = vmatprep.mubr.f32.mxu0 0.0
    %1484 = vmatmul.mubr.f32.gmra.mrb[0].mxu0 %v1223
    %v1485 = vpop.f32.mrb[0].mxu0
    %v1486 = vadd.f32 0.0, %v1485
    %v1487 = vpop.f32.mrb[0].mxu0
    %1488 = vmatprep.mubr.f32.mxu0 0.0
    %1489 = vmatmul.mubr.f32.gmra.mrb[0].mxu0 %v1224
    %v1490 = vpop.f32.mrb[0].mxu0
    %v1491 = vadd.f32 0.0, %v1490
    %v1492 = vpop.f32.mrb[0].mxu0
    %1493 = vmatprep.mubr.f32.mxu0 0.0
    %1494 = vmatmul.mubr.f32.gmra.mrb[0].mxu0 %v1225
    %v1495 = vpop.f32.mrb[0].mxu0
    %v1496 = vadd.f32 0.0, %v1495
    %v1497 = vpop.f32.mrb[0].mxu0
    %1498 = vmatprep.mubr.f32.mxu0 0.0
    %1499 = vmatmul.mubr.f32.gmra.mrb[0].mxu0 %v1226
    %v1500 = vpop.f32.mrb[0].mxu0
    %v1501 = vadd.f32 0.0, %v1500
    %v1502 = vpop.f32.mrb[0].mxu0
    %1503 = vmatprep.mubr.f32.mxu0 0.0
    %1504 = vmatmul.mubr.f32.gmra.mrb[0].mxu0 %v1227
    %v1505 = vpop.f32.mrb[0].mxu0
    %v1506 = vadd.f32 0.0, %v1505
    %v1507 = vpop.f32.mrb[0].mxu0
    %1508 = vmatprep.mubr.f32.mxu0 0.0
    %1509 = vmatmul.mubr.f32.gmra.mrb[0].mxu0 %v1228
    %v1510 = vpop.f32.mrb[0].mxu0
    %v1511 = vadd.f32 0.0, %v1510
    %v1512 = vpop.f32.mrb[0].mxu0
    %1513 = vmatprep.mubr.f32.mxu0 0.0
    %1514 = vmatmul.mubr.f32.gmra.mrb[0].mxu0 %v1229
    %v1515 = vpop.f32.mrb[0].mxu0
    %v1516 = vadd.f32 0.0, %v1515
    %v1517 = vpop.f32.mrb[0].mxu0
    %1518 = vmatprep.mubr.f32.mxu0 0.0
    %1519 = vmatmul.mubr.f32.gmra.mrb[0].mxu0 %v1230
    %v1520 = vpop.f32.mrb[0].mxu0
    %v1521 = vadd.f32 0.0, %v1520
    %v1522 = vpop.f32.mrb[0].mxu0
    %1523 = vmatprep.mubr.f32.mxu0 0.0
    %1524 = vmatmul.mubr.f32.gmra.mrb[0].mxu0 %v1231
    %v1525 = vpop.f32.mrb[0].mxu0
    %v1526 = vadd.f32 0.0, %v1525
    %v1527 = vpop.f32.mrb[0].mxu0
    %1528 = vmatprep.mubr.f32.mxu0 0.0
    %1529 = vmatmul.mubr.f32.gmra.mrb[0].mxu0 %v1232
    %v1530 = vpop.f32.mrb[0].mxu0
    %v1531 = vadd.f32 0.0, %v1530
    %v1532 = vpop.f32.mrb[0].mxu0
    %1533 = vmatprep.mubr.f32.mxu0 0.0
    %1534 = vmatmul.mubr.f32.gmra.mrb[0].mxu0 %v1233
    %v1535 = vpop.f32.mrb[0].mxu0
    %v1536 = vadd.f32 0.0, %v1535
    %v1537 = vpop.f32.mrb[0].mxu0
    %1538 = vmatprep.mubr.f32.mxu0 0.0
    %1539 = vmatmul.mubr.f32.gmra.mrb[0].mxu0 %v1234
    %v1540 = vpop.f32.mrb[0].mxu0
    %v1541 = vadd.f32 0.0, %v1540
    %v1542 = vpop.f32.mrb[0].mxu0
    %1543 = vmatprep.mubr.f32.mxu0 0.0
    %1544 = vmatmul.mubr.f32.gmra.mrb[0].mxu0 %v1235
    %v1545 = vpop.f32.mrb[0].mxu0
    %v1546 = vadd.f32 0.0, %v1545
    %v1547 = vpop.f32.mrb[0].mxu0
    %1548 = vmatprep.mubr.f32.mxu0 0.0
    %1549 = vmatmul.mubr.f32.gmra.mrb[0].mxu0 %v1236
    %v1550 = vpop.f32.mrb[0].mxu0
    %v1551 = vadd.f32 0.0, %v1550
    %v1552 = vpop.f32.mrb[0].mxu0
    %1553 = vmatprep.mubr.f32.mxu0 0.0
    %1554 = vmatmul.mubr.f32.gmra.mrb[0].mxu0 %v1237
    %v1555 = vpop.f32.mrb[0].mxu0
    %v1556 = vadd.f32 0.0, %v1555
    %v1557 = vpop.f32.mrb[0].mxu0
    %1558 = vmatprep.mubr.f32.mxu0 0.0
    %1559 = vmatmul.mubr.f32.gmra.mrb[0].mxu0 %v1238
    %v1560 = vpop.f32.mrb[0].mxu0
    %v1561 = vadd.f32 0.0, %v1560
    %v1562 = vpop.f32.mrb[0].mxu0
    %1563 = vmatprep.mubr.f32.mxu0 0.0
    %1564 = vmatmul.mubr.f32.gmra.mrb[0].mxu0 %v1239
    %v1565 = vpop.f32.mrb[0].mxu0
    %v1566 = vadd.f32 0.0, %v1565
    %v1567 = vpop.f32.mrb[0].mxu0
    %1568 = vmatprep.mubr.f32.mxu0 0.0
    %1569 = vmatmul.mubr.f32.gmra.mrb[0].mxu0 %v1240
    %v1570 = vpop.f32.mrb[0].mxu0
    %v1571 = vadd.f32 0.0, %v1570
    %v1572 = vpop.f32.mrb[0].mxu0
    %1573 = vmatprep.mubr.f32.mxu0 0.0
    %1574 = vmatmul.mubr.f32.gmra.mrb[0].mxu0 %v1241
    %v1575 = vpop.f32.mrb[0].mxu0
    %v1576 = vadd.f32 0.0, %v1575
    %v1577 = vpop.f32.mrb[0].mxu0
    %1578 = vmatprep.mubr.f32.mxu0 0.0
    %1579 = vmatmul.mubr.f32.gmra.mrb[0].mxu0 %v1242
    %v1580 = vpop.f32.mrb[0].mxu0
    %v1581 = vadd.f32 0.0, %v1580
    %v1582 = vpop.f32.mrb[0].mxu0
    %1583 = vmatprep.mubr.f32.mxu0 0.0
    %1584 = vmatmul.mubr.f32.gmra.mrb[0].mxu0 %v1243
    %v1585 = vpop.f32.mrb[0].mxu0
    %v1586 = vadd.f32 0.0, %v1585
    %v1587 = vpop.f32.mrb[0].mxu0
    %1588 = vmatprep.mubr.f32.mxu0 0.0
    %1589 = vmatmul.mubr.f32.gmra.mrb[0].mxu0 %v1244
    %v1590 = vpop.f32.mrb[0].mxu0
    %v1591 = vadd.f32 0.0, %v1590
    %v1592 = vpop.f32.mrb[0].mxu0
    %1593 = vmatprep.mubr.f32.mxu0 0.0
    %1594 = vmatmul.mubr.f32.gmra.mrb[0].mxu0 %v1245
    %v1595 = vpop.f32.mrb[0].mxu0
    %v1596 = vadd.f32 0.0, %v1595
    %v1597 = vpop.f32.mrb[0].mxu0
    %1598 = vmatprep.mubr.f32.mxu0 0.0
    %1599 = vmatmul.mubr.f32.gmra.mrb[0].mxu0 %v1246
    %v1600 = vpop.f32.mrb[0].mxu0
    %v1601 = vadd.f32 0.0, %v1600
    %v1602 = vpop.f32.mrb[0].mxu0
    %1603 = vmatprep.mubr.f32.mxu0 0.0
    %1604 = vmatmul.mubr.f32.gmra.mrb[0].mxu0 %v1247
    %v1605 = vpop.f32.mrb[0].mxu0
    %v1606 = vadd.f32 0.0, %v1605
    %v1607 = vpop.f32.mrb[0].mxu0
    %1608 = vmatprep.mubr.f32.mxu0 0.0
    %1609 = vmatmul.mubr.f32.gmra.mrb[0].mxu0 %v1248
    %v1610 = vpop.f32.mrb[0].mxu0
    %v1611 = vadd.f32 0.0, %v1610
    %v1612 = vpop.f32.mrb[0].mxu0
    %1613 = vmatprep.mubr.f32.mxu0 0.0
    %1614 = vmatmul.mubr.f32.gmra.mrb[0].mxu0 %v1249
    %v1615 = vpop.f32.mrb[0].mxu0
    %v1616 = vadd.f32 0.0, %v1615
    %v1617 = vpop.f32.mrb[0].mxu0
    %1618 = vmatprep.mubr.f32.mxu0 0.0
    %1619 = vmatmul.mubr.f32.gmra.mrb[0].mxu0 %v1250
    %v1620 = vpop.f32.mrb[0].mxu0
    %v1621 = vadd.f32 0.0, %v1620
    %v1622 = vpop.f32.mrb[0].mxu0
    %1623 = vmatprep.mubr.f32.mxu0 0.0
    %1624 = vmatmul.mubr.f32.gmra.mrb[0].mxu0 %v1251
    %v1625 = vpop.f32.mrb[0].mxu0
    %v1626 = vadd.f32 0.0, %v1625
    %v1627 = vpop.f32.mrb[0].mxu0
    %1628 = vmatprep.mubr.f32.mxu0 0.0
    %1629 = vmatmul.mubr.f32.gmra.mrb[0].mxu0 %v1252
    %v1630 = vpop.f32.mrb[0].mxu0
    %v1631 = vadd.f32 0.0, %v1630
    %v1632 = vpop.f32.mrb[0].mxu0
    %1633 = vmatprep.mubr.f32.mxu0 0.0
    %1634 = vmatmul.mubr.f32.gmra.mrb[0].mxu0 %v1253
    %v1635 = vpop.f32.mrb[0].mxu0
    %v1636 = vadd.f32 0.0, %v1635
    %v1637 = vpop.f32.mrb[0].mxu0
    %1638 = vmatprep.mubr.f32.mxu0 0.0
    %1639 = vmatmul.mubr.f32.gmra.mrb[0].mxu0 %v1254
    %v1640 = vpop.f32.mrb[0].mxu0
    %v1641 = vadd.f32 0.0, %v1640
    %v1642 = vpop.f32.mrb[0].mxu0
    %1643 = vmatprep.mubr.f32.mxu0 0.0
    %1644 = vmatmul.mubr.f32.gmra.mrb[0].mxu0 %v1255
    %v1645 = vpop.f32.mrb[0].mxu0
    %v1646 = vadd.f32 0.0, %v1645
    %v1647 = vpop.f32.mrb[0].mxu0
    %1648 = vmatprep.mubr.f32.mxu0 0.0
    %1649 = vmatmul.mubr.f32.gmra.mrb[0].mxu0 %v1256
    %v1650 = vpop.f32.mrb[0].mxu0
    %v1651 = vadd.f32 0.0, %v1650
    %v1652 = vpop.f32.mrb[0].mxu0
    %1653 = vmatprep.mubr.f32.mxu0 0.0
    %1654 = vmatmul.mubr.f32.gmra.mrb[0].mxu0 %v1257
    %v1655 = vpop.f32.mrb[0].mxu0
    %v1656 = vadd.f32 0.0, %v1655
    %v1657 = vpop.f32.mrb[0].mxu0
    %1658 = vmatprep.mubr.f32.mxu0 0.0
    %1659 = vmatmul.mubr.f32.gmra.mrb[0].mxu0 %v1258
    %v1660 = vpop.f32.mrb[0].mxu0
    %v1661 = vadd.f32 0.0, %v1660
    %v1662 = vpop.f32.mrb[0].mxu0
    %1663 = vmatprep.mubr.f32.mxu0 0.0
    %1664 = vmatmul.mubr.f32.gmra.mrb[0].mxu0 %v1259
    %v1665 = vpop.f32.mrb[0].mxu0
    %v1666 = vadd.f32 0.0, %v1665
    %v1667 = vpop.f32.mrb[0].mxu0
    %1668 = vmatprep.mubr.f32.mxu0 0.0
    %1669 = vmatmul.mubr.f32.gmra.mrb[0].mxu0 %v1260
    %v1670 = vpop.f32.mrb[0].mxu0
    %v1671 = vadd.f32 0.0, %v1670
    %v1672 = vpop.f32.mrb[0].mxu0
    %1673 = vmatprep.mubr.f32.mxu0 0.0
    %1674 = vmatmul.mubr.f32.gmra.mrb[0].mxu0 %v1261
    %v1675 = vpop.f32.mrb[0].mxu0
    %v1676 = vadd.f32 0.0, %v1675
    %v1677 = vpop.f32.mrb[0].mxu0
    %1678 = vmatprep.mubr.f32.mxu0 0.0
    %1679 = vmatmul.mubr.f32.gmra.mrb[0].mxu0 %v1262
    %v1680 = vpop.f32.mrb[0].mxu0
    %v1681 = vadd.f32 0.0, %v1680
    %v1682 = vpop.f32.mrb[0].mxu0
    %1683 = vmatprep.mubr.f32.mxu0 0.0
    %1684 = vmatmul.mubr.f32.gmra.mrb[0].mxu0 %v1263
    %v1685 = vpop.f32.mrb[0].mxu0
    %v1686 = vadd.f32 0.0, %v1685
    %v1687 = vpop.f32.mrb[0].mxu0
    %1688 = vmatprep.mubr.f32.mxu0 0.0
    %1689 = vmatmul.mubr.f32.gmra.mrb[0].mxu0 %v1264
    %v1690 = vpop.f32.mrb[0].mxu0
    %v1691 = vadd.f32 0.0, %v1690
    %v1692 = vpop.f32.mrb[0].mxu0
    %1693 = vmatprep.mubr.f32.mxu0 0.0
    %1694 = vmatmul.mubr.f32.gmra.mrb[0].mxu0 %v1265
    %v1695 = vpop.f32.mrb[0].mxu0
    %v1696 = vadd.f32 0.0, %v1695
    %v1697 = vpop.f32.mrb[0].mxu0
    %1698 = vmatprep.mubr.f32.mxu0 0.0
    %1699 = vmatmul.mubr.f32.gmra.mrb[0].mxu0 %v1266
    %v1700 = vpop.f32.mrb[0].mxu0
    %v1701 = vadd.f32 0.0, %v1700
    %v1702 = vpop.f32.mrb[0].mxu0
    %1703 = vmatprep.mubr.f32.mxu0 0.0
    %1704 = vmatmul.mubr.f32.gmra.mrb[0].mxu0 %v1267
    %v1705 = vpop.f32.mrb[0].mxu0
    %v1706 = vadd.f32 0.0, %v1705
    %v1707 = vpop.f32.mrb[0].mxu0
    %1708 = vmatprep.mubr.f32.mxu0 0.0
    %1709 = vmatmul.mubr.f32.gmra.mrb[0].mxu0 %v1268
    %v1710 = vpop.f32.mrb[0].mxu0
    %v1711 = vadd.f32 0.0, %v1710
    %v1712 = vpop.f32.mrb[0].mxu0
    %1713 = vmatprep.mubr.f32.mxu0 0.0
    %1714 = vmatmul.mubr.f32.gmra.mrb[0].mxu0 %v1269
    %v1715 = vpop.f32.mrb[0].mxu0
    %v1716 = vadd.f32 0.0, %v1715
    %v1717 = vpop.f32.mrb[0].mxu0
    %1718 = vmatprep.mubr.f32.mxu0 0.0
    %1719 = vmatmul.mubr.f32.gmra.mrb[0].mxu0 %v1270
    %v1720 = vpop.f32.mrb[0].mxu0
    %v1721 = vadd.f32 0.0, %v1720
    %v1722 = vpop.f32.mrb[0].mxu0
    %1723 = vmatprep.mubr.f32.mxu0 0.0
    %1724 = vmatmul.mubr.f32.gmra.mrb[0].mxu0 %v1271
    %v1725 = vpop.f32.mrb[0].mxu0
    %v1726 = vadd.f32 0.0, %v1725
    %v1727 = vpop.f32.mrb[0].mxu0
    %1728 = vmatprep.mubr.f32.mxu0 0.0
    %1729 = vmatmul.mubr.f32.gmra.mrb[0].mxu0 %v1272
    %v1730 = vpop.f32.mrb[0].mxu0
    %v1731 = vadd.f32 0.0, %v1730
    %v1732 = vpop.f32.mrb[0].mxu0
    %1733 = vmatprep.mubr.f32.mxu0 0.0
    %1734 = vmatmul.mubr.f32.gmra.mrb[0].mxu0 %v1273
    %v1735 = vpop.f32.mrb[0].mxu0
    %v1736 = vadd.f32 0.0, %v1735
    %v1737 = vpop.f32.mrb[0].mxu0
    %1738 = vdwg.mxu0
    %v1739 = vadd.f32 %v1274, %v1421
    %v1740 = vadd.f32 %v1275, %v1426
    %v1741 = vadd.f32 %v1276, %v1431
    %v1742 = vadd.f32 %v1277, %v1436
    %v1743 = vadd.f32 %v1278, %v1441
    %v1744 = vadd.f32 %v1279, %v1446
    %v1745 = vadd.f32 %v1280, %v1451
    %v1746 = vadd.f32 %v1281, %v1456
    %v1747 = vadd.f32 %v1282, %v1461
    %v1748 = vadd.f32 %v1283, %v1466
    %v1749 = vadd.f32 %v1284, %v1471
    %v1750 = vadd.f32 %v1285, %v1476
    %v1751 = vadd.f32 %v1286, %v1481
    %v1752 = vadd.f32 %v1287, %v1486
    %v1753 = vadd.f32 %v1288, %v1491
    %v1754 = vadd.f32 %v1289, %v1496
    %v1755 = vadd.f32 %v1290, %v1501
    %v1756 = vadd.f32 %v1291, %v1506
    %v1757 = vadd.f32 %v1292, %v1511
    %v1758 = vadd.f32 %v1293, %v1516
    %v1759 = vadd.f32 %v1294, %v1521
    %v1760 = vadd.f32 %v1295, %v1526
    %v1761 = vadd.f32 %v1296, %v1531
    %v1762 = vadd.f32 %v1297, %v1536
    %v1763 = vadd.f32 %v1298, %v1541
    %v1764 = vadd.f32 %v1299, %v1546
    %v1765 = vadd.f32 %v1300, %v1551
    %v1766 = vadd.f32 %v1301, %v1556
    %v1767 = vadd.f32 %v1302, %v1561
    %v1768 = vadd.f32 %v1303, %v1566
    %v1769 = vadd.f32 %v1304, %v1571
    %v1770 = vadd.f32 %v1305, %v1576
    %v1771 = vadd.f32 %v1306, %v1581
    %v1772 = vadd.f32 %v1307, %v1586
    %v1773 = vadd.f32 %v1308, %v1591
    %v1774 = vadd.f32 %v1309, %v1596
    %v1775 = vadd.f32 %v1310, %v1601
    %v1776 = vadd.f32 %v1311, %v1606
    %v1777 = vadd.f32 %v1312, %v1611
    %v1778 = vadd.f32 %v1313, %v1616
    %v1779 = vadd.f32 %v1314, %v1621
    %v1780 = vadd.f32 %v1315, %v1626
    %v1781 = vadd.f32 %v1316, %v1631
    %v1782 = vadd.f32 %v1317, %v1636
    %v1783 = vadd.f32 %v1318, %v1641
    %v1784 = vadd.f32 %v1319, %v1646
    %v1785 = vadd.f32 %v1320, %v1651
    %v1786 = vadd.f32 %v1321, %v1656
    %v1787 = vadd.f32 %v1322, %v1661
    %v1788 = vadd.f32 %v1323, %v1666
    %v1789 = vadd.f32 %v1324, %v1671
    %v1790 = vadd.f32 %v1325, %v1676
    %v1791 = vadd.f32 %v1326, %v1681
    %v1792 = vadd.f32 %v1327, %v1686
    %v1793 = vadd.f32 %v1328, %v1691
    %v1794 = vadd.f32 %v1329, %v1696
    %v1795 = vadd.f32 %v1330, %v1701
    %v1796 = vadd.f32 %v1331, %v1706
    %v1797 = vadd.f32 %v1332, %v1711
    %v1798 = vadd.f32 %v1333, %v1716
    %v1799 = vadd.f32 %v1334, %v1721
    %v1800 = vadd.f32 %v1335, %v1726
    %v1801 = vadd.f32 %v1336, %v1731
    %v1802 = vadd.f32 %v1337, %v1736
    %1803 = vst [vmem:[#allocation3] sm:$0xff] %v1739
    %1804 = vst [vmem:[#allocation3 + $0x8] sm:$0xff] %v1740
    %1805 = vst [vmem:[#allocation3 + $0x10] sm:$0xff] %v1741
    %1806 = vst [vmem:[#allocation3 + $0x18] sm:$0xff] %v1742
    %1807 = vst [vmem:[#allocation3 + $0x20] sm:$0xff] %v1743
    %1808 = vst [vmem:[#allocation3 + $0x28] sm:$0xff] %v1744
    %1809 = vst [vmem:[#allocation3 + $0x30] sm:$0xff] %v1745
    %1810 = vst [vmem:[#allocation3 + $0x38] sm:$0xff] %v1746
    %1811 = vst [vmem:[#allocation3 + $0x40] sm:$0xff] %v1747
    %1812 = vst [vmem:[#allocation3 + $0x48] sm:$0xff] %v1748
    %1813 = vst [vmem:[#allocation3 + $0x50] sm:$0xff] %v1749
    %1814 = vst [vmem:[#allocation3 + $0x58] sm:$0xff] %v1750
    %1815 = vst [vmem:[#allocation3 + $0x60] sm:$0xff] %v1751
    %1816 = vst [vmem:[#allocation3 + $0x68] sm:$0xff] %v1752
    %1817 = vst [vmem:[#allocation3 + $0x70] sm:$0xff] %v1753
    %1818 = vst [vmem:[#allocation3 + $0x78] sm:$0xff] %v1754
    %1819 = vst [vmem:[#allocation3 + $0x80] sm:$0xff] %v1755
    %1820 = vst [vmem:[#allocation3 + $0x88] sm:$0xff] %v1756
    %1821 = vst [vmem:[#allocation3 + $0x90] sm:$0xff] %v1757
    %1822 = vst [vmem:[#allocation3 + $0x98] sm:$0xff] %v1758
    %1823 = vst [vmem:[#allocation3 + $0xa0] sm:$0xff] %v1759
    %1824 = vst [vmem:[#allocation3 + $0xa8] sm:$0xff] %v1760
    %1825 = vst [vmem:[#allocation3 + $0xb0] sm:$0xff] %v1761
    %1826 = vst [vmem:[#allocation3 + $0xb8] sm:$0xff] %v1762
    %1827 = vst [vmem:[#allocation3 + $0xc0] sm:$0xff] %v1763
    %1828 = vst [vmem:[#allocation3 + $0xc8] sm:$0xff] %v1764
    %1829 = vst [vmem:[#allocation3 + $0xd0] sm:$0xff] %v1765
    %1830 = vst [vmem:[#allocation3 + $0xd8] sm:$0xff] %v1766
    %1831 = vst [vmem:[#allocation3 + $0xe0] sm:$0xff] %v1767
    %1832 = vst [vmem:[#allocation3 + $0xe8] sm:$0xff] %v1768
    %1833 = vst [vmem:[#allocation3 + $0xf0] sm:$0xff] %v1769
    %1834 = vst [vmem:[#allocation3 + $0xf8] sm:$0xff] %v1770
    %1835 = vst [vmem:[#allocation3 + $0x100] sm:$0xff] %v1771
    %1836 = vst [vmem:[#allocation3 + $0x108] sm:$0xff] %v1772
    %1837 = vst [vmem:[#allocation3 + $0x110] sm:$0xff] %v1773
    %1838 = vst [vmem:[#allocation3 + $0x118] sm:$0xff] %v1774
    %1839 = vst [vmem:[#allocation3 + $0x120] sm:$0xff] %v1775
    %1840 = vst [vmem:[#allocation3 + $0x128] sm:$0xff] %v1776
    %1841 = vst [vmem:[#allocation3 + $0x130] sm:$0xff] %v1777
    %1842 = vst [vmem:[#allocation3 + $0x138] sm:$0xff] %v1778
    %1843 = vst [vmem:[#allocation3 + $0x140] sm:$0xff] %v1779
    %1844 = vst [vmem:[#allocation3 + $0x148] sm:$0xff] %v1780
    %1845 = vst [vmem:[#allocation3 + $0x150] sm:$0xff] %v1781
    %1846 = vst [vmem:[#allocation3 + $0x158] sm:$0xff] %v1782
    %1847 = vst [vmem:[#allocation3 + $0x160] sm:$0xff] %v1783
    %1848 = vst [vmem:[#allocation3 + $0x168] sm:$0xff] %v1784
    %1849 = vst [vmem:[#allocation3 + $0x170] sm:$0xff] %v1785
    %1850 = vst [vmem:[#allocation3 + $0x178] sm:$0xff] %v1786
    %1851 = vst [vmem:[#allocation3 + $0x180] sm:$0xff] %v1787
    %1852 = vst [vmem:[#allocation3 + $0x188] sm:$0xff] %v1788
    %1853 = vst [vmem:[#allocation3 + $0x190] sm:$0xff] %v1789
    %1854 = vst [vmem:[#allocation3 + $0x198] sm:$0xff] %v1790
    %1855 = vst [vmem:[#allocation3 + $0x1a0] sm:$0xff] %v1791
    %1856 = vst [vmem:[#allocation3 + $0x1a8] sm:$0xff] %v1792
    %1857 = vst [vmem:[#allocation3 + $0x1b0] sm:$0xff] %v1793
    %1858 = vst [vmem:[#allocation3 + $0x1b8] sm:$0xff] %v1794
    %1859 = vst [vmem:[#allocation3 + $0x1c0] sm:$0xff] %v1795
    %1860 = vst [vmem:[#allocation3 + $0x1c8] sm:$0xff] %v1796
    %1861 = vst [vmem:[#allocation3 + $0x1d0] sm:$0xff] %v1797
    %1862 = vst [vmem:[#allocation3 + $0x1d8] sm:$0xff] %v1798
    %1863 = vst [vmem:[#allocation3 + $0x1e0] sm:$0xff] %v1799
    %1864 = vst [vmem:[#allocation3 + $0x1e8] sm:$0xff] %v1800
    %1865 = vst [vmem:[#allocation3 + $0x1f0] sm:$0xff] %v1801
    %1866 = vst [vmem:[#allocation3 + $0x1f8] sm:$0xff] %v1802
    %v1867 = vld [vmem:[#allocation2 + $0x1] sm:$0xff]
    %v1868 = vld [vmem:[#allocation2 + $0x9] sm:$0xff]
    %v1869 = vld [vmem:[#allocation2 + $0x19] sm:$0xff]
    %v1870 = vld [vmem:[#allocation2 + $0x21] sm:$0xff]
    %v1871 = vld [vmem:[#allocation2 + $0x31] sm:$0xff]
    %v1872 = vld [vmem:[#allocation2 + $0x39] sm:$0xff]
    %v1873 = vld [vmem:[#allocation2 + $0x49] sm:$0xff]
    %v1874 = vld [vmem:[#allocation2 + $0x51] sm:$0xff]
    %v1875 = vld [vmem:[#allocation2 + $0x61] sm:$0xff]
    %v1876 = vld [vmem:[#allocation2 + $0x69] sm:$0xff]
    %v1877 = vld [vmem:[#allocation2 + $0x79] sm:$0xff]
    %v1878 = vld [vmem:[#allocation2 + $0x81] sm:$0xff]
    %v1879 = vld [vmem:[#allocation2 + $0x91] sm:$0xff]
    %v1880 = vld [vmem:[#allocation2 + $0x99] sm:$0xff]
    %v1881 = vld [vmem:[#allocation2 + $0xa9] sm:$0xff]
    %v1882 = vld [vmem:[#allocation2 + $0xb1] sm:$0xff]
    %v1883 = vld [vmem:[#allocation2 + $0xc1] sm:$0xff]
    %v1884 = vld [vmem:[#allocation2 + $0xc9] sm:$0xff]
    %v1885 = vld [vmem:[#allocation2 + $0xd9] sm:$0xff]
    %v1886 = vld [vmem:[#allocation2 + $0xe1] sm:$0xff]
    %v1887 = vld [vmem:[#allocation2 + $0xf1] sm:$0xff]
    %v1888 = vld [vmem:[#allocation2 + $0xf9] sm:$0xff]
    %v1889 = vld [vmem:[#allocation2 + $0x109] sm:$0xff]
    %v1890 = vld [vmem:[#allocation2 + $0x111] sm:$0xff]
    %v1891 = vld [vmem:[#allocation2 + $0x121] sm:$0xff]
    %v1892 = vld [vmem:[#allocation2 + $0x129] sm:$0xff]
    %v1893 = vld [vmem:[#allocation2 + $0x139] sm:$0xff]
    %v1894 = vld [vmem:[#allocation2 + $0x141] sm:$0xff]
    %v1895 = vld [vmem:[#allocation2 + $0x151] sm:$0xff]
    %v1896 = vld [vmem:[#allocation2 + $0x159] sm:$0xff]
    %v1897 = vld [vmem:[#allocation2 + $0x169] sm:$0xff]
    %v1898 = vld [vmem:[#allocation2 + $0x171] sm:$0xff]
    %v1899 = vld [vmem:[#allocation2 + $0x1b1] sm:$0xff]
    %v1900 = vld [vmem:[#allocation2 + $0x1b9] sm:$0xff]
    %v1901 = vld [vmem:[#allocation2 + $0x1c9] sm:$0xff]
    %v1902 = vld [vmem:[#allocation2 + $0x1d1] sm:$0xff]
    %v1903 = vld [vmem:[#allocation2 + $0x1e1] sm:$0xff]
    %v1904 = vld [vmem:[#allocation2 + $0x1e9] sm:$0xff]
    %v1905 = vld [vmem:[#allocation2 + $0x1f9] sm:$0xff]
    %v1906 = vld [vmem:[#allocation2 + $0x201] sm:$0xff]
    %v1907 = vld [vmem:[#allocation2 + $0x211] sm:$0xff]
    %v1908 = vld [vmem:[#allocation2 + $0x219] sm:$0xff]
    %v1909 = vld [vmem:[#allocation2 + $0x229] sm:$0xff]
    %v1910 = vld [vmem:[#allocation2 + $0x231] sm:$0xff]
    %v1911 = vld [vmem:[#allocation2 + $0x241] sm:$0xff]
    %v1912 = vld [vmem:[#allocation2 + $0x249] sm:$0xff]
    %v1913 = vld [vmem:[#allocation2 + $0x259] sm:$0xff]
    %v1914 = vld [vmem:[#allocation2 + $0x261] sm:$0xff]
    %v1915 = vld [vmem:[#allocation2 + $0x271] sm:$0xff]
    %v1916 = vld [vmem:[#allocation2 + $0x279] sm:$0xff]
    %v1917 = vld [vmem:[#allocation2 + $0x289] sm:$0xff]
    %v1918 = vld [vmem:[#allocation2 + $0x291] sm:$0xff]
    %v1919 = vld [vmem:[#allocation2 + $0x2a1] sm:$0xff]
    %v1920 = vld [vmem:[#allocation2 + $0x2a9] sm:$0xff]
    %v1921 = vld [vmem:[#allocation2 + $0x2b9] sm:$0xff]
    %v1922 = vld [vmem:[#allocation2 + $0x2c1] sm:$0xff]
    %v1923 = vld [vmem:[#allocation2 + $0x2d1] sm:$0xff]
    %v1924 = vld [vmem:[#allocation2 + $0x2d9] sm:$0xff]
    %v1925 = vld [vmem:[#allocation2 + $0x2e9] sm:$0xff]
    %v1926 = vld [vmem:[#allocation2 + $0x2f1] sm:$0xff]
    %v1927 = vld [vmem:[#allocation2 + $0x301] sm:$0xff]
    %v1928 = vld [vmem:[#allocation2 + $0x309] sm:$0xff]
    %v1929 = vld [vmem:[#allocation2 + $0x319] sm:$0xff]
    %v1930 = vld [vmem:[#allocation2 + $0x321] sm:$0xff]
    %v1931 = vld [vmem:[#allocation3] sm:$0xff]
    %v1932 = vld [vmem:[#allocation3 + $0x8] sm:$0xff]
    %v1933 = vld [vmem:[#allocation3 + $0x10] sm:$0xff]
    %v1934 = vld [vmem:[#allocation3 + $0x18] sm:$0xff]
    %v1935 = vld [vmem:[#allocation3 + $0x20] sm:$0xff]
    %v1936 = vld [vmem:[#allocation3 + $0x28] sm:$0xff]
    %v1937 = vld [vmem:[#allocation3 + $0x30] sm:$0xff]
    %v1938 = vld [vmem:[#allocation3 + $0x38] sm:$0xff]
    %v1939 = vld [vmem:[#allocation3 + $0x40] sm:$0xff]
    %v1940 = vld [vmem:[#allocation3 + $0x48] sm:$0xff]
    %v1941 = vld [vmem:[#allocation3 + $0x50] sm:$0xff]
    %v1942 = vld [vmem:[#allocation3 + $0x58] sm:$0xff]
    %v1943 = vld [vmem:[#allocation3 + $0x60] sm:$0xff]
    %v1944 = vld [vmem:[#allocation3 + $0x68] sm:$0xff]
    %v1945 = vld [vmem:[#allocation3 + $0x70] sm:$0xff]
    %v1946 = vld [vmem:[#allocation3 + $0x78] sm:$0xff]
    %v1947 = vld [vmem:[#allocation3 + $0x80] sm:$0xff]
    %v1948 = vld [vmem:[#allocation3 + $0x88] sm:$0xff]
    %v1949 = vld [vmem:[#allocation3 + $0x90] sm:$0xff]
    %v1950 = vld [vmem:[#allocation3 + $0x98] sm:$0xff]
    %v1951 = vld [vmem:[#allocation3 + $0xa0] sm:$0xff]
    %v1952 = vld [vmem:[#allocation3 + $0xa8] sm:$0xff]
    %v1953 = vld [vmem:[#allocation3 + $0xb0] sm:$0xff]
    %v1954 = vld [vmem:[#allocation3 + $0xb8] sm:$0xff]
    %v1955 = vld [vmem:[#allocation3 + $0xc0] sm:$0xff]
    %v1956 = vld [vmem:[#allocation3 + $0xc8] sm:$0xff]
    %v1957 = vld [vmem:[#allocation3 + $0xd0] sm:$0xff]
    %v1958 = vld [vmem:[#allocation3 + $0xd8] sm:$0xff]
    %v1959 = vld [vmem:[#allocation3 + $0xe0] sm:$0xff]
    %v1960 = vld [vmem:[#allocation3 + $0xe8] sm:$0xff]
    %v1961 = vld [vmem:[#allocation3 + $0xf0] sm:$0xff]
    %v1962 = vld [vmem:[#allocation3 + $0xf8] sm:$0xff]
    %v1963 = vld [vmem:[#allocation3 + $0x100] sm:$0xff]
    %v1964 = vld [vmem:[#allocation3 + $0x108] sm:$0xff]
    %v1965 = vld [vmem:[#allocation3 + $0x110] sm:$0xff]
    %v1966 = vld [vmem:[#allocation3 + $0x118] sm:$0xff]
    %v1967 = vld [vmem:[#allocation3 + $0x120] sm:$0xff]
    %v1968 = vld [vmem:[#allocation3 + $0x128] sm:$0xff]
    %v1969 = vld [vmem:[#allocation3 + $0x130] sm:$0xff]
    %v1970 = vld [vmem:[#allocation3 + $0x138] sm:$0xff]
    %v1971 = vld [vmem:[#allocation3 + $0x140] sm:$0xff]
    %v1972 = vld [vmem:[#allocation3 + $0x148] sm:$0xff]
    %v1973 = vld [vmem:[#allocation3 + $0x150] sm:$0xff]
    %v1974 = vld [vmem:[#allocation3 + $0x158] sm:$0xff]
    %v1975 = vld [vmem:[#allocation3 + $0x160] sm:$0xff]
    %v1976 = vld [vmem:[#allocation3 + $0x168] sm:$0xff]
    %v1977 = vld [vmem:[#allocation3 + $0x170] sm:$0xff]
    %v1978 = vld [vmem:[#allocation3 + $0x178] sm:$0xff]
    %v1979 = vld [vmem:[#allocation3 + $0x180] sm:$0xff]
    %v1980 = vld [vmem:[#allocation3 + $0x188] sm:$0xff]
    %v1981 = vld [vmem:[#allocation3 + $0x190] sm:$0xff]
    %v1982 = vld [vmem:[#allocation3 + $0x198] sm:$0xff]
    %v1983 = vld [vmem:[#allocation3 + $0x1a0] sm:$0xff]
    %v1984 = vld [vmem:[#allocation3 + $0x1a8] sm:$0xff]
    %v1985 = vld [vmem:[#allocation3 + $0x1b0] sm:$0xff]
    %v1986 = vld [vmem:[#allocation3 + $0x1b8] sm:$0xff]
    %v1987 = vld [vmem:[#allocation3 + $0x1c0] sm:$0xff]
    %v1988 = vld [vmem:[#allocation3 + $0x1c8] sm:$0xff]
    %v1989 = vld [vmem:[#allocation3 + $0x1d0] sm:$0xff]
    %v1990 = vld [vmem:[#allocation3 + $0x1d8] sm:$0xff]
    %v1991 = vld [vmem:[#allocation3 + $0x1e0] sm:$0xff]
    %v1992 = vld [vmem:[#allocation3 + $0x1e8] sm:$0xff]
    %v1993 = vld [vmem:[#allocation3 + $0x1f0] sm:$0xff]
    %v1994 = vld [vmem:[#allocation3 + $0x1f8] sm:$0xff]
    %s1995 = scalar_lea.vmem [#allocation9], 128
    %v1996 = vld [vmem:[%s1995] sm:$0xff]
    %v1997 = vld [vmem:[%s1995 + $0x8] sm:$0xff]
    %v1998 = vld [vmem:[%s1995 + $0x10] sm:$0xff]
    %v1999 = vld [vmem:[%s1995 + $0x18] sm:$0xff]
    %v2000 = vld [vmem:[%s1995 + $0x20] sm:$0xff]
    %v2001 = vld [vmem:[%s1995 + $0x28] sm:$0xff]
    %v2002 = vld [vmem:[%s1995 + $0x30] sm:$0xff]
    %v2003 = vld [vmem:[%s1995 + $0x38] sm:$0xff]
    %v2004 = vld [vmem:[%s1995 + $0x40] sm:$0xff]
    %v2005 = vld [vmem:[%s1995 + $0x48] sm:$0xff]
    %v2006 = vld [vmem:[%s1995 + $0x50] sm:$0xff]
    %v2007 = vld [vmem:[%s1995 + $0x58] sm:$0xff]
    %v2008 = vld [vmem:[%s1995 + $0x60] sm:$0xff]
    %v2009 = vld [vmem:[%s1995 + $0x68] sm:$0xff]
    %v2010 = vld [vmem:[%s1995 + $0x70] sm:$0xff]
    %v2011 = vld [vmem:[%s1995 + $0x78] sm:$0xff]
    %2012 = vmatprep.subr.mxu0 0.0
    %2013 = vmatpush1.msra.mxu0 %v1996
    %2014 = vmatprep.subr.mxu0 0.0
    %2015 = vmatpush1.msra.mxu0 %v1997
    %2016 = vmatprep.subr.mxu0 0.0
    %2017 = vmatpush1.msra.mxu0 %v1998
    %2018 = vmatprep.subr.mxu0 0.0
    %2019 = vmatpush1.msra.mxu0 %v1999
    %2020 = vmatprep.subr.mxu0 0.0
    %2021 = vmatpush1.msra.mxu0 %v2000
    %2022 = vmatprep.subr.mxu0 0.0
    %2023 = vmatpush1.msra.mxu0 %v2001
    %2024 = vmatprep.subr.mxu0 0.0
    %2025 = vmatpush1.msra.mxu0 %v2002
    %2026 = vmatprep.subr.mxu0 0.0
    %2027 = vmatpush1.msra.mxu0 %v2003
    %2028 = vmatprep.subr.mxu0 0.0
    %2029 = vmatpush1.msra.mxu0 %v2004
    %2030 = vmatprep.subr.mxu0 0.0
    %2031 = vmatpush1.msra.mxu0 %v2005
    %2032 = vmatprep.subr.mxu0 0.0
    %2033 = vmatpush1.msra.mxu0 %v2006
    %2034 = vmatprep.subr.mxu0 0.0
    %2035 = vmatpush1.msra.mxu0 %v2007
    %2036 = vmatprep.subr.mxu0 0.0
    %2037 = vmatpush1.msra.mxu0 %v2008
    %2038 = vmatprep.subr.mxu0 0.0
    %2039 = vmatpush1.msra.mxu0 %v2009
    %2040 = vmatprep.subr.mxu0 0.0
    %2041 = vmatpush1.msra.mxu0 %v2010
    %2042 = vmatprep.subr.mxu0 0.0
    %2043 = vmatpush1.msra.mxu0 %v2011
    %2044 = vmatprep.subr.mxu0 0.0
    %2045 = vmatpush1.msra.mxu0 0.0
    %2046 = vmatprep.subr.mxu0 0.0
    %2047 = vmatpush1.msra.mxu0 0.0
    %2048 = vmatprep.subr.mxu0 0.0
    %2049 = vmatpush1.msra.mxu0 0.0
    %2050 = vmatprep.subr.mxu0 0.0
    %2051 = vmatpush1.msra.mxu0 0.0
    %2052 = vmatprep.subr.mxu0 0.0
    %2053 = vmatpush1.msra.mxu0 0.0
    %2054 = vmatprep.subr.mxu0 0.0
    %2055 = vmatpush1.msra.mxu0 0.0
    %2056 = vmatprep.subr.mxu0 0.0
    %2057 = vmatpush1.msra.mxu0 0.0
    %2058 = vmatprep.subr.mxu0 0.0
    %2059 = vmatpush1.msra.mxu0 0.0
    %2060 = vmatprep.subr.mxu0 0.0
    %2061 = vmatpush1.msra.mxu0 0.0
    %2062 = vmatprep.subr.mxu0 0.0
    %2063 = vmatpush1.msra.mxu0 0.0
    %2064 = vmatprep.subr.mxu0 0.0
    %2065 = vmatpush1.msra.mxu0 0.0
    %2066 = vmatprep.subr.mxu0 0.0
    %2067 = vmatpush1.msra.mxu0 0.0
    %2068 = vmatprep.subr.mxu0 0.0
    %2069 = vmatpush1.msra.mxu0 0.0
    %2070 = vmatprep.subr.mxu0 0.0
    %2071 = vmatpush1.msra.mxu0 0.0
    %2072 = vmatprep.subr.mxu0 0.0
    %2073 = vmatpush1.msra.mxu0 0.0
    %2074 = vmatprep.subr.mxu0 0.0
    %2075 = vmatpush1.msra.mxu0 0.0
    %2076 = vmatprep.mubr.f32.mxu0 0.0
    %2077 = vmatmul.mubr.f32.gmra.mrb[0].mxu0 %v1867
    %v2078 = vpop.f32.mrb[0].mxu0
    %v2079 = vadd.f32 0.0, %v2078
    %v2080 = vpop.f32.mrb[0].mxu0
    %2081 = vmatprep.mubr.f32.mxu0 0.0
    %2082 = vmatmul.mubr.f32.gmra.mrb[0].mxu0 %v1868
    %v2083 = vpop.f32.mrb[0].mxu0
    %v2084 = vadd.f32 0.0, %v2083
    %v2085 = vpop.f32.mrb[0].mxu0
    %2086 = vmatprep.mubr.f32.mxu0 0.0
    %2087 = vmatmul.mubr.f32.gmra.mrb[0].mxu0 %v1869
    %v2088 = vpop.f32.mrb[0].mxu0
    %v2089 = vadd.f32 0.0, %v2088
    %v2090 = vpop.f32.mrb[0].mxu0
    %2091 = vmatprep.mubr.f32.mxu0 0.0
    %2092 = vmatmul.mubr.f32.gmra.mrb[0].mxu0 %v1870
    %v2093 = vpop.f32.mrb[0].mxu0
    %v2094 = vadd.f32 0.0, %v2093
    %v2095 = vpop.f32.mrb[0].mxu0
    %2096 = vmatprep.mubr.f32.mxu0 0.0
    %2097 = vmatmul.mubr.f32.gmra.mrb[0].mxu0 %v1871
    %v2098 = vpop.f32.mrb[0].mxu0
    %v2099 = vadd.f32 0.0, %v2098
    %v2100 = vpop.f32.mrb[0].mxu0
    %2101 = vmatprep.mubr.f32.mxu0 0.0
    %2102 = vmatmul.mubr.f32.gmra.mrb[0].mxu0 %v1872
    %v2103 = vpop.f32.mrb[0].mxu0
    %v2104 = vadd.f32 0.0, %v2103
    %v2105 = vpop.f32.mrb[0].mxu0
    %2106 = vmatprep.mubr.f32.mxu0 0.0
    %2107 = vmatmul.mubr.f32.gmra.mrb[0].mxu0 %v1873
    %v2108 = vpop.f32.mrb[0].mxu0
    %v2109 = vadd.f32 0.0, %v2108
    %v2110 = vpop.f32.mrb[0].mxu0
    %2111 = vmatprep.mubr.f32.mxu0 0.0
    %2112 = vmatmul.mubr.f32.gmra.mrb[0].mxu0 %v1874
    %v2113 = vpop.f32.mrb[0].mxu0
    %v2114 = vadd.f32 0.0, %v2113
    %v2115 = vpop.f32.mrb[0].mxu0
    %2116 = vmatprep.mubr.f32.mxu0 0.0
    %2117 = vmatmul.mubr.f32.gmra.mrb[0].mxu0 %v1875
    %v2118 = vpop.f32.mrb[0].mxu0
    %v2119 = vadd.f32 0.0, %v2118
    %v2120 = vpop.f32.mrb[0].mxu0
    %2121 = vmatprep.mubr.f32.mxu0 0.0
    %2122 = vmatmul.mubr.f32.gmra.mrb[0].mxu0 %v1876
    %v2123 = vpop.f32.mrb[0].mxu0
    %v2124 = vadd.f32 0.0, %v2123
    %v2125 = vpop.f32.mrb[0].mxu0
    %2126 = vmatprep.mubr.f32.mxu0 0.0
    %2127 = vmatmul.mubr.f32.gmra.mrb[0].mxu0 %v1877
    %v2128 = vpop.f32.mrb[0].mxu0
    %v2129 = vadd.f32 0.0, %v2128
    %v2130 = vpop.f32.mrb[0].mxu0
    %2131 = vmatprep.mubr.f32.mxu0 0.0
    %2132 = vmatmul.mubr.f32.gmra.mrb[0].mxu0 %v1878
    %v2133 = vpop.f32.mrb[0].mxu0
    %v2134 = vadd.f32 0.0, %v2133
    %v2135 = vpop.f32.mrb[0].mxu0
    %2136 = vmatprep.mubr.f32.mxu0 0.0
    %2137 = vmatmul.mubr.f32.gmra.mrb[0].mxu0 %v1879
    %v2138 = vpop.f32.mrb[0].mxu0
    %v2139 = vadd.f32 0.0, %v2138
    %v2140 = vpop.f32.mrb[0].mxu0
    %2141 = vmatprep.mubr.f32.mxu0 0.0
    %2142 = vmatmul.mubr.f32.gmra.mrb[0].mxu0 %v1880
    %v2143 = vpop.f32.mrb[0].mxu0
    %v2144 = vadd.f32 0.0, %v2143
    %v2145 = vpop.f32.mrb[0].mxu0
    %2146 = vmatprep.mubr.f32.mxu0 0.0
    %2147 = vmatmul.mubr.f32.gmra.mrb[0].mxu0 %v1881
    %v2148 = vpop.f32.mrb[0].mxu0
    %v2149 = vadd.f32 0.0, %v2148
    %v2150 = vpop.f32.mrb[0].mxu0
    %2151 = vmatprep.mubr.f32.mxu0 0.0
    %2152 = vmatmul.mubr.f32.gmra.mrb[0].mxu0 %v1882
    %v2153 = vpop.f32.mrb[0].mxu0
    %v2154 = vadd.f32 0.0, %v2153
    %v2155 = vpop.f32.mrb[0].mxu0
    %2156 = vmatprep.mubr.f32.mxu0 0.0
    %2157 = vmatmul.mubr.f32.gmra.mrb[0].mxu0 %v1883
    %v2158 = vpop.f32.mrb[0].mxu0
    %v2159 = vadd.f32 0.0, %v2158
    %v2160 = vpop.f32.mrb[0].mxu0
    %2161 = vmatprep.mubr.f32.mxu0 0.0
    %2162 = vmatmul.mubr.f32.gmra.mrb[0].mxu0 %v1884
    %v2163 = vpop.f32.mrb[0].mxu0
    %v2164 = vadd.f32 0.0, %v2163
    %v2165 = vpop.f32.mrb[0].mxu0
    %2166 = vmatprep.mubr.f32.mxu0 0.0
    %2167 = vmatmul.mubr.f32.gmra.mrb[0].mxu0 %v1885
    %v2168 = vpop.f32.mrb[0].mxu0
    %v2169 = vadd.f32 0.0, %v2168
    %v2170 = vpop.f32.mrb[0].mxu0
    %2171 = vmatprep.mubr.f32.mxu0 0.0
    %2172 = vmatmul.mubr.f32.gmra.mrb[0].mxu0 %v1886
    %v2173 = vpop.f32.mrb[0].mxu0
    %v2174 = vadd.f32 0.0, %v2173
    %v2175 = vpop.f32.mrb[0].mxu0
    %2176 = vmatprep.mubr.f32.mxu0 0.0
    %2177 = vmatmul.mubr.f32.gmra.mrb[0].mxu0 %v1887
    %v2178 = vpop.f32.mrb[0].mxu0
    %v2179 = vadd.f32 0.0, %v2178
    %v2180 = vpop.f32.mrb[0].mxu0
    %2181 = vmatprep.mubr.f32.mxu0 0.0
    %2182 = vmatmul.mubr.f32.gmra.mrb[0].mxu0 %v1888
    %v2183 = vpop.f32.mrb[0].mxu0
    %v2184 = vadd.f32 0.0, %v2183
    %v2185 = vpop.f32.mrb[0].mxu0
    %2186 = vmatprep.mubr.f32.mxu0 0.0
    %2187 = vmatmul.mubr.f32.gmra.mrb[0].mxu0 %v1889
    %v2188 = vpop.f32.mrb[0].mxu0
    %v2189 = vadd.f32 0.0, %v2188
    %v2190 = vpop.f32.mrb[0].mxu0
    %2191 = vmatprep.mubr.f32.mxu0 0.0
    %2192 = vmatmul.mubr.f32.gmra.mrb[0].mxu0 %v1890
    %v2193 = vpop.f32.mrb[0].mxu0
    %v2194 = vadd.f32 0.0, %v2193
    %v2195 = vpop.f32.mrb[0].mxu0
    %2196 = vmatprep.mubr.f32.mxu0 0.0
    %2197 = vmatmul.mubr.f32.gmra.mrb[0].mxu0 %v1891
    %v2198 = vpop.f32.mrb[0].mxu0
    %v2199 = vadd.f32 0.0, %v2198
    %v2200 = vpop.f32.mrb[0].mxu0
    %2201 = vmatprep.mubr.f32.mxu0 0.0
    %2202 = vmatmul.mubr.f32.gmra.mrb[0].mxu0 %v1892
    %v2203 = vpop.f32.mrb[0].mxu0
    %v2204 = vadd.f32 0.0, %v2203
    %v2205 = vpop.f32.mrb[0].mxu0
    %2206 = vmatprep.mubr.f32.mxu0 0.0
    %2207 = vmatmul.mubr.f32.gmra.mrb[0].mxu0 %v1893
    %v2208 = vpop.f32.mrb[0].mxu0
    %v2209 = vadd.f32 0.0, %v2208
    %v2210 = vpop.f32.mrb[0].mxu0
    %2211 = vmatprep.mubr.f32.mxu0 0.0
    %2212 = vmatmul.mubr.f32.gmra.mrb[0].mxu0 %v1894
    %v2213 = vpop.f32.mrb[0].mxu0
    %v2214 = vadd.f32 0.0, %v2213
    %v2215 = vpop.f32.mrb[0].mxu0
    %2216 = vmatprep.mubr.f32.mxu0 0.0
    %2217 = vmatmul.mubr.f32.gmra.mrb[0].mxu0 %v1895
    %v2218 = vpop.f32.mrb[0].mxu0
    %v2219 = vadd.f32 0.0, %v2218
    %v2220 = vpop.f32.mrb[0].mxu0
    %2221 = vmatprep.mubr.f32.mxu0 0.0
    %2222 = vmatmul.mubr.f32.gmra.mrb[0].mxu0 %v1896
    %v2223 = vpop.f32.mrb[0].mxu0
    %v2224 = vadd.f32 0.0, %v2223
    %v2225 = vpop.f32.mrb[0].mxu0
    %2226 = vmatprep.mubr.f32.mxu0 0.0
    %2227 = vmatmul.mubr.f32.gmra.mrb[0].mxu0 %v1897
    %v2228 = vpop.f32.mrb[0].mxu0
    %v2229 = vadd.f32 0.0, %v2228
    %v2230 = vpop.f32.mrb[0].mxu0
    %2231 = vmatprep.mubr.f32.mxu0 0.0
    %2232 = vmatmul.mubr.f32.gmra.mrb[0].mxu0 %v1898
    %v2233 = vpop.f32.mrb[0].mxu0
    %v2234 = vadd.f32 0.0, %v2233
    %v2235 = vpop.f32.mrb[0].mxu0
    %2236 = vmatprep.mubr.f32.mxu0 0.0
    %2237 = vmatmul.mubr.f32.gmra.mrb[0].mxu0 %v1899
    %v2238 = vpop.f32.mrb[0].mxu0
    %v2239 = vadd.f32 0.0, %v2238
    %v2240 = vpop.f32.mrb[0].mxu0
    %2241 = vmatprep.mubr.f32.mxu0 0.0
    %2242 = vmatmul.mubr.f32.gmra.mrb[0].mxu0 %v1900
    %v2243 = vpop.f32.mrb[0].mxu0
    %v2244 = vadd.f32 0.0, %v2243
    %v2245 = vpop.f32.mrb[0].mxu0
    %2246 = vmatprep.mubr.f32.mxu0 0.0
    %2247 = vmatmul.mubr.f32.gmra.mrb[0].mxu0 %v1901
    %v2248 = vpop.f32.mrb[0].mxu0
    %v2249 = vadd.f32 0.0, %v2248
    %v2250 = vpop.f32.mrb[0].mxu0
    %2251 = vmatprep.mubr.f32.mxu0 0.0
    %2252 = vmatmul.mubr.f32.gmra.mrb[0].mxu0 %v1902
    %v2253 = vpop.f32.mrb[0].mxu0
    %v2254 = vadd.f32 0.0, %v2253
    %v2255 = vpop.f32.mrb[0].mxu0
    %2256 = vmatprep.mubr.f32.mxu0 0.0
    %2257 = vmatmul.mubr.f32.gmra.mrb[0].mxu0 %v1903
    %v2258 = vpop.f32.mrb[0].mxu0
    %v2259 = vadd.f32 0.0, %v2258
    %v2260 = vpop.f32.mrb[0].mxu0
    %2261 = vmatprep.mubr.f32.mxu0 0.0
    %2262 = vmatmul.mubr.f32.gmra.mrb[0].mxu0 %v1904
    %v2263 = vpop.f32.mrb[0].mxu0
    %v2264 = vadd.f32 0.0, %v2263
    %v2265 = vpop.f32.mrb[0].mxu0
    %2266 = vmatprep.mubr.f32.mxu0 0.0
    %2267 = vmatmul.mubr.f32.gmra.mrb[0].mxu0 %v1905
    %v2268 = vpop.f32.mrb[0].mxu0
    %v2269 = vadd.f32 0.0, %v2268
    %v2270 = vpop.f32.mrb[0].mxu0
    %2271 = vmatprep.mubr.f32.mxu0 0.0
    %2272 = vmatmul.mubr.f32.gmra.mrb[0].mxu0 %v1906
    %v2273 = vpop.f32.mrb[0].mxu0
    %v2274 = vadd.f32 0.0, %v2273
    %v2275 = vpop.f32.mrb[0].mxu0
    %2276 = vmatprep.mubr.f32.mxu0 0.0
    %2277 = vmatmul.mubr.f32.gmra.mrb[0].mxu0 %v1907
    %v2278 = vpop.f32.mrb[0].mxu0
    %v2279 = vadd.f32 0.0, %v2278
    %v2280 = vpop.f32.mrb[0].mxu0
    %2281 = vmatprep.mubr.f32.mxu0 0.0
    %2282 = vmatmul.mubr.f32.gmra.mrb[0].mxu0 %v1908
    %v2283 = vpop.f32.mrb[0].mxu0
    %v2284 = vadd.f32 0.0, %v2283
    %v2285 = vpop.f32.mrb[0].mxu0
    %2286 = vmatprep.mubr.f32.mxu0 0.0
    %2287 = vmatmul.mubr.f32.gmra.mrb[0].mxu0 %v1909
    %v2288 = vpop.f32.mrb[0].mxu0
    %v2289 = vadd.f32 0.0, %v2288
    %v2290 = vpop.f32.mrb[0].mxu0
    %2291 = vmatprep.mubr.f32.mxu0 0.0
    %2292 = vmatmul.mubr.f32.gmra.mrb[0].mxu0 %v1910
    %v2293 = vpop.f32.mrb[0].mxu0
    %v2294 = vadd.f32 0.0, %v2293
    %v2295 = vpop.f32.mrb[0].mxu0
    %2296 = vmatprep.mubr.f32.mxu0 0.0
    %2297 = vmatmul.mubr.f32.gmra.mrb[0].mxu0 %v1911
    %v2298 = vpop.f32.mrb[0].mxu0
    %v2299 = vadd.f32 0.0, %v2298
    %v2300 = vpop.f32.mrb[0].mxu0
    %2301 = vmatprep.mubr.f32.mxu0 0.0
    %2302 = vmatmul.mubr.f32.gmra.mrb[0].mxu0 %v1912
    %v2303 = vpop.f32.mrb[0].mxu0
    %v2304 = vadd.f32 0.0, %v2303
    %v2305 = vpop.f32.mrb[0].mxu0
    %2306 = vmatprep.mubr.f32.mxu0 0.0
    %2307 = vmatmul.mubr.f32.gmra.mrb[0].mxu0 %v1913
    %v2308 = vpop.f32.mrb[0].mxu0
    %v2309 = vadd.f32 0.0, %v2308
    %v2310 = vpop.f32.mrb[0].mxu0
    %2311 = vmatprep.mubr.f32.mxu0 0.0
    %2312 = vmatmul.mubr.f32.gmra.mrb[0].mxu0 %v1914
    %v2313 = vpop.f32.mrb[0].mxu0
    %v2314 = vadd.f32 0.0, %v2313
    %v2315 = vpop.f32.mrb[0].mxu0
    %2316 = vmatprep.mubr.f32.mxu0 0.0
    %2317 = vmatmul.mubr.f32.gmra.mrb[0].mxu0 %v1915
    %v2318 = vpop.f32.mrb[0].mxu0
    %v2319 = vadd.f32 0.0, %v2318
    %v2320 = vpop.f32.mrb[0].mxu0
    %2321 = vmatprep.mubr.f32.mxu0 0.0
    %2322 = vmatmul.mubr.f32.gmra.mrb[0].mxu0 %v1916
    %v2323 = vpop.f32.mrb[0].mxu0
    %v2324 = vadd.f32 0.0, %v2323
    %v2325 = vpop.f32.mrb[0].mxu0
    %2326 = vmatprep.mubr.f32.mxu0 0.0
    %2327 = vmatmul.mubr.f32.gmra.mrb[0].mxu0 %v1917
    %v2328 = vpop.f32.mrb[0].mxu0
    %v2329 = vadd.f32 0.0, %v2328
    %v2330 = vpop.f32.mrb[0].mxu0
    %2331 = vmatprep.mubr.f32.mxu0 0.0
    %2332 = vmatmul.mubr.f32.gmra.mrb[0].mxu0 %v1918
    %v2333 = vpop.f32.mrb[0].mxu0
    %v2334 = vadd.f32 0.0, %v2333
    %v2335 = vpop.f32.mrb[0].mxu0
    %2336 = vmatprep.mubr.f32.mxu0 0.0
    %2337 = vmatmul.mubr.f32.gmra.mrb[0].mxu0 %v1919
    %v2338 = vpop.f32.mrb[0].mxu0
    %v2339 = vadd.f32 0.0, %v2338
    %v2340 = vpop.f32.mrb[0].mxu0
    %2341 = vmatprep.mubr.f32.mxu0 0.0
    %2342 = vmatmul.mubr.f32.gmra.mrb[0].mxu0 %v1920
    %v2343 = vpop.f32.mrb[0].mxu0
    %v2344 = vadd.f32 0.0, %v2343
    %v2345 = vpop.f32.mrb[0].mxu0
    %2346 = vmatprep.mubr.f32.mxu0 0.0
    %2347 = vmatmul.mubr.f32.gmra.mrb[0].mxu0 %v1921
    %v2348 = vpop.f32.mrb[0].mxu0
    %v2349 = vadd.f32 0.0, %v2348
    %v2350 = vpop.f32.mrb[0].mxu0
    %2351 = vmatprep.mubr.f32.mxu0 0.0
    %2352 = vmatmul.mubr.f32.gmra.mrb[0].mxu0 %v1922
    %v2353 = vpop.f32.mrb[0].mxu0
    %v2354 = vadd.f32 0.0, %v2353
    %v2355 = vpop.f32.mrb[0].mxu0
    %2356 = vmatprep.mubr.f32.mxu0 0.0
    %2357 = vmatmul.mubr.f32.gmra.mrb[0].mxu0 %v1923
    %v2358 = vpop.f32.mrb[0].mxu0
    %v2359 = vadd.f32 0.0, %v2358
    %v2360 = vpop.f32.mrb[0].mxu0
    %2361 = vmatprep.mubr.f32.mxu0 0.0
    %2362 = vmatmul.mubr.f32.gmra.mrb[0].mxu0 %v1924
    %v2363 = vpop.f32.mrb[0].mxu0
    %v2364 = vadd.f32 0.0, %v2363
    %v2365 = vpop.f32.mrb[0].mxu0
    %2366 = vmatprep.mubr.f32.mxu0 0.0
    %2367 = vmatmul.mubr.f32.gmra.mrb[0].mxu0 %v1925
    %v2368 = vpop.f32.mrb[0].mxu0
    %v2369 = vadd.f32 0.0, %v2368
    %v2370 = vpop.f32.mrb[0].mxu0
    %2371 = vmatprep.mubr.f32.mxu0 0.0
    %2372 = vmatmul.mubr.f32.gmra.mrb[0].mxu0 %v1926
    %v2373 = vpop.f32.mrb[0].mxu0
    %v2374 = vadd.f32 0.0, %v2373
    %v2375 = vpop.f32.mrb[0].mxu0
    %2376 = vmatprep.mubr.f32.mxu0 0.0
    %2377 = vmatmul.mubr.f32.gmra.mrb[0].mxu0 %v1927
    %v2378 = vpop.f32.mrb[0].mxu0
    %v2379 = vadd.f32 0.0, %v2378
    %v2380 = vpop.f32.mrb[0].mxu0
    %2381 = vmatprep.mubr.f32.mxu0 0.0
    %2382 = vmatmul.mubr.f32.gmra.mrb[0].mxu0 %v1928
    %v2383 = vpop.f32.mrb[0].mxu0
    %v2384 = vadd.f32 0.0, %v2383
    %v2385 = vpop.f32.mrb[0].mxu0
    %2386 = vmatprep.mubr.f32.mxu0 0.0
    %2387 = vmatmul.mubr.f32.gmra.mrb[0].mxu0 %v1929
    %v2388 = vpop.f32.mrb[0].mxu0
    %v2389 = vadd.f32 0.0, %v2388
    %v2390 = vpop.f32.mrb[0].mxu0
    %2391 = vmatprep.mubr.f32.mxu0 0.0
    %2392 = vmatmul.mubr.f32.gmra.mrb[0].mxu0 %v1930
    %v2393 = vpop.f32.mrb[0].mxu0
    %v2394 = vadd.f32 0.0, %v2393
    %v2395 = vpop.f32.mrb[0].mxu0
    %2396 = vdwg.mxu0
    %v2397 = vadd.f32 %v1931, %v2079
    %v2398 = vadd.f32 %v1932, %v2084
    %v2399 = vadd.f32 %v1933, %v2089
    %v2400 = vadd.f32 %v1934, %v2094
    %v2401 = vadd.f32 %v1935, %v2099
    %v2402 = vadd.f32 %v1936, %v2104
    %v2403 = vadd.f32 %v1937, %v2109
    %v2404 = vadd.f32 %v1938, %v2114
    %v2405 = vadd.f32 %v1939, %v2119
    %v2406 = vadd.f32 %v1940, %v2124
    %v2407 = vadd.f32 %v1941, %v2129
    %v2408 = vadd.f32 %v1942, %v2134
    %v2409 = vadd.f32 %v1943, %v2139
    %v2410 = vadd.f32 %v1944, %v2144
    %v2411 = vadd.f32 %v1945, %v2149
    %v2412 = vadd.f32 %v1946, %v2154
    %v2413 = vadd.f32 %v1947, %v2159
    %v2414 = vadd.f32 %v1948, %v2164
    %v2415 = vadd.f32 %v1949, %v2169
    %v2416 = vadd.f32 %v1950, %v2174
    %v2417 = vadd.f32 %v1951, %v2179
    %v2418 = vadd.f32 %v1952, %v2184
    %v2419 = vadd.f32 %v1953, %v2189
    %v2420 = vadd.f32 %v1954, %v2194
    %v2421 = vadd.f32 %v1955, %v2199
    %v2422 = vadd.f32 %v1956, %v2204
    %v2423 = vadd.f32 %v1957, %v2209
    %v2424 = vadd.f32 %v1958, %v2214
    %v2425 = vadd.f32 %v1959, %v2219
    %v2426 = vadd.f32 %v1960, %v2224
    %v2427 = vadd.f32 %v1961, %v2229
    %v2428 = vadd.f32 %v1962, %v2234
    %v2429 = vadd.f32 %v1963, %v2239
    %v2430 = vadd.f32 %v1964, %v2244
    %v2431 = vadd.f32 %v1965, %v2249
    %v2432 = vadd.f32 %v1966, %v2254
    %v2433 = vadd.f32 %v1967, %v2259
    %v2434 = vadd.f32 %v1968, %v2264
    %v2435 = vadd.f32 %v1969, %v2269
    %v2436 = vadd.f32 %v1970, %v2274
    %v2437 = vadd.f32 %v1971, %v2279
    %v2438 = vadd.f32 %v1972, %v2284
    %v2439 = vadd.f32 %v1973, %v2289
    %v2440 = vadd.f32 %v1974, %v2294
    %v2441 = vadd.f32 %v1975, %v2299
    %v2442 = vadd.f32 %v1976, %v2304
    %v2443 = vadd.f32 %v1977, %v2309
    %v2444 = vadd.f32 %v1978, %v2314
    %v2445 = vadd.f32 %v1979, %v2319
    %v2446 = vadd.f32 %v1980, %v2324
    %v2447 = vadd.f32 %v1981, %v2329
    %v2448 = vadd.f32 %v1982, %v2334
    %v2449 = vadd.f32 %v1983, %v2339
    %v2450 = vadd.f32 %v1984, %v2344
    %v2451 = vadd.f32 %v1985, %v2349
    %v2452 = vadd.f32 %v1986, %v2354
    %v2453 = vadd.f32 %v1987, %v2359
    %v2454 = vadd.f32 %v1988, %v2364
    %v2455 = vadd.f32 %v1989, %v2369
    %v2456 = vadd.f32 %v1990, %v2374
    %v2457 = vadd.f32 %v1991, %v2379
    %v2458 = vadd.f32 %v1992, %v2384
    %v2459 = vadd.f32 %v1993, %v2389
    %v2460 = vadd.f32 %v1994, %v2394
    %2461 = vst [vmem:[#allocation3] sm:$0xff] %v2397
    %2462 = vst [vmem:[#allocation3 + $0x8] sm:$0xff] %v2398
    %2463 = vst [vmem:[#allocation3 + $0x10] sm:$0xff] %v2399
    %2464 = vst [vmem:[#allocation3 + $0x18] sm:$0xff] %v2400
    %2465 = vst [vmem:[#allocation3 + $0x20] sm:$0xff] %v2401
    %2466 = vst [vmem:[#allocation3 + $0x28] sm:$0xff] %v2402
    %2467 = vst [vmem:[#allocation3 + $0x30] sm:$0xff] %v2403
    %2468 = vst [vmem:[#allocation3 + $0x38] sm:$0xff] %v2404
    %2469 = vst [vmem:[#allocation3 + $0x40] sm:$0xff] %v2405
    %2470 = vst [vmem:[#allocation3 + $0x48] sm:$0xff] %v2406
    %2471 = vst [vmem:[#allocation3 + $0x50] sm:$0xff] %v2407
    %2472 = vst [vmem:[#allocation3 + $0x58] sm:$0xff] %v2408
    %2473 = vst [vmem:[#allocation3 + $0x60] sm:$0xff] %v2409
    %2474 = vst [vmem:[#allocation3 + $0x68] sm:$0xff] %v2410
    %2475 = vst [vmem:[#allocation3 + $0x70] sm:$0xff] %v2411
    %2476 = vst [vmem:[#allocation3 + $0x78] sm:$0xff] %v2412
    %2477 = vst [vmem:[#allocation3 + $0x80] sm:$0xff] %v2413
    %2478 = vst [vmem:[#allocation3 + $0x88] sm:$0xff] %v2414
    %2479 = vst [vmem:[#allocation3 + $0x90] sm:$0xff] %v2415
    %2480 = vst [vmem:[#allocation3 + $0x98] sm:$0xff] %v2416
    %2481 = vst [vmem:[#allocation3 + $0xa0] sm:$0xff] %v2417
    %2482 = vst [vmem:[#allocation3 + $0xa8] sm:$0xff] %v2418
    %2483 = vst [vmem:[#allocation3 + $0xb0] sm:$0xff] %v2419
    %2484 = vst [vmem:[#allocation3 + $0xb8] sm:$0xff] %v2420
    %2485 = vst [vmem:[#allocation3 + $0xc0] sm:$0xff] %v2421
    %2486 = vst [vmem:[#allocation3 + $0xc8] sm:$0xff] %v2422
    %2487 = vst [vmem:[#allocation3 + $0xd0] sm:$0xff] %v2423
    %2488 = vst [vmem:[#allocation3 + $0xd8] sm:$0xff] %v2424
    %2489 = vst [vmem:[#allocation3 + $0xe0] sm:$0xff] %v2425
    %2490 = vst [vmem:[#allocation3 + $0xe8] sm:$0xff] %v2426
    %2491 = vst [vmem:[#allocation3 + $0xf0] sm:$0xff] %v2427
    %2492 = vst [vmem:[#allocation3 + $0xf8] sm:$0xff] %v2428
    %2493 = vst [vmem:[#allocation3 + $0x100] sm:$0xff] %v2429
    %2494 = vst [vmem:[#allocation3 + $0x108] sm:$0xff] %v2430
    %2495 = vst [vmem:[#allocation3 + $0x110] sm:$0xff] %v2431
    %2496 = vst [vmem:[#allocation3 + $0x118] sm:$0xff] %v2432
    %2497 = vst [vmem:[#allocation3 + $0x120] sm:$0xff] %v2433
    %2498 = vst [vmem:[#allocation3 + $0x128] sm:$0xff] %v2434
    %2499 = vst [vmem:[#allocation3 + $0x130] sm:$0xff] %v2435
    %2500 = vst [vmem:[#allocation3 + $0x138] sm:$0xff] %v2436
    %2501 = vst [vmem:[#allocation3 + $0x140] sm:$0xff] %v2437
    %2502 = vst [vmem:[#allocation3 + $0x148] sm:$0xff] %v2438
    %2503 = vst [vmem:[#allocation3 + $0x150] sm:$0xff] %v2439
    %2504 = vst [vmem:[#allocation3 + $0x158] sm:$0xff] %v2440
    %2505 = vst [vmem:[#allocation3 + $0x160] sm:$0xff] %v2441
    %2506 = vst [vmem:[#allocation3 + $0x168] sm:$0xff] %v2442
    %2507 = vst [vmem:[#allocation3 + $0x170] sm:$0xff] %v2443
    %2508 = vst [vmem:[#allocation3 + $0x178] sm:$0xff] %v2444
    %2509 = vst [vmem:[#allocation3 + $0x180] sm:$0xff] %v2445
    %2510 = vst [vmem:[#allocation3 + $0x188] sm:$0xff] %v2446
    %2511 = vst [vmem:[#allocation3 + $0x190] sm:$0xff] %v2447
    %2512 = vst [vmem:[#allocation3 + $0x198] sm:$0xff] %v2448
    %2513 = vst [vmem:[#allocation3 + $0x1a0] sm:$0xff] %v2449
    %2514 = vst [vmem:[#allocation3 + $0x1a8] sm:$0xff] %v2450
    %2515 = vst [vmem:[#allocation3 + $0x1b0] sm:$0xff] %v2451
    %2516 = vst [vmem:[#allocation3 + $0x1b8] sm:$0xff] %v2452
    %2517 = vst [vmem:[#allocation3 + $0x1c0] sm:$0xff] %v2453
    %2518 = vst [vmem:[#allocation3 + $0x1c8] sm:$0xff] %v2454
    %2519 = vst [vmem:[#allocation3 + $0x1d0] sm:$0xff] %v2455
    %2520 = vst [vmem:[#allocation3 + $0x1d8] sm:$0xff] %v2456
    %2521 = vst [vmem:[#allocation3 + $0x1e0] sm:$0xff] %v2457
    %2522 = vst [vmem:[#allocation3 + $0x1e8] sm:$0xff] %v2458
    %2523 = vst [vmem:[#allocation3 + $0x1f0] sm:$0xff] %v2459
    %2524 = vst [vmem:[#allocation3 + $0x1f8] sm:$0xff] %v2460
    %v2525 = vld [vmem:[#allocation2 + $0x2] sm:$0xff]
    %v2526 = vld [vmem:[#allocation2 + $0xa] sm:$0xff]
    %v2527 = vld [vmem:[#allocation2 + $0x1a] sm:$0xff]
    %v2528 = vld [vmem:[#allocation2 + $0x22] sm:$0xff]
    %v2529 = vld [vmem:[#allocation2 + $0x32] sm:$0xff]
    %v2530 = vld [vmem:[#allocation2 + $0x3a] sm:$0xff]
    %v2531 = vld [vmem:[#allocation2 + $0x4a] sm:$0xff]
    %v2532 = vld [vmem:[#allocation2 + $0x52] sm:$0xff]
    %v2533 = vld [vmem:[#allocation2 + $0x62] sm:$0xff]
    %v2534 = vld [vmem:[#allocation2 + $0x6a] sm:$0xff]
    %v2535 = vld [vmem:[#allocation2 + $0x7a] sm:$0xff]
    %v2536 = vld [vmem:[#allocation2 + $0x82] sm:$0xff]
    %v2537 = vld [vmem:[#allocation2 + $0x92] sm:$0xff]
    %v2538 = vld [vmem:[#allocation2 + $0x9a] sm:$0xff]
    %v2539 = vld [vmem:[#allocation2 + $0xaa] sm:$0xff]
    %v2540 = vld [vmem:[#allocation2 + $0xb2] sm:$0xff]
    %v2541 = vld [vmem:[#allocation2 + $0xc2] sm:$0xff]
    %v2542 = vld [vmem:[#allocation2 + $0xca] sm:$0xff]
    %v2543 = vld [vmem:[#allocation2 + $0xda] sm:$0xff]
    %v2544 = vld [vmem:[#allocation2 + $0xe2] sm:$0xff]
    %v2545 = vld [vmem:[#allocation2 + $0xf2] sm:$0xff]
    %v2546 = vld [vmem:[#allocation2 + $0xfa] sm:$0xff]
    %v2547 = vld [vmem:[#allocation2 + $0x10a] sm:$0xff]
    %v2548 = vld [vmem:[#allocation2 + $0x112] sm:$0xff]
    %v2549 = vld [vmem:[#allocation2 + $0x122] sm:$0xff]
    %v2550 = vld [vmem:[#allocation2 + $0x12a] sm:$0xff]
    %v2551 = vld [vmem:[#allocation2 + $0x13a] sm:$0xff]
    %v2552 = vld [vmem:[#allocation2 + $0x142] sm:$0xff]
    %v2553 = vld [vmem:[#allocation2 + $0x152] sm:$0xff]
    %v2554 = vld [vmem:[#allocation2 + $0x15a] sm:$0xff]
    %v2555 = vld [vmem:[#allocation2 + $0x16a] sm:$0xff]
    %v2556 = vld [vmem:[#allocation2 + $0x172] sm:$0xff]
    %v2557 = vld [vmem:[#allocation2 + $0x1b2] sm:$0xff]
    %v2558 = vld [vmem:[#allocation2 + $0x1ba] sm:$0xff]
    %v2559 = vld [vmem:[#allocation2 + $0x1ca] sm:$0xff]
    %v2560 = vld [vmem:[#allocation2 + $0x1d2] sm:$0xff]
    %v2561 = vld [vmem:[#allocation2 + $0x1e2] sm:$0xff]
    %v2562 = vld [vmem:[#allocation2 + $0x1ea] sm:$0xff]
    %v2563 = vld [vmem:[#allocation2 + $0x1fa] sm:$0xff]
    %v2564 = vld [vmem:[#allocation2 + $0x202] sm:$0xff]
    %v2565 = vld [vmem:[#allocation2 + $0x212] sm:$0xff]
    %v2566 = vld [vmem:[#allocation2 + $0x21a] sm:$0xff]
    %v2567 = vld [vmem:[#allocation2 + $0x22a] sm:$0xff]
    %v2568 = vld [vmem:[#allocation2 + $0x232] sm:$0xff]
    %v2569 = vld [vmem:[#allocation2 + $0x242] sm:$0xff]
    %v2570 = vld [vmem:[#allocation2 + $0x24a] sm:$0xff]
    %v2571 = vld [vmem:[#allocation2 + $0x25a] sm:$0xff]
    %v2572 = vld [vmem:[#allocation2 + $0x262] sm:$0xff]
    %v2573 = vld [vmem:[#allocation2 + $0x272] sm:$0xff]
    %v2574 = vld [vmem:[#allocation2 + $0x27a] sm:$0xff]
    %v2575 = vld [vmem:[#allocation2 + $0x28a] sm:$0xff]
    %v2576 = vld [vmem:[#allocation2 + $0x292] sm:$0xff]
    %v2577 = vld [vmem:[#allocation2 + $0x2a2] sm:$0xff]
    %v2578 = vld [vmem:[#allocation2 + $0x2aa] sm:$0xff]
    %v2579 = vld [vmem:[#allocation2 + $0x2ba] sm:$0xff]
    %v2580 = vld [vmem:[#allocation2 + $0x2c2] sm:$0xff]
    %v2581 = vld [vmem:[#allocation2 + $0x2d2] sm:$0xff]
    %v2582 = vld [vmem:[#allocation2 + $0x2da] sm:$0xff]
    %v2583 = vld [vmem:[#allocation2 + $0x2ea] sm:$0xff]
    %v2584 = vld [vmem:[#allocation2 + $0x2f2] sm:$0xff]
    %v2585 = vld [vmem:[#allocation2 + $0x302] sm:$0xff]
    %v2586 = vld [vmem:[#allocation2 + $0x30a] sm:$0xff]
    %v2587 = vld [vmem:[#allocation2 + $0x31a] sm:$0xff]
    %v2588 = vld [vmem:[#allocation2 + $0x322] sm:$0xff]
    %v2589 = vld [vmem:[#allocation3] sm:$0xff]
    %v2590 = vld [vmem:[#allocation3 + $0x8] sm:$0xff]
    %v2591 = vld [vmem:[#allocation3 + $0x10] sm:$0xff]
    %v2592 = vld [vmem:[#allocation3 + $0x18] sm:$0xff]
    %v2593 = vld [vmem:[#allocation3 + $0x20] sm:$0xff]
    %v2594 = vld [vmem:[#allocation3 + $0x28] sm:$0xff]
    %v2595 = vld [vmem:[#allocation3 + $0x30] sm:$0xff]
    %v2596 = vld [vmem:[#allocation3 + $0x38] sm:$0xff]
    %v2597 = vld [vmem:[#allocation3 + $0x40] sm:$0xff]
    %v2598 = vld [vmem:[#allocation3 + $0x48] sm:$0xff]
    %v2599 = vld [vmem:[#allocation3 + $0x50] sm:$0xff]
    %v2600 = vld [vmem:[#allocation3 + $0x58] sm:$0xff]
    %v2601 = vld [vmem:[#allocation3 + $0x60] sm:$0xff]
    %v2602 = vld [vmem:[#allocation3 + $0x68] sm:$0xff]
    %v2603 = vld [vmem:[#allocation3 + $0x70] sm:$0xff]
    %v2604 = vld [vmem:[#allocation3 + $0x78] sm:$0xff]
    %v2605 = vld [vmem:[#allocation3 + $0x80] sm:$0xff]
    %v2606 = vld [vmem:[#allocation3 + $0x88] sm:$0xff]
    %v2607 = vld [vmem:[#allocation3 + $0x90] sm:$0xff]
    %v2608 = vld [vmem:[#allocation3 + $0x98] sm:$0xff]
    %v2609 = vld [vmem:[#allocation3 + $0xa0] sm:$0xff]
    %v2610 = vld [vmem:[#allocation3 + $0xa8] sm:$0xff]
    %v2611 = vld [vmem:[#allocation3 + $0xb0] sm:$0xff]
    %v2612 = vld [vmem:[#allocation3 + $0xb8] sm:$0xff]
    %v2613 = vld [vmem:[#allocation3 + $0xc0] sm:$0xff]
    %v2614 = vld [vmem:[#allocation3 + $0xc8] sm:$0xff]
    %v2615 = vld [vmem:[#allocation3 + $0xd0] sm:$0xff]
    %v2616 = vld [vmem:[#allocation3 + $0xd8] sm:$0xff]
    %v2617 = vld [vmem:[#allocation3 + $0xe0] sm:$0xff]
    %v2618 = vld [vmem:[#allocation3 + $0xe8] sm:$0xff]
    %v2619 = vld [vmem:[#allocation3 + $0xf0] sm:$0xff]
    %v2620 = vld [vmem:[#allocation3 + $0xf8] sm:$0xff]
    %v2621 = vld [vmem:[#allocation3 + $0x100] sm:$0xff]
    %v2622 = vld [vmem:[#allocation3 + $0x108] sm:$0xff]
    %v2623 = vld [vmem:[#allocation3 + $0x110] sm:$0xff]
    %v2624 = vld [vmem:[#allocation3 + $0x118] sm:$0xff]
    %v2625 = vld [vmem:[#allocation3 + $0x120] sm:$0xff]
    %v2626 = vld [vmem:[#allocation3 + $0x128] sm:$0xff]
    %v2627 = vld [vmem:[#allocation3 + $0x130] sm:$0xff]
    %v2628 = vld [vmem:[#allocation3 + $0x138] sm:$0xff]
    %v2629 = vld [vmem:[#allocation3 + $0x140] sm:$0xff]
    %v2630 = vld [vmem:[#allocation3 + $0x148] sm:$0xff]
    %v2631 = vld [vmem:[#allocation3 + $0x150] sm:$0xff]
    %v2632 = vld [vmem:[#allocation3 + $0x158] sm:$0xff]
    %v2633 = vld [vmem:[#allocation3 + $0x160] sm:$0xff]
    %v2634 = vld [vmem:[#allocation3 + $0x168] sm:$0xff]
    %v2635 = vld [vmem:[#allocation3 + $0x170] sm:$0xff]
    %v2636 = vld [vmem:[#allocation3 + $0x178] sm:$0xff]
    %v2637 = vld [vmem:[#allocation3 + $0x180] sm:$0xff]
    %v2638 = vld [vmem:[#allocation3 + $0x188] sm:$0xff]
    %v2639 = vld [vmem:[#allocation3 + $0x190] sm:$0xff]
    %v2640 = vld [vmem:[#allocation3 + $0x198] sm:$0xff]
    %v2641 = vld [vmem:[#allocation3 + $0x1a0] sm:$0xff]
    %v2642 = vld [vmem:[#allocation3 + $0x1a8] sm:$0xff]
    %v2643 = vld [vmem:[#allocation3 + $0x1b0] sm:$0xff]
    %v2644 = vld [vmem:[#allocation3 + $0x1b8] sm:$0xff]
    %v2645 = vld [vmem:[#allocation3 + $0x1c0] sm:$0xff]
    %v2646 = vld [vmem:[#allocation3 + $0x1c8] sm:$0xff]
    %v2647 = vld [vmem:[#allocation3 + $0x1d0] sm:$0xff]
    %v2648 = vld [vmem:[#allocation3 + $0x1d8] sm:$0xff]
    %v2649 = vld [vmem:[#allocation3 + $0x1e0] sm:$0xff]
    %v2650 = vld [vmem:[#allocation3 + $0x1e8] sm:$0xff]
    %v2651 = vld [vmem:[#allocation3 + $0x1f0] sm:$0xff]
    %v2652 = vld [vmem:[#allocation3 + $0x1f8] sm:$0xff]
    %s2653 = scalar_lea.vmem [#allocation9], 256
    %v2654 = vld [vmem:[%s2653] sm:$0xff]
    %v2655 = vld [vmem:[%s2653 + $0x8] sm:$0xff]
    %v2656 = vld [vmem:[%s2653 + $0x10] sm:$0xff]
    %v2657 = vld [vmem:[%s2653 + $0x18] sm:$0xff]
    %v2658 = vld [vmem:[%s2653 + $0x20] sm:$0xff]
    %v2659 = vld [vmem:[%s2653 + $0x28] sm:$0xff]
    %v2660 = vld [vmem:[%s2653 + $0x30] sm:$0xff]
    %v2661 = vld [vmem:[%s2653 + $0x38] sm:$0xff]
    %v2662 = vld [vmem:[%s2653 + $0x40] sm:$0xff]
    %v2663 = vld [vmem:[%s2653 + $0x48] sm:$0xff]
    %v2664 = vld [vmem:[%s2653 + $0x50] sm:$0xff]
    %v2665 = vld [vmem:[%s2653 + $0x58] sm:$0xff]
    %v2666 = vld [vmem:[%s2653 + $0x60] sm:$0xff]
    %v2667 = vld [vmem:[%s2653 + $0x68] sm:$0xff]
    %v2668 = vld [vmem:[%s2653 + $0x70] sm:$0xff]
    %v2669 = vld [vmem:[%s2653 + $0x78] sm:$0xff]
    %2670 = vmatprep.subr.mxu0 0.0
    %2671 = vmatpush1.msra.mxu0 %v2654
    %2672 = vmatprep.subr.mxu0 0.0
    %2673 = vmatpush1.msra.mxu0 %v2655
    %2674 = vmatprep.subr.mxu0 0.0
    %2675 = vmatpush1.msra.mxu0 %v2656
    %2676 = vmatprep.subr.mxu0 0.0
    %2677 = vmatpush1.msra.mxu0 %v2657
    %2678 = vmatprep.subr.mxu0 0.0
    %2679 = vmatpush1.msra.mxu0 %v2658
    %2680 = vmatprep.subr.mxu0 0.0
    %2681 = vmatpush1.msra.mxu0 %v2659
    %2682 = vmatprep.subr.mxu0 0.0
    %2683 = vmatpush1.msra.mxu0 %v2660
    %2684 = vmatprep.subr.mxu0 0.0
    %2685 = vmatpush1.msra.mxu0 %v2661
    %2686 = vmatprep.subr.mxu0 0.0
    %2687 = vmatpush1.msra.mxu0 %v2662
    %2688 = vmatprep.subr.mxu0 0.0
    %2689 = vmatpush1.msra.mxu0 %v2663
    %2690 = vmatprep.subr.mxu0 0.0
    %2691 = vmatpush1.msra.mxu0 %v2664
    %2692 = vmatprep.subr.mxu0 0.0
    %2693 = vmatpush1.msra.mxu0 %v2665
    %2694 = vmatprep.subr.mxu0 0.0
    %2695 = vmatpush1.msra.mxu0 %v2666
    %2696 = vmatprep.subr.mxu0 0.0
    %2697 = vmatpush1.msra.mxu0 %v2667
    %2698 = vmatprep.subr.mxu0 0.0
    %2699 = vmatpush1.msra.mxu0 %v2668
    %2700 = vmatprep.subr.mxu0 0.0
    %2701 = vmatpush1.msra.mxu0 %v2669
    %2702 = vmatprep.subr.mxu0 0.0
    %2703 = vmatpush1.msra.mxu0 0.0
    %2704 = vmatprep.subr.mxu0 0.0
    %2705 = vmatpush1.msra.mxu0 0.0
    %2706 = vmatprep.subr.mxu0 0.0
    %2707 = vmatpush1.msra.mxu0 0.0
    %2708 = vmatprep.subr.mxu0 0.0
    %2709 = vmatpush1.msra.mxu0 0.0
    %2710 = vmatprep.subr.mxu0 0.0
    %2711 = vmatpush1.msra.mxu0 0.0
    %2712 = vmatprep.subr.mxu0 0.0
    %2713 = vmatpush1.msra.mxu0 0.0
    %2714 = vmatprep.subr.mxu0 0.0
    %2715 = vmatpush1.msra.mxu0 0.0
    %2716 = vmatprep.subr.mxu0 0.0
    %2717 = vmatpush1.msra.mxu0 0.0
    %2718 = vmatprep.subr.mxu0 0.0
    %2719 = vmatpush1.msra.mxu0 0.0
    %2720 = vmatprep.subr.mxu0 0.0
    %2721 = vmatpush1.msra.mxu0 0.0
    %2722 = vmatprep.subr.mxu0 0.0
    %2723 = vmatpush1.msra.mxu0 0.0
    %2724 = vmatprep.subr.mxu0 0.0
    %2725 = vmatpush1.msra.mxu0 0.0
    %2726 = vmatprep.subr.mxu0 0.0
    %2727 = vmatpush1.msra.mxu0 0.0
    %2728 = vmatprep.subr.mxu0 0.0
    %2729 = vmatpush1.msra.mxu0 0.0
    %2730 = vmatprep.subr.mxu0 0.0
    %2731 = vmatpush1.msra.mxu0 0.0
    %2732 = vmatprep.subr.mxu0 0.0
    %2733 = vmatpush1.msra.mxu0 0.0
    %2734 = vmatprep.mubr.f32.mxu0 0.0
    %2735 = vmatmul.mubr.f32.gmra.mrb[0].mxu0 %v2525
    %v2736 = vpop.f32.mrb[0].mxu0
    %v2737 = vadd.f32 0.0, %v2736
    %v2738 = vpop.f32.mrb[0].mxu0
    %2739 = vmatprep.mubr.f32.mxu0 0.0
    %2740 = vmatmul.mubr.f32.gmra.mrb[0].mxu0 %v2526
    %v2741 = vpop.f32.mrb[0].mxu0
    %v2742 = vadd.f32 0.0, %v2741
    %v2743 = vpop.f32.mrb[0].mxu0
    %2744 = vmatprep.mubr.f32.mxu0 0.0
    %2745 = vmatmul.mubr.f32.gmra.mrb[0].mxu0 %v2527
    %v2746 = vpop.f32.mrb[0].mxu0
    %v2747 = vadd.f32 0.0, %v2746
    %v2748 = vpop.f32.mrb[0].mxu0
    %2749 = vmatprep.mubr.f32.mxu0 0.0
    %2750 = vmatmul.mubr.f32.gmra.mrb[0].mxu0 %v2528
    %v2751 = vpop.f32.mrb[0].mxu0
    %v2752 = vadd.f32 0.0, %v2751
    %v2753 = vpop.f32.mrb[0].mxu0
    %2754 = vmatprep.mubr.f32.mxu0 0.0
    %2755 = vmatmul.mubr.f32.gmra.mrb[0].mxu0 %v2529
    %v2756 = vpop.f32.mrb[0].mxu0
    %v2757 = vadd.f32 0.0, %v2756
    %v2758 = vpop.f32.mrb[0].mxu0
    %2759 = vmatprep.mubr.f32.mxu0 0.0
    %2760 = vmatmul.mubr.f32.gmra.mrb[0].mxu0 %v2530
    %v2761 = vpop.f32.mrb[0].mxu0
    %v2762 = vadd.f32 0.0, %v2761
    %v2763 = vpop.f32.mrb[0].mxu0
    %2764 = vmatprep.mubr.f32.mxu0 0.0
    %2765 = vmatmul.mubr.f32.gmra.mrb[0].mxu0 %v2531
    %v2766 = vpop.f32.mrb[0].mxu0
    %v2767 = vadd.f32 0.0, %v2766
    %v2768 = vpop.f32.mrb[0].mxu0
    %2769 = vmatprep.mubr.f32.mxu0 0.0
    %2770 = vmatmul.mubr.f32.gmra.mrb[0].mxu0 %v2532
    %v2771 = vpop.f32.mrb[0].mxu0
    %v2772 = vadd.f32 0.0, %v2771
    %v2773 = vpop.f32.mrb[0].mxu0
    %2774 = vmatprep.mubr.f32.mxu0 0.0
    %2775 = vmatmul.mubr.f32.gmra.mrb[0].mxu0 %v2533
    %v2776 = vpop.f32.mrb[0].mxu0
    %v2777 = vadd.f32 0.0, %v2776
    %v2778 = vpop.f32.mrb[0].mxu0
    %2779 = vmatprep.mubr.f32.mxu0 0.0
    %2780 = vmatmul.mubr.f32.gmra.mrb[0].mxu0 %v2534
    %v2781 = vpop.f32.mrb[0].mxu0
    %v2782 = vadd.f32 0.0, %v2781
    %v2783 = vpop.f32.mrb[0].mxu0
    %2784 = vmatprep.mubr.f32.mxu0 0.0
    %2785 = vmatmul.mubr.f32.gmra.mrb[0].mxu0 %v2535
    %v2786 = vpop.f32.mrb[0].mxu0
    %v2787 = vadd.f32 0.0, %v2786
    %v2788 = vpop.f32.mrb[0].mxu0
    %2789 = vmatprep.mubr.f32.mxu0 0.0
    %2790 = vmatmul.mubr.f32.gmra.mrb[0].mxu0 %v2536
    %v2791 = vpop.f32.mrb[0].mxu0
    %v2792 = vadd.f32 0.0, %v2791
    %v2793 = vpop.f32.mrb[0].mxu0
    %2794 = vmatprep.mubr.f32.mxu0 0.0
    %2795 = vmatmul.mubr.f32.gmra.mrb[0].mxu0 %v2537
    %v2796 = vpop.f32.mrb[0].mxu0
    %v2797 = vadd.f32 0.0, %v2796
    %v2798 = vpop.f32.mrb[0].mxu0
    %2799 = vmatprep.mubr.f32.mxu0 0.0
    %2800 = vmatmul.mubr.f32.gmra.mrb[0].mxu0 %v2538
    %v2801 = vpop.f32.mrb[0].mxu0
    %v2802 = vadd.f32 0.0, %v2801
    %v2803 = vpop.f32.mrb[0].mxu0
    %2804 = vmatprep.mubr.f32.mxu0 0.0
    %2805 = vmatmul.mubr.f32.gmra.mrb[0].mxu0 %v2539
    %v2806 = vpop.f32.mrb[0].mxu0
    %v2807 = vadd.f32 0.0, %v2806
    %v2808 = vpop.f32.mrb[0].mxu0
    %2809 = vmatprep.mubr.f32.mxu0 0.0
    %2810 = vmatmul.mubr.f32.gmra.mrb[0].mxu0 %v2540
    %v2811 = vpop.f32.mrb[0].mxu0
    %v2812 = vadd.f32 0.0, %v2811
    %v2813 = vpop.f32.mrb[0].mxu0
    %2814 = vmatprep.mubr.f32.mxu0 0.0
    %2815 = vmatmul.mubr.f32.gmra.mrb[0].mxu0 %v2541
    %v2816 = vpop.f32.mrb[0].mxu0
    %v2817 = vadd.f32 0.0, %v2816
    %v2818 = vpop.f32.mrb[0].mxu0
    %2819 = vmatprep.mubr.f32.mxu0 0.0
    %2820 = vmatmul.mubr.f32.gmra.mrb[0].mxu0 %v2542
    %v2821 = vpop.f32.mrb[0].mxu0
    %v2822 = vadd.f32 0.0, %v2821
    %v2823 = vpop.f32.mrb[0].mxu0
    %2824 = vmatprep.mubr.f32.mxu0 0.0
    %2825 = vmatmul.mubr.f32.gmra.mrb[0].mxu0 %v2543
    %v2826 = vpop.f32.mrb[0].mxu0
    %v2827 = vadd.f32 0.0, %v2826
    %v2828 = vpop.f32.mrb[0].mxu0
    %2829 = vmatprep.mubr.f32.mxu0 0.0
    %2830 = vmatmul.mubr.f32.gmra.mrb[0].mxu0 %v2544
    %v2831 = vpop.f32.mrb[0].mxu0
    %v2832 = vadd.f32 0.0, %v2831
    %v2833 = vpop.f32.mrb[0].mxu0
    %2834 = vmatprep.mubr.f32.mxu0 0.0
    %2835 = vmatmul.mubr.f32.gmra.mrb[0].mxu0 %v2545
    %v2836 = vpop.f32.mrb[0].mxu0
    %v2837 = vadd.f32 0.0, %v2836
    %v2838 = vpop.f32.mrb[0].mxu0
    %2839 = vmatprep.mubr.f32.mxu0 0.0
    %2840 = vmatmul.mubr.f32.gmra.mrb[0].mxu0 %v2546
    %v2841 = vpop.f32.mrb[0].mxu0
    %v2842 = vadd.f32 0.0, %v2841
    %v2843 = vpop.f32.mrb[0].mxu0
    %2844 = vmatprep.mubr.f32.mxu0 0.0
    %2845 = vmatmul.mubr.f32.gmra.mrb[0].mxu0 %v2547
    %v2846 = vpop.f32.mrb[0].mxu0
    %v2847 = vadd.f32 0.0, %v2846
    %v2848 = vpop.f32.mrb[0].mxu0
    %2849 = vmatprep.mubr.f32.mxu0 0.0
    %2850 = vmatmul.mubr.f32.gmra.mrb[0].mxu0 %v2548
    %v2851 = vpop.f32.mrb[0].mxu0
    %v2852 = vadd.f32 0.0, %v2851
    %v2853 = vpop.f32.mrb[0].mxu0
    %2854 = vmatprep.mubr.f32.mxu0 0.0
    %2855 = vmatmul.mubr.f32.gmra.mrb[0].mxu0 %v2549
    %v2856 = vpop.f32.mrb[0].mxu0
    %v2857 = vadd.f32 0.0, %v2856
    %v2858 = vpop.f32.mrb[0].mxu0
    %2859 = vmatprep.mubr.f32.mxu0 0.0
    %2860 = vmatmul.mubr.f32.gmra.mrb[0].mxu0 %v2550
    %v2861 = vpop.f32.mrb[0].mxu0
    %v2862 = vadd.f32 0.0, %v2861
    %v2863 = vpop.f32.mrb[0].mxu0
    %2864 = vmatprep.mubr.f32.mxu0 0.0
    %2865 = vmatmul.mubr.f32.gmra.mrb[0].mxu0 %v2551
    %v2866 = vpop.f32.mrb[0].mxu0
    %v2867 = vadd.f32 0.0, %v2866
    %v2868 = vpop.f32.mrb[0].mxu0
    %2869 = vmatprep.mubr.f32.mxu0 0.0
    %2870 = vmatmul.mubr.f32.gmra.mrb[0].mxu0 %v2552
    %v2871 = vpop.f32.mrb[0].mxu0
    %v2872 = vadd.f32 0.0, %v2871
    %v2873 = vpop.f32.mrb[0].mxu0
    %2874 = vmatprep.mubr.f32.mxu0 0.0
    %2875 = vmatmul.mubr.f32.gmra.mrb[0].mxu0 %v2553
    %v2876 = vpop.f32.mrb[0].mxu0
    %v2877 = vadd.f32 0.0, %v2876
    %v2878 = vpop.f32.mrb[0].mxu0
    %2879 = vmatprep.mubr.f32.mxu0 0.0
    %2880 = vmatmul.mubr.f32.gmra.mrb[0].mxu0 %v2554
    %v2881 = vpop.f32.mrb[0].mxu0
    %v2882 = vadd.f32 0.0, %v2881
    %v2883 = vpop.f32.mrb[0].mxu0
    %2884 = vmatprep.mubr.f32.mxu0 0.0
    %2885 = vmatmul.mubr.f32.gmra.mrb[0].mxu0 %v2555
    %v2886 = vpop.f32.mrb[0].mxu0
    %v2887 = vadd.f32 0.0, %v2886
    %v2888 = vpop.f32.mrb[0].mxu0
    %2889 = vmatprep.mubr.f32.mxu0 0.0
    %2890 = vmatmul.mubr.f32.gmra.mrb[0].mxu0 %v2556
    %v2891 = vpop.f32.mrb[0].mxu0
    %v2892 = vadd.f32 0.0, %v2891
    %v2893 = vpop.f32.mrb[0].mxu0
    %2894 = vmatprep.mubr.f32.mxu0 0.0
    %2895 = vmatmul.mubr.f32.gmra.mrb[0].mxu0 %v2557
    %v2896 = vpop.f32.mrb[0].mxu0
    %v2897 = vadd.f32 0.0, %v2896
    %v2898 = vpop.f32.mrb[0].mxu0
    %2899 = vmatprep.mubr.f32.mxu0 0.0
    %2900 = vmatmul.mubr.f32.gmra.mrb[0].mxu0 %v2558
    %v2901 = vpop.f32.mrb[0].mxu0
    %v2902 = vadd.f32 0.0, %v2901
    %v2903 = vpop.f32.mrb[0].mxu0
    %2904 = vmatprep.mubr.f32.mxu0 0.0
    %2905 = vmatmul.mubr.f32.gmra.mrb[0].mxu0 %v2559
    %v2906 = vpop.f32.mrb[0].mxu0
    %v2907 = vadd.f32 0.0, %v2906
    %v2908 = vpop.f32.mrb[0].mxu0
    %2909 = vmatprep.mubr.f32.mxu0 0.0
    %2910 = vmatmul.mubr.f32.gmra.mrb[0].mxu0 %v2560
    %v2911 = vpop.f32.mrb[0].mxu0
    %v2912 = vadd.f32 0.0, %v2911
    %v2913 = vpop.f32.mrb[0].mxu0
    %2914 = vmatprep.mubr.f32.mxu0 0.0
    %2915 = vmatmul.mubr.f32.gmra.mrb[0].mxu0 %v2561
    %v2916 = vpop.f32.mrb[0].mxu0
    %v2917 = vadd.f32 0.0, %v2916
    %v2918 = vpop.f32.mrb[0].mxu0
    %2919 = vmatprep.mubr.f32.mxu0 0.0
    %2920 = vmatmul.mubr.f32.gmra.mrb[0].mxu0 %v2562
    %v2921 = vpop.f32.mrb[0].mxu0
    %v2922 = vadd.f32 0.0, %v2921
    %v2923 = vpop.f32.mrb[0].mxu0
    %2924 = vmatprep.mubr.f32.mxu0 0.0
    %2925 = vmatmul.mubr.f32.gmra.mrb[0].mxu0 %v2563
    %v2926 = vpop.f32.mrb[0].mxu0
    %v2927 = vadd.f32 0.0, %v2926
    %v2928 = vpop.f32.mrb[0].mxu0
    %2929 = vmatprep.mubr.f32.mxu0 0.0
    %2930 = vmatmul.mubr.f32.gmra.mrb[0].mxu0 %v2564
    %v2931 = vpop.f32.mrb[0].mxu0
    %v2932 = vadd.f32 0.0, %v2931
    %v2933 = vpop.f32.mrb[0].mxu0
    %2934 = vmatprep.mubr.f32.mxu0 0.0
    %2935 = vmatmul.mubr.f32.gmra.mrb[0].mxu0 %v2565
    %v2936 = vpop.f32.mrb[0].mxu0
    %v2937 = vadd.f32 0.0, %v2936
    %v2938 = vpop.f32.mrb[0].mxu0
    %2939 = vmatprep.mubr.f32.mxu0 0.0
    %2940 = vmatmul.mubr.f32.gmra.mrb[0].mxu0 %v2566
    %v2941 = vpop.f32.mrb[0].mxu0
    %v2942 = vadd.f32 0.0, %v2941
    %v2943 = vpop.f32.mrb[0].mxu0
    %2944 = vmatprep.mubr.f32.mxu0 0.0
    %2945 = vmatmul.mubr.f32.gmra.mrb[0].mxu0 %v2567
    %v2946 = vpop.f32.mrb[0].mxu0
    %v2947 = vadd.f32 0.0, %v2946
    %v2948 = vpop.f32.mrb[0].mxu0
    %2949 = vmatprep.mubr.f32.mxu0 0.0
    %2950 = vmatmul.mubr.f32.gmra.mrb[0].mxu0 %v2568
    %v2951 = vpop.f32.mrb[0].mxu0
    %v2952 = vadd.f32 0.0, %v2951
    %v2953 = vpop.f32.mrb[0].mxu0
    %2954 = vmatprep.mubr.f32.mxu0 0.0
    %2955 = vmatmul.mubr.f32.gmra.mrb[0].mxu0 %v2569
    %v2956 = vpop.f32.mrb[0].mxu0
    %v2957 = vadd.f32 0.0, %v2956
    %v2958 = vpop.f32.mrb[0].mxu0
    %2959 = vmatprep.mubr.f32.mxu0 0.0
    %2960 = vmatmul.mubr.f32.gmra.mrb[0].mxu0 %v2570
    %v2961 = vpop.f32.mrb[0].mxu0
    %v2962 = vadd.f32 0.0, %v2961
    %v2963 = vpop.f32.mrb[0].mxu0
    %2964 = vmatprep.mubr.f32.mxu0 0.0
    %2965 = vmatmul.mubr.f32.gmra.mrb[0].mxu0 %v2571
    %v2966 = vpop.f32.mrb[0].mxu0
    %v2967 = vadd.f32 0.0, %v2966
    %v2968 = vpop.f32.mrb[0].mxu0
    %2969 = vmatprep.mubr.f32.mxu0 0.0
    %2970 = vmatmul.mubr.f32.gmra.mrb[0].mxu0 %v2572
    %v2971 = vpop.f32.mrb[0].mxu0
    %v2972 = vadd.f32 0.0, %v2971
    %v2973 = vpop.f32.mrb[0].mxu0
    %2974 = vmatprep.mubr.f32.mxu0 0.0
    %2975 = vmatmul.mubr.f32.gmra.mrb[0].mxu0 %v2573
    %v2976 = vpop.f32.mrb[0].mxu0
    %v2977 = vadd.f32 0.0, %v2976
    %v2978 = vpop.f32.mrb[0].mxu0
    %2979 = vmatprep.mubr.f32.mxu0 0.0
    %2980 = vmatmul.mubr.f32.gmra.mrb[0].mxu0 %v2574
    %v2981 = vpop.f32.mrb[0].mxu0
    %v2982 = vadd.f32 0.0, %v2981
    %v2983 = vpop.f32.mrb[0].mxu0
    %2984 = vmatprep.mubr.f32.mxu0 0.0
    %2985 = vmatmul.mubr.f32.gmra.mrb[0].mxu0 %v2575
    %v2986 = vpop.f32.mrb[0].mxu0
    %v2987 = vadd.f32 0.0, %v2986
    %v2988 = vpop.f32.mrb[0].mxu0
    %2989 = vmatprep.mubr.f32.mxu0 0.0
    %2990 = vmatmul.mubr.f32.gmra.mrb[0].mxu0 %v2576
    %v2991 = vpop.f32.mrb[0].mxu0
    %v2992 = vadd.f32 0.0, %v2991
    %v2993 = vpop.f32.mrb[0].mxu0
    %2994 = vmatprep.mubr.f32.mxu0 0.0
    %2995 = vmatmul.mubr.f32.gmra.mrb[0].mxu0 %v2577
    %v2996 = vpop.f32.mrb[0].mxu0
    %v2997 = vadd.f32 0.0, %v2996
    %v2998 = vpop.f32.mrb[0].mxu0
    %2999 = vmatprep.mubr.f32.mxu0 0.0
    %3000 = vmatmul.mubr.f32.gmra.mrb[0].mxu0 %v2578
    %v3001 = vpop.f32.mrb[0].mxu0
    %v3002 = vadd.f32 0.0, %v3001
    %v3003 = vpop.f32.mrb[0].mxu0
    %3004 = vmatprep.mubr.f32.mxu0 0.0
    %3005 = vmatmul.mubr.f32.gmra.mrb[0].mxu0 %v2579
    %v3006 = vpop.f32.mrb[0].mxu0
    %v3007 = vadd.f32 0.0, %v3006
    %v3008 = vpop.f32.mrb[0].mxu0
    %3009 = vmatprep.mubr.f32.mxu0 0.0
    %3010 = vmatmul.mubr.f32.gmra.mrb[0].mxu0 %v2580
    %v3011 = vpop.f32.mrb[0].mxu0
    %v3012 = vadd.f32 0.0, %v3011
    %v3013 = vpop.f32.mrb[0].mxu0
    %3014 = vmatprep.mubr.f32.mxu0 0.0
    %3015 = vmatmul.mubr.f32.gmra.mrb[0].mxu0 %v2581
    %v3016 = vpop.f32.mrb[0].mxu0
    %v3017 = vadd.f32 0.0, %v3016
    %v3018 = vpop.f32.mrb[0].mxu0
    %3019 = vmatprep.mubr.f32.mxu0 0.0
    %3020 = vmatmul.mubr.f32.gmra.mrb[0].mxu0 %v2582
    %v3021 = vpop.f32.mrb[0].mxu0
    %v3022 = vadd.f32 0.0, %v3021
    %v3023 = vpop.f32.mrb[0].mxu0
    %3024 = vmatprep.mubr.f32.mxu0 0.0
    %3025 = vmatmul.mubr.f32.gmra.mrb[0].mxu0 %v2583
    %v3026 = vpop.f32.mrb[0].mxu0
    %v3027 = vadd.f32 0.0, %v3026
    %v3028 = vpop.f32.mrb[0].mxu0
    %3029 = vmatprep.mubr.f32.mxu0 0.0
    %3030 = vmatmul.mubr.f32.gmra.mrb[0].mxu0 %v2584
    %v3031 = vpop.f32.mrb[0].mxu0
    %v3032 = vadd.f32 0.0, %v3031
    %v3033 = vpop.f32.mrb[0].mxu0
    %3034 = vmatprep.mubr.f32.mxu0 0.0
    %3035 = vmatmul.mubr.f32.gmra.mrb[0].mxu0 %v2585
    %v3036 = vpop.f32.mrb[0].mxu0
    %v3037 = vadd.f32 0.0, %v3036
    %v3038 = vpop.f32.mrb[0].mxu0
    %3039 = vmatprep.mubr.f32.mxu0 0.0
    %3040 = vmatmul.mubr.f32.gmra.mrb[0].mxu0 %v2586
    %v3041 = vpop.f32.mrb[0].mxu0
    %v3042 = vadd.f32 0.0, %v3041
    %v3043 = vpop.f32.mrb[0].mxu0
    %3044 = vmatprep.mubr.f32.mxu0 0.0
    %3045 = vmatmul.mubr.f32.gmra.mrb[0].mxu0 %v2587
    %v3046 = vpop.f32.mrb[0].mxu0
    %v3047 = vadd.f32 0.0, %v3046
    %v3048 = vpop.f32.mrb[0].mxu0
    %3049 = vmatprep.mubr.f32.mxu0 0.0
    %3050 = vmatmul.mubr.f32.gmra.mrb[0].mxu0 %v2588
    %v3051 = vpop.f32.mrb[0].mxu0
    %v3052 = vadd.f32 0.0, %v3051
    %v3053 = vpop.f32.mrb[0].mxu0
    %3054 = vdwg.mxu0
    %v3055 = vadd.f32 %v2589, %v2737
    %v3056 = vadd.f32 %v2590, %v2742
    %v3057 = vadd.f32 %v2591, %v2747
    %v3058 = vadd.f32 %v2592, %v2752
    %v3059 = vadd.f32 %v2593, %v2757
    %v3060 = vadd.f32 %v2594, %v2762
    %v3061 = vadd.f32 %v2595, %v2767
    %v3062 = vadd.f32 %v2596, %v2772
    %v3063 = vadd.f32 %v2597, %v2777
    %v3064 = vadd.f32 %v2598, %v2782
    %v3065 = vadd.f32 %v2599, %v2787
    %v3066 = vadd.f32 %v2600, %v2792
    %v3067 = vadd.f32 %v2601, %v2797
    %v3068 = vadd.f32 %v2602, %v2802
    %v3069 = vadd.f32 %v2603, %v2807
    %v3070 = vadd.f32 %v2604, %v2812
    %v3071 = vadd.f32 %v2605, %v2817
    %v3072 = vadd.f32 %v2606, %v2822
    %v3073 = vadd.f32 %v2607, %v2827
    %v3074 = vadd.f32 %v2608, %v2832
    %v3075 = vadd.f32 %v2609, %v2837
    %v3076 = vadd.f32 %v2610, %v2842
    %v3077 = vadd.f32 %v2611, %v2847
    %v3078 = vadd.f32 %v2612, %v2852
    %v3079 = vadd.f32 %v2613, %v2857
    %v3080 = vadd.f32 %v2614, %v2862
    %v3081 = vadd.f32 %v2615, %v2867
    %v3082 = vadd.f32 %v2616, %v2872
    %v3083 = vadd.f32 %v2617, %v2877
    %v3084 = vadd.f32 %v2618, %v2882
    %v3085 = vadd.f32 %v2619, %v2887
    %v3086 = vadd.f32 %v2620, %v2892
    %v3087 = vadd.f32 %v2621, %v2897
    %v3088 = vadd.f32 %v2622, %v2902
    %v3089 = vadd.f32 %v2623, %v2907
    %v3090 = vadd.f32 %v2624, %v2912
    %v3091 = vadd.f32 %v2625, %v2917
    %v3092 = vadd.f32 %v2626, %v2922
    %v3093 = vadd.f32 %v2627, %v2927
    %v3094 = vadd.f32 %v2628, %v2932
    %v3095 = vadd.f32 %v2629, %v2937
    %v3096 = vadd.f32 %v2630, %v2942
    %v3097 = vadd.f32 %v2631, %v2947
    %v3098 = vadd.f32 %v2632, %v2952
    %v3099 = vadd.f32 %v2633, %v2957
    %v3100 = vadd.f32 %v2634, %v2962
    %v3101 = vadd.f32 %v2635, %v2967
    %v3102 = vadd.f32 %v2636, %v2972
    %v3103 = vadd.f32 %v2637, %v2977
    %v3104 = vadd.f32 %v2638, %v2982
    %v3105 = vadd.f32 %v2639, %v2987
    %v3106 = vadd.f32 %v2640, %v2992
    %v3107 = vadd.f32 %v2641, %v2997
    %v3108 = vadd.f32 %v2642, %v3002
    %v3109 = vadd.f32 %v2643, %v3007
    %v3110 = vadd.f32 %v2644, %v3012
    %v3111 = vadd.f32 %v2645, %v3017
    %v3112 = vadd.f32 %v2646, %v3022
    %v3113 = vadd.f32 %v2647, %v3027
    %v3114 = vadd.f32 %v2648, %v3032
    %v3115 = vadd.f32 %v2649, %v3037
    %v3116 = vadd.f32 %v2650, %v3042
    %v3117 = vadd.f32 %v2651, %v3047
    %v3118 = vadd.f32 %v2652, %v3052
    %3119 = vst [vmem:[#allocation3] sm:$0xff] %v3055
    %3120 = vst [vmem:[#allocation3 + $0x8] sm:$0xff] %v3056
    %3121 = vst [vmem:[#allocation3 + $0x10] sm:$0xff] %v3057
    %3122 = vst [vmem:[#allocation3 + $0x18] sm:$0xff] %v3058
    %3123 = vst [vmem:[#allocation3 + $0x20] sm:$0xff] %v3059
    %3124 = vst [vmem:[#allocation3 + $0x28] sm:$0xff] %v3060
    %3125 = vst [vmem:[#allocation3 + $0x30] sm:$0xff] %v3061
    %3126 = vst [vmem:[#allocation3 + $0x38] sm:$0xff] %v3062
    %3127 = vst [vmem:[#allocation3 + $0x40] sm:$0xff] %v3063
    %3128 = vst [vmem:[#allocation3 + $0x48] sm:$0xff] %v3064
    %3129 = vst [vmem:[#allocation3 + $0x50] sm:$0xff] %v3065
    %3130 = vst [vmem:[#allocation3 + $0x58] sm:$0xff] %v3066
    %3131 = vst [vmem:[#allocation3 + $0x60] sm:$0xff] %v3067
    %3132 = vst [vmem:[#allocation3 + $0x68] sm:$0xff] %v3068
    %3133 = vst [vmem:[#allocation3 + $0x70] sm:$0xff] %v3069
    %3134 = vst [vmem:[#allocation3 + $0x78] sm:$0xff] %v3070
    %3135 = vst [vmem:[#allocation3 + $0x80] sm:$0xff] %v3071
    %3136 = vst [vmem:[#allocation3 + $0x88] sm:$0xff] %v3072
    %3137 = vst [vmem:[#allocation3 + $0x90] sm:$0xff] %v3073
    %3138 = vst [vmem:[#allocation3 + $0x98] sm:$0xff] %v3074
    %3139 = vst [vmem:[#allocation3 + $0xa0] sm:$0xff] %v3075
    %3140 = vst [vmem:[#allocation3 + $0xa8] sm:$0xff] %v3076
    %3141 = vst [vmem:[#allocation3 + $0xb0] sm:$0xff] %v3077
    %3142 = vst [vmem:[#allocation3 + $0xb8] sm:$0xff] %v3078
    %3143 = vst [vmem:[#allocation3 + $0xc0] sm:$0xff] %v3079
    %3144 = vst [vmem:[#allocation3 + $0xc8] sm:$0xff] %v3080
    %3145 = vst [vmem:[#allocation3 + $0xd0] sm:$0xff] %v3081
    %3146 = vst [vmem:[#allocation3 + $0xd8] sm:$0xff] %v3082
    %3147 = vst [vmem:[#allocation3 + $0xe0] sm:$0xff] %v3083
    %3148 = vst [vmem:[#allocation3 + $0xe8] sm:$0xff] %v3084
    %3149 = vst [vmem:[#allocation3 + $0xf0] sm:$0xff] %v3085
    %3150 = vst [vmem:[#allocation3 + $0xf8] sm:$0xff] %v3086
    %3151 = vst [vmem:[#allocation3 + $0x100] sm:$0xff] %v3087
    %3152 = vst [vmem:[#allocation3 + $0x108] sm:$0xff] %v3088
    %3153 = vst [vmem:[#allocation3 + $0x110] sm:$0xff] %v3089
    %3154 = vst [vmem:[#allocation3 + $0x118] sm:$0xff] %v3090
    %3155 = vst [vmem:[#allocation3 + $0x120] sm:$0xff] %v3091
    %3156 = vst [vmem:[#allocation3 + $0x128] sm:$0xff] %v3092
    %3157 = vst [vmem:[#allocation3 + $0x130] sm:$0xff] %v3093
    %3158 = vst [vmem:[#allocation3 + $0x138] sm:$0xff] %v3094
    %3159 = vst [vmem:[#allocation3 + $0x140] sm:$0xff] %v3095
    %3160 = vst [vmem:[#allocation3 + $0x148] sm:$0xff] %v3096
    %3161 = vst [vmem:[#allocation3 + $0x150] sm:$0xff] %v3097
    %3162 = vst [vmem:[#allocation3 + $0x158] sm:$0xff] %v3098
    %3163 = vst [vmem:[#allocation3 + $0x160] sm:$0xff] %v3099
    %3164 = vst [vmem:[#allocation3 + $0x168] sm:$0xff] %v3100
    %3165 = vst [vmem:[#allocation3 + $0x170] sm:$0xff] %v3101
    %3166 = vst [vmem:[#allocation3 + $0x178] sm:$0xff] %v3102
    %3167 = vst [vmem:[#allocation3 + $0x180] sm:$0xff] %v3103
    %3168 = vst [vmem:[#allocation3 + $0x188] sm:$0xff] %v3104
    %3169 = vst [vmem:[#allocation3 + $0x190] sm:$0xff] %v3105
    %3170 = vst [vmem:[#allocation3 + $0x198] sm:$0xff] %v3106
    %3171 = vst [vmem:[#allocation3 + $0x1a0] sm:$0xff] %v3107
    %3172 = vst [vmem:[#allocation3 + $0x1a8] sm:$0xff] %v3108
    %3173 = vst [vmem:[#allocation3 + $0x1b0] sm:$0xff] %v3109
    %3174 = vst [vmem:[#allocation3 + $0x1b8] sm:$0xff] %v3110
    %3175 = vst [vmem:[#allocation3 + $0x1c0] sm:$0xff] %v3111
    %3176 = vst [vmem:[#allocation3 + $0x1c8] sm:$0xff] %v3112
    %3177 = vst [vmem:[#allocation3 + $0x1d0] sm:$0xff] %v3113
    %3178 = vst [vmem:[#allocation3 + $0x1d8] sm:$0xff] %v3114
    %3179 = vst [vmem:[#allocation3 + $0x1e0] sm:$0xff] %v3115
    %3180 = vst [vmem:[#allocation3 + $0x1e8] sm:$0xff] %v3116
    %3181 = vst [vmem:[#allocation3 + $0x1f0] sm:$0xff] %v3117
    %3182 = vst [vmem:[#allocation3 + $0x1f8] sm:$0xff] %v3118
    %v3183 = vld [vmem:[%s1081] sm:$0xff]
    %v3184 = vld [vmem:[%s1081 + $0x8] sm:$0xff]
    %v3185 = vld [vmem:[%s1081 + $0x18] sm:$0xff]
    %v3186 = vld [vmem:[%s1081 + $0x20] sm:$0xff]
    %v3187 = vld [vmem:[%s1081 + $0x30] sm:$0xff]
    %v3188 = vld [vmem:[%s1081 + $0x38] sm:$0xff]
    %v3189 = vld [vmem:[%s1081 + $0x48] sm:$0xff]
    %v3190 = vld [vmem:[%s1081 + $0x50] sm:$0xff]
    %v3191 = vld [vmem:[%s1081 + $0x60] sm:$0xff]
    %v3192 = vld [vmem:[%s1081 + $0x68] sm:$0xff]
    %v3193 = vld [vmem:[%s1081 + $0x78] sm:$0xff]
    %v3194 = vld [vmem:[%s1081 + $0x80] sm:$0xff]
    %v3195 = vld [vmem:[%s1081 + $0x90] sm:$0xff]
    %v3196 = vld [vmem:[%s1081 + $0x98] sm:$0xff]
    %v3197 = vld [vmem:[%s1081 + $0xa8] sm:$0xff]
    %v3198 = vld [vmem:[%s1081 + $0xb0] sm:$0xff]
    %v3199 = vld [vmem:[%s1081 + $0xc0] sm:$0xff]
    %v3200 = vld [vmem:[%s1081 + $0xc8] sm:$0xff]
    %v3201 = vld [vmem:[%s1081 + $0xd8] sm:$0xff]
    %v3202 = vld [vmem:[%s1081 + $0xe0] sm:$0xff]
    %v3203 = vld [vmem:[%s1081 + $0xf0] sm:$0xff]
    %v3204 = vld [vmem:[%s1081 + $0xf8] sm:$0xff]
    %v3205 = vld [vmem:[%s1081 + $0x108] sm:$0xff]
    %v3206 = vld [vmem:[%s1081 + $0x110] sm:$0xff]
    %v3207 = vld [vmem:[%s1081 + $0x120] sm:$0xff]
    %v3208 = vld [vmem:[%s1081 + $0x128] sm:$0xff]
    %v3209 = vld [vmem:[%s1081 + $0x138] sm:$0xff]
    %v3210 = vld [vmem:[%s1081 + $0x140] sm:$0xff]
    %v3211 = vld [vmem:[%s1081 + $0x150] sm:$0xff]
    %v3212 = vld [vmem:[%s1081 + $0x158] sm:$0xff]
    %v3213 = vld [vmem:[%s1081 + $0x168] sm:$0xff]
    %v3214 = vld [vmem:[%s1081 + $0x170] sm:$0xff]
    %v3215 = vld [vmem:[%s1081 + $0x1b0] sm:$0xff]
    %v3216 = vld [vmem:[%s1081 + $0x1b8] sm:$0xff]
    %v3217 = vld [vmem:[%s1081 + $0x1c8] sm:$0xff]
    %v3218 = vld [vmem:[%s1081 + $0x1d0] sm:$0xff]
    %v3219 = vld [vmem:[%s1081 + $0x1e0] sm:$0xff]
    %v3220 = vld [vmem:[%s1081 + $0x1e8] sm:$0xff]
    %v3221 = vld [vmem:[%s1081 + $0x1f8] sm:$0xff]
    %v3222 = vld [vmem:[%s1081 + $0x200] sm:$0xff]
    %v3223 = vld [vmem:[%s1081 + $0x210] sm:$0xff]
    %v3224 = vld [vmem:[%s1081 + $0x218] sm:$0xff]
    %v3225 = vld [vmem:[%s1081 + $0x228] sm:$0xff]
    %v3226 = vld [vmem:[%s1081 + $0x230] sm:$0xff]
    %v3227 = vld [vmem:[%s1081 + $0x240] sm:$0xff]
    %v3228 = vld [vmem:[%s1081 + $0x248] sm:$0xff]
    %v3229 = vld [vmem:[%s1081 + $0x258] sm:$0xff]
    %v3230 = vld [vmem:[%s1081 + $0x260] sm:$0xff]
    %v3231 = vld [vmem:[%s1081 + $0x270] sm:$0xff]
    %v3232 = vld [vmem:[%s1081 + $0x278] sm:$0xff]
    %v3233 = vld [vmem:[%s1081 + $0x288] sm:$0xff]
    %v3234 = vld [vmem:[%s1081 + $0x290] sm:$0xff]
    %v3235 = vld [vmem:[%s1081 + $0x2a0] sm:$0xff]
    %v3236 = vld [vmem:[%s1081 + $0x2a8] sm:$0xff]
    %v3237 = vld [vmem:[%s1081 + $0x2b8] sm:$0xff]
    %v3238 = vld [vmem:[%s1081 + $0x2c0] sm:$0xff]
    %v3239 = vld [vmem:[%s1081 + $0x2d0] sm:$0xff]
    %v3240 = vld [vmem:[%s1081 + $0x2d8] sm:$0xff]
    %v3241 = vld [vmem:[%s1081 + $0x2e8] sm:$0xff]
    %v3242 = vld [vmem:[%s1081 + $0x2f0] sm:$0xff]
    %v3243 = vld [vmem:[%s1081 + $0x300] sm:$0xff]
    %v3244 = vld [vmem:[%s1081 + $0x308] sm:$0xff]
    %v3245 = vld [vmem:[%s1081 + $0x318] sm:$0xff]
    %v3246 = vld [vmem:[%s1081 + $0x320] sm:$0xff]
    %v3247 = vld [vmem:[#allocation3] sm:$0xff]
    %v3248 = vld [vmem:[#allocation3 + $0x8] sm:$0xff]
    %v3249 = vld [vmem:[#allocation3 + $0x10] sm:$0xff]
    %v3250 = vld [vmem:[#allocation3 + $0x18] sm:$0xff]
    %v3251 = vld [vmem:[#allocation3 + $0x20] sm:$0xff]
    %v3252 = vld [vmem:[#allocation3 + $0x28] sm:$0xff]
    %v3253 = vld [vmem:[#allocation3 + $0x30] sm:$0xff]
    %v3254 = vld [vmem:[#allocation3 + $0x38] sm:$0xff]
    %v3255 = vld [vmem:[#allocation3 + $0x40] sm:$0xff]
    %v3256 = vld [vmem:[#allocation3 + $0x48] sm:$0xff]
    %v3257 = vld [vmem:[#allocation3 + $0x50] sm:$0xff]
    %v3258 = vld [vmem:[#allocation3 + $0x58] sm:$0xff]
    %v3259 = vld [vmem:[#allocation3 + $0x60] sm:$0xff]
    %v3260 = vld [vmem:[#allocation3 + $0x68] sm:$0xff]
    %v3261 = vld [vmem:[#allocation3 + $0x70] sm:$0xff]
    %v3262 = vld [vmem:[#allocation3 + $0x78] sm:$0xff]
    %v3263 = vld [vmem:[#allocation3 + $0x80] sm:$0xff]
    %v3264 = vld [vmem:[#allocation3 + $0x88] sm:$0xff]
    %v3265 = vld [vmem:[#allocation3 + $0x90] sm:$0xff]
    %v3266 = vld [vmem:[#allocation3 + $0x98] sm:$0xff]
    %v3267 = vld [vmem:[#allocation3 + $0xa0] sm:$0xff]
    %v3268 = vld [vmem:[#allocation3 + $0xa8] sm:$0xff]
    %v3269 = vld [vmem:[#allocation3 + $0xb0] sm:$0xff]
    %v3270 = vld [vmem:[#allocation3 + $0xb8] sm:$0xff]
    %v3271 = vld [vmem:[#allocation3 + $0xc0] sm:$0xff]
    %v3272 = vld [vmem:[#allocation3 + $0xc8] sm:$0xff]
    %v3273 = vld [vmem:[#allocation3 + $0xd0] sm:$0xff]
    %v3274 = vld [vmem:[#allocation3 + $0xd8] sm:$0xff]
    %v3275 = vld [vmem:[#allocation3 + $0xe0] sm:$0xff]
    %v3276 = vld [vmem:[#allocation3 + $0xe8] sm:$0xff]
    %v3277 = vld [vmem:[#allocation3 + $0xf0] sm:$0xff]
    %v3278 = vld [vmem:[#allocation3 + $0xf8] sm:$0xff]
    %v3279 = vld [vmem:[#allocation3 + $0x100] sm:$0xff]
    %v3280 = vld [vmem:[#allocation3 + $0x108] sm:$0xff]
    %v3281 = vld [vmem:[#allocation3 + $0x110] sm:$0xff]
    %v3282 = vld [vmem:[#allocation3 + $0x118] sm:$0xff]
    %v3283 = vld [vmem:[#allocation3 + $0x120] sm:$0xff]
    %v3284 = vld [vmem:[#allocation3 + $0x128] sm:$0xff]
    %v3285 = vld [vmem:[#allocation3 + $0x130] sm:$0xff]
    %v3286 = vld [vmem:[#allocation3 + $0x138] sm:$0xff]
    %v3287 = vld [vmem:[#allocation3 + $0x140] sm:$0xff]
    %v3288 = vld [vmem:[#allocation3 + $0x148] sm:$0xff]
    %v3289 = vld [vmem:[#allocation3 + $0x150] sm:$0xff]
    %v3290 = vld [vmem:[#allocation3 + $0x158] sm:$0xff]
    %v3291 = vld [vmem:[#allocation3 + $0x160] sm:$0xff]
    %v3292 = vld [vmem:[#allocation3 + $0x168] sm:$0xff]
    %v3293 = vld [vmem:[#allocation3 + $0x170] sm:$0xff]
    %v3294 = vld [vmem:[#allocation3 + $0x178] sm:$0xff]
    %v3295 = vld [vmem:[#allocation3 + $0x180] sm:$0xff]
    %v3296 = vld [vmem:[#allocation3 + $0x188] sm:$0xff]
    %v3297 = vld [vmem:[#allocation3 + $0x190] sm:$0xff]
    %v3298 = vld [vmem:[#allocation3 + $0x198] sm:$0xff]
    %v3299 = vld [vmem:[#allocation3 + $0x1a0] sm:$0xff]
    %v3300 = vld [vmem:[#allocation3 + $0x1a8] sm:$0xff]
    %v3301 = vld [vmem:[#allocation3 + $0x1b0] sm:$0xff]
    %v3302 = vld [vmem:[#allocation3 + $0x1b8] sm:$0xff]
    %v3303 = vld [vmem:[#allocation3 + $0x1c0] sm:$0xff]
    %v3304 = vld [vmem:[#allocation3 + $0x1c8] sm:$0xff]
    %v3305 = vld [vmem:[#allocation3 + $0x1d0] sm:$0xff]
    %v3306 = vld [vmem:[#allocation3 + $0x1d8] sm:$0xff]
    %v3307 = vld [vmem:[#allocation3 + $0x1e0] sm:$0xff]
    %v3308 = vld [vmem:[#allocation3 + $0x1e8] sm:$0xff]
    %v3309 = vld [vmem:[#allocation3 + $0x1f0] sm:$0xff]
    %v3310 = vld [vmem:[#allocation3 + $0x1f8] sm:$0xff]
    %s3311 = scalar_lea.vmem [#allocation9], 384
    %v3312 = vld [vmem:[%s3311] sm:$0xff]
    %v3313 = vld [vmem:[%s3311 + $0x8] sm:$0xff]
    %v3314 = vld [vmem:[%s3311 + $0x10] sm:$0xff]
    %v3315 = vld [vmem:[%s3311 + $0x18] sm:$0xff]
    %v3316 = vld [vmem:[%s3311 + $0x20] sm:$0xff]
    %v3317 = vld [vmem:[%s3311 + $0x28] sm:$0xff]
    %v3318 = vld [vmem:[%s3311 + $0x30] sm:$0xff]
    %v3319 = vld [vmem:[%s3311 + $0x38] sm:$0xff]
    %v3320 = vld [vmem:[%s3311 + $0x40] sm:$0xff]
    %v3321 = vld [vmem:[%s3311 + $0x48] sm:$0xff]
    %v3322 = vld [vmem:[%s3311 + $0x50] sm:$0xff]
    %v3323 = vld [vmem:[%s3311 + $0x58] sm:$0xff]
    %v3324 = vld [vmem:[%s3311 + $0x60] sm:$0xff]
    %v3325 = vld [vmem:[%s3311 + $0x68] sm:$0xff]
    %v3326 = vld [vmem:[%s3311 + $0x70] sm:$0xff]
    %v3327 = vld [vmem:[%s3311 + $0x78] sm:$0xff]
    %3328 = vmatprep.subr.mxu0 0.0
    %3329 = vmatpush1.msra.mxu0 %v3312
    %3330 = vmatprep.subr.mxu0 0.0
    %3331 = vmatpush1.msra.mxu0 %v3313
    %3332 = vmatprep.subr.mxu0 0.0
    %3333 = vmatpush1.msra.mxu0 %v3314
    %3334 = vmatprep.subr.mxu0 0.0
    %3335 = vmatpush1.msra.mxu0 %v3315
    %3336 = vmatprep.subr.mxu0 0.0
    %3337 = vmatpush1.msra.mxu0 %v3316
    %3338 = vmatprep.subr.mxu0 0.0
    %3339 = vmatpush1.msra.mxu0 %v3317
    %3340 = vmatprep.subr.mxu0 0.0
    %3341 = vmatpush1.msra.mxu0 %v3318
    %3342 = vmatprep.subr.mxu0 0.0
    %3343 = vmatpush1.msra.mxu0 %v3319
    %3344 = vmatprep.subr.mxu0 0.0
    %3345 = vmatpush1.msra.mxu0 %v3320
    %3346 = vmatprep.subr.mxu0 0.0
    %3347 = vmatpush1.msra.mxu0 %v3321
    %3348 = vmatprep.subr.mxu0 0.0
    %3349 = vmatpush1.msra.mxu0 %v3322
    %3350 = vmatprep.subr.mxu0 0.0
    %3351 = vmatpush1.msra.mxu0 %v3323
    %3352 = vmatprep.subr.mxu0 0.0
    %3353 = vmatpush1.msra.mxu0 %v3324
    %3354 = vmatprep.subr.mxu0 0.0
    %3355 = vmatpush1.msra.mxu0 %v3325
    %3356 = vmatprep.subr.mxu0 0.0
    %3357 = vmatpush1.msra.mxu0 %v3326
    %3358 = vmatprep.subr.mxu0 0.0
    %3359 = vmatpush1.msra.mxu0 %v3327
    %3360 = vmatprep.subr.mxu0 0.0
    %3361 = vmatpush1.msra.mxu0 0.0
    %3362 = vmatprep.subr.mxu0 0.0
    %3363 = vmatpush1.msra.mxu0 0.0
    %3364 = vmatprep.subr.mxu0 0.0
    %3365 = vmatpush1.msra.mxu0 0.0
    %3366 = vmatprep.subr.mxu0 0.0
    %3367 = vmatpush1.msra.mxu0 0.0
    %3368 = vmatprep.subr.mxu0 0.0
    %3369 = vmatpush1.msra.mxu0 0.0
    %3370 = vmatprep.subr.mxu0 0.0
    %3371 = vmatpush1.msra.mxu0 0.0
    %3372 = vmatprep.subr.mxu0 0.0
    %3373 = vmatpush1.msra.mxu0 0.0
    %3374 = vmatprep.subr.mxu0 0.0
    %3375 = vmatpush1.msra.mxu0 0.0
    %3376 = vmatprep.subr.mxu0 0.0
    %3377 = vmatpush1.msra.mxu0 0.0
    %3378 = vmatprep.subr.mxu0 0.0
    %3379 = vmatpush1.msra.mxu0 0.0
    %3380 = vmatprep.subr.mxu0 0.0
    %3381 = vmatpush1.msra.mxu0 0.0
    %3382 = vmatprep.subr.mxu0 0.0
    %3383 = vmatpush1.msra.mxu0 0.0
    %3384 = vmatprep.subr.mxu0 0.0
    %3385 = vmatpush1.msra.mxu0 0.0
    %3386 = vmatprep.subr.mxu0 0.0
    %3387 = vmatpush1.msra.mxu0 0.0
    %3388 = vmatprep.subr.mxu0 0.0
    %3389 = vmatpush1.msra.mxu0 0.0
    %3390 = vmatprep.subr.mxu0 0.0
    %3391 = vmatpush1.msra.mxu0 0.0
    %3392 = vmatprep.mubr.f32.mxu0 0.0
    %3393 = vmatmul.mubr.f32.gmra.mrb[0].mxu0 %v3183
    %v3394 = vpop.f32.mrb[0].mxu0
    %v3395 = vadd.f32 0.0, %v3394
    %v3396 = vpop.f32.mrb[0].mxu0
    %3397 = vmatprep.mubr.f32.mxu0 0.0
    %3398 = vmatmul.mubr.f32.gmra.mrb[0].mxu0 %v3184
    %v3399 = vpop.f32.mrb[0].mxu0
    %v3400 = vadd.f32 0.0, %v3399
    %v3401 = vpop.f32.mrb[0].mxu0
    %3402 = vmatprep.mubr.f32.mxu0 0.0
    %3403 = vmatmul.mubr.f32.gmra.mrb[0].mxu0 %v3185
    %v3404 = vpop.f32.mrb[0].mxu0
    %v3405 = vadd.f32 0.0, %v3404
    %v3406 = vpop.f32.mrb[0].mxu0
    %3407 = vmatprep.mubr.f32.mxu0 0.0
    %3408 = vmatmul.mubr.f32.gmra.mrb[0].mxu0 %v3186
    %v3409 = vpop.f32.mrb[0].mxu0
    %v3410 = vadd.f32 0.0, %v3409
    %v3411 = vpop.f32.mrb[0].mxu0
    %3412 = vmatprep.mubr.f32.mxu0 0.0
    %3413 = vmatmul.mubr.f32.gmra.mrb[0].mxu0 %v3187
    %v3414 = vpop.f32.mrb[0].mxu0
    %v3415 = vadd.f32 0.0, %v3414
    %v3416 = vpop.f32.mrb[0].mxu0
    %3417 = vmatprep.mubr.f32.mxu0 0.0
    %3418 = vmatmul.mubr.f32.gmra.mrb[0].mxu0 %v3188
    %v3419 = vpop.f32.mrb[0].mxu0
    %v3420 = vadd.f32 0.0, %v3419
    %v3421 = vpop.f32.mrb[0].mxu0
    %3422 = vmatprep.mubr.f32.mxu0 0.0
    %3423 = vmatmul.mubr.f32.gmra.mrb[0].mxu0 %v3189
    %v3424 = vpop.f32.mrb[0].mxu0
    %v3425 = vadd.f32 0.0, %v3424
    %v3426 = vpop.f32.mrb[0].mxu0
    %3427 = vmatprep.mubr.f32.mxu0 0.0
    %3428 = vmatmul.mubr.f32.gmra.mrb[0].mxu0 %v3190
    %v3429 = vpop.f32.mrb[0].mxu0
    %v3430 = vadd.f32 0.0, %v3429
    %v3431 = vpop.f32.mrb[0].mxu0
    %3432 = vmatprep.mubr.f32.mxu0 0.0
    %3433 = vmatmul.mubr.f32.gmra.mrb[0].mxu0 %v3191
    %v3434 = vpop.f32.mrb[0].mxu0
    %v3435 = vadd.f32 0.0, %v3434
    %v3436 = vpop.f32.mrb[0].mxu0
    %3437 = vmatprep.mubr.f32.mxu0 0.0
    %3438 = vmatmul.mubr.f32.gmra.mrb[0].mxu0 %v3192
    %v3439 = vpop.f32.mrb[0].mxu0
    %v3440 = vadd.f32 0.0, %v3439
    %v3441 = vpop.f32.mrb[0].mxu0
    %3442 = vmatprep.mubr.f32.mxu0 0.0
    %3443 = vmatmul.mubr.f32.gmra.mrb[0].mxu0 %v3193
    %v3444 = vpop.f32.mrb[0].mxu0
    %v3445 = vadd.f32 0.0, %v3444
    %v3446 = vpop.f32.mrb[0].mxu0
    %3447 = vmatprep.mubr.f32.mxu0 0.0
    %3448 = vmatmul.mubr.f32.gmra.mrb[0].mxu0 %v3194
    %v3449 = vpop.f32.mrb[0].mxu0
    %v3450 = vadd.f32 0.0, %v3449
    %v3451 = vpop.f32.mrb[0].mxu0
    %3452 = vmatprep.mubr.f32.mxu0 0.0
    %3453 = vmatmul.mubr.f32.gmra.mrb[0].mxu0 %v3195
    %v3454 = vpop.f32.mrb[0].mxu0
    %v3455 = vadd.f32 0.0, %v3454
    %v3456 = vpop.f32.mrb[0].mxu0
    %3457 = vmatprep.mubr.f32.mxu0 0.0
    %3458 = vmatmul.mubr.f32.gmra.mrb[0].mxu0 %v3196
    %v3459 = vpop.f32.mrb[0].mxu0
    %v3460 = vadd.f32 0.0, %v3459
    %v3461 = vpop.f32.mrb[0].mxu0
    %3462 = vmatprep.mubr.f32.mxu0 0.0
    %3463 = vmatmul.mubr.f32.gmra.mrb[0].mxu0 %v3197
    %v3464 = vpop.f32.mrb[0].mxu0
    %v3465 = vadd.f32 0.0, %v3464
    %v3466 = vpop.f32.mrb[0].mxu0
    %3467 = vmatprep.mubr.f32.mxu0 0.0
    %3468 = vmatmul.mubr.f32.gmra.mrb[0].mxu0 %v3198
    %v3469 = vpop.f32.mrb[0].mxu0
    %v3470 = vadd.f32 0.0, %v3469
    %v3471 = vpop.f32.mrb[0].mxu0
    %3472 = vmatprep.mubr.f32.mxu0 0.0
    %3473 = vmatmul.mubr.f32.gmra.mrb[0].mxu0 %v3199
    %v3474 = vpop.f32.mrb[0].mxu0
    %v3475 = vadd.f32 0.0, %v3474
    %v3476 = vpop.f32.mrb[0].mxu0
    %3477 = vmatprep.mubr.f32.mxu0 0.0
    %3478 = vmatmul.mubr.f32.gmra.mrb[0].mxu0 %v3200
    %v3479 = vpop.f32.mrb[0].mxu0
    %v3480 = vadd.f32 0.0, %v3479
    %v3481 = vpop.f32.mrb[0].mxu0
    %3482 = vmatprep.mubr.f32.mxu0 0.0
    %3483 = vmatmul.mubr.f32.gmra.mrb[0].mxu0 %v3201
    %v3484 = vpop.f32.mrb[0].mxu0
    %v3485 = vadd.f32 0.0, %v3484
    %v3486 = vpop.f32.mrb[0].mxu0
    %3487 = vmatprep.mubr.f32.mxu0 0.0
    %3488 = vmatmul.mubr.f32.gmra.mrb[0].mxu0 %v3202
    %v3489 = vpop.f32.mrb[0].mxu0
    %v3490 = vadd.f32 0.0, %v3489
    %v3491 = vpop.f32.mrb[0].mxu0
    %3492 = vmatprep.mubr.f32.mxu0 0.0
    %3493 = vmatmul.mubr.f32.gmra.mrb[0].mxu0 %v3203
    %v3494 = vpop.f32.mrb[0].mxu0
    %v3495 = vadd.f32 0.0, %v3494
    %v3496 = vpop.f32.mrb[0].mxu0
    %3497 = vmatprep.mubr.f32.mxu0 0.0
    %3498 = vmatmul.mubr.f32.gmra.mrb[0].mxu0 %v3204
    %v3499 = vpop.f32.mrb[0].mxu0
    %v3500 = vadd.f32 0.0, %v3499
    %v3501 = vpop.f32.mrb[0].mxu0
    %3502 = vmatprep.mubr.f32.mxu0 0.0
    %3503 = vmatmul.mubr.f32.gmra.mrb[0].mxu0 %v3205
    %v3504 = vpop.f32.mrb[0].mxu0
    %v3505 = vadd.f32 0.0, %v3504
    %v3506 = vpop.f32.mrb[0].mxu0
    %3507 = vmatprep.mubr.f32.mxu0 0.0
    %3508 = vmatmul.mubr.f32.gmra.mrb[0].mxu0 %v3206
    %v3509 = vpop.f32.mrb[0].mxu0
    %v3510 = vadd.f32 0.0, %v3509
    %v3511 = vpop.f32.mrb[0].mxu0
    %3512 = vmatprep.mubr.f32.mxu0 0.0
    %3513 = vmatmul.mubr.f32.gmra.mrb[0].mxu0 %v3207
    %v3514 = vpop.f32.mrb[0].mxu0
    %v3515 = vadd.f32 0.0, %v3514
    %v3516 = vpop.f32.mrb[0].mxu0
    %3517 = vmatprep.mubr.f32.mxu0 0.0
    %3518 = vmatmul.mubr.f32.gmra.mrb[0].mxu0 %v3208
    %v3519 = vpop.f32.mrb[0].mxu0
    %v3520 = vadd.f32 0.0, %v3519
    %v3521 = vpop.f32.mrb[0].mxu0
    %3522 = vmatprep.mubr.f32.mxu0 0.0
    %3523 = vmatmul.mubr.f32.gmra.mrb[0].mxu0 %v3209
    %v3524 = vpop.f32.mrb[0].mxu0
    %v3525 = vadd.f32 0.0, %v3524
    %v3526 = vpop.f32.mrb[0].mxu0
    %3527 = vmatprep.mubr.f32.mxu0 0.0
    %3528 = vmatmul.mubr.f32.gmra.mrb[0].mxu0 %v3210
    %v3529 = vpop.f32.mrb[0].mxu0
    %v3530 = vadd.f32 0.0, %v3529
    %v3531 = vpop.f32.mrb[0].mxu0
    %3532 = vmatprep.mubr.f32.mxu0 0.0
    %3533 = vmatmul.mubr.f32.gmra.mrb[0].mxu0 %v3211
    %v3534 = vpop.f32.mrb[0].mxu0
    %v3535 = vadd.f32 0.0, %v3534
    %v3536 = vpop.f32.mrb[0].mxu0
    %3537 = vmatprep.mubr.f32.mxu0 0.0
    %3538 = vmatmul.mubr.f32.gmra.mrb[0].mxu0 %v3212
    %v3539 = vpop.f32.mrb[0].mxu0
    %v3540 = vadd.f32 0.0, %v3539
    %v3541 = vpop.f32.mrb[0].mxu0
    %3542 = vmatprep.mubr.f32.mxu0 0.0
    %3543 = vmatmul.mubr.f32.gmra.mrb[0].mxu0 %v3213
    %v3544 = vpop.f32.mrb[0].mxu0
    %v3545 = vadd.f32 0.0, %v3544
    %v3546 = vpop.f32.mrb[0].mxu0
    %3547 = vmatprep.mubr.f32.mxu0 0.0
    %3548 = vmatmul.mubr.f32.gmra.mrb[0].mxu0 %v3214
    %v3549 = vpop.f32.mrb[0].mxu0
    %v3550 = vadd.f32 0.0, %v3549
    %v3551 = vpop.f32.mrb[0].mxu0
    %3552 = vmatprep.mubr.f32.mxu0 0.0
    %3553 = vmatmul.mubr.f32.gmra.mrb[0].mxu0 %v3215
    %v3554 = vpop.f32.mrb[0].mxu0
    %v3555 = vadd.f32 0.0, %v3554
    %v3556 = vpop.f32.mrb[0].mxu0
    %3557 = vmatprep.mubr.f32.mxu0 0.0
    %3558 = vmatmul.mubr.f32.gmra.mrb[0].mxu0 %v3216
    %v3559 = vpop.f32.mrb[0].mxu0
    %v3560 = vadd.f32 0.0, %v3559
    %v3561 = vpop.f32.mrb[0].mxu0
    %3562 = vmatprep.mubr.f32.mxu0 0.0
    %3563 = vmatmul.mubr.f32.gmra.mrb[0].mxu0 %v3217
    %v3564 = vpop.f32.mrb[0].mxu0
    %v3565 = vadd.f32 0.0, %v3564
    %v3566 = vpop.f32.mrb[0].mxu0
    %3567 = vmatprep.mubr.f32.mxu0 0.0
    %3568 = vmatmul.mubr.f32.gmra.mrb[0].mxu0 %v3218
    %v3569 = vpop.f32.mrb[0].mxu0
    %v3570 = vadd.f32 0.0, %v3569
    %v3571 = vpop.f32.mrb[0].mxu0
    %3572 = vmatprep.mubr.f32.mxu0 0.0
    %3573 = vmatmul.mubr.f32.gmra.mrb[0].mxu0 %v3219
    %v3574 = vpop.f32.mrb[0].mxu0
    %v3575 = vadd.f32 0.0, %v3574
    %v3576 = vpop.f32.mrb[0].mxu0
    %3577 = vmatprep.mubr.f32.mxu0 0.0
    %3578 = vmatmul.mubr.f32.gmra.mrb[0].mxu0 %v3220
    %v3579 = vpop.f32.mrb[0].mxu0
    %v3580 = vadd.f32 0.0, %v3579
    %v3581 = vpop.f32.mrb[0].mxu0
    %3582 = vmatprep.mubr.f32.mxu0 0.0
    %3583 = vmatmul.mubr.f32.gmra.mrb[0].mxu0 %v3221
    %v3584 = vpop.f32.mrb[0].mxu0
    %v3585 = vadd.f32 0.0, %v3584
    %v3586 = vpop.f32.mrb[0].mxu0
    %3587 = vmatprep.mubr.f32.mxu0 0.0
    %3588 = vmatmul.mubr.f32.gmra.mrb[0].mxu0 %v3222
    %v3589 = vpop.f32.mrb[0].mxu0
    %v3590 = vadd.f32 0.0, %v3589
    %v3591 = vpop.f32.mrb[0].mxu0
    %3592 = vmatprep.mubr.f32.mxu0 0.0
    %3593 = vmatmul.mubr.f32.gmra.mrb[0].mxu0 %v3223
    %v3594 = vpop.f32.mrb[0].mxu0
    %v3595 = vadd.f32 0.0, %v3594
    %v3596 = vpop.f32.mrb[0].mxu0
    %3597 = vmatprep.mubr.f32.mxu0 0.0
    %3598 = vmatmul.mubr.f32.gmra.mrb[0].mxu0 %v3224
    %v3599 = vpop.f32.mrb[0].mxu0
    %v3600 = vadd.f32 0.0, %v3599
    %v3601 = vpop.f32.mrb[0].mxu0
    %3602 = vmatprep.mubr.f32.mxu0 0.0
    %3603 = vmatmul.mubr.f32.gmra.mrb[0].mxu0 %v3225
    %v3604 = vpop.f32.mrb[0].mxu0
    %v3605 = vadd.f32 0.0, %v3604
    %v3606 = vpop.f32.mrb[0].mxu0
    %3607 = vmatprep.mubr.f32.mxu0 0.0
    %3608 = vmatmul.mubr.f32.gmra.mrb[0].mxu0 %v3226
    %v3609 = vpop.f32.mrb[0].mxu0
    %v3610 = vadd.f32 0.0, %v3609
    %v3611 = vpop.f32.mrb[0].mxu0
    %3612 = vmatprep.mubr.f32.mxu0 0.0
    %3613 = vmatmul.mubr.f32.gmra.mrb[0].mxu0 %v3227
    %v3614 = vpop.f32.mrb[0].mxu0
    %v3615 = vadd.f32 0.0, %v3614
    %v3616 = vpop.f32.mrb[0].mxu0
    %3617 = vmatprep.mubr.f32.mxu0 0.0
    %3618 = vmatmul.mubr.f32.gmra.mrb[0].mxu0 %v3228
    %v3619 = vpop.f32.mrb[0].mxu0
    %v3620 = vadd.f32 0.0, %v3619
    %v3621 = vpop.f32.mrb[0].mxu0
    %3622 = vmatprep.mubr.f32.mxu0 0.0
    %3623 = vmatmul.mubr.f32.gmra.mrb[0].mxu0 %v3229
    %v3624 = vpop.f32.mrb[0].mxu0
    %v3625 = vadd.f32 0.0, %v3624
    %v3626 = vpop.f32.mrb[0].mxu0
    %3627 = vmatprep.mubr.f32.mxu0 0.0
    %3628 = vmatmul.mubr.f32.gmra.mrb[0].mxu0 %v3230
    %v3629 = vpop.f32.mrb[0].mxu0
    %v3630 = vadd.f32 0.0, %v3629
    %v3631 = vpop.f32.mrb[0].mxu0
    %3632 = vmatprep.mubr.f32.mxu0 0.0
    %3633 = vmatmul.mubr.f32.gmra.mrb[0].mxu0 %v3231
    %v3634 = vpop.f32.mrb[0].mxu0
    %v3635 = vadd.f32 0.0, %v3634
    %v3636 = vpop.f32.mrb[0].mxu0
    %3637 = vmatprep.mubr.f32.mxu0 0.0
    %3638 = vmatmul.mubr.f32.gmra.mrb[0].mxu0 %v3232
    %v3639 = vpop.f32.mrb[0].mxu0
    %v3640 = vadd.f32 0.0, %v3639
    %v3641 = vpop.f32.mrb[0].mxu0
    %3642 = vmatprep.mubr.f32.mxu0 0.0
    %3643 = vmatmul.mubr.f32.gmra.mrb[0].mxu0 %v3233
    %v3644 = vpop.f32.mrb[0].mxu0
    %v3645 = vadd.f32 0.0, %v3644
    %v3646 = vpop.f32.mrb[0].mxu0
    %3647 = vmatprep.mubr.f32.mxu0 0.0
    %3648 = vmatmul.mubr.f32.gmra.mrb[0].mxu0 %v3234
    %v3649 = vpop.f32.mrb[0].mxu0
    %v3650 = vadd.f32 0.0, %v3649
    %v3651 = vpop.f32.mrb[0].mxu0
    %3652 = vmatprep.mubr.f32.mxu0 0.0
    %3653 = vmatmul.mubr.f32.gmra.mrb[0].mxu0 %v3235
    %v3654 = vpop.f32.mrb[0].mxu0
    %v3655 = vadd.f32 0.0, %v3654
    %v3656 = vpop.f32.mrb[0].mxu0
    %3657 = vmatprep.mubr.f32.mxu0 0.0
    %3658 = vmatmul.mubr.f32.gmra.mrb[0].mxu0 %v3236
    %v3659 = vpop.f32.mrb[0].mxu0
    %v3660 = vadd.f32 0.0, %v3659
    %v3661 = vpop.f32.mrb[0].mxu0
    %3662 = vmatprep.mubr.f32.mxu0 0.0
    %3663 = vmatmul.mubr.f32.gmra.mrb[0].mxu0 %v3237
    %v3664 = vpop.f32.mrb[0].mxu0
    %v3665 = vadd.f32 0.0, %v3664
    %v3666 = vpop.f32.mrb[0].mxu0
    %3667 = vmatprep.mubr.f32.mxu0 0.0
    %3668 = vmatmul.mubr.f32.gmra.mrb[0].mxu0 %v3238
    %v3669 = vpop.f32.mrb[0].mxu0
    %v3670 = vadd.f32 0.0, %v3669
    %v3671 = vpop.f32.mrb[0].mxu0
    %3672 = vmatprep.mubr.f32.mxu0 0.0
    %3673 = vmatmul.mubr.f32.gmra.mrb[0].mxu0 %v3239
    %v3674 = vpop.f32.mrb[0].mxu0
    %v3675 = vadd.f32 0.0, %v3674
    %v3676 = vpop.f32.mrb[0].mxu0
    %3677 = vmatprep.mubr.f32.mxu0 0.0
    %3678 = vmatmul.mubr.f32.gmra.mrb[0].mxu0 %v3240
    %v3679 = vpop.f32.mrb[0].mxu0
    %v3680 = vadd.f32 0.0, %v3679
    %v3681 = vpop.f32.mrb[0].mxu0
    %3682 = vmatprep.mubr.f32.mxu0 0.0
    %3683 = vmatmul.mubr.f32.gmra.mrb[0].mxu0 %v3241
    %v3684 = vpop.f32.mrb[0].mxu0
    %v3685 = vadd.f32 0.0, %v3684
    %v3686 = vpop.f32.mrb[0].mxu0
    %3687 = vmatprep.mubr.f32.mxu0 0.0
    %3688 = vmatmul.mubr.f32.gmra.mrb[0].mxu0 %v3242
    %v3689 = vpop.f32.mrb[0].mxu0
    %v3690 = vadd.f32 0.0, %v3689
    %v3691 = vpop.f32.mrb[0].mxu0
    %3692 = vmatprep.mubr.f32.mxu0 0.0
    %3693 = vmatmul.mubr.f32.gmra.mrb[0].mxu0 %v3243
    %v3694 = vpop.f32.mrb[0].mxu0
    %v3695 = vadd.f32 0.0, %v3694
    %v3696 = vpop.f32.mrb[0].mxu0
    %3697 = vmatprep.mubr.f32.mxu0 0.0
    %3698 = vmatmul.mubr.f32.gmra.mrb[0].mxu0 %v3244
    %v3699 = vpop.f32.mrb[0].mxu0
    %v3700 = vadd.f32 0.0, %v3699
    %v3701 = vpop.f32.mrb[0].mxu0
    %3702 = vmatprep.mubr.f32.mxu0 0.0
    %3703 = vmatmul.mubr.f32.gmra.mrb[0].mxu0 %v3245
    %v3704 = vpop.f32.mrb[0].mxu0
    %v3705 = vadd.f32 0.0, %v3704
    %v3706 = vpop.f32.mrb[0].mxu0
    %3707 = vmatprep.mubr.f32.mxu0 0.0
    %3708 = vmatmul.mubr.f32.gmra.mrb[0].mxu0 %v3246
    %v3709 = vpop.f32.mrb[0].mxu0
    %v3710 = vadd.f32 0.0, %v3709
    %v3711 = vpop.f32.mrb[0].mxu0
    %3712 = vdwg.mxu0
    %v3713 = vadd.f32 %v3247, %v3395
    %v3714 = vadd.f32 %v3248, %v3400
    %v3715 = vadd.f32 %v3249, %v3405
    %v3716 = vadd.f32 %v3250, %v3410
    %v3717 = vadd.f32 %v3251, %v3415
    %v3718 = vadd.f32 %v3252, %v3420
    %v3719 = vadd.f32 %v3253, %v3425
    %v3720 = vadd.f32 %v3254, %v3430
    %v3721 = vadd.f32 %v3255, %v3435
    %v3722 = vadd.f32 %v3256, %v3440
    %v3723 = vadd.f32 %v3257, %v3445
    %v3724 = vadd.f32 %v3258, %v3450
    %v3725 = vadd.f32 %v3259, %v3455
    %v3726 = vadd.f32 %v3260, %v3460
    %v3727 = vadd.f32 %v3261, %v3465
    %v3728 = vadd.f32 %v3262, %v3470
    %v3729 = vadd.f32 %v3263, %v3475
    %v3730 = vadd.f32 %v3264, %v3480
    %v3731 = vadd.f32 %v3265, %v3485
    %v3732 = vadd.f32 %v3266, %v3490
    %v3733 = vadd.f32 %v3267, %v3495
    %v3734 = vadd.f32 %v3268, %v3500
    %v3735 = vadd.f32 %v3269, %v3505
    %v3736 = vadd.f32 %v3270, %v3510
    %v3737 = vadd.f32 %v3271, %v3515
    %v3738 = vadd.f32 %v3272, %v3520
    %v3739 = vadd.f32 %v3273, %v3525
    %v3740 = vadd.f32 %v3274, %v3530
    %v3741 = vadd.f32 %v3275, %v3535
    %v3742 = vadd.f32 %v3276, %v3540
    %v3743 = vadd.f32 %v3277, %v3545
    %v3744 = vadd.f32 %v3278, %v3550
    %v3745 = vadd.f32 %v3279, %v3555
    %v3746 = vadd.f32 %v3280, %v3560
    %v3747 = vadd.f32 %v3281, %v3565
    %v3748 = vadd.f32 %v3282, %v3570
    %v3749 = vadd.f32 %v3283, %v3575
    %v3750 = vadd.f32 %v3284, %v3580
    %v3751 = vadd.f32 %v3285, %v3585
    %v3752 = vadd.f32 %v3286, %v3590
    %v3753 = vadd.f32 %v3287, %v3595
    %v3754 = vadd.f32 %v3288, %v3600
    %v3755 = vadd.f32 %v3289, %v3605
    %v3756 = vadd.f32 %v3290, %v3610
    %v3757 = vadd.f32 %v3291, %v3615
    %v3758 = vadd.f32 %v3292, %v3620
    %v3759 = vadd.f32 %v3293, %v3625
    %v3760 = vadd.f32 %v3294, %v3630
    %v3761 = vadd.f32 %v3295, %v3635
    %v3762 = vadd.f32 %v3296, %v3640
    %v3763 = vadd.f32 %v3297, %v3645
    %v3764 = vadd.f32 %v3298, %v3650
    %v3765 = vadd.f32 %v3299, %v3655
    %v3766 = vadd.f32 %v3300, %v3660
    %v3767 = vadd.f32 %v3301, %v3665
    %v3768 = vadd.f32 %v3302, %v3670
    %v3769 = vadd.f32 %v3303, %v3675
    %v3770 = vadd.f32 %v3304, %v3680
    %v3771 = vadd.f32 %v3305, %v3685
    %v3772 = vadd.f32 %v3306, %v3690
    %v3773 = vadd.f32 %v3307, %v3695
    %v3774 = vadd.f32 %v3308, %v3700
    %v3775 = vadd.f32 %v3309, %v3705
    %v3776 = vadd.f32 %v3310, %v3710
    %3777 = vst [vmem:[#allocation3] sm:$0xff] %v3713
    %3778 = vst [vmem:[#allocation3 + $0x8] sm:$0xff] %v3714
    %3779 = vst [vmem:[#allocation3 + $0x10] sm:$0xff] %v3715
    %3780 = vst [vmem:[#allocation3 + $0x18] sm:$0xff] %v3716
    %3781 = vst [vmem:[#allocation3 + $0x20] sm:$0xff] %v3717
    %3782 = vst [vmem:[#allocation3 + $0x28] sm:$0xff] %v3718
    %3783 = vst [vmem:[#allocation3 + $0x30] sm:$0xff] %v3719
    %3784 = vst [vmem:[#allocation3 + $0x38] sm:$0xff] %v3720
    %3785 = vst [vmem:[#allocation3 + $0x40] sm:$0xff] %v3721
    %3786 = vst [vmem:[#allocation3 + $0x48] sm:$0xff] %v3722
    %3787 = vst [vmem:[#allocation3 + $0x50] sm:$0xff] %v3723
    %3788 = vst [vmem:[#allocation3 + $0x58] sm:$0xff] %v3724
    %3789 = vst [vmem:[#allocation3 + $0x60] sm:$0xff] %v3725
    %3790 = vst [vmem:[#allocation3 + $0x68] sm:$0xff] %v3726
    %3791 = vst [vmem:[#allocation3 + $0x70] sm:$0xff] %v3727
    %3792 = vst [vmem:[#allocation3 + $0x78] sm:$0xff] %v3728
    %3793 = vst [vmem:[#allocation3 + $0x80] sm:$0xff] %v3729
    %3794 = vst [vmem:[#allocation3 + $0x88] sm:$0xff] %v3730
    %3795 = vst [vmem:[#allocation3 + $0x90] sm:$0xff] %v3731
    %3796 = vst [vmem:[#allocation3 + $0x98] sm:$0xff] %v3732
    %3797 = vst [vmem:[#allocation3 + $0xa0] sm:$0xff] %v3733
    %3798 = vst [vmem:[#allocation3 + $0xa8] sm:$0xff] %v3734
    %3799 = vst [vmem:[#allocation3 + $0xb0] sm:$0xff] %v3735
    %3800 = vst [vmem:[#allocation3 + $0xb8] sm:$0xff] %v3736
    %3801 = vst [vmem:[#allocation3 + $0xc0] sm:$0xff] %v3737
    %3802 = vst [vmem:[#allocation3 + $0xc8] sm:$0xff] %v3738
    %3803 = vst [vmem:[#allocation3 + $0xd0] sm:$0xff] %v3739
    %3804 = vst [vmem:[#allocation3 + $0xd8] sm:$0xff] %v3740
    %3805 = vst [vmem:[#allocation3 + $0xe0] sm:$0xff] %v3741
    %3806 = vst [vmem:[#allocation3 + $0xe8] sm:$0xff] %v3742
    %3807 = vst [vmem:[#allocation3 + $0xf0] sm:$0xff] %v3743
    %3808 = vst [vmem:[#allocation3 + $0xf8] sm:$0xff] %v3744
    %3809 = vst [vmem:[#allocation3 + $0x100] sm:$0xff] %v3745
    %3810 = vst [vmem:[#allocation3 + $0x108] sm:$0xff] %v3746
    %3811 = vst [vmem:[#allocation3 + $0x110] sm:$0xff] %v3747
    %3812 = vst [vmem:[#allocation3 + $0x118] sm:$0xff] %v3748
    %3813 = vst [vmem:[#allocation3 + $0x120] sm:$0xff] %v3749
    %3814 = vst [vmem:[#allocation3 + $0x128] sm:$0xff] %v3750
    %3815 = vst [vmem:[#allocation3 + $0x130] sm:$0xff] %v3751
    %3816 = vst [vmem:[#allocation3 + $0x138] sm:$0xff] %v3752
    %3817 = vst [vmem:[#allocation3 + $0x140] sm:$0xff] %v3753
    %3818 = vst [vmem:[#allocation3 + $0x148] sm:$0xff] %v3754
    %3819 = vst [vmem:[#allocation3 + $0x150] sm:$0xff] %v3755
    %3820 = vst [vmem:[#allocation3 + $0x158] sm:$0xff] %v3756
    %3821 = vst [vmem:[#allocation3 + $0x160] sm:$0xff] %v3757
    %3822 = vst [vmem:[#allocation3 + $0x168] sm:$0xff] %v3758
    %3823 = vst [vmem:[#allocation3 + $0x170] sm:$0xff] %v3759
    %3824 = vst [vmem:[#allocation3 + $0x178] sm:$0xff] %v3760
    %3825 = vst [vmem:[#allocation3 + $0x180] sm:$0xff] %v3761
    %3826 = vst [vmem:[#allocation3 + $0x188] sm:$0xff] %v3762
    %3827 = vst [vmem:[#allocation3 + $0x190] sm:$0xff] %v3763
    %3828 = vst [vmem:[#allocation3 + $0x198] sm:$0xff] %v3764
    %3829 = vst [vmem:[#allocation3 + $0x1a0] sm:$0xff] %v3765
    %3830 = vst [vmem:[#allocation3 + $0x1a8] sm:$0xff] %v3766
    %3831 = vst [vmem:[#allocation3 + $0x1b0] sm:$0xff] %v3767
    %3832 = vst [vmem:[#allocation3 + $0x1b8] sm:$0xff] %v3768
    %3833 = vst [vmem:[#allocation3 + $0x1c0] sm:$0xff] %v3769
    %3834 = vst [vmem:[#allocation3 + $0x1c8] sm:$0xff] %v3770
    %3835 = vst [vmem:[#allocation3 + $0x1d0] sm:$0xff] %v3771
    %3836 = vst [vmem:[#allocation3 + $0x1d8] sm:$0xff] %v3772
    %3837 = vst [vmem:[#allocation3 + $0x1e0] sm:$0xff] %v3773
    %3838 = vst [vmem:[#allocation3 + $0x1e8] sm:$0xff] %v3774
    %3839 = vst [vmem:[#allocation3 + $0x1f0] sm:$0xff] %v3775
    %3840 = vst [vmem:[#allocation3 + $0x1f8] sm:$0xff] %v3776
    %v3841 = vld [vmem:[%s1081 + $0x1] sm:$0xff]
    %v3842 = vld [vmem:[%s1081 + $0x9] sm:$0xff]
    %v3843 = vld [vmem:[%s1081 + $0x19] sm:$0xff]
    %v3844 = vld [vmem:[%s1081 + $0x21] sm:$0xff]
    %v3845 = vld [vmem:[%s1081 + $0x31] sm:$0xff]
    %v3846 = vld [vmem:[%s1081 + $0x39] sm:$0xff]
    %v3847 = vld [vmem:[%s1081 + $0x49] sm:$0xff]
    %v3848 = vld [vmem:[%s1081 + $0x51] sm:$0xff]
    %v3849 = vld [vmem:[%s1081 + $0x61] sm:$0xff]
    %v3850 = vld [vmem:[%s1081 + $0x69] sm:$0xff]
    %v3851 = vld [vmem:[%s1081 + $0x79] sm:$0xff]
    %v3852 = vld [vmem:[%s1081 + $0x81] sm:$0xff]
    %v3853 = vld [vmem:[%s1081 + $0x91] sm:$0xff]
    %v3854 = vld [vmem:[%s1081 + $0x99] sm:$0xff]
    %v3855 = vld [vmem:[%s1081 + $0xa9] sm:$0xff]
    %v3856 = vld [vmem:[%s1081 + $0xb1] sm:$0xff]
    %v3857 = vld [vmem:[%s1081 + $0xc1] sm:$0xff]
    %v3858 = vld [vmem:[%s1081 + $0xc9] sm:$0xff]
    %v3859 = vld [vmem:[%s1081 + $0xd9] sm:$0xff]
    %v3860 = vld [vmem:[%s1081 + $0xe1] sm:$0xff]
    %v3861 = vld [vmem:[%s1081 + $0xf1] sm:$0xff]
    %v3862 = vld [vmem:[%s1081 + $0xf9] sm:$0xff]
    %v3863 = vld [vmem:[%s1081 + $0x109] sm:$0xff]
    %v3864 = vld [vmem:[%s1081 + $0x111] sm:$0xff]
    %v3865 = vld [vmem:[%s1081 + $0x121] sm:$0xff]
    %v3866 = vld [vmem:[%s1081 + $0x129] sm:$0xff]
    %v3867 = vld [vmem:[%s1081 + $0x139] sm:$0xff]
    %v3868 = vld [vmem:[%s1081 + $0x141] sm:$0xff]
    %v3869 = vld [vmem:[%s1081 + $0x151] sm:$0xff]
    %v3870 = vld [vmem:[%s1081 + $0x159] sm:$0xff]
    %v3871 = vld [vmem:[%s1081 + $0x169] sm:$0xff]
    %v3872 = vld [vmem:[%s1081 + $0x171] sm:$0xff]
    %v3873 = vld [vmem:[%s1081 + $0x1b1] sm:$0xff]
    %v3874 = vld [vmem:[%s1081 + $0x1b9] sm:$0xff]
    %v3875 = vld [vmem:[%s1081 + $0x1c9] sm:$0xff]
    %v3876 = vld [vmem:[%s1081 + $0x1d1] sm:$0xff]
    %v3877 = vld [vmem:[%s1081 + $0x1e1] sm:$0xff]
    %v3878 = vld [vmem:[%s1081 + $0x1e9] sm:$0xff]
    %v3879 = vld [vmem:[%s1081 + $0x1f9] sm:$0xff]
    %v3880 = vld [vmem:[%s1081 + $0x201] sm:$0xff]
    %v3881 = vld [vmem:[%s1081 + $0x211] sm:$0xff]
    %v3882 = vld [vmem:[%s1081 + $0x219] sm:$0xff]
    %v3883 = vld [vmem:[%s1081 + $0x229] sm:$0xff]
    %v3884 = vld [vmem:[%s1081 + $0x231] sm:$0xff]
    %v3885 = vld [vmem:[%s1081 + $0x241] sm:$0xff]
    %v3886 = vld [vmem:[%s1081 + $0x249] sm:$0xff]
    %v3887 = vld [vmem:[%s1081 + $0x259] sm:$0xff]
    %v3888 = vld [vmem:[%s1081 + $0x261] sm:$0xff]
    %v3889 = vld [vmem:[%s1081 + $0x271] sm:$0xff]
    %v3890 = vld [vmem:[%s1081 + $0x279] sm:$0xff]
    %v3891 = vld [vmem:[%s1081 + $0x289] sm:$0xff]
    %v3892 = vld [vmem:[%s1081 + $0x291] sm:$0xff]
    %v3893 = vld [vmem:[%s1081 + $0x2a1] sm:$0xff]
    %v3894 = vld [vmem:[%s1081 + $0x2a9] sm:$0xff]
    %v3895 = vld [vmem:[%s1081 + $0x2b9] sm:$0xff]
    %v3896 = vld [vmem:[%s1081 + $0x2c1] sm:$0xff]
    %v3897 = vld [vmem:[%s1081 + $0x2d1] sm:$0xff]
    %v3898 = vld [vmem:[%s1081 + $0x2d9] sm:$0xff]
    %v3899 = vld [vmem:[%s1081 + $0x2e9] sm:$0xff]
    %v3900 = vld [vmem:[%s1081 + $0x2f1] sm:$0xff]
    %v3901 = vld [vmem:[%s1081 + $0x301] sm:$0xff]
    %v3902 = vld [vmem:[%s1081 + $0x309] sm:$0xff]
    %v3903 = vld [vmem:[%s1081 + $0x319] sm:$0xff]
    %v3904 = vld [vmem:[%s1081 + $0x321] sm:$0xff]
    %v3905 = vld [vmem:[#allocation3] sm:$0xff]
    %v3906 = vld [vmem:[#allocation3 + $0x8] sm:$0xff]
    %v3907 = vld [vmem:[#allocation3 + $0x10] sm:$0xff]
    %v3908 = vld [vmem:[#allocation3 + $0x18] sm:$0xff]
    %v3909 = vld [vmem:[#allocation3 + $0x20] sm:$0xff]
    %v3910 = vld [vmem:[#allocation3 + $0x28] sm:$0xff]
    %v3911 = vld [vmem:[#allocation3 + $0x30] sm:$0xff]
    %v3912 = vld [vmem:[#allocation3 + $0x38] sm:$0xff]
    %v3913 = vld [vmem:[#allocation3 + $0x40] sm:$0xff]
    %v3914 = vld [vmem:[#allocation3 + $0x48] sm:$0xff]
    %v3915 = vld [vmem:[#allocation3 + $0x50] sm:$0xff]
    %v3916 = vld [vmem:[#allocation3 + $0x58] sm:$0xff]
    %v3917 = vld [vmem:[#allocation3 + $0x60] sm:$0xff]
    %v3918 = vld [vmem:[#allocation3 + $0x68] sm:$0xff]
    %v3919 = vld [vmem:[#allocation3 + $0x70] sm:$0xff]
    %v3920 = vld [vmem:[#allocation3 + $0x78] sm:$0xff]
    %v3921 = vld [vmem:[#allocation3 + $0x80] sm:$0xff]
    %v3922 = vld [vmem:[#allocation3 + $0x88] sm:$0xff]
    %v3923 = vld [vmem:[#allocation3 + $0x90] sm:$0xff]
    %v3924 = vld [vmem:[#allocation3 + $0x98] sm:$0xff]
    %v3925 = vld [vmem:[#allocation3 + $0xa0] sm:$0xff]
    %v3926 = vld [vmem:[#allocation3 + $0xa8] sm:$0xff]
    %v3927 = vld [vmem:[#allocation3 + $0xb0] sm:$0xff]
    %v3928 = vld [vmem:[#allocation3 + $0xb8] sm:$0xff]
    %v3929 = vld [vmem:[#allocation3 + $0xc0] sm:$0xff]
    %v3930 = vld [vmem:[#allocation3 + $0xc8] sm:$0xff]
    %v3931 = vld [vmem:[#allocation3 + $0xd0] sm:$0xff]
    %v3932 = vld [vmem:[#allocation3 + $0xd8] sm:$0xff]
    %v3933 = vld [vmem:[#allocation3 + $0xe0] sm:$0xff]
    %v3934 = vld [vmem:[#allocation3 + $0xe8] sm:$0xff]
    %v3935 = vld [vmem:[#allocation3 + $0xf0] sm:$0xff]
    %v3936 = vld [vmem:[#allocation3 + $0xf8] sm:$0xff]
    %v3937 = vld [vmem:[#allocation3 + $0x100] sm:$0xff]
    %v3938 = vld [vmem:[#allocation3 + $0x108] sm:$0xff]
    %v3939 = vld [vmem:[#allocation3 + $0x110] sm:$0xff]
    %v3940 = vld [vmem:[#allocation3 + $0x118] sm:$0xff]
    %v3941 = vld [vmem:[#allocation3 + $0x120] sm:$0xff]
    %v3942 = vld [vmem:[#allocation3 + $0x128] sm:$0xff]
    %v3943 = vld [vmem:[#allocation3 + $0x130] sm:$0xff]
    %v3944 = vld [vmem:[#allocation3 + $0x138] sm:$0xff]
    %v3945 = vld [vmem:[#allocation3 + $0x140] sm:$0xff]
    %v3946 = vld [vmem:[#allocation3 + $0x148] sm:$0xff]
    %v3947 = vld [vmem:[#allocation3 + $0x150] sm:$0xff]
    %v3948 = vld [vmem:[#allocation3 + $0x158] sm:$0xff]
    %v3949 = vld [vmem:[#allocation3 + $0x160] sm:$0xff]
    %v3950 = vld [vmem:[#allocation3 + $0x168] sm:$0xff]
    %v3951 = vld [vmem:[#allocation3 + $0x170] sm:$0xff]
    %v3952 = vld [vmem:[#allocation3 + $0x178] sm:$0xff]
    %v3953 = vld [vmem:[#allocation3 + $0x180] sm:$0xff]
    %v3954 = vld [vmem:[#allocation3 + $0x188] sm:$0xff]
    %v3955 = vld [vmem:[#allocation3 + $0x190] sm:$0xff]
    %v3956 = vld [vmem:[#allocation3 + $0x198] sm:$0xff]
    %v3957 = vld [vmem:[#allocation3 + $0x1a0] sm:$0xff]
    %v3958 = vld [vmem:[#allocation3 + $0x1a8] sm:$0xff]
    %v3959 = vld [vmem:[#allocation3 + $0x1b0] sm:$0xff]
    %v3960 = vld [vmem:[#allocation3 + $0x1b8] sm:$0xff]
    %v3961 = vld [vmem:[#allocation3 + $0x1c0] sm:$0xff]
    %v3962 = vld [vmem:[#allocation3 + $0x1c8] sm:$0xff]
    %v3963 = vld [vmem:[#allocation3 + $0x1d0] sm:$0xff]
    %v3964 = vld [vmem:[#allocation3 + $0x1d8] sm:$0xff]
    %v3965 = vld [vmem:[#allocation3 + $0x1e0] sm:$0xff]
    %v3966 = vld [vmem:[#allocation3 + $0x1e8] sm:$0xff]
    %v3967 = vld [vmem:[#allocation3 + $0x1f0] sm:$0xff]
    %v3968 = vld [vmem:[#allocation3 + $0x1f8] sm:$0xff]
    %s3969 = scalar_lea.vmem [#allocation9], 512
    %v3970 = vld [vmem:[%s3969] sm:$0xff]
    %v3971 = vld [vmem:[%s3969 + $0x8] sm:$0xff]
    %v3972 = vld [vmem:[%s3969 + $0x10] sm:$0xff]
    %v3973 = vld [vmem:[%s3969 + $0x18] sm:$0xff]
    %v3974 = vld [vmem:[%s3969 + $0x20] sm:$0xff]
    %v3975 = vld [vmem:[%s3969 + $0x28] sm:$0xff]
    %v3976 = vld [vmem:[%s3969 + $0x30] sm:$0xff]
    %v3977 = vld [vmem:[%s3969 + $0x38] sm:$0xff]
    %v3978 = vld [vmem:[%s3969 + $0x40] sm:$0xff]
    %v3979 = vld [vmem:[%s3969 + $0x48] sm:$0xff]
    %v3980 = vld [vmem:[%s3969 + $0x50] sm:$0xff]
    %v3981 = vld [vmem:[%s3969 + $0x58] sm:$0xff]
    %v3982 = vld [vmem:[%s3969 + $0x60] sm:$0xff]
    %v3983 = vld [vmem:[%s3969 + $0x68] sm:$0xff]
    %v3984 = vld [vmem:[%s3969 + $0x70] sm:$0xff]
    %v3985 = vld [vmem:[%s3969 + $0x78] sm:$0xff]
    %3986 = vmatprep.subr.mxu0 0.0
    %3987 = vmatpush1.msra.mxu0 %v3970
    %3988 = vmatprep.subr.mxu0 0.0
    %3989 = vmatpush1.msra.mxu0 %v3971
    %3990 = vmatprep.subr.mxu0 0.0
    %3991 = vmatpush1.msra.mxu0 %v3972
    %3992 = vmatprep.subr.mxu0 0.0
    %3993 = vmatpush1.msra.mxu0 %v3973
    %3994 = vmatprep.subr.mxu0 0.0
    %3995 = vmatpush1.msra.mxu0 %v3974
    %3996 = vmatprep.subr.mxu0 0.0
    %3997 = vmatpush1.msra.mxu0 %v3975
    %3998 = vmatprep.subr.mxu0 0.0
    %3999 = vmatpush1.msra.mxu0 %v3976
    %4000 = vmatprep.subr.mxu0 0.0
    %4001 = vmatpush1.msra.mxu0 %v3977
    %4002 = vmatprep.subr.mxu0 0.0
    %4003 = vmatpush1.msra.mxu0 %v3978
    %4004 = vmatprep.subr.mxu0 0.0
    %4005 = vmatpush1.msra.mxu0 %v3979
    %4006 = vmatprep.subr.mxu0 0.0
    %4007 = vmatpush1.msra.mxu0 %v3980
    %4008 = vmatprep.subr.mxu0 0.0
    %4009 = vmatpush1.msra.mxu0 %v3981
    %4010 = vmatprep.subr.mxu0 0.0
    %4011 = vmatpush1.msra.mxu0 %v3982
    %4012 = vmatprep.subr.mxu0 0.0
    %4013 = vmatpush1.msra.mxu0 %v3983
    %4014 = vmatprep.subr.mxu0 0.0
    %4015 = vmatpush1.msra.mxu0 %v3984
    %4016 = vmatprep.subr.mxu0 0.0
    %4017 = vmatpush1.msra.mxu0 %v3985
    %4018 = vmatprep.subr.mxu0 0.0
    %4019 = vmatpush1.msra.mxu0 0.0
    %4020 = vmatprep.subr.mxu0 0.0
    %4021 = vmatpush1.msra.mxu0 0.0
    %4022 = vmatprep.subr.mxu0 0.0
    %4023 = vmatpush1.msra.mxu0 0.0
    %4024 = vmatprep.subr.mxu0 0.0
    %4025 = vmatpush1.msra.mxu0 0.0
    %4026 = vmatprep.subr.mxu0 0.0
    %4027 = vmatpush1.msra.mxu0 0.0
    %4028 = vmatprep.subr.mxu0 0.0
    %4029 = vmatpush1.msra.mxu0 0.0
    %4030 = vmatprep.subr.mxu0 0.0
    %4031 = vmatpush1.msra.mxu0 0.0
    %4032 = vmatprep.subr.mxu0 0.0
    %4033 = vmatpush1.msra.mxu0 0.0
    %4034 = vmatprep.subr.mxu0 0.0
    %4035 = vmatpush1.msra.mxu0 0.0
    %4036 = vmatprep.subr.mxu0 0.0
    %4037 = vmatpush1.msra.mxu0 0.0
    %4038 = vmatprep.subr.mxu0 0.0
    %4039 = vmatpush1.msra.mxu0 0.0
    %4040 = vmatprep.subr.mxu0 0.0
    %4041 = vmatpush1.msra.mxu0 0.0
    %4042 = vmatprep.subr.mxu0 0.0
    %4043 = vmatpush1.msra.mxu0 0.0
    %4044 = vmatprep.subr.mxu0 0.0
    %4045 = vmatpush1.msra.mxu0 0.0
    %4046 = vmatprep.subr.mxu0 0.0
    %4047 = vmatpush1.msra.mxu0 0.0
    %4048 = vmatprep.subr.mxu0 0.0
    %4049 = vmatpush1.msra.mxu0 0.0
    %4050 = vmatprep.mubr.f32.mxu0 0.0
    %4051 = vmatmul.mubr.f32.gmra.mrb[0].mxu0 %v3841
    %v4052 = vpop.f32.mrb[0].mxu0
    %v4053 = vadd.f32 0.0, %v4052
    %v4054 = vpop.f32.mrb[0].mxu0
    %4055 = vmatprep.mubr.f32.mxu0 0.0
    %4056 = vmatmul.mubr.f32.gmra.mrb[0].mxu0 %v3842
    %v4057 = vpop.f32.mrb[0].mxu0
    %v4058 = vadd.f32 0.0, %v4057
    %v4059 = vpop.f32.mrb[0].mxu0
    %4060 = vmatprep.mubr.f32.mxu0 0.0
    %4061 = vmatmul.mubr.f32.gmra.mrb[0].mxu0 %v3843
    %v4062 = vpop.f32.mrb[0].mxu0
    %v4063 = vadd.f32 0.0, %v4062
    %v4064 = vpop.f32.mrb[0].mxu0
    %4065 = vmatprep.mubr.f32.mxu0 0.0
    %4066 = vmatmul.mubr.f32.gmra.mrb[0].mxu0 %v3844
    %v4067 = vpop.f32.mrb[0].mxu0
    %v4068 = vadd.f32 0.0, %v4067
    %v4069 = vpop.f32.mrb[0].mxu0
    %4070 = vmatprep.mubr.f32.mxu0 0.0
    %4071 = vmatmul.mubr.f32.gmra.mrb[0].mxu0 %v3845
    %v4072 = vpop.f32.mrb[0].mxu0
    %v4073 = vadd.f32 0.0, %v4072
    %v4074 = vpop.f32.mrb[0].mxu0
    %4075 = vmatprep.mubr.f32.mxu0 0.0
    %4076 = vmatmul.mubr.f32.gmra.mrb[0].mxu0 %v3846
    %v4077 = vpop.f32.mrb[0].mxu0
    %v4078 = vadd.f32 0.0, %v4077
    %v4079 = vpop.f32.mrb[0].mxu0
    %4080 = vmatprep.mubr.f32.mxu0 0.0
    %4081 = vmatmul.mubr.f32.gmra.mrb[0].mxu0 %v3847
    %v4082 = vpop.f32.mrb[0].mxu0
    %v4083 = vadd.f32 0.0, %v4082
    %v4084 = vpop.f32.mrb[0].mxu0
    %4085 = vmatprep.mubr.f32.mxu0 0.0
    %4086 = vmatmul.mubr.f32.gmra.mrb[0].mxu0 %v3848
    %v4087 = vpop.f32.mrb[0].mxu0
    %v4088 = vadd.f32 0.0, %v4087
    %v4089 = vpop.f32.mrb[0].mxu0
    %4090 = vmatprep.mubr.f32.mxu0 0.0
    %4091 = vmatmul.mubr.f32.gmra.mrb[0].mxu0 %v3849
    %v4092 = vpop.f32.mrb[0].mxu0
    %v4093 = vadd.f32 0.0, %v4092
    %v4094 = vpop.f32.mrb[0].mxu0
    %4095 = vmatprep.mubr.f32.mxu0 0.0
    %4096 = vmatmul.mubr.f32.gmra.mrb[0].mxu0 %v3850
    %v4097 = vpop.f32.mrb[0].mxu0
    %v4098 = vadd.f32 0.0, %v4097
    %v4099 = vpop.f32.mrb[0].mxu0
    %4100 = vmatprep.mubr.f32.mxu0 0.0
    %4101 = vmatmul.mubr.f32.gmra.mrb[0].mxu0 %v3851
    %v4102 = vpop.f32.mrb[0].mxu0
    %v4103 = vadd.f32 0.0, %v4102
    %v4104 = vpop.f32.mrb[0].mxu0
    %4105 = vmatprep.mubr.f32.mxu0 0.0
    %4106 = vmatmul.mubr.f32.gmra.mrb[0].mxu0 %v3852
    %v4107 = vpop.f32.mrb[0].mxu0
    %v4108 = vadd.f32 0.0, %v4107
    %v4109 = vpop.f32.mrb[0].mxu0
    %4110 = vmatprep.mubr.f32.mxu0 0.0
    %4111 = vmatmul.mubr.f32.gmra.mrb[0].mxu0 %v3853
    %v4112 = vpop.f32.mrb[0].mxu0
    %v4113 = vadd.f32 0.0, %v4112
    %v4114 = vpop.f32.mrb[0].mxu0
    %4115 = vmatprep.mubr.f32.mxu0 0.0
    %4116 = vmatmul.mubr.f32.gmra.mrb[0].mxu0 %v3854
    %v4117 = vpop.f32.mrb[0].mxu0
    %v4118 = vadd.f32 0.0, %v4117
    %v4119 = vpop.f32.mrb[0].mxu0
    %4120 = vmatprep.mubr.f32.mxu0 0.0
    %4121 = vmatmul.mubr.f32.gmra.mrb[0].mxu0 %v3855
    %v4122 = vpop.f32.mrb[0].mxu0
    %v4123 = vadd.f32 0.0, %v4122
    %v4124 = vpop.f32.mrb[0].mxu0
    %4125 = vmatprep.mubr.f32.mxu0 0.0
    %4126 = vmatmul.mubr.f32.gmra.mrb[0].mxu0 %v3856
    %v4127 = vpop.f32.mrb[0].mxu0
    %v4128 = vadd.f32 0.0, %v4127
    %v4129 = vpop.f32.mrb[0].mxu0
    %4130 = vmatprep.mubr.f32.mxu0 0.0
    %4131 = vmatmul.mubr.f32.gmra.mrb[0].mxu0 %v3857
    %v4132 = vpop.f32.mrb[0].mxu0
    %v4133 = vadd.f32 0.0, %v4132
    %v4134 = vpop.f32.mrb[0].mxu0
    %4135 = vmatprep.mubr.f32.mxu0 0.0
    %4136 = vmatmul.mubr.f32.gmra.mrb[0].mxu0 %v3858
    %v4137 = vpop.f32.mrb[0].mxu0
    %v4138 = vadd.f32 0.0, %v4137
    %v4139 = vpop.f32.mrb[0].mxu0
    %4140 = vmatprep.mubr.f32.mxu0 0.0
    %4141 = vmatmul.mubr.f32.gmra.mrb[0].mxu0 %v3859
    %v4142 = vpop.f32.mrb[0].mxu0
    %v4143 = vadd.f32 0.0, %v4142
    %v4144 = vpop.f32.mrb[0].mxu0
    %4145 = vmatprep.mubr.f32.mxu0 0.0
    %4146 = vmatmul.mubr.f32.gmra.mrb[0].mxu0 %v3860
    %v4147 = vpop.f32.mrb[0].mxu0
    %v4148 = vadd.f32 0.0, %v4147
    %v4149 = vpop.f32.mrb[0].mxu0
    %4150 = vmatprep.mubr.f32.mxu0 0.0
    %4151 = vmatmul.mubr.f32.gmra.mrb[0].mxu0 %v3861
    %v4152 = vpop.f32.mrb[0].mxu0
    %v4153 = vadd.f32 0.0, %v4152
    %v4154 = vpop.f32.mrb[0].mxu0
    %4155 = vmatprep.mubr.f32.mxu0 0.0
    %4156 = vmatmul.mubr.f32.gmra.mrb[0].mxu0 %v3862
    %v4157 = vpop.f32.mrb[0].mxu0
    %v4158 = vadd.f32 0.0, %v4157
    %v4159 = vpop.f32.mrb[0].mxu0
    %4160 = vmatprep.mubr.f32.mxu0 0.0
    %4161 = vmatmul.mubr.f32.gmra.mrb[0].mxu0 %v3863
    %v4162 = vpop.f32.mrb[0].mxu0
    %v4163 = vadd.f32 0.0, %v4162
    %v4164 = vpop.f32.mrb[0].mxu0
    %4165 = vmatprep.mubr.f32.mxu0 0.0
    %4166 = vmatmul.mubr.f32.gmra.mrb[0].mxu0 %v3864
    %v4167 = vpop.f32.mrb[0].mxu0
    %v4168 = vadd.f32 0.0, %v4167
    %v4169 = vpop.f32.mrb[0].mxu0
    %4170 = vmatprep.mubr.f32.mxu0 0.0
    %4171 = vmatmul.mubr.f32.gmra.mrb[0].mxu0 %v3865
    %v4172 = vpop.f32.mrb[0].mxu0
    %v4173 = vadd.f32 0.0, %v4172
    %v4174 = vpop.f32.mrb[0].mxu0
    %4175 = vmatprep.mubr.f32.mxu0 0.0
    %4176 = vmatmul.mubr.f32.gmra.mrb[0].mxu0 %v3866
    %v4177 = vpop.f32.mrb[0].mxu0
    %v4178 = vadd.f32 0.0, %v4177
    %v4179 = vpop.f32.mrb[0].mxu0
    %4180 = vmatprep.mubr.f32.mxu0 0.0
    %4181 = vmatmul.mubr.f32.gmra.mrb[0].mxu0 %v3867
    %v4182 = vpop.f32.mrb[0].mxu0
    %v4183 = vadd.f32 0.0, %v4182
    %v4184 = vpop.f32.mrb[0].mxu0
    %4185 = vmatprep.mubr.f32.mxu0 0.0
    %4186 = vmatmul.mubr.f32.gmra.mrb[0].mxu0 %v3868
    %v4187 = vpop.f32.mrb[0].mxu0
    %v4188 = vadd.f32 0.0, %v4187
    %v4189 = vpop.f32.mrb[0].mxu0
    %4190 = vmatprep.mubr.f32.mxu0 0.0
    %4191 = vmatmul.mubr.f32.gmra.mrb[0].mxu0 %v3869
    %v4192 = vpop.f32.mrb[0].mxu0
    %v4193 = vadd.f32 0.0, %v4192
    %v4194 = vpop.f32.mrb[0].mxu0
    %4195 = vmatprep.mubr.f32.mxu0 0.0
    %4196 = vmatmul.mubr.f32.gmra.mrb[0].mxu0 %v3870
    %v4197 = vpop.f32.mrb[0].mxu0
    %v4198 = vadd.f32 0.0, %v4197
    %v4199 = vpop.f32.mrb[0].mxu0
    %4200 = vmatprep.mubr.f32.mxu0 0.0
    %4201 = vmatmul.mubr.f32.gmra.mrb[0].mxu0 %v3871
    %v4202 = vpop.f32.mrb[0].mxu0
    %v4203 = vadd.f32 0.0, %v4202
    %v4204 = vpop.f32.mrb[0].mxu0
    %4205 = vmatprep.mubr.f32.mxu0 0.0
    %4206 = vmatmul.mubr.f32.gmra.mrb[0].mxu0 %v3872
    %v4207 = vpop.f32.mrb[0].mxu0
    %v4208 = vadd.f32 0.0, %v4207
    %v4209 = vpop.f32.mrb[0].mxu0
    %4210 = vmatprep.mubr.f32.mxu0 0.0
    %4211 = vmatmul.mubr.f32.gmra.mrb[0].mxu0 %v3873
    %v4212 = vpop.f32.mrb[0].mxu0
    %v4213 = vadd.f32 0.0, %v4212
    %v4214 = vpop.f32.mrb[0].mxu0
    %4215 = vmatprep.mubr.f32.mxu0 0.0
    %4216 = vmatmul.mubr.f32.gmra.mrb[0].mxu0 %v3874
    %v4217 = vpop.f32.mrb[0].mxu0
    %v4218 = vadd.f32 0.0, %v4217
    %v4219 = vpop.f32.mrb[0].mxu0
    %4220 = vmatprep.mubr.f32.mxu0 0.0
    %4221 = vmatmul.mubr.f32.gmra.mrb[0].mxu0 %v3875
    %v4222 = vpop.f32.mrb[0].mxu0
    %v4223 = vadd.f32 0.0, %v4222
    %v4224 = vpop.f32.mrb[0].mxu0
    %4225 = vmatprep.mubr.f32.mxu0 0.0
    %4226 = vmatmul.mubr.f32.gmra.mrb[0].mxu0 %v3876
    %v4227 = vpop.f32.mrb[0].mxu0
    %v4228 = vadd.f32 0.0, %v4227
    %v4229 = vpop.f32.mrb[0].mxu0
    %4230 = vmatprep.mubr.f32.mxu0 0.0
    %4231 = vmatmul.mubr.f32.gmra.mrb[0].mxu0 %v3877
    %v4232 = vpop.f32.mrb[0].mxu0
    %v4233 = vadd.f32 0.0, %v4232
    %v4234 = vpop.f32.mrb[0].mxu0
    %4235 = vmatprep.mubr.f32.mxu0 0.0
    %4236 = vmatmul.mubr.f32.gmra.mrb[0].mxu0 %v3878
    %v4237 = vpop.f32.mrb[0].mxu0
    %v4238 = vadd.f32 0.0, %v4237
    %v4239 = vpop.f32.mrb[0].mxu0
    %4240 = vmatprep.mubr.f32.mxu0 0.0
    %4241 = vmatmul.mubr.f32.gmra.mrb[0].mxu0 %v3879
    %v4242 = vpop.f32.mrb[0].mxu0
    %v4243 = vadd.f32 0.0, %v4242
    %v4244 = vpop.f32.mrb[0].mxu0
    %4245 = vmatprep.mubr.f32.mxu0 0.0
    %4246 = vmatmul.mubr.f32.gmra.mrb[0].mxu0 %v3880
    %v4247 = vpop.f32.mrb[0].mxu0
    %v4248 = vadd.f32 0.0, %v4247
    %v4249 = vpop.f32.mrb[0].mxu0
    %4250 = vmatprep.mubr.f32.mxu0 0.0
    %4251 = vmatmul.mubr.f32.gmra.mrb[0].mxu0 %v3881
    %v4252 = vpop.f32.mrb[0].mxu0
    %v4253 = vadd.f32 0.0, %v4252
    %v4254 = vpop.f32.mrb[0].mxu0
    %4255 = vmatprep.mubr.f32.mxu0 0.0
    %4256 = vmatmul.mubr.f32.gmra.mrb[0].mxu0 %v3882
    %v4257 = vpop.f32.mrb[0].mxu0
    %v4258 = vadd.f32 0.0, %v4257
    %v4259 = vpop.f32.mrb[0].mxu0
    %4260 = vmatprep.mubr.f32.mxu0 0.0
    %4261 = vmatmul.mubr.f32.gmra.mrb[0].mxu0 %v3883
    %v4262 = vpop.f32.mrb[0].mxu0
    %v4263 = vadd.f32 0.0, %v4262
    %v4264 = vpop.f32.mrb[0].mxu0
    %4265 = vmatprep.mubr.f32.mxu0 0.0
    %4266 = vmatmul.mubr.f32.gmra.mrb[0].mxu0 %v3884
    %v4267 = vpop.f32.mrb[0].mxu0
    %v4268 = vadd.f32 0.0, %v4267
    %v4269 = vpop.f32.mrb[0].mxu0
    %4270 = vmatprep.mubr.f32.mxu0 0.0
    %4271 = vmatmul.mubr.f32.gmra.mrb[0].mxu0 %v3885
    %v4272 = vpop.f32.mrb[0].mxu0
    %v4273 = vadd.f32 0.0, %v4272
    %v4274 = vpop.f32.mrb[0].mxu0
    %4275 = vmatprep.mubr.f32.mxu0 0.0
    %4276 = vmatmul.mubr.f32.gmra.mrb[0].mxu0 %v3886
    %v4277 = vpop.f32.mrb[0].mxu0
    %v4278 = vadd.f32 0.0, %v4277
    %v4279 = vpop.f32.mrb[0].mxu0
    %4280 = vmatprep.mubr.f32.mxu0 0.0
    %4281 = vmatmul.mubr.f32.gmra.mrb[0].mxu0 %v3887
    %v4282 = vpop.f32.mrb[0].mxu0
    %v4283 = vadd.f32 0.0, %v4282
    %v4284 = vpop.f32.mrb[0].mxu0
    %4285 = vmatprep.mubr.f32.mxu0 0.0
    %4286 = vmatmul.mubr.f32.gmra.mrb[0].mxu0 %v3888
    %v4287 = vpop.f32.mrb[0].mxu0
    %v4288 = vadd.f32 0.0, %v4287
    %v4289 = vpop.f32.mrb[0].mxu0
    %4290 = vmatprep.mubr.f32.mxu0 0.0
    %4291 = vmatmul.mubr.f32.gmra.mrb[0].mxu0 %v3889
    %v4292 = vpop.f32.mrb[0].mxu0
    %v4293 = vadd.f32 0.0, %v4292
    %v4294 = vpop.f32.mrb[0].mxu0
    %4295 = vmatprep.mubr.f32.mxu0 0.0
    %4296 = vmatmul.mubr.f32.gmra.mrb[0].mxu0 %v3890
    %v4297 = vpop.f32.mrb[0].mxu0
    %v4298 = vadd.f32 0.0, %v4297
    %v4299 = vpop.f32.mrb[0].mxu0
    %4300 = vmatprep.mubr.f32.mxu0 0.0
    %4301 = vmatmul.mubr.f32.gmra.mrb[0].mxu0 %v3891
    %v4302 = vpop.f32.mrb[0].mxu0
    %v4303 = vadd.f32 0.0, %v4302
    %v4304 = vpop.f32.mrb[0].mxu0
    %4305 = vmatprep.mubr.f32.mxu0 0.0
    %4306 = vmatmul.mubr.f32.gmra.mrb[0].mxu0 %v3892
    %v4307 = vpop.f32.mrb[0].mxu0
    %v4308 = vadd.f32 0.0, %v4307
    %v4309 = vpop.f32.mrb[0].mxu0
    %4310 = vmatprep.mubr.f32.mxu0 0.0
    %4311 = vmatmul.mubr.f32.gmra.mrb[0].mxu0 %v3893
    %v4312 = vpop.f32.mrb[0].mxu0
    %v4313 = vadd.f32 0.0, %v4312
    %v4314 = vpop.f32.mrb[0].mxu0
    %4315 = vmatprep.mubr.f32.mxu0 0.0
    %4316 = vmatmul.mubr.f32.gmra.mrb[0].mxu0 %v3894
    %v4317 = vpop.f32.mrb[0].mxu0
    %v4318 = vadd.f32 0.0, %v4317
    %v4319 = vpop.f32.mrb[0].mxu0
    %4320 = vmatprep.mubr.f32.mxu0 0.0
    %4321 = vmatmul.mubr.f32.gmra.mrb[0].mxu0 %v3895
    %v4322 = vpop.f32.mrb[0].mxu0
    %v4323 = vadd.f32 0.0, %v4322
    %v4324 = vpop.f32.mrb[0].mxu0
    %4325 = vmatprep.mubr.f32.mxu0 0.0
    %4326 = vmatmul.mubr.f32.gmra.mrb[0].mxu0 %v3896
    %v4327 = vpop.f32.mrb[0].mxu0
    %v4328 = vadd.f32 0.0, %v4327
    %v4329 = vpop.f32.mrb[0].mxu0
    %4330 = vmatprep.mubr.f32.mxu0 0.0
    %4331 = vmatmul.mubr.f32.gmra.mrb[0].mxu0 %v3897
    %v4332 = vpop.f32.mrb[0].mxu0
    %v4333 = vadd.f32 0.0, %v4332
    %v4334 = vpop.f32.mrb[0].mxu0
    %4335 = vmatprep.mubr.f32.mxu0 0.0
    %4336 = vmatmul.mubr.f32.gmra.mrb[0].mxu0 %v3898
    %v4337 = vpop.f32.mrb[0].mxu0
    %v4338 = vadd.f32 0.0, %v4337
    %v4339 = vpop.f32.mrb[0].mxu0
    %4340 = vmatprep.mubr.f32.mxu0 0.0
    %4341 = vmatmul.mubr.f32.gmra.mrb[0].mxu0 %v3899
    %v4342 = vpop.f32.mrb[0].mxu0
    %v4343 = vadd.f32 0.0, %v4342
    %v4344 = vpop.f32.mrb[0].mxu0
    %4345 = vmatprep.mubr.f32.mxu0 0.0
    %4346 = vmatmul.mubr.f32.gmra.mrb[0].mxu0 %v3900
    %v4347 = vpop.f32.mrb[0].mxu0
    %v4348 = vadd.f32 0.0, %v4347
    %v4349 = vpop.f32.mrb[0].mxu0
    %4350 = vmatprep.mubr.f32.mxu0 0.0
    %4351 = vmatmul.mubr.f32.gmra.mrb[0].mxu0 %v3901
    %v4352 = vpop.f32.mrb[0].mxu0
    %v4353 = vadd.f32 0.0, %v4352
    %v4354 = vpop.f32.mrb[0].mxu0
    %4355 = vmatprep.mubr.f32.mxu0 0.0
    %4356 = vmatmul.mubr.f32.gmra.mrb[0].mxu0 %v3902
    %v4357 = vpop.f32.mrb[0].mxu0
    %v4358 = vadd.f32 0.0, %v4357
    %v4359 = vpop.f32.mrb[0].mxu0
    %4360 = vmatprep.mubr.f32.mxu0 0.0
    %4361 = vmatmul.mubr.f32.gmra.mrb[0].mxu0 %v3903
    %v4362 = vpop.f32.mrb[0].mxu0
    %v4363 = vadd.f32 0.0, %v4362
    %v4364 = vpop.f32.mrb[0].mxu0
    %4365 = vmatprep.mubr.f32.mxu0 0.0
    %4366 = vmatmul.mubr.f32.gmra.mrb[0].mxu0 %v3904
    %v4367 = vpop.f32.mrb[0].mxu0
    %v4368 = vadd.f32 0.0, %v4367
    %v4369 = vpop.f32.mrb[0].mxu0
    %4370 = vdwg.mxu0
    %v4371 = vadd.f32 %v3905, %v4053
    %v4372 = vadd.f32 %v3906, %v4058
    %v4373 = vadd.f32 %v3907, %v4063
    %v4374 = vadd.f32 %v3908, %v4068
    %v4375 = vadd.f32 %v3909, %v4073
    %v4376 = vadd.f32 %v3910, %v4078
    %v4377 = vadd.f32 %v3911, %v4083
    %v4378 = vadd.f32 %v3912, %v4088
    %v4379 = vadd.f32 %v3913, %v4093
    %v4380 = vadd.f32 %v3914, %v4098
    %v4381 = vadd.f32 %v3915, %v4103
    %v4382 = vadd.f32 %v3916, %v4108
    %v4383 = vadd.f32 %v3917, %v4113
    %v4384 = vadd.f32 %v3918, %v4118
    %v4385 = vadd.f32 %v3919, %v4123
    %v4386 = vadd.f32 %v3920, %v4128
    %v4387 = vadd.f32 %v3921, %v4133
    %v4388 = vadd.f32 %v3922, %v4138
    %v4389 = vadd.f32 %v3923, %v4143
    %v4390 = vadd.f32 %v3924, %v4148
    %v4391 = vadd.f32 %v3925, %v4153
    %v4392 = vadd.f32 %v3926, %v4158
    %v4393 = vadd.f32 %v3927, %v4163
    %v4394 = vadd.f32 %v3928, %v4168
    %v4395 = vadd.f32 %v3929, %v4173
    %v4396 = vadd.f32 %v3930, %v4178
    %v4397 = vadd.f32 %v3931, %v4183
    %v4398 = vadd.f32 %v3932, %v4188
    %v4399 = vadd.f32 %v3933, %v4193
    %v4400 = vadd.f32 %v3934, %v4198
    %v4401 = vadd.f32 %v3935, %v4203
    %v4402 = vadd.f32 %v3936, %v4208
    %v4403 = vadd.f32 %v3937, %v4213
    %v4404 = vadd.f32 %v3938, %v4218
    %v4405 = vadd.f32 %v3939, %v4223
    %v4406 = vadd.f32 %v3940, %v4228
    %v4407 = vadd.f32 %v3941, %v4233
    %v4408 = vadd.f32 %v3942, %v4238
    %v4409 = vadd.f32 %v3943, %v4243
    %v4410 = vadd.f32 %v3944, %v4248
    %v4411 = vadd.f32 %v3945, %v4253
    %v4412 = vadd.f32 %v3946, %v4258
    %v4413 = vadd.f32 %v3947, %v4263
    %v4414 = vadd.f32 %v3948, %v4268
    %v4415 = vadd.f32 %v3949, %v4273
    %v4416 = vadd.f32 %v3950, %v4278
    %v4417 = vadd.f32 %v3951, %v4283
    %v4418 = vadd.f32 %v3952, %v4288
    %v4419 = vadd.f32 %v3953, %v4293
    %v4420 = vadd.f32 %v3954, %v4298
    %v4421 = vadd.f32 %v3955, %v4303
    %v4422 = vadd.f32 %v3956, %v4308
    %v4423 = vadd.f32 %v3957, %v4313
    %v4424 = vadd.f32 %v3958, %v4318
    %v4425 = vadd.f32 %v3959, %v4323
    %v4426 = vadd.f32 %v3960, %v4328
    %v4427 = vadd.f32 %v3961, %v4333
    %v4428 = vadd.f32 %v3962, %v4338
    %v4429 = vadd.f32 %v3963, %v4343
    %v4430 = vadd.f32 %v3964, %v4348
    %v4431 = vadd.f32 %v3965, %v4353
    %v4432 = vadd.f32 %v3966, %v4358
    %v4433 = vadd.f32 %v3967, %v4363
    %v4434 = vadd.f32 %v3968, %v4368
    %4435 = vst [vmem:[#allocation3] sm:$0xff] %v4371
    %4436 = vst [vmem:[#allocation3 + $0x8] sm:$0xff] %v4372
    %4437 = vst [vmem:[#allocation3 + $0x10] sm:$0xff] %v4373
    %4438 = vst [vmem:[#allocation3 + $0x18] sm:$0xff] %v4374
    %4439 = vst [vmem:[#allocation3 + $0x20] sm:$0xff] %v4375
    %4440 = vst [vmem:[#allocation3 + $0x28] sm:$0xff] %v4376
    %4441 = vst [vmem:[#allocation3 + $0x30] sm:$0xff] %v4377
    %4442 = vst [vmem:[#allocation3 + $0x38] sm:$0xff] %v4378
    %4443 = vst [vmem:[#allocation3 + $0x40] sm:$0xff] %v4379
    %4444 = vst [vmem:[#allocation3 + $0x48] sm:$0xff] %v4380
    %4445 = vst [vmem:[#allocation3 + $0x50] sm:$0xff] %v4381
    %4446 = vst [vmem:[#allocation3 + $0x58] sm:$0xff] %v4382
    %4447 = vst [vmem:[#allocation3 + $0x60] sm:$0xff] %v4383
    %4448 = vst [vmem:[#allocation3 + $0x68] sm:$0xff] %v4384
    %4449 = vst [vmem:[#allocation3 + $0x70] sm:$0xff] %v4385
    %4450 = vst [vmem:[#allocation3 + $0x78] sm:$0xff] %v4386
    %4451 = vst [vmem:[#allocation3 + $0x80] sm:$0xff] %v4387
    %4452 = vst [vmem:[#allocation3 + $0x88] sm:$0xff] %v4388
    %4453 = vst [vmem:[#allocation3 + $0x90] sm:$0xff] %v4389
    %4454 = vst [vmem:[#allocation3 + $0x98] sm:$0xff] %v4390
    %4455 = vst [vmem:[#allocation3 + $0xa0] sm:$0xff] %v4391
    %4456 = vst [vmem:[#allocation3 + $0xa8] sm:$0xff] %v4392
    %4457 = vst [vmem:[#allocation3 + $0xb0] sm:$0xff] %v4393
    %4458 = vst [vmem:[#allocation3 + $0xb8] sm:$0xff] %v4394
    %4459 = vst [vmem:[#allocation3 + $0xc0] sm:$0xff] %v4395
    %4460 = vst [vmem:[#allocation3 + $0xc8] sm:$0xff] %v4396
    %4461 = vst [vmem:[#allocation3 + $0xd0] sm:$0xff] %v4397
    %4462 = vst [vmem:[#allocation3 + $0xd8] sm:$0xff] %v4398
    %4463 = vst [vmem:[#allocation3 + $0xe0] sm:$0xff] %v4399
    %4464 = vst [vmem:[#allocation3 + $0xe8] sm:$0xff] %v4400
    %4465 = vst [vmem:[#allocation3 + $0xf0] sm:$0xff] %v4401
    %4466 = vst [vmem:[#allocation3 + $0xf8] sm:$0xff] %v4402
    %4467 = vst [vmem:[#allocation3 + $0x100] sm:$0xff] %v4403
    %4468 = vst [vmem:[#allocation3 + $0x108] sm:$0xff] %v4404
    %4469 = vst [vmem:[#allocation3 + $0x110] sm:$0xff] %v4405
    %4470 = vst [vmem:[#allocation3 + $0x118] sm:$0xff] %v4406
    %4471 = vst [vmem:[#allocation3 + $0x120] sm:$0xff] %v4407
    %4472 = vst [vmem:[#allocation3 + $0x128] sm:$0xff] %v4408
    %4473 = vst [vmem:[#allocation3 + $0x130] sm:$0xff] %v4409
    %4474 = vst [vmem:[#allocation3 + $0x138] sm:$0xff] %v4410
    %4475 = vst [vmem:[#allocation3 + $0x140] sm:$0xff] %v4411
    %4476 = vst [vmem:[#allocation3 + $0x148] sm:$0xff] %v4412
    %4477 = vst [vmem:[#allocation3 + $0x150] sm:$0xff] %v4413
    %4478 = vst [vmem:[#allocation3 + $0x158] sm:$0xff] %v4414
    %4479 = vst [vmem:[#allocation3 + $0x160] sm:$0xff] %v4415
    %4480 = vst [vmem:[#allocation3 + $0x168] sm:$0xff] %v4416
    %4481 = vst [vmem:[#allocation3 + $0x170] sm:$0xff] %v4417
    %4482 = vst [vmem:[#allocation3 + $0x178] sm:$0xff] %v4418
    %4483 = vst [vmem:[#allocation3 + $0x180] sm:$0xff] %v4419
    %4484 = vst [vmem:[#allocation3 + $0x188] sm:$0xff] %v4420
    %4485 = vst [vmem:[#allocation3 + $0x190] sm:$0xff] %v4421
    %4486 = vst [vmem:[#allocation3 + $0x198] sm:$0xff] %v4422
    %4487 = vst [vmem:[#allocation3 + $0x1a0] sm:$0xff] %v4423
    %4488 = vst [vmem:[#allocation3 + $0x1a8] sm:$0xff] %v4424
    %4489 = vst [vmem:[#allocation3 + $0x1b0] sm:$0xff] %v4425
    %4490 = vst [vmem:[#allocation3 + $0x1b8] sm:$0xff] %v4426
    %4491 = vst [vmem:[#allocation3 + $0x1c0] sm:$0xff] %v4427
    %4492 = vst [vmem:[#allocation3 + $0x1c8] sm:$0xff] %v4428
    %4493 = vst [vmem:[#allocation3 + $0x1d0] sm:$0xff] %v4429
    %4494 = vst [vmem:[#allocation3 + $0x1d8] sm:$0xff] %v4430
    %4495 = vst [vmem:[#allocation3 + $0x1e0] sm:$0xff] %v4431
    %4496 = vst [vmem:[#allocation3 + $0x1e8] sm:$0xff] %v4432
    %4497 = vst [vmem:[#allocation3 + $0x1f0] sm:$0xff] %v4433
    %4498 = vst [vmem:[#allocation3 + $0x1f8] sm:$0xff] %v4434
    %v4499 = vld [vmem:[%s1081 + $0x2] sm:$0xff]
    %v4500 = vld [vmem:[%s1081 + $0xa] sm:$0xff]
    %v4501 = vld [vmem:[%s1081 + $0x1a] sm:$0xff]
    %v4502 = vld [vmem:[%s1081 + $0x22] sm:$0xff]
    %v4503 = vld [vmem:[%s1081 + $0x32] sm:$0xff]
    %v4504 = vld [vmem:[%s1081 + $0x3a] sm:$0xff]
    %v4505 = vld [vmem:[%s1081 + $0x4a] sm:$0xff]
    %v4506 = vld [vmem:[%s1081 + $0x52] sm:$0xff]
    %v4507 = vld [vmem:[%s1081 + $0x62] sm:$0xff]
    %v4508 = vld [vmem:[%s1081 + $0x6a] sm:$0xff]
    %v4509 = vld [vmem:[%s1081 + $0x7a] sm:$0xff]
    %v4510 = vld [vmem:[%s1081 + $0x82] sm:$0xff]
    %v4511 = vld [vmem:[%s1081 + $0x92] sm:$0xff]
    %v4512 = vld [vmem:[%s1081 + $0x9a] sm:$0xff]
    %v4513 = vld [vmem:[%s1081 + $0xaa] sm:$0xff]
    %v4514 = vld [vmem:[%s1081 + $0xb2] sm:$0xff]
    %v4515 = vld [vmem:[%s1081 + $0xc2] sm:$0xff]
    %v4516 = vld [vmem:[%s1081 + $0xca] sm:$0xff]
    %v4517 = vld [vmem:[%s1081 + $0xda] sm:$0xff]
    %v4518 = vld [vmem:[%s1081 + $0xe2] sm:$0xff]
    %v4519 = vld [vmem:[%s1081 + $0xf2] sm:$0xff]
    %v4520 = vld [vmem:[%s1081 + $0xfa] sm:$0xff]
    %v4521 = vld [vmem:[%s1081 + $0x10a] sm:$0xff]
    %v4522 = vld [vmem:[%s1081 + $0x112] sm:$0xff]
    %v4523 = vld [vmem:[%s1081 + $0x122] sm:$0xff]
    %v4524 = vld [vmem:[%s1081 + $0x12a] sm:$0xff]
    %v4525 = vld [vmem:[%s1081 + $0x13a] sm:$0xff]
    %v4526 = vld [vmem:[%s1081 + $0x142] sm:$0xff]
    %v4527 = vld [vmem:[%s1081 + $0x152] sm:$0xff]
    %v4528 = vld [vmem:[%s1081 + $0x15a] sm:$0xff]
    %v4529 = vld [vmem:[%s1081 + $0x16a] sm:$0xff]
    %v4530 = vld [vmem:[%s1081 + $0x172] sm:$0xff]
    %v4531 = vld [vmem:[%s1081 + $0x1b2] sm:$0xff]
    %v4532 = vld [vmem:[%s1081 + $0x1ba] sm:$0xff]
    %v4533 = vld [vmem:[%s1081 + $0x1ca] sm:$0xff]
    %v4534 = vld [vmem:[%s1081 + $0x1d2] sm:$0xff]
    %v4535 = vld [vmem:[%s1081 + $0x1e2] sm:$0xff]
    %v4536 = vld [vmem:[%s1081 + $0x1ea] sm:$0xff]
    %v4537 = vld [vmem:[%s1081 + $0x1fa] sm:$0xff]
    %v4538 = vld [vmem:[%s1081 + $0x202] sm:$0xff]
    %v4539 = vld [vmem:[%s1081 + $0x212] sm:$0xff]
    %v4540 = vld [vmem:[%s1081 + $0x21a] sm:$0xff]
    %v4541 = vld [vmem:[%s1081 + $0x22a] sm:$0xff]
    %v4542 = vld [vmem:[%s1081 + $0x232] sm:$0xff]
    %v4543 = vld [vmem:[%s1081 + $0x242] sm:$0xff]
    %v4544 = vld [vmem:[%s1081 + $0x24a] sm:$0xff]
    %v4545 = vld [vmem:[%s1081 + $0x25a] sm:$0xff]
    %v4546 = vld [vmem:[%s1081 + $0x262] sm:$0xff]
    %v4547 = vld [vmem:[%s1081 + $0x272] sm:$0xff]
    %v4548 = vld [vmem:[%s1081 + $0x27a] sm:$0xff]
    %v4549 = vld [vmem:[%s1081 + $0x28a] sm:$0xff]
    %v4550 = vld [vmem:[%s1081 + $0x292] sm:$0xff]
    %v4551 = vld [vmem:[%s1081 + $0x2a2] sm:$0xff]
    %v4552 = vld [vmem:[%s1081 + $0x2aa] sm:$0xff]
    %v4553 = vld [vmem:[%s1081 + $0x2ba] sm:$0xff]
    %v4554 = vld [vmem:[%s1081 + $0x2c2] sm:$0xff]
    %v4555 = vld [vmem:[%s1081 + $0x2d2] sm:$0xff]
    %v4556 = vld [vmem:[%s1081 + $0x2da] sm:$0xff]
    %v4557 = vld [vmem:[%s1081 + $0x2ea] sm:$0xff]
    %v4558 = vld [vmem:[%s1081 + $0x2f2] sm:$0xff]
    %v4559 = vld [vmem:[%s1081 + $0x302] sm:$0xff]
    %v4560 = vld [vmem:[%s1081 + $0x30a] sm:$0xff]
    %v4561 = vld [vmem:[%s1081 + $0x31a] sm:$0xff]
    %v4562 = vld [vmem:[%s1081 + $0x322] sm:$0xff]
    %v4563 = vld [vmem:[#allocation3] sm:$0xff]
    %v4564 = vld [vmem:[#allocation3 + $0x8] sm:$0xff]
    %v4565 = vld [vmem:[#allocation3 + $0x10] sm:$0xff]
    %v4566 = vld [vmem:[#allocation3 + $0x18] sm:$0xff]
    %v4567 = vld [vmem:[#allocation3 + $0x20] sm:$0xff]
    %v4568 = vld [vmem:[#allocation3 + $0x28] sm:$0xff]
    %v4569 = vld [vmem:[#allocation3 + $0x30] sm:$0xff]
    %v4570 = vld [vmem:[#allocation3 + $0x38] sm:$0xff]
    %v4571 = vld [vmem:[#allocation3 + $0x40] sm:$0xff]
    %v4572 = vld [vmem:[#allocation3 + $0x48] sm:$0xff]
    %v4573 = vld [vmem:[#allocation3 + $0x50] sm:$0xff]
    %v4574 = vld [vmem:[#allocation3 + $0x58] sm:$0xff]
    %v4575 = vld [vmem:[#allocation3 + $0x60] sm:$0xff]
    %v4576 = vld [vmem:[#allocation3 + $0x68] sm:$0xff]
    %v4577 = vld [vmem:[#allocation3 + $0x70] sm:$0xff]
    %v4578 = vld [vmem:[#allocation3 + $0x78] sm:$0xff]
    %v4579 = vld [vmem:[#allocation3 + $0x80] sm:$0xff]
    %v4580 = vld [vmem:[#allocation3 + $0x88] sm:$0xff]
    %v4581 = vld [vmem:[#allocation3 + $0x90] sm:$0xff]
    %v4582 = vld [vmem:[#allocation3 + $0x98] sm:$0xff]
    %v4583 = vld [vmem:[#allocation3 + $0xa0] sm:$0xff]
    %v4584 = vld [vmem:[#allocation3 + $0xa8] sm:$0xff]
    %v4585 = vld [vmem:[#allocation3 + $0xb0] sm:$0xff]
    %v4586 = vld [vmem:[#allocation3 + $0xb8] sm:$0xff]
    %v4587 = vld [vmem:[#allocation3 + $0xc0] sm:$0xff]
    %v4588 = vld [vmem:[#allocation3 + $0xc8] sm:$0xff]
    %v4589 = vld [vmem:[#allocation3 + $0xd0] sm:$0xff]
    %v4590 = vld [vmem:[#allocation3 + $0xd8] sm:$0xff]
    %v4591 = vld [vmem:[#allocation3 + $0xe0] sm:$0xff]
    %v4592 = vld [vmem:[#allocation3 + $0xe8] sm:$0xff]
    %v4593 = vld [vmem:[#allocation3 + $0xf0] sm:$0xff]
    %v4594 = vld [vmem:[#allocation3 + $0xf8] sm:$0xff]
    %v4595 = vld [vmem:[#allocation3 + $0x100] sm:$0xff]
    %v4596 = vld [vmem:[#allocation3 + $0x108] sm:$0xff]
    %v4597 = vld [vmem:[#allocation3 + $0x110] sm:$0xff]
    %v4598 = vld [vmem:[#allocation3 + $0x118] sm:$0xff]
    %v4599 = vld [vmem:[#allocation3 + $0x120] sm:$0xff]
    %v4600 = vld [vmem:[#allocation3 + $0x128] sm:$0xff]
    %v4601 = vld [vmem:[#allocation3 + $0x130] sm:$0xff]
    %v4602 = vld [vmem:[#allocation3 + $0x138] sm:$0xff]
    %v4603 = vld [vmem:[#allocation3 + $0x140] sm:$0xff]
    %v4604 = vld [vmem:[#allocation3 + $0x148] sm:$0xff]
    %v4605 = vld [vmem:[#allocation3 + $0x150] sm:$0xff]
    %v4606 = vld [vmem:[#allocation3 + $0x158] sm:$0xff]
    %v4607 = vld [vmem:[#allocation3 + $0x160] sm:$0xff]
    %v4608 = vld [vmem:[#allocation3 + $0x168] sm:$0xff]
    %v4609 = vld [vmem:[#allocation3 + $0x170] sm:$0xff]
    %v4610 = vld [vmem:[#allocation3 + $0x178] sm:$0xff]
    %v4611 = vld [vmem:[#allocation3 + $0x180] sm:$0xff]
    %v4612 = vld [vmem:[#allocation3 + $0x188] sm:$0xff]
    %v4613 = vld [vmem:[#allocation3 + $0x190] sm:$0xff]
    %v4614 = vld [vmem:[#allocation3 + $0x198] sm:$0xff]
    %v4615 = vld [vmem:[#allocation3 + $0x1a0] sm:$0xff]
    %v4616 = vld [vmem:[#allocation3 + $0x1a8] sm:$0xff]
    %v4617 = vld [vmem:[#allocation3 + $0x1b0] sm:$0xff]
    %v4618 = vld [vmem:[#allocation3 + $0x1b8] sm:$0xff]
    %v4619 = vld [vmem:[#allocation3 + $0x1c0] sm:$0xff]
    %v4620 = vld [vmem:[#allocation3 + $0x1c8] sm:$0xff]
    %v4621 = vld [vmem:[#allocation3 + $0x1d0] sm:$0xff]
    %v4622 = vld [vmem:[#allocation3 + $0x1d8] sm:$0xff]
    %v4623 = vld [vmem:[#allocation3 + $0x1e0] sm:$0xff]
    %v4624 = vld [vmem:[#allocation3 + $0x1e8] sm:$0xff]
    %v4625 = vld [vmem:[#allocation3 + $0x1f0] sm:$0xff]
    %v4626 = vld [vmem:[#allocation3 + $0x1f8] sm:$0xff]
    %s4627 = scalar_lea.vmem [#allocation9], 640
    %v4628 = vld [vmem:[%s4627] sm:$0xff]
    %v4629 = vld [vmem:[%s4627 + $0x8] sm:$0xff]
    %v4630 = vld [vmem:[%s4627 + $0x10] sm:$0xff]
    %v4631 = vld [vmem:[%s4627 + $0x18] sm:$0xff]
    %v4632 = vld [vmem:[%s4627 + $0x20] sm:$0xff]
    %v4633 = vld [vmem:[%s4627 + $0x28] sm:$0xff]
    %v4634 = vld [vmem:[%s4627 + $0x30] sm:$0xff]
    %v4635 = vld [vmem:[%s4627 + $0x38] sm:$0xff]
    %v4636 = vld [vmem:[%s4627 + $0x40] sm:$0xff]
    %v4637 = vld [vmem:[%s4627 + $0x48] sm:$0xff]
    %v4638 = vld [vmem:[%s4627 + $0x50] sm:$0xff]
    %v4639 = vld [vmem:[%s4627 + $0x58] sm:$0xff]
    %v4640 = vld [vmem:[%s4627 + $0x60] sm:$0xff]
    %v4641 = vld [vmem:[%s4627 + $0x68] sm:$0xff]
    %v4642 = vld [vmem:[%s4627 + $0x70] sm:$0xff]
    %v4643 = vld [vmem:[%s4627 + $0x78] sm:$0xff]
    %4644 = vmatprep.subr.mxu0 0.0
    %4645 = vmatpush1.msra.mxu0 %v4628
    %4646 = vmatprep.subr.mxu0 0.0
    %4647 = vmatpush1.msra.mxu0 %v4629
    %4648 = vmatprep.subr.mxu0 0.0
    %4649 = vmatpush1.msra.mxu0 %v4630
    %4650 = vmatprep.subr.mxu0 0.0
    %4651 = vmatpush1.msra.mxu0 %v4631
    %4652 = vmatprep.subr.mxu0 0.0
    %4653 = vmatpush1.msra.mxu0 %v4632
    %4654 = vmatprep.subr.mxu0 0.0
    %4655 = vmatpush1.msra.mxu0 %v4633
    %4656 = vmatprep.subr.mxu0 0.0
    %4657 = vmatpush1.msra.mxu0 %v4634
    %4658 = vmatprep.subr.mxu0 0.0
    %4659 = vmatpush1.msra.mxu0 %v4635
    %4660 = vmatprep.subr.mxu0 0.0
    %4661 = vmatpush1.msra.mxu0 %v4636
    %4662 = vmatprep.subr.mxu0 0.0
    %4663 = vmatpush1.msra.mxu0 %v4637
    %4664 = vmatprep.subr.mxu0 0.0
    %4665 = vmatpush1.msra.mxu0 %v4638
    %4666 = vmatprep.subr.mxu0 0.0
    %4667 = vmatpush1.msra.mxu0 %v4639
    %4668 = vmatprep.subr.mxu0 0.0
    %4669 = vmatpush1.msra.mxu0 %v4640
    %4670 = vmatprep.subr.mxu0 0.0
    %4671 = vmatpush1.msra.mxu0 %v4641
    %4672 = vmatprep.subr.mxu0 0.0
    %4673 = vmatpush1.msra.mxu0 %v4642
    %4674 = vmatprep.subr.mxu0 0.0
    %4675 = vmatpush1.msra.mxu0 %v4643
    %4676 = vmatprep.subr.mxu0 0.0
    %4677 = vmatpush1.msra.mxu0 0.0
    %4678 = vmatprep.subr.mxu0 0.0
    %4679 = vmatpush1.msra.mxu0 0.0
    %4680 = vmatprep.subr.mxu0 0.0
    %4681 = vmatpush1.msra.mxu0 0.0
    %4682 = vmatprep.subr.mxu0 0.0
    %4683 = vmatpush1.msra.mxu0 0.0
    %4684 = vmatprep.subr.mxu0 0.0
    %4685 = vmatpush1.msra.mxu0 0.0
    %4686 = vmatprep.subr.mxu0 0.0
    %4687 = vmatpush1.msra.mxu0 0.0
    %4688 = vmatprep.subr.mxu0 0.0
    %4689 = vmatpush1.msra.mxu0 0.0
    %4690 = vmatprep.subr.mxu0 0.0
    %4691 = vmatpush1.msra.mxu0 0.0
    %4692 = vmatprep.subr.mxu0 0.0
    %4693 = vmatpush1.msra.mxu0 0.0
    %4694 = vmatprep.subr.mxu0 0.0
    %4695 = vmatpush1.msra.mxu0 0.0
    %4696 = vmatprep.subr.mxu0 0.0
    %4697 = vmatpush1.msra.mxu0 0.0
    %4698 = vmatprep.subr.mxu0 0.0
    %4699 = vmatpush1.msra.mxu0 0.0
    %4700 = vmatprep.subr.mxu0 0.0
    %4701 = vmatpush1.msra.mxu0 0.0
    %4702 = vmatprep.subr.mxu0 0.0
    %4703 = vmatpush1.msra.mxu0 0.0
    %4704 = vmatprep.subr.mxu0 0.0
    %4705 = vmatpush1.msra.mxu0 0.0
    %4706 = vmatprep.subr.mxu0 0.0
    %4707 = vmatpush1.msra.mxu0 0.0
    %4708 = vmatprep.mubr.f32.mxu0 0.0
    %4709 = vmatmul.mubr.f32.gmra.mrb[0].mxu0 %v4499
    %v4710 = vpop.f32.mrb[0].mxu0
    %v4711 = vadd.f32 0.0, %v4710
    %v4712 = vpop.f32.mrb[0].mxu0
    %4713 = vmatprep.mubr.f32.mxu0 0.0
    %4714 = vmatmul.mubr.f32.gmra.mrb[0].mxu0 %v4500
    %v4715 = vpop.f32.mrb[0].mxu0
    %v4716 = vadd.f32 0.0, %v4715
    %v4717 = vpop.f32.mrb[0].mxu0
    %4718 = vmatprep.mubr.f32.mxu0 0.0
    %4719 = vmatmul.mubr.f32.gmra.mrb[0].mxu0 %v4501
    %v4720 = vpop.f32.mrb[0].mxu0
    %v4721 = vadd.f32 0.0, %v4720
    %v4722 = vpop.f32.mrb[0].mxu0
    %4723 = vmatprep.mubr.f32.mxu0 0.0
    %4724 = vmatmul.mubr.f32.gmra.mrb[0].mxu0 %v4502
    %v4725 = vpop.f32.mrb[0].mxu0
    %v4726 = vadd.f32 0.0, %v4725
    %v4727 = vpop.f32.mrb[0].mxu0
    %4728 = vmatprep.mubr.f32.mxu0 0.0
    %4729 = vmatmul.mubr.f32.gmra.mrb[0].mxu0 %v4503
    %v4730 = vpop.f32.mrb[0].mxu0
    %v4731 = vadd.f32 0.0, %v4730
    %v4732 = vpop.f32.mrb[0].mxu0
    %4733 = vmatprep.mubr.f32.mxu0 0.0
    %4734 = vmatmul.mubr.f32.gmra.mrb[0].mxu0 %v4504
    %v4735 = vpop.f32.mrb[0].mxu0
    %v4736 = vadd.f32 0.0, %v4735
    %v4737 = vpop.f32.mrb[0].mxu0
    %4738 = vmatprep.mubr.f32.mxu0 0.0
    %4739 = vmatmul.mubr.f32.gmra.mrb[0].mxu0 %v4505
    %v4740 = vpop.f32.mrb[0].mxu0
    %v4741 = vadd.f32 0.0, %v4740
    %v4742 = vpop.f32.mrb[0].mxu0
    %4743 = vmatprep.mubr.f32.mxu0 0.0
    %4744 = vmatmul.mubr.f32.gmra.mrb[0].mxu0 %v4506
    %v4745 = vpop.f32.mrb[0].mxu0
    %v4746 = vadd.f32 0.0, %v4745
    %v4747 = vpop.f32.mrb[0].mxu0
    %4748 = vmatprep.mubr.f32.mxu0 0.0
    %4749 = vmatmul.mubr.f32.gmra.mrb[0].mxu0 %v4507
    %v4750 = vpop.f32.mrb[0].mxu0
    %v4751 = vadd.f32 0.0, %v4750
    %v4752 = vpop.f32.mrb[0].mxu0
    %4753 = vmatprep.mubr.f32.mxu0 0.0
    %4754 = vmatmul.mubr.f32.gmra.mrb[0].mxu0 %v4508
    %v4755 = vpop.f32.mrb[0].mxu0
    %v4756 = vadd.f32 0.0, %v4755
    %v4757 = vpop.f32.mrb[0].mxu0
    %4758 = vmatprep.mubr.f32.mxu0 0.0
    %4759 = vmatmul.mubr.f32.gmra.mrb[0].mxu0 %v4509
    %v4760 = vpop.f32.mrb[0].mxu0
    %v4761 = vadd.f32 0.0, %v4760
    %v4762 = vpop.f32.mrb[0].mxu0
    %4763 = vmatprep.mubr.f32.mxu0 0.0
    %4764 = vmatmul.mubr.f32.gmra.mrb[0].mxu0 %v4510
    %v4765 = vpop.f32.mrb[0].mxu0
    %v4766 = vadd.f32 0.0, %v4765
    %v4767 = vpop.f32.mrb[0].mxu0
    %4768 = vmatprep.mubr.f32.mxu0 0.0
    %4769 = vmatmul.mubr.f32.gmra.mrb[0].mxu0 %v4511
    %v4770 = vpop.f32.mrb[0].mxu0
    %v4771 = vadd.f32 0.0, %v4770
    %v4772 = vpop.f32.mrb[0].mxu0
    %4773 = vmatprep.mubr.f32.mxu0 0.0
    %4774 = vmatmul.mubr.f32.gmra.mrb[0].mxu0 %v4512
    %v4775 = vpop.f32.mrb[0].mxu0
    %v4776 = vadd.f32 0.0, %v4775
    %v4777 = vpop.f32.mrb[0].mxu0
    %4778 = vmatprep.mubr.f32.mxu0 0.0
    %4779 = vmatmul.mubr.f32.gmra.mrb[0].mxu0 %v4513
    %v4780 = vpop.f32.mrb[0].mxu0
    %v4781 = vadd.f32 0.0, %v4780
    %v4782 = vpop.f32.mrb[0].mxu0
    %4783 = vmatprep.mubr.f32.mxu0 0.0
    %4784 = vmatmul.mubr.f32.gmra.mrb[0].mxu0 %v4514
    %v4785 = vpop.f32.mrb[0].mxu0
    %v4786 = vadd.f32 0.0, %v4785
    %v4787 = vpop.f32.mrb[0].mxu0
    %4788 = vmatprep.mubr.f32.mxu0 0.0
    %4789 = vmatmul.mubr.f32.gmra.mrb[0].mxu0 %v4515
    %v4790 = vpop.f32.mrb[0].mxu0
    %v4791 = vadd.f32 0.0, %v4790
    %v4792 = vpop.f32.mrb[0].mxu0
    %4793 = vmatprep.mubr.f32.mxu0 0.0
    %4794 = vmatmul.mubr.f32.gmra.mrb[0].mxu0 %v4516
    %v4795 = vpop.f32.mrb[0].mxu0
    %v4796 = vadd.f32 0.0, %v4795
    %v4797 = vpop.f32.mrb[0].mxu0
    %4798 = vmatprep.mubr.f32.mxu0 0.0
    %4799 = vmatmul.mubr.f32.gmra.mrb[0].mxu0 %v4517
    %v4800 = vpop.f32.mrb[0].mxu0
    %v4801 = vadd.f32 0.0, %v4800
    %v4802 = vpop.f32.mrb[0].mxu0
    %4803 = vmatprep.mubr.f32.mxu0 0.0
    %4804 = vmatmul.mubr.f32.gmra.mrb[0].mxu0 %v4518
    %v4805 = vpop.f32.mrb[0].mxu0
    %v4806 = vadd.f32 0.0, %v4805
    %v4807 = vpop.f32.mrb[0].mxu0
    %4808 = vmatprep.mubr.f32.mxu0 0.0
    %4809 = vmatmul.mubr.f32.gmra.mrb[0].mxu0 %v4519
    %v4810 = vpop.f32.mrb[0].mxu0
    %v4811 = vadd.f32 0.0, %v4810
    %v4812 = vpop.f32.mrb[0].mxu0
    %4813 = vmatprep.mubr.f32.mxu0 0.0
    %4814 = vmatmul.mubr.f32.gmra.mrb[0].mxu0 %v4520
    %v4815 = vpop.f32.mrb[0].mxu0
    %v4816 = vadd.f32 0.0, %v4815
    %v4817 = vpop.f32.mrb[0].mxu0
    %4818 = vmatprep.mubr.f32.mxu0 0.0
    %4819 = vmatmul.mubr.f32.gmra.mrb[0].mxu0 %v4521
    %v4820 = vpop.f32.mrb[0].mxu0
    %v4821 = vadd.f32 0.0, %v4820
    %v4822 = vpop.f32.mrb[0].mxu0
    %4823 = vmatprep.mubr.f32.mxu0 0.0
    %4824 = vmatmul.mubr.f32.gmra.mrb[0].mxu0 %v4522
    %v4825 = vpop.f32.mrb[0].mxu0
    %v4826 = vadd.f32 0.0, %v4825
    %v4827 = vpop.f32.mrb[0].mxu0
    %4828 = vmatprep.mubr.f32.mxu0 0.0
    %4829 = vmatmul.mubr.f32.gmra.mrb[0].mxu0 %v4523
    %v4830 = vpop.f32.mrb[0].mxu0
    %v4831 = vadd.f32 0.0, %v4830
    %v4832 = vpop.f32.mrb[0].mxu0
    %4833 = vmatprep.mubr.f32.mxu0 0.0
    %4834 = vmatmul.mubr.f32.gmra.mrb[0].mxu0 %v4524
    %v4835 = vpop.f32.mrb[0].mxu0
    %v4836 = vadd.f32 0.0, %v4835
    %v4837 = vpop.f32.mrb[0].mxu0
    %4838 = vmatprep.mubr.f32.mxu0 0.0
    %4839 = vmatmul.mubr.f32.gmra.mrb[0].mxu0 %v4525
    %v4840 = vpop.f32.mrb[0].mxu0
    %v4841 = vadd.f32 0.0, %v4840
    %v4842 = vpop.f32.mrb[0].mxu0
    %4843 = vmatprep.mubr.f32.mxu0 0.0
    %4844 = vmatmul.mubr.f32.gmra.mrb[0].mxu0 %v4526
    %v4845 = vpop.f32.mrb[0].mxu0
    %v4846 = vadd.f32 0.0, %v4845
    %v4847 = vpop.f32.mrb[0].mxu0
    %4848 = vmatprep.mubr.f32.mxu0 0.0
    %4849 = vmatmul.mubr.f32.gmra.mrb[0].mxu0 %v4527
    %v4850 = vpop.f32.mrb[0].mxu0
    %v4851 = vadd.f32 0.0, %v4850
    %v4852 = vpop.f32.mrb[0].mxu0
    %4853 = vmatprep.mubr.f32.mxu0 0.0
    %4854 = vmatmul.mubr.f32.gmra.mrb[0].mxu0 %v4528
    %v4855 = vpop.f32.mrb[0].mxu0
    %v4856 = vadd.f32 0.0, %v4855
    %v4857 = vpop.f32.mrb[0].mxu0
    %4858 = vmatprep.mubr.f32.mxu0 0.0
    %4859 = vmatmul.mubr.f32.gmra.mrb[0].mxu0 %v4529
    %v4860 = vpop.f32.mrb[0].mxu0
    %v4861 = vadd.f32 0.0, %v4860
    %v4862 = vpop.f32.mrb[0].mxu0
    %4863 = vmatprep.mubr.f32.mxu0 0.0
    %4864 = vmatmul.mubr.f32.gmra.mrb[0].mxu0 %v4530
    %v4865 = vpop.f32.mrb[0].mxu0
    %v4866 = vadd.f32 0.0, %v4865
    %v4867 = vpop.f32.mrb[0].mxu0
    %4868 = vmatprep.mubr.f32.mxu0 0.0
    %4869 = vmatmul.mubr.f32.gmra.mrb[0].mxu0 %v4531
    %v4870 = vpop.f32.mrb[0].mxu0
    %v4871 = vadd.f32 0.0, %v4870
    %v4872 = vpop.f32.mrb[0].mxu0
    %4873 = vmatprep.mubr.f32.mxu0 0.0
    %4874 = vmatmul.mubr.f32.gmra.mrb[0].mxu0 %v4532
    %v4875 = vpop.f32.mrb[0].mxu0
    %v4876 = vadd.f32 0.0, %v4875
    %v4877 = vpop.f32.mrb[0].mxu0
    %4878 = vmatprep.mubr.f32.mxu0 0.0
    %4879 = vmatmul.mubr.f32.gmra.mrb[0].mxu0 %v4533
    %v4880 = vpop.f32.mrb[0].mxu0
    %v4881 = vadd.f32 0.0, %v4880
    %v4882 = vpop.f32.mrb[0].mxu0
    %4883 = vmatprep.mubr.f32.mxu0 0.0
    %4884 = vmatmul.mubr.f32.gmra.mrb[0].mxu0 %v4534
    %v4885 = vpop.f32.mrb[0].mxu0
    %v4886 = vadd.f32 0.0, %v4885
    %v4887 = vpop.f32.mrb[0].mxu0
    %4888 = vmatprep.mubr.f32.mxu0 0.0
    %4889 = vmatmul.mubr.f32.gmra.mrb[0].mxu0 %v4535
    %v4890 = vpop.f32.mrb[0].mxu0
    %v4891 = vadd.f32 0.0, %v4890
    %v4892 = vpop.f32.mrb[0].mxu0
    %4893 = vmatprep.mubr.f32.mxu0 0.0
    %4894 = vmatmul.mubr.f32.gmra.mrb[0].mxu0 %v4536
    %v4895 = vpop.f32.mrb[0].mxu0
    %v4896 = vadd.f32 0.0, %v4895
    %v4897 = vpop.f32.mrb[0].mxu0
    %4898 = vmatprep.mubr.f32.mxu0 0.0
    %4899 = vmatmul.mubr.f32.gmra.mrb[0].mxu0 %v4537
    %v4900 = vpop.f32.mrb[0].mxu0
    %v4901 = vadd.f32 0.0, %v4900
    %v4902 = vpop.f32.mrb[0].mxu0
    %4903 = vmatprep.mubr.f32.mxu0 0.0
    %4904 = vmatmul.mubr.f32.gmra.mrb[0].mxu0 %v4538
    %v4905 = vpop.f32.mrb[0].mxu0
    %v4906 = vadd.f32 0.0, %v4905
    %v4907 = vpop.f32.mrb[0].mxu0
    %4908 = vmatprep.mubr.f32.mxu0 0.0
    %4909 = vmatmul.mubr.f32.gmra.mrb[0].mxu0 %v4539
    %v4910 = vpop.f32.mrb[0].mxu0
    %v4911 = vadd.f32 0.0, %v4910
    %v4912 = vpop.f32.mrb[0].mxu0
    %4913 = vmatprep.mubr.f32.mxu0 0.0
    %4914 = vmatmul.mubr.f32.gmra.mrb[0].mxu0 %v4540
    %v4915 = vpop.f32.mrb[0].mxu0
    %v4916 = vadd.f32 0.0, %v4915
    %v4917 = vpop.f32.mrb[0].mxu0
    %4918 = vmatprep.mubr.f32.mxu0 0.0
    %4919 = vmatmul.mubr.f32.gmra.mrb[0].mxu0 %v4541
    %v4920 = vpop.f32.mrb[0].mxu0
    %v4921 = vadd.f32 0.0, %v4920
    %v4922 = vpop.f32.mrb[0].mxu0
    %4923 = vmatprep.mubr.f32.mxu0 0.0
    %4924 = vmatmul.mubr.f32.gmra.mrb[0].mxu0 %v4542
    %v4925 = vpop.f32.mrb[0].mxu0
    %v4926 = vadd.f32 0.0, %v4925
    %v4927 = vpop.f32.mrb[0].mxu0
    %4928 = vmatprep.mubr.f32.mxu0 0.0
    %4929 = vmatmul.mubr.f32.gmra.mrb[0].mxu0 %v4543
    %v4930 = vpop.f32.mrb[0].mxu0
    %v4931 = vadd.f32 0.0, %v4930
    %v4932 = vpop.f32.mrb[0].mxu0
    %4933 = vmatprep.mubr.f32.mxu0 0.0
    %4934 = vmatmul.mubr.f32.gmra.mrb[0].mxu0 %v4544
    %v4935 = vpop.f32.mrb[0].mxu0
    %v4936 = vadd.f32 0.0, %v4935
    %v4937 = vpop.f32.mrb[0].mxu0
    %4938 = vmatprep.mubr.f32.mxu0 0.0
    %4939 = vmatmul.mubr.f32.gmra.mrb[0].mxu0 %v4545
    %v4940 = vpop.f32.mrb[0].mxu0
    %v4941 = vadd.f32 0.0, %v4940
    %v4942 = vpop.f32.mrb[0].mxu0
    %4943 = vmatprep.mubr.f32.mxu0 0.0
    %4944 = vmatmul.mubr.f32.gmra.mrb[0].mxu0 %v4546
    %v4945 = vpop.f32.mrb[0].mxu0
    %v4946 = vadd.f32 0.0, %v4945
    %v4947 = vpop.f32.mrb[0].mxu0
    %4948 = vmatprep.mubr.f32.mxu0 0.0
    %4949 = vmatmul.mubr.f32.gmra.mrb[0].mxu0 %v4547
    %v4950 = vpop.f32.mrb[0].mxu0
    %v4951 = vadd.f32 0.0, %v4950
    %v4952 = vpop.f32.mrb[0].mxu0
    %4953 = vmatprep.mubr.f32.mxu0 0.0
    %4954 = vmatmul.mubr.f32.gmra.mrb[0].mxu0 %v4548
    %v4955 = vpop.f32.mrb[0].mxu0
    %v4956 = vadd.f32 0.0, %v4955
    %v4957 = vpop.f32.mrb[0].mxu0
    %4958 = vmatprep.mubr.f32.mxu0 0.0
    %4959 = vmatmul.mubr.f32.gmra.mrb[0].mxu0 %v4549
    %v4960 = vpop.f32.mrb[0].mxu0
    %v4961 = vadd.f32 0.0, %v4960
    %v4962 = vpop.f32.mrb[0].mxu0
    %4963 = vmatprep.mubr.f32.mxu0 0.0
    %4964 = vmatmul.mubr.f32.gmra.mrb[0].mxu0 %v4550
    %v4965 = vpop.f32.mrb[0].mxu0
    %v4966 = vadd.f32 0.0, %v4965
    %v4967 = vpop.f32.mrb[0].mxu0
    %4968 = vmatprep.mubr.f32.mxu0 0.0
    %4969 = vmatmul.mubr.f32.gmra.mrb[0].mxu0 %v4551
    %v4970 = vpop.f32.mrb[0].mxu0
    %v4971 = vadd.f32 0.0, %v4970
    %v4972 = vpop.f32.mrb[0].mxu0
    %4973 = vmatprep.mubr.f32.mxu0 0.0
    %4974 = vmatmul.mubr.f32.gmra.mrb[0].mxu0 %v4552
    %v4975 = vpop.f32.mrb[0].mxu0
    %v4976 = vadd.f32 0.0, %v4975
    %v4977 = vpop.f32.mrb[0].mxu0
    %4978 = vmatprep.mubr.f32.mxu0 0.0
    %4979 = vmatmul.mubr.f32.gmra.mrb[0].mxu0 %v4553
    %v4980 = vpop.f32.mrb[0].mxu0
    %v4981 = vadd.f32 0.0, %v4980
    %v4982 = vpop.f32.mrb[0].mxu0
    %4983 = vmatprep.mubr.f32.mxu0 0.0
    %4984 = vmatmul.mubr.f32.gmra.mrb[0].mxu0 %v4554
    %v4985 = vpop.f32.mrb[0].mxu0
    %v4986 = vadd.f32 0.0, %v4985
    %v4987 = vpop.f32.mrb[0].mxu0
    %4988 = vmatprep.mubr.f32.mxu0 0.0
    %4989 = vmatmul.mubr.f32.gmra.mrb[0].mxu0 %v4555
    %v4990 = vpop.f32.mrb[0].mxu0
    %v4991 = vadd.f32 0.0, %v4990
    %v4992 = vpop.f32.mrb[0].mxu0
    %4993 = vmatprep.mubr.f32.mxu0 0.0
    %4994 = vmatmul.mubr.f32.gmra.mrb[0].mxu0 %v4556
    %v4995 = vpop.f32.mrb[0].mxu0
    %v4996 = vadd.f32 0.0, %v4995
    %v4997 = vpop.f32.mrb[0].mxu0
    %4998 = vmatprep.mubr.f32.mxu0 0.0
    %4999 = vmatmul.mubr.f32.gmra.mrb[0].mxu0 %v4557
    %v5000 = vpop.f32.mrb[0].mxu0
    %v5001 = vadd.f32 0.0, %v5000
    %v5002 = vpop.f32.mrb[0].mxu0
    %5003 = vmatprep.mubr.f32.mxu0 0.0
    %5004 = vmatmul.mubr.f32.gmra.mrb[0].mxu0 %v4558
    %v5005 = vpop.f32.mrb[0].mxu0
    %v5006 = vadd.f32 0.0, %v5005
    %v5007 = vpop.f32.mrb[0].mxu0
    %5008 = vmatprep.mubr.f32.mxu0 0.0
    %5009 = vmatmul.mubr.f32.gmra.mrb[0].mxu0 %v4559
    %v5010 = vpop.f32.mrb[0].mxu0
    %v5011 = vadd.f32 0.0, %v5010
    %v5012 = vpop.f32.mrb[0].mxu0
    %5013 = vmatprep.mubr.f32.mxu0 0.0
    %5014 = vmatmul.mubr.f32.gmra.mrb[0].mxu0 %v4560
    %v5015 = vpop.f32.mrb[0].mxu0
    %v5016 = vadd.f32 0.0, %v5015
    %v5017 = vpop.f32.mrb[0].mxu0
    %5018 = vmatprep.mubr.f32.mxu0 0.0
    %5019 = vmatmul.mubr.f32.gmra.mrb[0].mxu0 %v4561
    %v5020 = vpop.f32.mrb[0].mxu0
    %v5021 = vadd.f32 0.0, %v5020
    %v5022 = vpop.f32.mrb[0].mxu0
    %5023 = vmatprep.mubr.f32.mxu0 0.0
    %5024 = vmatmul.mubr.f32.gmra.mrb[0].mxu0 %v4562
    %v5025 = vpop.f32.mrb[0].mxu0
    %v5026 = vadd.f32 0.0, %v5025
    %v5027 = vpop.f32.mrb[0].mxu0
    %5028 = vdwg.mxu0
    %v5029 = vadd.f32 %v4563, %v4711
    %v5030 = vadd.f32 %v4564, %v4716
    %v5031 = vadd.f32 %v4565, %v4721
    %v5032 = vadd.f32 %v4566, %v4726
    %v5033 = vadd.f32 %v4567, %v4731
    %v5034 = vadd.f32 %v4568, %v4736
    %v5035 = vadd.f32 %v4569, %v4741
    %v5036 = vadd.f32 %v4570, %v4746
    %v5037 = vadd.f32 %v4571, %v4751
    %v5038 = vadd.f32 %v4572, %v4756
    %v5039 = vadd.f32 %v4573, %v4761
    %v5040 = vadd.f32 %v4574, %v4766
    %v5041 = vadd.f32 %v4575, %v4771
    %v5042 = vadd.f32 %v4576, %v4776
    %v5043 = vadd.f32 %v4577, %v4781
    %v5044 = vadd.f32 %v4578, %v4786
    %v5045 = vadd.f32 %v4579, %v4791
    %v5046 = vadd.f32 %v4580, %v4796
    %v5047 = vadd.f32 %v4581, %v4801
    %v5048 = vadd.f32 %v4582, %v4806
    %v5049 = vadd.f32 %v4583, %v4811
    %v5050 = vadd.f32 %v4584, %v4816
    %v5051 = vadd.f32 %v4585, %v4821
    %v5052 = vadd.f32 %v4586, %v4826
    %v5053 = vadd.f32 %v4587, %v4831
    %v5054 = vadd.f32 %v4588, %v4836
    %v5055 = vadd.f32 %v4589, %v4841
    %v5056 = vadd.f32 %v4590, %v4846
    %v5057 = vadd.f32 %v4591, %v4851
    %v5058 = vadd.f32 %v4592, %v4856
    %v5059 = vadd.f32 %v4593, %v4861
    %v5060 = vadd.f32 %v4594, %v4866
    %v5061 = vadd.f32 %v4595, %v4871
    %v5062 = vadd.f32 %v4596, %v4876
    %v5063 = vadd.f32 %v4597, %v4881
    %v5064 = vadd.f32 %v4598, %v4886
    %v5065 = vadd.f32 %v4599, %v4891
    %v5066 = vadd.f32 %v4600, %v4896
    %v5067 = vadd.f32 %v4601, %v4901
    %v5068 = vadd.f32 %v4602, %v4906
    %v5069 = vadd.f32 %v4603, %v4911
    %v5070 = vadd.f32 %v4604, %v4916
    %v5071 = vadd.f32 %v4605, %v4921
    %v5072 = vadd.f32 %v4606, %v4926
    %v5073 = vadd.f32 %v4607, %v4931
    %v5074 = vadd.f32 %v4608, %v4936
    %v5075 = vadd.f32 %v4609, %v4941
    %v5076 = vadd.f32 %v4610, %v4946
    %v5077 = vadd.f32 %v4611, %v4951
    %v5078 = vadd.f32 %v4612, %v4956
    %v5079 = vadd.f32 %v4613, %v4961
    %v5080 = vadd.f32 %v4614, %v4966
    %v5081 = vadd.f32 %v4615, %v4971
    %v5082 = vadd.f32 %v4616, %v4976
    %v5083 = vadd.f32 %v4617, %v4981
    %v5084 = vadd.f32 %v4618, %v4986
    %v5085 = vadd.f32 %v4619, %v4991
    %v5086 = vadd.f32 %v4620, %v4996
    %v5087 = vadd.f32 %v4621, %v5001
    %v5088 = vadd.f32 %v4622, %v5006
    %v5089 = vadd.f32 %v4623, %v5011
    %v5090 = vadd.f32 %v4624, %v5016
    %v5091 = vadd.f32 %v4625, %v5021
    %v5092 = vadd.f32 %v4626, %v5026
    %5093 = vst [vmem:[#allocation3] sm:$0xff] %v5029
    %5094 = vst [vmem:[#allocation3 + $0x8] sm:$0xff] %v5030
    %5095 = vst [vmem:[#allocation3 + $0x10] sm:$0xff] %v5031
    %5096 = vst [vmem:[#allocation3 + $0x18] sm:$0xff] %v5032
    %5097 = vst [vmem:[#allocation3 + $0x20] sm:$0xff] %v5033
    %5098 = vst [vmem:[#allocation3 + $0x28] sm:$0xff] %v5034
    %5099 = vst [vmem:[#allocation3 + $0x30] sm:$0xff] %v5035
    %5100 = vst [vmem:[#allocation3 + $0x38] sm:$0xff] %v5036
    %5101 = vst [vmem:[#allocation3 + $0x40] sm:$0xff] %v5037
    %5102 = vst [vmem:[#allocation3 + $0x48] sm:$0xff] %v5038
    %5103 = vst [vmem:[#allocation3 + $0x50] sm:$0xff] %v5039
    %5104 = vst [vmem:[#allocation3 + $0x58] sm:$0xff] %v5040
    %5105 = vst [vmem:[#allocation3 + $0x60] sm:$0xff] %v5041
    %5106 = vst [vmem:[#allocation3 + $0x68] sm:$0xff] %v5042
    %5107 = vst [vmem:[#allocation3 + $0x70] sm:$0xff] %v5043
    %5108 = vst [vmem:[#allocation3 + $0x78] sm:$0xff] %v5044
    %5109 = vst [vmem:[#allocation3 + $0x80] sm:$0xff] %v5045
    %5110 = vst [vmem:[#allocation3 + $0x88] sm:$0xff] %v5046
    %5111 = vst [vmem:[#allocation3 + $0x90] sm:$0xff] %v5047
    %5112 = vst [vmem:[#allocation3 + $0x98] sm:$0xff] %v5048
    %5113 = vst [vmem:[#allocation3 + $0xa0] sm:$0xff] %v5049
    %5114 = vst [vmem:[#allocation3 + $0xa8] sm:$0xff] %v5050
    %5115 = vst [vmem:[#allocation3 + $0xb0] sm:$0xff] %v5051
    %5116 = vst [vmem:[#allocation3 + $0xb8] sm:$0xff] %v5052
    %5117 = vst [vmem:[#allocation3 + $0xc0] sm:$0xff] %v5053
    %5118 = vst [vmem:[#allocation3 + $0xc8] sm:$0xff] %v5054
    %5119 = vst [vmem:[#allocation3 + $0xd0] sm:$0xff] %v5055
    %5120 = vst [vmem:[#allocation3 + $0xd8] sm:$0xff] %v5056
    %5121 = vst [vmem:[#allocation3 + $0xe0] sm:$0xff] %v5057
    %5122 = vst [vmem:[#allocation3 + $0xe8] sm:$0xff] %v5058
    %5123 = vst [vmem:[#allocation3 + $0xf0] sm:$0xff] %v5059
    %5124 = vst [vmem:[#allocation3 + $0xf8] sm:$0xff] %v5060
    %5125 = vst [vmem:[#allocation3 + $0x100] sm:$0xff] %v5061
    %5126 = vst [vmem:[#allocation3 + $0x108] sm:$0xff] %v5062
    %5127 = vst [vmem:[#allocation3 + $0x110] sm:$0xff] %v5063
    %5128 = vst [vmem:[#allocation3 + $0x118] sm:$0xff] %v5064
    %5129 = vst [vmem:[#allocation3 + $0x120] sm:$0xff] %v5065
    %5130 = vst [vmem:[#allocation3 + $0x128] sm:$0xff] %v5066
    %5131 = vst [vmem:[#allocation3 + $0x130] sm:$0xff] %v5067
    %5132 = vst [vmem:[#allocation3 + $0x138] sm:$0xff] %v5068
    %5133 = vst [vmem:[#allocation3 + $0x140] sm:$0xff] %v5069
    %5134 = vst [vmem:[#allocation3 + $0x148] sm:$0xff] %v5070
    %5135 = vst [vmem:[#allocation3 + $0x150] sm:$0xff] %v5071
    %5136 = vst [vmem:[#allocation3 + $0x158] sm:$0xff] %v5072
    %5137 = vst [vmem:[#allocation3 + $0x160] sm:$0xff] %v5073
    %5138 = vst [vmem:[#allocation3 + $0x168] sm:$0xff] %v5074
    %5139 = vst [vmem:[#allocation3 + $0x170] sm:$0xff] %v5075
    %5140 = vst [vmem:[#allocation3 + $0x178] sm:$0xff] %v5076
    %5141 = vst [vmem:[#allocation3 + $0x180] sm:$0xff] %v5077
    %5142 = vst [vmem:[#allocation3 + $0x188] sm:$0xff] %v5078
    %5143 = vst [vmem:[#allocation3 + $0x190] sm:$0xff] %v5079
    %5144 = vst [vmem:[#allocation3 + $0x198] sm:$0xff] %v5080
    %5145 = vst [vmem:[#allocation3 + $0x1a0] sm:$0xff] %v5081
    %5146 = vst [vmem:[#allocation3 + $0x1a8] sm:$0xff] %v5082
    %5147 = vst [vmem:[#allocation3 + $0x1b0] sm:$0xff] %v5083
    %5148 = vst [vmem:[#allocation3 + $0x1b8] sm:$0xff] %v5084
    %5149 = vst [vmem:[#allocation3 + $0x1c0] sm:$0xff] %v5085
    %5150 = vst [vmem:[#allocation3 + $0x1c8] sm:$0xff] %v5086
    %5151 = vst [vmem:[#allocation3 + $0x1d0] sm:$0xff] %v5087
    %5152 = vst [vmem:[#allocation3 + $0x1d8] sm:$0xff] %v5088
    %5153 = vst [vmem:[#allocation3 + $0x1e0] sm:$0xff] %v5089
    %5154 = vst [vmem:[#allocation3 + $0x1e8] sm:$0xff] %v5090
    %5155 = vst [vmem:[#allocation3 + $0x1f0] sm:$0xff] %v5091
    %5156 = vst [vmem:[#allocation3 + $0x1f8] sm:$0xff] %v5092
    %s5157 = scalar_lea.vmem [#allocation2], 48
    %v5158 = vld [vmem:[%s5157] sm:$0xff]
    %v5159 = vld [vmem:[%s5157 + $0x8] sm:$0xff]
    %v5160 = vld [vmem:[%s5157 + $0x18] sm:$0xff]
    %v5161 = vld [vmem:[%s5157 + $0x20] sm:$0xff]
    %v5162 = vld [vmem:[%s5157 + $0x30] sm:$0xff]
    %v5163 = vld [vmem:[%s5157 + $0x38] sm:$0xff]
    %v5164 = vld [vmem:[%s5157 + $0x48] sm:$0xff]
    %v5165 = vld [vmem:[%s5157 + $0x50] sm:$0xff]
    %v5166 = vld [vmem:[%s5157 + $0x60] sm:$0xff]
    %v5167 = vld [vmem:[%s5157 + $0x68] sm:$0xff]
    %v5168 = vld [vmem:[%s5157 + $0x78] sm:$0xff]
    %v5169 = vld [vmem:[%s5157 + $0x80] sm:$0xff]
    %v5170 = vld [vmem:[%s5157 + $0x90] sm:$0xff]
    %v5171 = vld [vmem:[%s5157 + $0x98] sm:$0xff]
    %v5172 = vld [vmem:[%s5157 + $0xa8] sm:$0xff]
    %v5173 = vld [vmem:[%s5157 + $0xb0] sm:$0xff]
    %v5174 = vld [vmem:[%s5157 + $0xc0] sm:$0xff]
    %v5175 = vld [vmem:[%s5157 + $0xc8] sm:$0xff]
    %v5176 = vld [vmem:[%s5157 + $0xd8] sm:$0xff]
    %v5177 = vld [vmem:[%s5157 + $0xe0] sm:$0xff]
    %v5178 = vld [vmem:[%s5157 + $0xf0] sm:$0xff]
    %v5179 = vld [vmem:[%s5157 + $0xf8] sm:$0xff]
    %v5180 = vld [vmem:[%s5157 + $0x108] sm:$0xff]
    %v5181 = vld [vmem:[%s5157 + $0x110] sm:$0xff]
    %v5182 = vld [vmem:[%s5157 + $0x120] sm:$0xff]
    %v5183 = vld [vmem:[%s5157 + $0x128] sm:$0xff]
    %v5184 = vld [vmem:[%s5157 + $0x138] sm:$0xff]
    %v5185 = vld [vmem:[%s5157 + $0x140] sm:$0xff]
    %v5186 = vld [vmem:[%s5157 + $0x150] sm:$0xff]
    %v5187 = vld [vmem:[%s5157 + $0x158] sm:$0xff]
    %v5188 = vld [vmem:[%s5157 + $0x168] sm:$0xff]
    %v5189 = vld [vmem:[%s5157 + $0x170] sm:$0xff]
    %v5190 = vld [vmem:[%s5157 + $0x1b0] sm:$0xff]
    %v5191 = vld [vmem:[%s5157 + $0x1b8] sm:$0xff]
    %v5192 = vld [vmem:[%s5157 + $0x1c8] sm:$0xff]
    %v5193 = vld [vmem:[%s5157 + $0x1d0] sm:$0xff]
    %v5194 = vld [vmem:[%s5157 + $0x1e0] sm:$0xff]
    %v5195 = vld [vmem:[%s5157 + $0x1e8] sm:$0xff]
    %v5196 = vld [vmem:[%s5157 + $0x1f8] sm:$0xff]
    %v5197 = vld [vmem:[%s5157 + $0x200] sm:$0xff]
    %v5198 = vld [vmem:[%s5157 + $0x210] sm:$0xff]
    %v5199 = vld [vmem:[%s5157 + $0x218] sm:$0xff]
    %v5200 = vld [vmem:[%s5157 + $0x228] sm:$0xff]
    %v5201 = vld [vmem:[%s5157 + $0x230] sm:$0xff]
    %v5202 = vld [vmem:[%s5157 + $0x240] sm:$0xff]
    %v5203 = vld [vmem:[%s5157 + $0x248] sm:$0xff]
    %v5204 = vld [vmem:[%s5157 + $0x258] sm:$0xff]
    %v5205 = vld [vmem:[%s5157 + $0x260] sm:$0xff]
    %v5206 = vld [vmem:[%s5157 + $0x270] sm:$0xff]
    %v5207 = vld [vmem:[%s5157 + $0x278] sm:$0xff]
    %v5208 = vld [vmem:[%s5157 + $0x288] sm:$0xff]
    %v5209 = vld [vmem:[%s5157 + $0x290] sm:$0xff]
    %v5210 = vld [vmem:[%s5157 + $0x2a0] sm:$0xff]
    %v5211 = vld [vmem:[%s5157 + $0x2a8] sm:$0xff]
    %v5212 = vld [vmem:[%s5157 + $0x2b8] sm:$0xff]
    %v5213 = vld [vmem:[%s5157 + $0x2c0] sm:$0xff]
    %v5214 = vld [vmem:[%s5157 + $0x2d0] sm:$0xff]
    %v5215 = vld [vmem:[%s5157 + $0x2d8] sm:$0xff]
    %v5216 = vld [vmem:[%s5157 + $0x2e8] sm:$0xff]
    %v5217 = vld [vmem:[%s5157 + $0x2f0] sm:$0xff]
    %v5218 = vld [vmem:[%s5157 + $0x300] sm:$0xff]
    %v5219 = vld [vmem:[%s5157 + $0x308] sm:$0xff]
    %v5220 = vld [vmem:[%s5157 + $0x318] sm:$0xff]
    %v5221 = vld [vmem:[%s5157 + $0x320] sm:$0xff]
    %v5222 = vld [vmem:[#allocation3] sm:$0xff]
    %v5223 = vld [vmem:[#allocation3 + $0x8] sm:$0xff]
    %v5224 = vld [vmem:[#allocation3 + $0x10] sm:$0xff]
    %v5225 = vld [vmem:[#allocation3 + $0x18] sm:$0xff]
    %v5226 = vld [vmem:[#allocation3 + $0x20] sm:$0xff]
    %v5227 = vld [vmem:[#allocation3 + $0x28] sm:$0xff]
    %v5228 = vld [vmem:[#allocation3 + $0x30] sm:$0xff]
    %v5229 = vld [vmem:[#allocation3 + $0x38] sm:$0xff]
    %v5230 = vld [vmem:[#allocation3 + $0x40] sm:$0xff]
    %v5231 = vld [vmem:[#allocation3 + $0x48] sm:$0xff]
    %v5232 = vld [vmem:[#allocation3 + $0x50] sm:$0xff]
    %v5233 = vld [vmem:[#allocation3 + $0x58] sm:$0xff]
    %v5234 = vld [vmem:[#allocation3 + $0x60] sm:$0xff]
    %v5235 = vld [vmem:[#allocation3 + $0x68] sm:$0xff]
    %v5236 = vld [vmem:[#allocation3 + $0x70] sm:$0xff]
    %v5237 = vld [vmem:[#allocation3 + $0x78] sm:$0xff]
    %v5238 = vld [vmem:[#allocation3 + $0x80] sm:$0xff]
    %v5239 = vld [vmem:[#allocation3 + $0x88] sm:$0xff]
    %v5240 = vld [vmem:[#allocation3 + $0x90] sm:$0xff]
    %v5241 = vld [vmem:[#allocation3 + $0x98] sm:$0xff]
    %v5242 = vld [vmem:[#allocation3 + $0xa0] sm:$0xff]
    %v5243 = vld [vmem:[#allocation3 + $0xa8] sm:$0xff]
    %v5244 = vld [vmem:[#allocation3 + $0xb0] sm:$0xff]
    %v5245 = vld [vmem:[#allocation3 + $0xb8] sm:$0xff]
    %v5246 = vld [vmem:[#allocation3 + $0xc0] sm:$0xff]
    %v5247 = vld [vmem:[#allocation3 + $0xc8] sm:$0xff]
    %v5248 = vld [vmem:[#allocation3 + $0xd0] sm:$0xff]
    %v5249 = vld [vmem:[#allocation3 + $0xd8] sm:$0xff]
    %v5250 = vld [vmem:[#allocation3 + $0xe0] sm:$0xff]
    %v5251 = vld [vmem:[#allocation3 + $0xe8] sm:$0xff]
    %v5252 = vld [vmem:[#allocation3 + $0xf0] sm:$0xff]
    %v5253 = vld [vmem:[#allocation3 + $0xf8] sm:$0xff]
    %v5254 = vld [vmem:[#allocation3 + $0x100] sm:$0xff]
    %v5255 = vld [vmem:[#allocation3 + $0x108] sm:$0xff]
    %v5256 = vld [vmem:[#allocation3 + $0x110] sm:$0xff]
    %v5257 = vld [vmem:[#allocation3 + $0x118] sm:$0xff]
    %v5258 = vld [vmem:[#allocation3 + $0x120] sm:$0xff]
    %v5259 = vld [vmem:[#allocation3 + $0x128] sm:$0xff]
    %v5260 = vld [vmem:[#allocation3 + $0x130] sm:$0xff]
    %v5261 = vld [vmem:[#allocation3 + $0x138] sm:$0xff]
    %v5262 = vld [vmem:[#allocation3 + $0x140] sm:$0xff]
    %v5263 = vld [vmem:[#allocation3 + $0x148] sm:$0xff]
    %v5264 = vld [vmem:[#allocation3 + $0x150] sm:$0xff]
    %v5265 = vld [vmem:[#allocation3 + $0x158] sm:$0xff]
    %v5266 = vld [vmem:[#allocation3 + $0x160] sm:$0xff]
    %v5267 = vld [vmem:[#allocation3 + $0x168] sm:$0xff]
    %v5268 = vld [vmem:[#allocation3 + $0x170] sm:$0xff]
    %v5269 = vld [vmem:[#allocation3 + $0x178] sm:$0xff]
    %v5270 = vld [vmem:[#allocation3 + $0x180] sm:$0xff]
    %v5271 = vld [vmem:[#allocation3 + $0x188] sm:$0xff]
    %v5272 = vld [vmem:[#allocation3 + $0x190] sm:$0xff]
    %v5273 = vld [vmem:[#allocation3 + $0x198] sm:$0xff]
    %v5274 = vld [vmem:[#allocation3 + $0x1a0] sm:$0xff]
    %v5275 = vld [vmem:[#allocation3 + $0x1a8] sm:$0xff]
    %v5276 = vld [vmem:[#allocation3 + $0x1b0] sm:$0xff]
    %v5277 = vld [vmem:[#allocation3 + $0x1b8] sm:$0xff]
    %v5278 = vld [vmem:[#allocation3 + $0x1c0] sm:$0xff]
    %v5279 = vld [vmem:[#allocation3 + $0x1c8] sm:$0xff]
    %v5280 = vld [vmem:[#allocation3 + $0x1d0] sm:$0xff]
    %v5281 = vld [vmem:[#allocation3 + $0x1d8] sm:$0xff]
    %v5282 = vld [vmem:[#allocation3 + $0x1e0] sm:$0xff]
    %v5283 = vld [vmem:[#allocation3 + $0x1e8] sm:$0xff]
    %v5284 = vld [vmem:[#allocation3 + $0x1f0] sm:$0xff]
    %v5285 = vld [vmem:[#allocation3 + $0x1f8] sm:$0xff]
    %s5286 = scalar_lea.vmem [#allocation9], 768
    %v5287 = vld [vmem:[%s5286] sm:$0xff]
    %v5288 = vld [vmem:[%s5286 + $0x8] sm:$0xff]
    %v5289 = vld [vmem:[%s5286 + $0x10] sm:$0xff]
    %v5290 = vld [vmem:[%s5286 + $0x18] sm:$0xff]
    %v5291 = vld [vmem:[%s5286 + $0x20] sm:$0xff]
    %v5292 = vld [vmem:[%s5286 + $0x28] sm:$0xff]
    %v5293 = vld [vmem:[%s5286 + $0x30] sm:$0xff]
    %v5294 = vld [vmem:[%s5286 + $0x38] sm:$0xff]
    %v5295 = vld [vmem:[%s5286 + $0x40] sm:$0xff]
    %v5296 = vld [vmem:[%s5286 + $0x48] sm:$0xff]
    %v5297 = vld [vmem:[%s5286 + $0x50] sm:$0xff]
    %v5298 = vld [vmem:[%s5286 + $0x58] sm:$0xff]
    %v5299 = vld [vmem:[%s5286 + $0x60] sm:$0xff]
    %v5300 = vld [vmem:[%s5286 + $0x68] sm:$0xff]
    %v5301 = vld [vmem:[%s5286 + $0x70] sm:$0xff]
    %v5302 = vld [vmem:[%s5286 + $0x78] sm:$0xff]
    %5303 = vmatprep.subr.mxu0 0.0
    %5304 = vmatpush1.msra.mxu0 %v5287
    %5305 = vmatprep.subr.mxu0 0.0
    %5306 = vmatpush1.msra.mxu0 %v5288
    %5307 = vmatprep.subr.mxu0 0.0
    %5308 = vmatpush1.msra.mxu0 %v5289
    %5309 = vmatprep.subr.mxu0 0.0
    %5310 = vmatpush1.msra.mxu0 %v5290
    %5311 = vmatprep.subr.mxu0 0.0
    %5312 = vmatpush1.msra.mxu0 %v5291
    %5313 = vmatprep.subr.mxu0 0.0
    %5314 = vmatpush1.msra.mxu0 %v5292
    %5315 = vmatprep.subr.mxu0 0.0
    %5316 = vmatpush1.msra.mxu0 %v5293
    %5317 = vmatprep.subr.mxu0 0.0
    %5318 = vmatpush1.msra.mxu0 %v5294
    %5319 = vmatprep.subr.mxu0 0.0
    %5320 = vmatpush1.msra.mxu0 %v5295
    %5321 = vmatprep.subr.mxu0 0.0
    %5322 = vmatpush1.msra.mxu0 %v5296
    %5323 = vmatprep.subr.mxu0 0.0
    %5324 = vmatpush1.msra.mxu0 %v5297
    %5325 = vmatprep.subr.mxu0 0.0
    %5326 = vmatpush1.msra.mxu0 %v5298
    %5327 = vmatprep.subr.mxu0 0.0
    %5328 = vmatpush1.msra.mxu0 %v5299
    %5329 = vmatprep.subr.mxu0 0.0
    %5330 = vmatpush1.msra.mxu0 %v5300
    %5331 = vmatprep.subr.mxu0 0.0
    %5332 = vmatpush1.msra.mxu0 %v5301
    %5333 = vmatprep.subr.mxu0 0.0
    %5334 = vmatpush1.msra.mxu0 %v5302
    %5335 = vmatprep.subr.mxu0 0.0
    %5336 = vmatpush1.msra.mxu0 0.0
    %5337 = vmatprep.subr.mxu0 0.0
    %5338 = vmatpush1.msra.mxu0 0.0
    %5339 = vmatprep.subr.mxu0 0.0
    %5340 = vmatpush1.msra.mxu0 0.0
    %5341 = vmatprep.subr.mxu0 0.0
    %5342 = vmatpush1.msra.mxu0 0.0
    %5343 = vmatprep.subr.mxu0 0.0
    %5344 = vmatpush1.msra.mxu0 0.0
    %5345 = vmatprep.subr.mxu0 0.0
    %5346 = vmatpush1.msra.mxu0 0.0
    %5347 = vmatprep.subr.mxu0 0.0
    %5348 = vmatpush1.msra.mxu0 0.0
    %5349 = vmatprep.subr.mxu0 0.0
    %5350 = vmatpush1.msra.mxu0 0.0
    %5351 = vmatprep.subr.mxu0 0.0
    %5352 = vmatpush1.msra.mxu0 0.0
    %5353 = vmatprep.subr.mxu0 0.0
    %5354 = vmatpush1.msra.mxu0 0.0
    %5355 = vmatprep.subr.mxu0 0.0
    %5356 = vmatpush1.msra.mxu0 0.0
    %5357 = vmatprep.subr.mxu0 0.0
    %5358 = vmatpush1.msra.mxu0 0.0
    %5359 = vmatprep.subr.mxu0 0.0
    %5360 = vmatpush1.msra.mxu0 0.0
    %5361 = vmatprep.subr.mxu0 0.0
    %5362 = vmatpush1.msra.mxu0 0.0
    %5363 = vmatprep.subr.mxu0 0.0
    %5364 = vmatpush1.msra.mxu0 0.0
    %5365 = vmatprep.subr.mxu0 0.0
    %5366 = vmatpush1.msra.mxu0 0.0
    %5367 = vmatprep.mubr.f32.mxu0 0.0
    %5368 = vmatmul.mubr.f32.gmra.mrb[0].mxu0 %v5158
    %v5369 = vpop.f32.mrb[0].mxu0
    %v5370 = vadd.f32 0.0, %v5369
    %v5371 = vpop.f32.mrb[0].mxu0
    %5372 = vmatprep.mubr.f32.mxu0 0.0
    %5373 = vmatmul.mubr.f32.gmra.mrb[0].mxu0 %v5159
    %v5374 = vpop.f32.mrb[0].mxu0
    %v5375 = vadd.f32 0.0, %v5374
    %v5376 = vpop.f32.mrb[0].mxu0
    %5377 = vmatprep.mubr.f32.mxu0 0.0
    %5378 = vmatmul.mubr.f32.gmra.mrb[0].mxu0 %v5160
    %v5379 = vpop.f32.mrb[0].mxu0
    %v5380 = vadd.f32 0.0, %v5379
    %v5381 = vpop.f32.mrb[0].mxu0
    %5382 = vmatprep.mubr.f32.mxu0 0.0
    %5383 = vmatmul.mubr.f32.gmra.mrb[0].mxu0 %v5161
    %v5384 = vpop.f32.mrb[0].mxu0
    %v5385 = vadd.f32 0.0, %v5384
    %v5386 = vpop.f32.mrb[0].mxu0
    %5387 = vmatprep.mubr.f32.mxu0 0.0
    %5388 = vmatmul.mubr.f32.gmra.mrb[0].mxu0 %v5162
    %v5389 = vpop.f32.mrb[0].mxu0
    %v5390 = vadd.f32 0.0, %v5389
    %v5391 = vpop.f32.mrb[0].mxu0
    %5392 = vmatprep.mubr.f32.mxu0 0.0
    %5393 = vmatmul.mubr.f32.gmra.mrb[0].mxu0 %v5163
    %v5394 = vpop.f32.mrb[0].mxu0
    %v5395 = vadd.f32 0.0, %v5394
    %v5396 = vpop.f32.mrb[0].mxu0
    %5397 = vmatprep.mubr.f32.mxu0 0.0
    %5398 = vmatmul.mubr.f32.gmra.mrb[0].mxu0 %v5164
    %v5399 = vpop.f32.mrb[0].mxu0
    %v5400 = vadd.f32 0.0, %v5399
    %v5401 = vpop.f32.mrb[0].mxu0
    %5402 = vmatprep.mubr.f32.mxu0 0.0
    %5403 = vmatmul.mubr.f32.gmra.mrb[0].mxu0 %v5165
    %v5404 = vpop.f32.mrb[0].mxu0
    %v5405 = vadd.f32 0.0, %v5404
    %v5406 = vpop.f32.mrb[0].mxu0
    %5407 = vmatprep.mubr.f32.mxu0 0.0
    %5408 = vmatmul.mubr.f32.gmra.mrb[0].mxu0 %v5166
    %v5409 = vpop.f32.mrb[0].mxu0
    %v5410 = vadd.f32 0.0, %v5409
    %v5411 = vpop.f32.mrb[0].mxu0
    %5412 = vmatprep.mubr.f32.mxu0 0.0
    %5413 = vmatmul.mubr.f32.gmra.mrb[0].mxu0 %v5167
    %v5414 = vpop.f32.mrb[0].mxu0
    %v5415 = vadd.f32 0.0, %v5414
    %v5416 = vpop.f32.mrb[0].mxu0
    %5417 = vmatprep.mubr.f32.mxu0 0.0
    %5418 = vmatmul.mubr.f32.gmra.mrb[0].mxu0 %v5168
    %v5419 = vpop.f32.mrb[0].mxu0
    %v5420 = vadd.f32 0.0, %v5419
    %v5421 = vpop.f32.mrb[0].mxu0
    %5422 = vmatprep.mubr.f32.mxu0 0.0
    %5423 = vmatmul.mubr.f32.gmra.mrb[0].mxu0 %v5169
    %v5424 = vpop.f32.mrb[0].mxu0
    %v5425 = vadd.f32 0.0, %v5424
    %v5426 = vpop.f32.mrb[0].mxu0
    %5427 = vmatprep.mubr.f32.mxu0 0.0
    %5428 = vmatmul.mubr.f32.gmra.mrb[0].mxu0 %v5170
    %v5429 = vpop.f32.mrb[0].mxu0
    %v5430 = vadd.f32 0.0, %v5429
    %v5431 = vpop.f32.mrb[0].mxu0
    %5432 = vmatprep.mubr.f32.mxu0 0.0
    %5433 = vmatmul.mubr.f32.gmra.mrb[0].mxu0 %v5171
    %v5434 = vpop.f32.mrb[0].mxu0
    %v5435 = vadd.f32 0.0, %v5434
    %v5436 = vpop.f32.mrb[0].mxu0
    %5437 = vmatprep.mubr.f32.mxu0 0.0
    %5438 = vmatmul.mubr.f32.gmra.mrb[0].mxu0 %v5172
    %v5439 = vpop.f32.mrb[0].mxu0
    %v5440 = vadd.f32 0.0, %v5439
    %v5441 = vpop.f32.mrb[0].mxu0
    %5442 = vmatprep.mubr.f32.mxu0 0.0
    %5443 = vmatmul.mubr.f32.gmra.mrb[0].mxu0 %v5173
    %v5444 = vpop.f32.mrb[0].mxu0
    %v5445 = vadd.f32 0.0, %v5444
    %v5446 = vpop.f32.mrb[0].mxu0
    %5447 = vmatprep.mubr.f32.mxu0 0.0
    %5448 = vmatmul.mubr.f32.gmra.mrb[0].mxu0 %v5174
    %v5449 = vpop.f32.mrb[0].mxu0
    %v5450 = vadd.f32 0.0, %v5449
    %v5451 = vpop.f32.mrb[0].mxu0
    %5452 = vmatprep.mubr.f32.mxu0 0.0
    %5453 = vmatmul.mubr.f32.gmra.mrb[0].mxu0 %v5175
    %v5454 = vpop.f32.mrb[0].mxu0
    %v5455 = vadd.f32 0.0, %v5454
    %v5456 = vpop.f32.mrb[0].mxu0
    %5457 = vmatprep.mubr.f32.mxu0 0.0
    %5458 = vmatmul.mubr.f32.gmra.mrb[0].mxu0 %v5176
    %v5459 = vpop.f32.mrb[0].mxu0
    %v5460 = vadd.f32 0.0, %v5459
    %v5461 = vpop.f32.mrb[0].mxu0
    %5462 = vmatprep.mubr.f32.mxu0 0.0
    %5463 = vmatmul.mubr.f32.gmra.mrb[0].mxu0 %v5177
    %v5464 = vpop.f32.mrb[0].mxu0
    %v5465 = vadd.f32 0.0, %v5464
    %v5466 = vpop.f32.mrb[0].mxu0
    %5467 = vmatprep.mubr.f32.mxu0 0.0
    %5468 = vmatmul.mubr.f32.gmra.mrb[0].mxu0 %v5178
    %v5469 = vpop.f32.mrb[0].mxu0
    %v5470 = vadd.f32 0.0, %v5469
    %v5471 = vpop.f32.mrb[0].mxu0
    %5472 = vmatprep.mubr.f32.mxu0 0.0
    %5473 = vmatmul.mubr.f32.gmra.mrb[0].mxu0 %v5179
    %v5474 = vpop.f32.mrb[0].mxu0
    %v5475 = vadd.f32 0.0, %v5474
    %v5476 = vpop.f32.mrb[0].mxu0
    %5477 = vmatprep.mubr.f32.mxu0 0.0
    %5478 = vmatmul.mubr.f32.gmra.mrb[0].mxu0 %v5180
    %v5479 = vpop.f32.mrb[0].mxu0
    %v5480 = vadd.f32 0.0, %v5479
    %v5481 = vpop.f32.mrb[0].mxu0
    %5482 = vmatprep.mubr.f32.mxu0 0.0
    %5483 = vmatmul.mubr.f32.gmra.mrb[0].mxu0 %v5181
    %v5484 = vpop.f32.mrb[0].mxu0
    %v5485 = vadd.f32 0.0, %v5484
    %v5486 = vpop.f32.mrb[0].mxu0
    %5487 = vmatprep.mubr.f32.mxu0 0.0
    %5488 = vmatmul.mubr.f32.gmra.mrb[0].mxu0 %v5182
    %v5489 = vpop.f32.mrb[0].mxu0
    %v5490 = vadd.f32 0.0, %v5489
    %v5491 = vpop.f32.mrb[0].mxu0
    %5492 = vmatprep.mubr.f32.mxu0 0.0
    %5493 = vmatmul.mubr.f32.gmra.mrb[0].mxu0 %v5183
    %v5494 = vpop.f32.mrb[0].mxu0
    %v5495 = vadd.f32 0.0, %v5494
    %v5496 = vpop.f32.mrb[0].mxu0
    %5497 = vmatprep.mubr.f32.mxu0 0.0
    %5498 = vmatmul.mubr.f32.gmra.mrb[0].mxu0 %v5184
    %v5499 = vpop.f32.mrb[0].mxu0
    %v5500 = vadd.f32 0.0, %v5499
    %v5501 = vpop.f32.mrb[0].mxu0
    %5502 = vmatprep.mubr.f32.mxu0 0.0
    %5503 = vmatmul.mubr.f32.gmra.mrb[0].mxu0 %v5185
    %v5504 = vpop.f32.mrb[0].mxu0
    %v5505 = vadd.f32 0.0, %v5504
    %v5506 = vpop.f32.mrb[0].mxu0
    %5507 = vmatprep.mubr.f32.mxu0 0.0
    %5508 = vmatmul.mubr.f32.gmra.mrb[0].mxu0 %v5186
    %v5509 = vpop.f32.mrb[0].mxu0
    %v5510 = vadd.f32 0.0, %v5509
    %v5511 = vpop.f32.mrb[0].mxu0
    %5512 = vmatprep.mubr.f32.mxu0 0.0
    %5513 = vmatmul.mubr.f32.gmra.mrb[0].mxu0 %v5187
    %v5514 = vpop.f32.mrb[0].mxu0
    %v5515 = vadd.f32 0.0, %v5514
    %v5516 = vpop.f32.mrb[0].mxu0
    %5517 = vmatprep.mubr.f32.mxu0 0.0
    %5518 = vmatmul.mubr.f32.gmra.mrb[0].mxu0 %v5188
    %v5519 = vpop.f32.mrb[0].mxu0
    %v5520 = vadd.f32 0.0, %v5519
    %v5521 = vpop.f32.mrb[0].mxu0
    %5522 = vmatprep.mubr.f32.mxu0 0.0
    %5523 = vmatmul.mubr.f32.gmra.mrb[0].mxu0 %v5189
    %v5524 = vpop.f32.mrb[0].mxu0
    %v5525 = vadd.f32 0.0, %v5524
    %v5526 = vpop.f32.mrb[0].mxu0
    %5527 = vmatprep.mubr.f32.mxu0 0.0
    %5528 = vmatmul.mubr.f32.gmra.mrb[0].mxu0 %v5190
    %v5529 = vpop.f32.mrb[0].mxu0
    %v5530 = vadd.f32 0.0, %v5529
    %v5531 = vpop.f32.mrb[0].mxu0
    %5532 = vmatprep.mubr.f32.mxu0 0.0
    %5533 = vmatmul.mubr.f32.gmra.mrb[0].mxu0 %v5191
    %v5534 = vpop.f32.mrb[0].mxu0
    %v5535 = vadd.f32 0.0, %v5534
    %v5536 = vpop.f32.mrb[0].mxu0
    %5537 = vmatprep.mubr.f32.mxu0 0.0
    %5538 = vmatmul.mubr.f32.gmra.mrb[0].mxu0 %v5192
    %v5539 = vpop.f32.mrb[0].mxu0
    %v5540 = vadd.f32 0.0, %v5539
    %v5541 = vpop.f32.mrb[0].mxu0
    %5542 = vmatprep.mubr.f32.mxu0 0.0
    %5543 = vmatmul.mubr.f32.gmra.mrb[0].mxu0 %v5193
    %v5544 = vpop.f32.mrb[0].mxu0
    %v5545 = vadd.f32 0.0, %v5544
    %v5546 = vpop.f32.mrb[0].mxu0
    %5547 = vmatprep.mubr.f32.mxu0 0.0
    %5548 = vmatmul.mubr.f32.gmra.mrb[0].mxu0 %v5194
    %v5549 = vpop.f32.mrb[0].mxu0
    %v5550 = vadd.f32 0.0, %v5549
    %v5551 = vpop.f32.mrb[0].mxu0
    %5552 = vmatprep.mubr.f32.mxu0 0.0
    %5553 = vmatmul.mubr.f32.gmra.mrb[0].mxu0 %v5195
    %v5554 = vpop.f32.mrb[0].mxu0
    %v5555 = vadd.f32 0.0, %v5554
    %v5556 = vpop.f32.mrb[0].mxu0
    %5557 = vmatprep.mubr.f32.mxu0 0.0
    %5558 = vmatmul.mubr.f32.gmra.mrb[0].mxu0 %v5196
    %v5559 = vpop.f32.mrb[0].mxu0
    %v5560 = vadd.f32 0.0, %v5559
    %v5561 = vpop.f32.mrb[0].mxu0
    %5562 = vmatprep.mubr.f32.mxu0 0.0
    %5563 = vmatmul.mubr.f32.gmra.mrb[0].mxu0 %v5197
    %v5564 = vpop.f32.mrb[0].mxu0
    %v5565 = vadd.f32 0.0, %v5564
    %v5566 = vpop.f32.mrb[0].mxu0
    %5567 = vmatprep.mubr.f32.mxu0 0.0
    %5568 = vmatmul.mubr.f32.gmra.mrb[0].mxu0 %v5198
    %v5569 = vpop.f32.mrb[0].mxu0
    %v5570 = vadd.f32 0.0, %v5569
    %v5571 = vpop.f32.mrb[0].mxu0
    %5572 = vmatprep.mubr.f32.mxu0 0.0
    %5573 = vmatmul.mubr.f32.gmra.mrb[0].mxu0 %v5199
    %v5574 = vpop.f32.mrb[0].mxu0
    %v5575 = vadd.f32 0.0, %v5574
    %v5576 = vpop.f32.mrb[0].mxu0
    %5577 = vmatprep.mubr.f32.mxu0 0.0
    %5578 = vmatmul.mubr.f32.gmra.mrb[0].mxu0 %v5200
    %v5579 = vpop.f32.mrb[0].mxu0
    %v5580 = vadd.f32 0.0, %v5579
    %v5581 = vpop.f32.mrb[0].mxu0
    %5582 = vmatprep.mubr.f32.mxu0 0.0
    %5583 = vmatmul.mubr.f32.gmra.mrb[0].mxu0 %v5201
    %v5584 = vpop.f32.mrb[0].mxu0
    %v5585 = vadd.f32 0.0, %v5584
    %v5586 = vpop.f32.mrb[0].mxu0
    %5587 = vmatprep.mubr.f32.mxu0 0.0
    %5588 = vmatmul.mubr.f32.gmra.mrb[0].mxu0 %v5202
    %v5589 = vpop.f32.mrb[0].mxu0
    %v5590 = vadd.f32 0.0, %v5589
    %v5591 = vpop.f32.mrb[0].mxu0
    %5592 = vmatprep.mubr.f32.mxu0 0.0
    %5593 = vmatmul.mubr.f32.gmra.mrb[0].mxu0 %v5203
    %v5594 = vpop.f32.mrb[0].mxu0
    %v5595 = vadd.f32 0.0, %v5594
    %v5596 = vpop.f32.mrb[0].mxu0
    %5597 = vmatprep.mubr.f32.mxu0 0.0
    %5598 = vmatmul.mubr.f32.gmra.mrb[0].mxu0 %v5204
    %v5599 = vpop.f32.mrb[0].mxu0
    %v5600 = vadd.f32 0.0, %v5599
    %v5601 = vpop.f32.mrb[0].mxu0
    %5602 = vmatprep.mubr.f32.mxu0 0.0
    %5603 = vmatmul.mubr.f32.gmra.mrb[0].mxu0 %v5205
    %v5604 = vpop.f32.mrb[0].mxu0
    %v5605 = vadd.f32 0.0, %v5604
    %v5606 = vpop.f32.mrb[0].mxu0
    %5607 = vmatprep.mubr.f32.mxu0 0.0
    %5608 = vmatmul.mubr.f32.gmra.mrb[0].mxu0 %v5206
    %v5609 = vpop.f32.mrb[0].mxu0
    %v5610 = vadd.f32 0.0, %v5609
    %v5611 = vpop.f32.mrb[0].mxu0
    %5612 = vmatprep.mubr.f32.mxu0 0.0
    %5613 = vmatmul.mubr.f32.gmra.mrb[0].mxu0 %v5207
    %v5614 = vpop.f32.mrb[0].mxu0
    %v5615 = vadd.f32 0.0, %v5614
    %v5616 = vpop.f32.mrb[0].mxu0
    %5617 = vmatprep.mubr.f32.mxu0 0.0
    %5618 = vmatmul.mubr.f32.gmra.mrb[0].mxu0 %v5208
    %v5619 = vpop.f32.mrb[0].mxu0
    %v5620 = vadd.f32 0.0, %v5619
    %v5621 = vpop.f32.mrb[0].mxu0
    %5622 = vmatprep.mubr.f32.mxu0 0.0
    %5623 = vmatmul.mubr.f32.gmra.mrb[0].mxu0 %v5209
    %v5624 = vpop.f32.mrb[0].mxu0
    %v5625 = vadd.f32 0.0, %v5624
    %v5626 = vpop.f32.mrb[0].mxu0
    %5627 = vmatprep.mubr.f32.mxu0 0.0
    %5628 = vmatmul.mubr.f32.gmra.mrb[0].mxu0 %v5210
    %v5629 = vpop.f32.mrb[0].mxu0
    %v5630 = vadd.f32 0.0, %v5629
    %v5631 = vpop.f32.mrb[0].mxu0
    %5632 = vmatprep.mubr.f32.mxu0 0.0
    %5633 = vmatmul.mubr.f32.gmra.mrb[0].mxu0 %v5211
    %v5634 = vpop.f32.mrb[0].mxu0
    %v5635 = vadd.f32 0.0, %v5634
    %v5636 = vpop.f32.mrb[0].mxu0
    %5637 = vmatprep.mubr.f32.mxu0 0.0
    %5638 = vmatmul.mubr.f32.gmra.mrb[0].mxu0 %v5212
    %v5639 = vpop.f32.mrb[0].mxu0
    %v5640 = vadd.f32 0.0, %v5639
    %v5641 = vpop.f32.mrb[0].mxu0
    %5642 = vmatprep.mubr.f32.mxu0 0.0
    %5643 = vmatmul.mubr.f32.gmra.mrb[0].mxu0 %v5213
    %v5644 = vpop.f32.mrb[0].mxu0
    %v5645 = vadd.f32 0.0, %v5644
    %v5646 = vpop.f32.mrb[0].mxu0
    %5647 = vmatprep.mubr.f32.mxu0 0.0
    %5648 = vmatmul.mubr.f32.gmra.mrb[0].mxu0 %v5214
    %v5649 = vpop.f32.mrb[0].mxu0
    %v5650 = vadd.f32 0.0, %v5649
    %v5651 = vpop.f32.mrb[0].mxu0
    %5652 = vmatprep.mubr.f32.mxu0 0.0
    %5653 = vmatmul.mubr.f32.gmra.mrb[0].mxu0 %v5215
    %v5654 = vpop.f32.mrb[0].mxu0
    %v5655 = vadd.f32 0.0, %v5654
    %v5656 = vpop.f32.mrb[0].mxu0
    %5657 = vmatprep.mubr.f32.mxu0 0.0
    %5658 = vmatmul.mubr.f32.gmra.mrb[0].mxu0 %v5216
    %v5659 = vpop.f32.mrb[0].mxu0
    %v5660 = vadd.f32 0.0, %v5659
    %v5661 = vpop.f32.mrb[0].mxu0
    %5662 = vmatprep.mubr.f32.mxu0 0.0
    %5663 = vmatmul.mubr.f32.gmra.mrb[0].mxu0 %v5217
    %v5664 = vpop.f32.mrb[0].mxu0
    %v5665 = vadd.f32 0.0, %v5664
    %v5666 = vpop.f32.mrb[0].mxu0
    %5667 = vmatprep.mubr.f32.mxu0 0.0
    %5668 = vmatmul.mubr.f32.gmra.mrb[0].mxu0 %v5218
    %v5669 = vpop.f32.mrb[0].mxu0
    %v5670 = vadd.f32 0.0, %v5669
    %v5671 = vpop.f32.mrb[0].mxu0
    %5672 = vmatprep.mubr.f32.mxu0 0.0
    %5673 = vmatmul.mubr.f32.gmra.mrb[0].mxu0 %v5219
    %v5674 = vpop.f32.mrb[0].mxu0
    %v5675 = vadd.f32 0.0, %v5674
    %v5676 = vpop.f32.mrb[0].mxu0
    %5677 = vmatprep.mubr.f32.mxu0 0.0
    %5678 = vmatmul.mubr.f32.gmra.mrb[0].mxu0 %v5220
    %v5679 = vpop.f32.mrb[0].mxu0
    %v5680 = vadd.f32 0.0, %v5679
    %v5681 = vpop.f32.mrb[0].mxu0
    %5682 = vmatprep.mubr.f32.mxu0 0.0
    %5683 = vmatmul.mubr.f32.gmra.mrb[0].mxu0 %v5221
    %v5684 = vpop.f32.mrb[0].mxu0
    %v5685 = vadd.f32 0.0, %v5684
    %v5686 = vpop.f32.mrb[0].mxu0
    %5687 = vdwg.mxu0
    %v5688 = vadd.f32 %v5222, %v5370
    %v5689 = vadd.f32 %v5223, %v5375
    %v5690 = vadd.f32 %v5224, %v5380
    %v5691 = vadd.f32 %v5225, %v5385
    %v5692 = vadd.f32 %v5226, %v5390
    %v5693 = vadd.f32 %v5227, %v5395
    %v5694 = vadd.f32 %v5228, %v5400
    %v5695 = vadd.f32 %v5229, %v5405
    %v5696 = vadd.f32 %v5230, %v5410
    %v5697 = vadd.f32 %v5231, %v5415
    %v5698 = vadd.f32 %v5232, %v5420
    %v5699 = vadd.f32 %v5233, %v5425
    %v5700 = vadd.f32 %v5234, %v5430
    %v5701 = vadd.f32 %v5235, %v5435
    %v5702 = vadd.f32 %v5236, %v5440
    %v5703 = vadd.f32 %v5237, %v5445
    %v5704 = vadd.f32 %v5238, %v5450
    %v5705 = vadd.f32 %v5239, %v5455
    %v5706 = vadd.f32 %v5240, %v5460
    %v5707 = vadd.f32 %v5241, %v5465
    %v5708 = vadd.f32 %v5242, %v5470
    %v5709 = vadd.f32 %v5243, %v5475
    %v5710 = vadd.f32 %v5244, %v5480
    %v5711 = vadd.f32 %v5245, %v5485
    %v5712 = vadd.f32 %v5246, %v5490
    %v5713 = vadd.f32 %v5247, %v5495
    %v5714 = vadd.f32 %v5248, %v5500
    %v5715 = vadd.f32 %v5249, %v5505
    %v5716 = vadd.f32 %v5250, %v5510
    %v5717 = vadd.f32 %v5251, %v5515
    %v5718 = vadd.f32 %v5252, %v5520
    %v5719 = vadd.f32 %v5253, %v5525
    %v5720 = vadd.f32 %v5254, %v5530
    %v5721 = vadd.f32 %v5255, %v5535
    %v5722 = vadd.f32 %v5256, %v5540
    %v5723 = vadd.f32 %v5257, %v5545
    %v5724 = vadd.f32 %v5258, %v5550
    %v5725 = vadd.f32 %v5259, %v5555
    %v5726 = vadd.f32 %v5260, %v5560
    %v5727 = vadd.f32 %v5261, %v5565
    %v5728 = vadd.f32 %v5262, %v5570
    %v5729 = vadd.f32 %v5263, %v5575
    %v5730 = vadd.f32 %v5264, %v5580
    %v5731 = vadd.f32 %v5265, %v5585
    %v5732 = vadd.f32 %v5266, %v5590
    %v5733 = vadd.f32 %v5267, %v5595
    %v5734 = vadd.f32 %v5268, %v5600
    %v5735 = vadd.f32 %v5269, %v5605
    %v5736 = vadd.f32 %v5270, %v5610
    %v5737 = vadd.f32 %v5271, %v5615
    %v5738 = vadd.f32 %v5272, %v5620
    %v5739 = vadd.f32 %v5273, %v5625
    %v5740 = vadd.f32 %v5274, %v5630
    %v5741 = vadd.f32 %v5275, %v5635
    %v5742 = vadd.f32 %v5276, %v5640
    %v5743 = vadd.f32 %v5277, %v5645
    %v5744 = vadd.f32 %v5278, %v5650
    %v5745 = vadd.f32 %v5279, %v5655
    %v5746 = vadd.f32 %v5280, %v5660
    %v5747 = vadd.f32 %v5281, %v5665
    %v5748 = vadd.f32 %v5282, %v5670
    %v5749 = vadd.f32 %v5283, %v5675
    %v5750 = vadd.f32 %v5284, %v5680
    %v5751 = vadd.f32 %v5285, %v5685
    %5752 = vst [vmem:[#allocation3] sm:$0xff] %v5688
    %5753 = vst [vmem:[#allocation3 + $0x8] sm:$0xff] %v5689
    %5754 = vst [vmem:[#allocation3 + $0x10] sm:$0xff] %v5690
    %5755 = vst [vmem:[#allocation3 + $0x18] sm:$0xff] %v5691
    %5756 = vst [vmem:[#allocation3 + $0x20] sm:$0xff] %v5692
    %5757 = vst [vmem:[#allocation3 + $0x28] sm:$0xff] %v5693
    %5758 = vst [vmem:[#allocation3 + $0x30] sm:$0xff] %v5694
    %5759 = vst [vmem:[#allocation3 + $0x38] sm:$0xff] %v5695
    %5760 = vst [vmem:[#allocation3 + $0x40] sm:$0xff] %v5696
    %5761 = vst [vmem:[#allocation3 + $0x48] sm:$0xff] %v5697
    %5762 = vst [vmem:[#allocation3 + $0x50] sm:$0xff] %v5698
    %5763 = vst [vmem:[#allocation3 + $0x58] sm:$0xff] %v5699
    %5764 = vst [vmem:[#allocation3 + $0x60] sm:$0xff] %v5700
    %5765 = vst [vmem:[#allocation3 + $0x68] sm:$0xff] %v5701
    %5766 = vst [vmem:[#allocation3 + $0x70] sm:$0xff] %v5702
    %5767 = vst [vmem:[#allocation3 + $0x78] sm:$0xff] %v5703
    %5768 = vst [vmem:[#allocation3 + $0x80] sm:$0xff] %v5704
    %5769 = vst [vmem:[#allocation3 + $0x88] sm:$0xff] %v5705
    %5770 = vst [vmem:[#allocation3 + $0x90] sm:$0xff] %v5706
    %5771 = vst [vmem:[#allocation3 + $0x98] sm:$0xff] %v5707
    %5772 = vst [vmem:[#allocation3 + $0xa0] sm:$0xff] %v5708
    %5773 = vst [vmem:[#allocation3 + $0xa8] sm:$0xff] %v5709
    %5774 = vst [vmem:[#allocation3 + $0xb0] sm:$0xff] %v5710
    %5775 = vst [vmem:[#allocation3 + $0xb8] sm:$0xff] %v5711
    %5776 = vst [vmem:[#allocation3 + $0xc0] sm:$0xff] %v5712
    %5777 = vst [vmem:[#allocation3 + $0xc8] sm:$0xff] %v5713
    %5778 = vst [vmem:[#allocation3 + $0xd0] sm:$0xff] %v5714
    %5779 = vst [vmem:[#allocation3 + $0xd8] sm:$0xff] %v5715
    %5780 = vst [vmem:[#allocation3 + $0xe0] sm:$0xff] %v5716
    %5781 = vst [vmem:[#allocation3 + $0xe8] sm:$0xff] %v5717
    %5782 = vst [vmem:[#allocation3 + $0xf0] sm:$0xff] %v5718
    %5783 = vst [vmem:[#allocation3 + $0xf8] sm:$0xff] %v5719
    %5784 = vst [vmem:[#allocation3 + $0x100] sm:$0xff] %v5720
    %5785 = vst [vmem:[#allocation3 + $0x108] sm:$0xff] %v5721
    %5786 = vst [vmem:[#allocation3 + $0x110] sm:$0xff] %v5722
    %5787 = vst [vmem:[#allocation3 + $0x118] sm:$0xff] %v5723
    %5788 = vst [vmem:[#allocation3 + $0x120] sm:$0xff] %v5724
    %5789 = vst [vmem:[#allocation3 + $0x128] sm:$0xff] %v5725
    %5790 = vst [vmem:[#allocation3 + $0x130] sm:$0xff] %v5726
    %5791 = vst [vmem:[#allocation3 + $0x138] sm:$0xff] %v5727
    %5792 = vst [vmem:[#allocation3 + $0x140] sm:$0xff] %v5728
    %5793 = vst [vmem:[#allocation3 + $0x148] sm:$0xff] %v5729
    %5794 = vst [vmem:[#allocation3 + $0x150] sm:$0xff] %v5730
    %5795 = vst [vmem:[#allocation3 + $0x158] sm:$0xff] %v5731
    %5796 = vst [vmem:[#allocation3 + $0x160] sm:$0xff] %v5732
    %5797 = vst [vmem:[#allocation3 + $0x168] sm:$0xff] %v5733
    %5798 = vst [vmem:[#allocation3 + $0x170] sm:$0xff] %v5734
    %5799 = vst [vmem:[#allocation3 + $0x178] sm:$0xff] %v5735
    %5800 = vst [vmem:[#allocation3 + $0x180] sm:$0xff] %v5736
    %5801 = vst [vmem:[#allocation3 + $0x188] sm:$0xff] %v5737
    %5802 = vst [vmem:[#allocation3 + $0x190] sm:$0xff] %v5738
    %5803 = vst [vmem:[#allocation3 + $0x198] sm:$0xff] %v5739
    %5804 = vst [vmem:[#allocation3 + $0x1a0] sm:$0xff] %v5740
    %5805 = vst [vmem:[#allocation3 + $0x1a8] sm:$0xff] %v5741
    %5806 = vst [vmem:[#allocation3 + $0x1b0] sm:$0xff] %v5742
    %5807 = vst [vmem:[#allocation3 + $0x1b8] sm:$0xff] %v5743
    %5808 = vst [vmem:[#allocation3 + $0x1c0] sm:$0xff] %v5744
    %5809 = vst [vmem:[#allocation3 + $0x1c8] sm:$0xff] %v5745
    %5810 = vst [vmem:[#allocation3 + $0x1d0] sm:$0xff] %v5746
    %5811 = vst [vmem:[#allocation3 + $0x1d8] sm:$0xff] %v5747
    %5812 = vst [vmem:[#allocation3 + $0x1e0] sm:$0xff] %v5748
    %5813 = vst [vmem:[#allocation3 + $0x1e8] sm:$0xff] %v5749
    %5814 = vst [vmem:[#allocation3 + $0x1f0] sm:$0xff] %v5750
    %5815 = vst [vmem:[#allocation3 + $0x1f8] sm:$0xff] %v5751
    %v5816 = vld [vmem:[%s5157 + $0x1] sm:$0xff]
    %v5817 = vld [vmem:[%s5157 + $0x9] sm:$0xff]
    %v5818 = vld [vmem:[%s5157 + $0x19] sm:$0xff]
    %v5819 = vld [vmem:[%s5157 + $0x21] sm:$0xff]
    %v5820 = vld [vmem:[%s5157 + $0x31] sm:$0xff]
    %v5821 = vld [vmem:[%s5157 + $0x39] sm:$0xff]
    %v5822 = vld [vmem:[%s5157 + $0x49] sm:$0xff]
    %v5823 = vld [vmem:[%s5157 + $0x51] sm:$0xff]
    %v5824 = vld [vmem:[%s5157 + $0x61] sm:$0xff]
    %v5825 = vld [vmem:[%s5157 + $0x69] sm:$0xff]
    %v5826 = vld [vmem:[%s5157 + $0x79] sm:$0xff]
    %v5827 = vld [vmem:[%s5157 + $0x81] sm:$0xff]
    %v5828 = vld [vmem:[%s5157 + $0x91] sm:$0xff]
    %v5829 = vld [vmem:[%s5157 + $0x99] sm:$0xff]
    %v5830 = vld [vmem:[%s5157 + $0xa9] sm:$0xff]
    %v5831 = vld [vmem:[%s5157 + $0xb1] sm:$0xff]
    %v5832 = vld [vmem:[%s5157 + $0xc1] sm:$0xff]
    %v5833 = vld [vmem:[%s5157 + $0xc9] sm:$0xff]
    %v5834 = vld [vmem:[%s5157 + $0xd9] sm:$0xff]
    %v5835 = vld [vmem:[%s5157 + $0xe1] sm:$0xff]
    %v5836 = vld [vmem:[%s5157 + $0xf1] sm:$0xff]
    %v5837 = vld [vmem:[%s5157 + $0xf9] sm:$0xff]
    %v5838 = vld [vmem:[%s5157 + $0x109] sm:$0xff]
    %v5839 = vld [vmem:[%s5157 + $0x111] sm:$0xff]
    %v5840 = vld [vmem:[%s5157 + $0x121] sm:$0xff]
    %v5841 = vld [vmem:[%s5157 + $0x129] sm:$0xff]
    %v5842 = vld [vmem:[%s5157 + $0x139] sm:$0xff]
    %v5843 = vld [vmem:[%s5157 + $0x141] sm:$0xff]
    %v5844 = vld [vmem:[%s5157 + $0x151] sm:$0xff]
    %v5845 = vld [vmem:[%s5157 + $0x159] sm:$0xff]
    %v5846 = vld [vmem:[%s5157 + $0x169] sm:$0xff]
    %v5847 = vld [vmem:[%s5157 + $0x171] sm:$0xff]
    %v5848 = vld [vmem:[%s5157 + $0x1b1] sm:$0xff]
    %v5849 = vld [vmem:[%s5157 + $0x1b9] sm:$0xff]
    %v5850 = vld [vmem:[%s5157 + $0x1c9] sm:$0xff]
    %v5851 = vld [vmem:[%s5157 + $0x1d1] sm:$0xff]
    %v5852 = vld [vmem:[%s5157 + $0x1e1] sm:$0xff]
    %v5853 = vld [vmem:[%s5157 + $0x1e9] sm:$0xff]
    %v5854 = vld [vmem:[%s5157 + $0x1f9] sm:$0xff]
    %v5855 = vld [vmem:[%s5157 + $0x201] sm:$0xff]
    %v5856 = vld [vmem:[%s5157 + $0x211] sm:$0xff]
    %v5857 = vld [vmem:[%s5157 + $0x219] sm:$0xff]
    %v5858 = vld [vmem:[%s5157 + $0x229] sm:$0xff]
    %v5859 = vld [vmem:[%s5157 + $0x231] sm:$0xff]
    %v5860 = vld [vmem:[%s5157 + $0x241] sm:$0xff]
    %v5861 = vld [vmem:[%s5157 + $0x249] sm:$0xff]
    %v5862 = vld [vmem:[%s5157 + $0x259] sm:$0xff]
    %v5863 = vld [vmem:[%s5157 + $0x261] sm:$0xff]
    %v5864 = vld [vmem:[%s5157 + $0x271] sm:$0xff]
    %v5865 = vld [vmem:[%s5157 + $0x279] sm:$0xff]
    %v5866 = vld [vmem:[%s5157 + $0x289] sm:$0xff]
    %v5867 = vld [vmem:[%s5157 + $0x291] sm:$0xff]
    %v5868 = vld [vmem:[%s5157 + $0x2a1] sm:$0xff]
    %v5869 = vld [vmem:[%s5157 + $0x2a9] sm:$0xff]
    %v5870 = vld [vmem:[%s5157 + $0x2b9] sm:$0xff]
    %v5871 = vld [vmem:[%s5157 + $0x2c1] sm:$0xff]
    %v5872 = vld [vmem:[%s5157 + $0x2d1] sm:$0xff]
    %v5873 = vld [vmem:[%s5157 + $0x2d9] sm:$0xff]
    %v5874 = vld [vmem:[%s5157 + $0x2e9] sm:$0xff]
    %v5875 = vld [vmem:[%s5157 + $0x2f1] sm:$0xff]
    %v5876 = vld [vmem:[%s5157 + $0x301] sm:$0xff]
    %v5877 = vld [vmem:[%s5157 + $0x309] sm:$0xff]
    %v5878 = vld [vmem:[%s5157 + $0x319] sm:$0xff]
    %v5879 = vld [vmem:[%s5157 + $0x321] sm:$0xff]
    %v5880 = vld [vmem:[#allocation3] sm:$0xff]
    %v5881 = vld [vmem:[#allocation3 + $0x8] sm:$0xff]
    %v5882 = vld [vmem:[#allocation3 + $0x10] sm:$0xff]
    %v5883 = vld [vmem:[#allocation3 + $0x18] sm:$0xff]
    %v5884 = vld [vmem:[#allocation3 + $0x20] sm:$0xff]
    %v5885 = vld [vmem:[#allocation3 + $0x28] sm:$0xff]
    %v5886 = vld [vmem:[#allocation3 + $0x30] sm:$0xff]
    %v5887 = vld [vmem:[#allocation3 + $0x38] sm:$0xff]
    %v5888 = vld [vmem:[#allocation3 + $0x40] sm:$0xff]
    %v5889 = vld [vmem:[#allocation3 + $0x48] sm:$0xff]
    %v5890 = vld [vmem:[#allocation3 + $0x50] sm:$0xff]
    %v5891 = vld [vmem:[#allocation3 + $0x58] sm:$0xff]
    %v5892 = vld [vmem:[#allocation3 + $0x60] sm:$0xff]
    %v5893 = vld [vmem:[#allocation3 + $0x68] sm:$0xff]
    %v5894 = vld [vmem:[#allocation3 + $0x70] sm:$0xff]
    %v5895 = vld [vmem:[#allocation3 + $0x78] sm:$0xff]
    %v5896 = vld [vmem:[#allocation3 + $0x80] sm:$0xff]
    %v5897 = vld [vmem:[#allocation3 + $0x88] sm:$0xff]
    %v5898 = vld [vmem:[#allocation3 + $0x90] sm:$0xff]
    %v5899 = vld [vmem:[#allocation3 + $0x98] sm:$0xff]
    %v5900 = vld [vmem:[#allocation3 + $0xa0] sm:$0xff]
    %v5901 = vld [vmem:[#allocation3 + $0xa8] sm:$0xff]
    %v5902 = vld [vmem:[#allocation3 + $0xb0] sm:$0xff]
    %v5903 = vld [vmem:[#allocation3 + $0xb8] sm:$0xff]
    %v5904 = vld [vmem:[#allocation3 + $0xc0] sm:$0xff]
    %v5905 = vld [vmem:[#allocation3 + $0xc8] sm:$0xff]
    %v5906 = vld [vmem:[#allocation3 + $0xd0] sm:$0xff]
    %v5907 = vld [vmem:[#allocation3 + $0xd8] sm:$0xff]
    %v5908 = vld [vmem:[#allocation3 + $0xe0] sm:$0xff]
    %v5909 = vld [vmem:[#allocation3 + $0xe8] sm:$0xff]
    %v5910 = vld [vmem:[#allocation3 + $0xf0] sm:$0xff]
    %v5911 = vld [vmem:[#allocation3 + $0xf8] sm:$0xff]
    %v5912 = vld [vmem:[#allocation3 + $0x100] sm:$0xff]
    %v5913 = vld [vmem:[#allocation3 + $0x108] sm:$0xff]
    %v5914 = vld [vmem:[#allocation3 + $0x110] sm:$0xff]
    %v5915 = vld [vmem:[#allocation3 + $0x118] sm:$0xff]
    %v5916 = vld [vmem:[#allocation3 + $0x120] sm:$0xff]
    %v5917 = vld [vmem:[#allocation3 + $0x128] sm:$0xff]
    %v5918 = vld [vmem:[#allocation3 + $0x130] sm:$0xff]
    %v5919 = vld [vmem:[#allocation3 + $0x138] sm:$0xff]
    %v5920 = vld [vmem:[#allocation3 + $0x140] sm:$0xff]
    %v5921 = vld [vmem:[#allocation3 + $0x148] sm:$0xff]
    %v5922 = vld [vmem:[#allocation3 + $0x150] sm:$0xff]
    %v5923 = vld [vmem:[#allocation3 + $0x158] sm:$0xff]
    %v5924 = vld [vmem:[#allocation3 + $0x160] sm:$0xff]
    %v5925 = vld [vmem:[#allocation3 + $0x168] sm:$0xff]
    %v5926 = vld [vmem:[#allocation3 + $0x170] sm:$0xff]
    %v5927 = vld [vmem:[#allocation3 + $0x178] sm:$0xff]
    %v5928 = vld [vmem:[#allocation3 + $0x180] sm:$0xff]
    %v5929 = vld [vmem:[#allocation3 + $0x188] sm:$0xff]
    %v5930 = vld [vmem:[#allocation3 + $0x190] sm:$0xff]
    %v5931 = vld [vmem:[#allocation3 + $0x198] sm:$0xff]
    %v5932 = vld [vmem:[#allocation3 + $0x1a0] sm:$0xff]
    %v5933 = vld [vmem:[#allocation3 + $0x1a8] sm:$0xff]
    %v5934 = vld [vmem:[#allocation3 + $0x1b0] sm:$0xff]
    %v5935 = vld [vmem:[#allocation3 + $0x1b8] sm:$0xff]
    %v5936 = vld [vmem:[#allocation3 + $0x1c0] sm:$0xff]
    %v5937 = vld [vmem:[#allocation3 + $0x1c8] sm:$0xff]
    %v5938 = vld [vmem:[#allocation3 + $0x1d0] sm:$0xff]
    %v5939 = vld [vmem:[#allocation3 + $0x1d8] sm:$0xff]
    %v5940 = vld [vmem:[#allocation3 + $0x1e0] sm:$0xff]
    %v5941 = vld [vmem:[#allocation3 + $0x1e8] sm:$0xff]
    %v5942 = vld [vmem:[#allocation3 + $0x1f0] sm:$0xff]
    %v5943 = vld [vmem:[#allocation3 + $0x1f8] sm:$0xff]
    %s5944 = scalar_lea.vmem [#allocation9], 896
    %v5945 = vld [vmem:[%s5944] sm:$0xff]
    %v5946 = vld [vmem:[%s5944 + $0x8] sm:$0xff]
    %v5947 = vld [vmem:[%s5944 + $0x10] sm:$0xff]
    %v5948 = vld [vmem:[%s5944 + $0x18] sm:$0xff]
    %v5949 = vld [vmem:[%s5944 + $0x20] sm:$0xff]
    %v5950 = vld [vmem:[%s5944 + $0x28] sm:$0xff]
    %v5951 = vld [vmem:[%s5944 + $0x30] sm:$0xff]
    %v5952 = vld [vmem:[%s5944 + $0x38] sm:$0xff]
    %v5953 = vld [vmem:[%s5944 + $0x40] sm:$0xff]
    %v5954 = vld [vmem:[%s5944 + $0x48] sm:$0xff]
    %v5955 = vld [vmem:[%s5944 + $0x50] sm:$0xff]
    %v5956 = vld [vmem:[%s5944 + $0x58] sm:$0xff]
    %v5957 = vld [vmem:[%s5944 + $0x60] sm:$0xff]
    %v5958 = vld [vmem:[%s5944 + $0x68] sm:$0xff]
    %v5959 = vld [vmem:[%s5944 + $0x70] sm:$0xff]
    %v5960 = vld [vmem:[%s5944 + $0x78] sm:$0xff]
    %5961 = vmatprep.subr.mxu0 0.0
    %5962 = vmatpush1.msra.mxu0 %v5945
    %5963 = vmatprep.subr.mxu0 0.0
    %5964 = vmatpush1.msra.mxu0 %v5946
    %5965 = vmatprep.subr.mxu0 0.0
    %5966 = vmatpush1.msra.mxu0 %v5947
    %5967 = vmatprep.subr.mxu0 0.0
    %5968 = vmatpush1.msra.mxu0 %v5948
    %5969 = vmatprep.subr.mxu0 0.0
    %5970 = vmatpush1.msra.mxu0 %v5949
    %5971 = vmatprep.subr.mxu0 0.0
    %5972 = vmatpush1.msra.mxu0 %v5950
    %5973 = vmatprep.subr.mxu0 0.0
    %5974 = vmatpush1.msra.mxu0 %v5951
    %5975 = vmatprep.subr.mxu0 0.0
    %5976 = vmatpush1.msra.mxu0 %v5952
    %5977 = vmatprep.subr.mxu0 0.0
    %5978 = vmatpush1.msra.mxu0 %v5953
    %5979 = vmatprep.subr.mxu0 0.0
    %5980 = vmatpush1.msra.mxu0 %v5954
    %5981 = vmatprep.subr.mxu0 0.0
    %5982 = vmatpush1.msra.mxu0 %v5955
    %5983 = vmatprep.subr.mxu0 0.0
    %5984 = vmatpush1.msra.mxu0 %v5956
    %5985 = vmatprep.subr.mxu0 0.0
    %5986 = vmatpush1.msra.mxu0 %v5957
    %5987 = vmatprep.subr.mxu0 0.0
    %5988 = vmatpush1.msra.mxu0 %v5958
    %5989 = vmatprep.subr.mxu0 0.0
    %5990 = vmatpush1.msra.mxu0 %v5959
    %5991 = vmatprep.subr.mxu0 0.0
    %5992 = vmatpush1.msra.mxu0 %v5960
    %5993 = vmatprep.subr.mxu0 0.0
    %5994 = vmatpush1.msra.mxu0 0.0
    %5995 = vmatprep.subr.mxu0 0.0
    %5996 = vmatpush1.msra.mxu0 0.0
    %5997 = vmatprep.subr.mxu0 0.0
    %5998 = vmatpush1.msra.mxu0 0.0
    %5999 = vmatprep.subr.mxu0 0.0
    %6000 = vmatpush1.msra.mxu0 0.0
    %6001 = vmatprep.subr.mxu0 0.0
    %6002 = vmatpush1.msra.mxu0 0.0
    %6003 = vmatprep.subr.mxu0 0.0
    %6004 = vmatpush1.msra.mxu0 0.0
    %6005 = vmatprep.subr.mxu0 0.0
    %6006 = vmatpush1.msra.mxu0 0.0
    %6007 = vmatprep.subr.mxu0 0.0
    %6008 = vmatpush1.msra.mxu0 0.0
    %6009 = vmatprep.subr.mxu0 0.0
    %6010 = vmatpush1.msra.mxu0 0.0
    %6011 = vmatprep.subr.mxu0 0.0
    %6012 = vmatpush1.msra.mxu0 0.0
    %6013 = vmatprep.subr.mxu0 0.0
    %6014 = vmatpush1.msra.mxu0 0.0
    %6015 = vmatprep.subr.mxu0 0.0
    %6016 = vmatpush1.msra.mxu0 0.0
    %6017 = vmatprep.subr.mxu0 0.0
    %6018 = vmatpush1.msra.mxu0 0.0
    %6019 = vmatprep.subr.mxu0 0.0
    %6020 = vmatpush1.msra.mxu0 0.0
    %6021 = vmatprep.subr.mxu0 0.0
    %6022 = vmatpush1.msra.mxu0 0.0
    %6023 = vmatprep.subr.mxu0 0.0
    %6024 = vmatpush1.msra.mxu0 0.0
    %6025 = vmatprep.mubr.f32.mxu0 0.0
    %6026 = vmatmul.mubr.f32.gmra.mrb[0].mxu0 %v5816
    %v6027 = vpop.f32.mrb[0].mxu0
    %v6028 = vadd.f32 0.0, %v6027
    %v6029 = vpop.f32.mrb[0].mxu0
    %6030 = vmatprep.mubr.f32.mxu0 0.0
    %6031 = vmatmul.mubr.f32.gmra.mrb[0].mxu0 %v5817
    %v6032 = vpop.f32.mrb[0].mxu0
    %v6033 = vadd.f32 0.0, %v6032
    %v6034 = vpop.f32.mrb[0].mxu0
    %6035 = vmatprep.mubr.f32.mxu0 0.0
    %6036 = vmatmul.mubr.f32.gmra.mrb[0].mxu0 %v5818
    %v6037 = vpop.f32.mrb[0].mxu0
    %v6038 = vadd.f32 0.0, %v6037
    %v6039 = vpop.f32.mrb[0].mxu0
    %6040 = vmatprep.mubr.f32.mxu0 0.0
    %6041 = vmatmul.mubr.f32.gmra.mrb[0].mxu0 %v5819
    %v6042 = vpop.f32.mrb[0].mxu0
    %v6043 = vadd.f32 0.0, %v6042
    %v6044 = vpop.f32.mrb[0].mxu0
    %6045 = vmatprep.mubr.f32.mxu0 0.0
    %6046 = vmatmul.mubr.f32.gmra.mrb[0].mxu0 %v5820
    %v6047 = vpop.f32.mrb[0].mxu0
    %v6048 = vadd.f32 0.0, %v6047
    %v6049 = vpop.f32.mrb[0].mxu0
    %6050 = vmatprep.mubr.f32.mxu0 0.0
    %6051 = vmatmul.mubr.f32.gmra.mrb[0].mxu0 %v5821
    %v6052 = vpop.f32.mrb[0].mxu0
    %v6053 = vadd.f32 0.0, %v6052
    %v6054 = vpop.f32.mrb[0].mxu0
    %6055 = vmatprep.mubr.f32.mxu0 0.0
    %6056 = vmatmul.mubr.f32.gmra.mrb[0].mxu0 %v5822
    %v6057 = vpop.f32.mrb[0].mxu0
    %v6058 = vadd.f32 0.0, %v6057
    %v6059 = vpop.f32.mrb[0].mxu0
    %6060 = vmatprep.mubr.f32.mxu0 0.0
    %6061 = vmatmul.mubr.f32.gmra.mrb[0].mxu0 %v5823
    %v6062 = vpop.f32.mrb[0].mxu0
    %v6063 = vadd.f32 0.0, %v6062
    %v6064 = vpop.f32.mrb[0].mxu0
    %6065 = vmatprep.mubr.f32.mxu0 0.0
    %6066 = vmatmul.mubr.f32.gmra.mrb[0].mxu0 %v5824
    %v6067 = vpop.f32.mrb[0].mxu0
    %v6068 = vadd.f32 0.0, %v6067
    %v6069 = vpop.f32.mrb[0].mxu0
    %6070 = vmatprep.mubr.f32.mxu0 0.0
    %6071 = vmatmul.mubr.f32.gmra.mrb[0].mxu0 %v5825
    %v6072 = vpop.f32.mrb[0].mxu0
    %v6073 = vadd.f32 0.0, %v6072
    %v6074 = vpop.f32.mrb[0].mxu0
    %6075 = vmatprep.mubr.f32.mxu0 0.0
    %6076 = vmatmul.mubr.f32.gmra.mrb[0].mxu0 %v5826
    %v6077 = vpop.f32.mrb[0].mxu0
    %v6078 = vadd.f32 0.0, %v6077
    %v6079 = vpop.f32.mrb[0].mxu0
    %6080 = vmatprep.mubr.f32.mxu0 0.0
    %6081 = vmatmul.mubr.f32.gmra.mrb[0].mxu0 %v5827
    %v6082 = vpop.f32.mrb[0].mxu0
    %v6083 = vadd.f32 0.0, %v6082
    %v6084 = vpop.f32.mrb[0].mxu0
    %6085 = vmatprep.mubr.f32.mxu0 0.0
    %6086 = vmatmul.mubr.f32.gmra.mrb[0].mxu0 %v5828
    %v6087 = vpop.f32.mrb[0].mxu0
    %v6088 = vadd.f32 0.0, %v6087
    %v6089 = vpop.f32.mrb[0].mxu0
    %6090 = vmatprep.mubr.f32.mxu0 0.0
    %6091 = vmatmul.mubr.f32.gmra.mrb[0].mxu0 %v5829
    %v6092 = vpop.f32.mrb[0].mxu0
    %v6093 = vadd.f32 0.0, %v6092
    %v6094 = vpop.f32.mrb[0].mxu0
    %6095 = vmatprep.mubr.f32.mxu0 0.0
    %6096 = vmatmul.mubr.f32.gmra.mrb[0].mxu0 %v5830
    %v6097 = vpop.f32.mrb[0].mxu0
    %v6098 = vadd.f32 0.0, %v6097
    %v6099 = vpop.f32.mrb[0].mxu0
    %6100 = vmatprep.mubr.f32.mxu0 0.0
    %6101 = vmatmul.mubr.f32.gmra.mrb[0].mxu0 %v5831
    %v6102 = vpop.f32.mrb[0].mxu0
    %v6103 = vadd.f32 0.0, %v6102
    %v6104 = vpop.f32.mrb[0].mxu0
    %6105 = vmatprep.mubr.f32.mxu0 0.0
    %6106 = vmatmul.mubr.f32.gmra.mrb[0].mxu0 %v5832
    %v6107 = vpop.f32.mrb[0].mxu0
    %v6108 = vadd.f32 0.0, %v6107
    %v6109 = vpop.f32.mrb[0].mxu0
    %6110 = vmatprep.mubr.f32.mxu0 0.0
    %6111 = vmatmul.mubr.f32.gmra.mrb[0].mxu0 %v5833
    %v6112 = vpop.f32.mrb[0].mxu0
    %v6113 = vadd.f32 0.0, %v6112
    %v6114 = vpop.f32.mrb[0].mxu0
    %6115 = vmatprep.mubr.f32.mxu0 0.0
    %6116 = vmatmul.mubr.f32.gmra.mrb[0].mxu0 %v5834
    %v6117 = vpop.f32.mrb[0].mxu0
    %v6118 = vadd.f32 0.0, %v6117
    %v6119 = vpop.f32.mrb[0].mxu0
    %6120 = vmatprep.mubr.f32.mxu0 0.0
    %6121 = vmatmul.mubr.f32.gmra.mrb[0].mxu0 %v5835
    %v6122 = vpop.f32.mrb[0].mxu0
    %v6123 = vadd.f32 0.0, %v6122
    %v6124 = vpop.f32.mrb[0].mxu0
    %6125 = vmatprep.mubr.f32.mxu0 0.0
    %6126 = vmatmul.mubr.f32.gmra.mrb[0].mxu0 %v5836
    %v6127 = vpop.f32.mrb[0].mxu0
    %v6128 = vadd.f32 0.0, %v6127
    %v6129 = vpop.f32.mrb[0].mxu0
    %6130 = vmatprep.mubr.f32.mxu0 0.0
    %6131 = vmatmul.mubr.f32.gmra.mrb[0].mxu0 %v5837
    %v6132 = vpop.f32.mrb[0].mxu0
    %v6133 = vadd.f32 0.0, %v6132
    %v6134 = vpop.f32.mrb[0].mxu0
    %6135 = vmatprep.mubr.f32.mxu0 0.0
    %6136 = vmatmul.mubr.f32.gmra.mrb[0].mxu0 %v5838
    %v6137 = vpop.f32.mrb[0].mxu0
    %v6138 = vadd.f32 0.0, %v6137
    %v6139 = vpop.f32.mrb[0].mxu0
    %6140 = vmatprep.mubr.f32.mxu0 0.0
    %6141 = vmatmul.mubr.f32.gmra.mrb[0].mxu0 %v5839
    %v6142 = vpop.f32.mrb[0].mxu0
    %v6143 = vadd.f32 0.0, %v6142
    %v6144 = vpop.f32.mrb[0].mxu0
    %6145 = vmatprep.mubr.f32.mxu0 0.0
    %6146 = vmatmul.mubr.f32.gmra.mrb[0].mxu0 %v5840
    %v6147 = vpop.f32.mrb[0].mxu0
    %v6148 = vadd.f32 0.0, %v6147
    %v6149 = vpop.f32.mrb[0].mxu0
    %6150 = vmatprep.mubr.f32.mxu0 0.0
    %6151 = vmatmul.mubr.f32.gmra.mrb[0].mxu0 %v5841
    %v6152 = vpop.f32.mrb[0].mxu0
    %v6153 = vadd.f32 0.0, %v6152
    %v6154 = vpop.f32.mrb[0].mxu0
    %6155 = vmatprep.mubr.f32.mxu0 0.0
    %6156 = vmatmul.mubr.f32.gmra.mrb[0].mxu0 %v5842
    %v6157 = vpop.f32.mrb[0].mxu0
    %v6158 = vadd.f32 0.0, %v6157
    %v6159 = vpop.f32.mrb[0].mxu0
    %6160 = vmatprep.mubr.f32.mxu0 0.0
    %6161 = vmatmul.mubr.f32.gmra.mrb[0].mxu0 %v5843
    %v6162 = vpop.f32.mrb[0].mxu0
    %v6163 = vadd.f32 0.0, %v6162
    %v6164 = vpop.f32.mrb[0].mxu0
    %6165 = vmatprep.mubr.f32.mxu0 0.0
    %6166 = vmatmul.mubr.f32.gmra.mrb[0].mxu0 %v5844
    %v6167 = vpop.f32.mrb[0].mxu0
    %v6168 = vadd.f32 0.0, %v6167
    %v6169 = vpop.f32.mrb[0].mxu0
    %6170 = vmatprep.mubr.f32.mxu0 0.0
    %6171 = vmatmul.mubr.f32.gmra.mrb[0].mxu0 %v5845
    %v6172 = vpop.f32.mrb[0].mxu0
    %v6173 = vadd.f32 0.0, %v6172
    %v6174 = vpop.f32.mrb[0].mxu0
    %6175 = vmatprep.mubr.f32.mxu0 0.0
    %6176 = vmatmul.mubr.f32.gmra.mrb[0].mxu0 %v5846
    %v6177 = vpop.f32.mrb[0].mxu0
    %v6178 = vadd.f32 0.0, %v6177
    %v6179 = vpop.f32.mrb[0].mxu0
    %6180 = vmatprep.mubr.f32.mxu0 0.0
    %6181 = vmatmul.mubr.f32.gmra.mrb[0].mxu0 %v5847
    %v6182 = vpop.f32.mrb[0].mxu0
    %v6183 = vadd.f32 0.0, %v6182
    %v6184 = vpop.f32.mrb[0].mxu0
    %6185 = vmatprep.mubr.f32.mxu0 0.0
    %6186 = vmatmul.mubr.f32.gmra.mrb[0].mxu0 %v5848
    %v6187 = vpop.f32.mrb[0].mxu0
    %v6188 = vadd.f32 0.0, %v6187
    %v6189 = vpop.f32.mrb[0].mxu0
    %6190 = vmatprep.mubr.f32.mxu0 0.0
    %6191 = vmatmul.mubr.f32.gmra.mrb[0].mxu0 %v5849
    %v6192 = vpop.f32.mrb[0].mxu0
    %v6193 = vadd.f32 0.0, %v6192
    %v6194 = vpop.f32.mrb[0].mxu0
    %6195 = vmatprep.mubr.f32.mxu0 0.0
    %6196 = vmatmul.mubr.f32.gmra.mrb[0].mxu0 %v5850
    %v6197 = vpop.f32.mrb[0].mxu0
    %v6198 = vadd.f32 0.0, %v6197
    %v6199 = vpop.f32.mrb[0].mxu0
    %6200 = vmatprep.mubr.f32.mxu0 0.0
    %6201 = vmatmul.mubr.f32.gmra.mrb[0].mxu0 %v5851
    %v6202 = vpop.f32.mrb[0].mxu0
    %v6203 = vadd.f32 0.0, %v6202
    %v6204 = vpop.f32.mrb[0].mxu0
    %6205 = vmatprep.mubr.f32.mxu0 0.0
    %6206 = vmatmul.mubr.f32.gmra.mrb[0].mxu0 %v5852
    %v6207 = vpop.f32.mrb[0].mxu0
    %v6208 = vadd.f32 0.0, %v6207
    %v6209 = vpop.f32.mrb[0].mxu0
    %6210 = vmatprep.mubr.f32.mxu0 0.0
    %6211 = vmatmul.mubr.f32.gmra.mrb[0].mxu0 %v5853
    %v6212 = vpop.f32.mrb[0].mxu0
    %v6213 = vadd.f32 0.0, %v6212
    %v6214 = vpop.f32.mrb[0].mxu0
    %6215 = vmatprep.mubr.f32.mxu0 0.0
    %6216 = vmatmul.mubr.f32.gmra.mrb[0].mxu0 %v5854
    %v6217 = vpop.f32.mrb[0].mxu0
    %v6218 = vadd.f32 0.0, %v6217
    %v6219 = vpop.f32.mrb[0].mxu0
    %6220 = vmatprep.mubr.f32.mxu0 0.0
    %6221 = vmatmul.mubr.f32.gmra.mrb[0].mxu0 %v5855
    %v6222 = vpop.f32.mrb[0].mxu0
    %v6223 = vadd.f32 0.0, %v6222
    %v6224 = vpop.f32.mrb[0].mxu0
    %6225 = vmatprep.mubr.f32.mxu0 0.0
    %6226 = vmatmul.mubr.f32.gmra.mrb[0].mxu0 %v5856
    %v6227 = vpop.f32.mrb[0].mxu0
    %v6228 = vadd.f32 0.0, %v6227
    %v6229 = vpop.f32.mrb[0].mxu0
    %6230 = vmatprep.mubr.f32.mxu0 0.0
    %6231 = vmatmul.mubr.f32.gmra.mrb[0].mxu0 %v5857
    %v6232 = vpop.f32.mrb[0].mxu0
    %v6233 = vadd.f32 0.0, %v6232
    %v6234 = vpop.f32.mrb[0].mxu0
    %6235 = vmatprep.mubr.f32.mxu0 0.0
    %6236 = vmatmul.mubr.f32.gmra.mrb[0].mxu0 %v5858
    %v6237 = vpop.f32.mrb[0].mxu0
    %v6238 = vadd.f32 0.0, %v6237
    %v6239 = vpop.f32.mrb[0].mxu0
    %6240 = vmatprep.mubr.f32.mxu0 0.0
    %6241 = vmatmul.mubr.f32.gmra.mrb[0].mxu0 %v5859
    %v6242 = vpop.f32.mrb[0].mxu0
    %v6243 = vadd.f32 0.0, %v6242
    %v6244 = vpop.f32.mrb[0].mxu0
    %6245 = vmatprep.mubr.f32.mxu0 0.0
    %6246 = vmatmul.mubr.f32.gmra.mrb[0].mxu0 %v5860
    %v6247 = vpop.f32.mrb[0].mxu0
    %v6248 = vadd.f32 0.0, %v6247
    %v6249 = vpop.f32.mrb[0].mxu0
    %6250 = vmatprep.mubr.f32.mxu0 0.0
    %6251 = vmatmul.mubr.f32.gmra.mrb[0].mxu0 %v5861
    %v6252 = vpop.f32.mrb[0].mxu0
    %v6253 = vadd.f32 0.0, %v6252
    %v6254 = vpop.f32.mrb[0].mxu0
    %6255 = vmatprep.mubr.f32.mxu0 0.0
    %6256 = vmatmul.mubr.f32.gmra.mrb[0].mxu0 %v5862
    %v6257 = vpop.f32.mrb[0].mxu0
    %v6258 = vadd.f32 0.0, %v6257
    %v6259 = vpop.f32.mrb[0].mxu0
    %6260 = vmatprep.mubr.f32.mxu0 0.0
    %6261 = vmatmul.mubr.f32.gmra.mrb[0].mxu0 %v5863
    %v6262 = vpop.f32.mrb[0].mxu0
    %v6263 = vadd.f32 0.0, %v6262
    %v6264 = vpop.f32.mrb[0].mxu0
    %6265 = vmatprep.mubr.f32.mxu0 0.0
    %6266 = vmatmul.mubr.f32.gmra.mrb[0].mxu0 %v5864
    %v6267 = vpop.f32.mrb[0].mxu0
    %v6268 = vadd.f32 0.0, %v6267
    %v6269 = vpop.f32.mrb[0].mxu0
    %6270 = vmatprep.mubr.f32.mxu0 0.0
    %6271 = vmatmul.mubr.f32.gmra.mrb[0].mxu0 %v5865
    %v6272 = vpop.f32.mrb[0].mxu0
    %v6273 = vadd.f32 0.0, %v6272
    %v6274 = vpop.f32.mrb[0].mxu0
    %6275 = vmatprep.mubr.f32.mxu0 0.0
    %6276 = vmatmul.mubr.f32.gmra.mrb[0].mxu0 %v5866
    %v6277 = vpop.f32.mrb[0].mxu0
    %v6278 = vadd.f32 0.0, %v6277
    %v6279 = vpop.f32.mrb[0].mxu0
    %6280 = vmatprep.mubr.f32.mxu0 0.0
    %6281 = vmatmul.mubr.f32.gmra.mrb[0].mxu0 %v5867
    %v6282 = vpop.f32.mrb[0].mxu0
    %v6283 = vadd.f32 0.0, %v6282
    %v6284 = vpop.f32.mrb[0].mxu0
    %6285 = vmatprep.mubr.f32.mxu0 0.0
    %6286 = vmatmul.mubr.f32.gmra.mrb[0].mxu0 %v5868
    %v6287 = vpop.f32.mrb[0].mxu0
    %v6288 = vadd.f32 0.0, %v6287
    %v6289 = vpop.f32.mrb[0].mxu0
    %6290 = vmatprep.mubr.f32.mxu0 0.0
    %6291 = vmatmul.mubr.f32.gmra.mrb[0].mxu0 %v5869
    %v6292 = vpop.f32.mrb[0].mxu0
    %v6293 = vadd.f32 0.0, %v6292
    %v6294 = vpop.f32.mrb[0].mxu0
    %6295 = vmatprep.mubr.f32.mxu0 0.0
    %6296 = vmatmul.mubr.f32.gmra.mrb[0].mxu0 %v5870
    %v6297 = vpop.f32.mrb[0].mxu0
    %v6298 = vadd.f32 0.0, %v6297
    %v6299 = vpop.f32.mrb[0].mxu0
    %6300 = vmatprep.mubr.f32.mxu0 0.0
    %6301 = vmatmul.mubr.f32.gmra.mrb[0].mxu0 %v5871
    %v6302 = vpop.f32.mrb[0].mxu0
    %v6303 = vadd.f32 0.0, %v6302
    %v6304 = vpop.f32.mrb[0].mxu0
    %6305 = vmatprep.mubr.f32.mxu0 0.0
    %6306 = vmatmul.mubr.f32.gmra.mrb[0].mxu0 %v5872
    %v6307 = vpop.f32.mrb[0].mxu0
    %v6308 = vadd.f32 0.0, %v6307
    %v6309 = vpop.f32.mrb[0].mxu0
    %6310 = vmatprep.mubr.f32.mxu0 0.0
    %6311 = vmatmul.mubr.f32.gmra.mrb[0].mxu0 %v5873
    %v6312 = vpop.f32.mrb[0].mxu0
    %v6313 = vadd.f32 0.0, %v6312
    %v6314 = vpop.f32.mrb[0].mxu0
    %6315 = vmatprep.mubr.f32.mxu0 0.0
    %6316 = vmatmul.mubr.f32.gmra.mrb[0].mxu0 %v5874
    %v6317 = vpop.f32.mrb[0].mxu0
    %v6318 = vadd.f32 0.0, %v6317
    %v6319 = vpop.f32.mrb[0].mxu0
    %6320 = vmatprep.mubr.f32.mxu0 0.0
    %6321 = vmatmul.mubr.f32.gmra.mrb[0].mxu0 %v5875
    %v6322 = vpop.f32.mrb[0].mxu0
    %v6323 = vadd.f32 0.0, %v6322
    %v6324 = vpop.f32.mrb[0].mxu0
    %6325 = vmatprep.mubr.f32.mxu0 0.0
    %6326 = vmatmul.mubr.f32.gmra.mrb[0].mxu0 %v5876
    %v6327 = vpop.f32.mrb[0].mxu0
    %v6328 = vadd.f32 0.0, %v6327
    %v6329 = vpop.f32.mrb[0].mxu0
    %6330 = vmatprep.mubr.f32.mxu0 0.0
    %6331 = vmatmul.mubr.f32.gmra.mrb[0].mxu0 %v5877
    %v6332 = vpop.f32.mrb[0].mxu0
    %v6333 = vadd.f32 0.0, %v6332
    %v6334 = vpop.f32.mrb[0].mxu0
    %6335 = vmatprep.mubr.f32.mxu0 0.0
    %6336 = vmatmul.mubr.f32.gmra.mrb[0].mxu0 %v5878
    %v6337 = vpop.f32.mrb[0].mxu0
    %v6338 = vadd.f32 0.0, %v6337
    %v6339 = vpop.f32.mrb[0].mxu0
    %6340 = vmatprep.mubr.f32.mxu0 0.0
    %6341 = vmatmul.mubr.f32.gmra.mrb[0].mxu0 %v5879
    %v6342 = vpop.f32.mrb[0].mxu0
    %v6343 = vadd.f32 0.0, %v6342
    %v6344 = vpop.f32.mrb[0].mxu0
    %6345 = vdwg.mxu0
    %v6346 = vadd.f32 %v5880, %v6028
    %v6347 = vadd.f32 %v5881, %v6033
    %v6348 = vadd.f32 %v5882, %v6038
    %v6349 = vadd.f32 %v5883, %v6043
    %v6350 = vadd.f32 %v5884, %v6048
    %v6351 = vadd.f32 %v5885, %v6053
    %v6352 = vadd.f32 %v5886, %v6058
    %v6353 = vadd.f32 %v5887, %v6063
    %v6354 = vadd.f32 %v5888, %v6068
    %v6355 = vadd.f32 %v5889, %v6073
    %v6356 = vadd.f32 %v5890, %v6078
    %v6357 = vadd.f32 %v5891, %v6083
    %v6358 = vadd.f32 %v5892, %v6088
    %v6359 = vadd.f32 %v5893, %v6093
    %v6360 = vadd.f32 %v5894, %v6098
    %v6361 = vadd.f32 %v5895, %v6103
    %v6362 = vadd.f32 %v5896, %v6108
    %v6363 = vadd.f32 %v5897, %v6113
    %v6364 = vadd.f32 %v5898, %v6118
    %v6365 = vadd.f32 %v5899, %v6123
    %v6366 = vadd.f32 %v5900, %v6128
    %v6367 = vadd.f32 %v5901, %v6133
    %v6368 = vadd.f32 %v5902, %v6138
    %v6369 = vadd.f32 %v5903, %v6143
    %v6370 = vadd.f32 %v5904, %v6148
    %v6371 = vadd.f32 %v5905, %v6153
    %v6372 = vadd.f32 %v5906, %v6158
    %v6373 = vadd.f32 %v5907, %v6163
    %v6374 = vadd.f32 %v5908, %v6168
    %v6375 = vadd.f32 %v5909, %v6173
    %v6376 = vadd.f32 %v5910, %v6178
    %v6377 = vadd.f32 %v5911, %v6183
    %v6378 = vadd.f32 %v5912, %v6188
    %v6379 = vadd.f32 %v5913, %v6193
    %v6380 = vadd.f32 %v5914, %v6198
    %v6381 = vadd.f32 %v5915, %v6203
    %v6382 = vadd.f32 %v5916, %v6208
    %v6383 = vadd.f32 %v5917, %v6213
    %v6384 = vadd.f32 %v5918, %v6218
    %v6385 = vadd.f32 %v5919, %v6223
    %v6386 = vadd.f32 %v5920, %v6228
    %v6387 = vadd.f32 %v5921, %v6233
    %v6388 = vadd.f32 %v5922, %v6238
    %v6389 = vadd.f32 %v5923, %v6243
    %v6390 = vadd.f32 %v5924, %v6248
    %v6391 = vadd.f32 %v5925, %v6253
    %v6392 = vadd.f32 %v5926, %v6258
    %v6393 = vadd.f32 %v5927, %v6263
    %v6394 = vadd.f32 %v5928, %v6268
    %v6395 = vadd.f32 %v5929, %v6273
    %v6396 = vadd.f32 %v5930, %v6278
    %v6397 = vadd.f32 %v5931, %v6283
    %v6398 = vadd.f32 %v5932, %v6288
    %v6399 = vadd.f32 %v5933, %v6293
    %v6400 = vadd.f32 %v5934, %v6298
    %v6401 = vadd.f32 %v5935, %v6303
    %v6402 = vadd.f32 %v5936, %v6308
    %v6403 = vadd.f32 %v5937, %v6313
    %v6404 = vadd.f32 %v5938, %v6318
    %v6405 = vadd.f32 %v5939, %v6323
    %v6406 = vadd.f32 %v5940, %v6328
    %v6407 = vadd.f32 %v5941, %v6333
    %v6408 = vadd.f32 %v5942, %v6338
    %v6409 = vadd.f32 %v5943, %v6343
    %6410 = vst [vmem:[#allocation3] sm:$0xff] %v6346
    %6411 = vst [vmem:[#allocation3 + $0x8] sm:$0xff] %v6347
    %6412 = vst [vmem:[#allocation3 + $0x10] sm:$0xff] %v6348
    %6413 = vst [vmem:[#allocation3 + $0x18] sm:$0xff] %v6349
    %6414 = vst [vmem:[#allocation3 + $0x20] sm:$0xff] %v6350
    %6415 = vst [vmem:[#allocation3 + $0x28] sm:$0xff] %v6351
    %6416 = vst [vmem:[#allocation3 + $0x30] sm:$0xff] %v6352
    %6417 = vst [vmem:[#allocation3 + $0x38] sm:$0xff] %v6353
    %6418 = vst [vmem:[#allocation3 + $0x40] sm:$0xff] %v6354
    %6419 = vst [vmem:[#allocation3 + $0x48] sm:$0xff] %v6355
    %6420 = vst [vmem:[#allocation3 + $0x50] sm:$0xff] %v6356
    %6421 = vst [vmem:[#allocation3 + $0x58] sm:$0xff] %v6357
    %6422 = vst [vmem:[#allocation3 + $0x60] sm:$0xff] %v6358
    %6423 = vst [vmem:[#allocation3 + $0x68] sm:$0xff] %v6359
    %6424 = vst [vmem:[#allocation3 + $0x70] sm:$0xff] %v6360
    %6425 = vst [vmem:[#allocation3 + $0x78] sm:$0xff] %v6361
    %6426 = vst [vmem:[#allocation3 + $0x80] sm:$0xff] %v6362
    %6427 = vst [vmem:[#allocation3 + $0x88] sm:$0xff] %v6363
    %6428 = vst [vmem:[#allocation3 + $0x90] sm:$0xff] %v6364
    %6429 = vst [vmem:[#allocation3 + $0x98] sm:$0xff] %v6365
    %6430 = vst [vmem:[#allocation3 + $0xa0] sm:$0xff] %v6366
    %6431 = vst [vmem:[#allocation3 + $0xa8] sm:$0xff] %v6367
    %6432 = vst [vmem:[#allocation3 + $0xb0] sm:$0xff] %v6368
    %6433 = vst [vmem:[#allocation3 + $0xb8] sm:$0xff] %v6369
    %6434 = vst [vmem:[#allocation3 + $0xc0] sm:$0xff] %v6370
    %6435 = vst [vmem:[#allocation3 + $0xc8] sm:$0xff] %v6371
    %6436 = vst [vmem:[#allocation3 + $0xd0] sm:$0xff] %v6372
    %6437 = vst [vmem:[#allocation3 + $0xd8] sm:$0xff] %v6373
    %6438 = vst [vmem:[#allocation3 + $0xe0] sm:$0xff] %v6374
    %6439 = vst [vmem:[#allocation3 + $0xe8] sm:$0xff] %v6375
    %6440 = vst [vmem:[#allocation3 + $0xf0] sm:$0xff] %v6376
    %6441 = vst [vmem:[#allocation3 + $0xf8] sm:$0xff] %v6377
    %6442 = vst [vmem:[#allocation3 + $0x100] sm:$0xff] %v6378
    %6443 = vst [vmem:[#allocation3 + $0x108] sm:$0xff] %v6379
    %6444 = vst [vmem:[#allocation3 + $0x110] sm:$0xff] %v6380
    %6445 = vst [vmem:[#allocation3 + $0x118] sm:$0xff] %v6381
    %6446 = vst [vmem:[#allocation3 + $0x120] sm:$0xff] %v6382
    %6447 = vst [vmem:[#allocation3 + $0x128] sm:$0xff] %v6383
    %6448 = vst [vmem:[#allocation3 + $0x130] sm:$0xff] %v6384
    %6449 = vst [vmem:[#allocation3 + $0x138] sm:$0xff] %v6385
    %6450 = vst [vmem:[#allocation3 + $0x140] sm:$0xff] %v6386
    %6451 = vst [vmem:[#allocation3 + $0x148] sm:$0xff] %v6387
    %6452 = vst [vmem:[#allocation3 + $0x150] sm:$0xff] %v6388
    %6453 = vst [vmem:[#allocation3 + $0x158] sm:$0xff] %v6389
    %6454 = vst [vmem:[#allocation3 + $0x160] sm:$0xff] %v6390
    %6455 = vst [vmem:[#allocation3 + $0x168] sm:$0xff] %v6391
    %6456 = vst [vmem:[#allocation3 + $0x170] sm:$0xff] %v6392
    %6457 = vst [vmem:[#allocation3 + $0x178] sm:$0xff] %v6393
    %6458 = vst [vmem:[#allocation3 + $0x180] sm:$0xff] %v6394
    %6459 = vst [vmem:[#allocation3 + $0x188] sm:$0xff] %v6395
    %6460 = vst [vmem:[#allocation3 + $0x190] sm:$0xff] %v6396
    %6461 = vst [vmem:[#allocation3 + $0x198] sm:$0xff] %v6397
    %6462 = vst [vmem:[#allocation3 + $0x1a0] sm:$0xff] %v6398
    %6463 = vst [vmem:[#allocation3 + $0x1a8] sm:$0xff] %v6399
    %6464 = vst [vmem:[#allocation3 + $0x1b0] sm:$0xff] %v6400
    %6465 = vst [vmem:[#allocation3 + $0x1b8] sm:$0xff] %v6401
    %6466 = vst [vmem:[#allocation3 + $0x1c0] sm:$0xff] %v6402
    %6467 = vst [vmem:[#allocation3 + $0x1c8] sm:$0xff] %v6403
    %6468 = vst [vmem:[#allocation3 + $0x1d0] sm:$0xff] %v6404
    %6469 = vst [vmem:[#allocation3 + $0x1d8] sm:$0xff] %v6405
    %6470 = vst [vmem:[#allocation3 + $0x1e0] sm:$0xff] %v6406
    %6471 = vst [vmem:[#allocation3 + $0x1e8] sm:$0xff] %v6407
    %6472 = vst [vmem:[#allocation3 + $0x1f0] sm:$0xff] %v6408
    %6473 = vst [vmem:[#allocation3 + $0x1f8] sm:$0xff] %v6409
    %v6474 = vld [vmem:[%s5157 + $0x2] sm:$0xff]
    %v6475 = vld [vmem:[%s5157 + $0xa] sm:$0xff]
    %v6476 = vld [vmem:[%s5157 + $0x1a] sm:$0xff]
    %v6477 = vld [vmem:[%s5157 + $0x22] sm:$0xff]
    %v6478 = vld [vmem:[%s5157 + $0x32] sm:$0xff]
    %v6479 = vld [vmem:[%s5157 + $0x3a] sm:$0xff]
    %v6480 = vld [vmem:[%s5157 + $0x4a] sm:$0xff]
    %v6481 = vld [vmem:[%s5157 + $0x52] sm:$0xff]
    %v6482 = vld [vmem:[%s5157 + $0x62] sm:$0xff]
    %v6483 = vld [vmem:[%s5157 + $0x6a] sm:$0xff]
    %v6484 = vld [vmem:[%s5157 + $0x7a] sm:$0xff]
    %v6485 = vld [vmem:[%s5157 + $0x82] sm:$0xff]
    %v6486 = vld [vmem:[%s5157 + $0x92] sm:$0xff]
    %v6487 = vld [vmem:[%s5157 + $0x9a] sm:$0xff]
    %v6488 = vld [vmem:[%s5157 + $0xaa] sm:$0xff]
    %v6489 = vld [vmem:[%s5157 + $0xb2] sm:$0xff]
    %v6490 = vld [vmem:[%s5157 + $0xc2] sm:$0xff]
    %v6491 = vld [vmem:[%s5157 + $0xca] sm:$0xff]
    %v6492 = vld [vmem:[%s5157 + $0xda] sm:$0xff]
    %v6493 = vld [vmem:[%s5157 + $0xe2] sm:$0xff]
    %v6494 = vld [vmem:[%s5157 + $0xf2] sm:$0xff]
    %v6495 = vld [vmem:[%s5157 + $0xfa] sm:$0xff]
    %v6496 = vld [vmem:[%s5157 + $0x10a] sm:$0xff]
    %v6497 = vld [vmem:[%s5157 + $0x112] sm:$0xff]
    %v6498 = vld [vmem:[%s5157 + $0x122] sm:$0xff]
    %v6499 = vld [vmem:[%s5157 + $0x12a] sm:$0xff]
    %v6500 = vld [vmem:[%s5157 + $0x13a] sm:$0xff]
    %v6501 = vld [vmem:[%s5157 + $0x142] sm:$0xff]
    %v6502 = vld [vmem:[%s5157 + $0x152] sm:$0xff]
    %v6503 = vld [vmem:[%s5157 + $0x15a] sm:$0xff]
    %v6504 = vld [vmem:[%s5157 + $0x16a] sm:$0xff]
    %v6505 = vld [vmem:[%s5157 + $0x172] sm:$0xff]
    %v6506 = vld [vmem:[%s5157 + $0x1b2] sm:$0xff]
    %v6507 = vld [vmem:[%s5157 + $0x1ba] sm:$0xff]
    %v6508 = vld [vmem:[%s5157 + $0x1ca] sm:$0xff]
    %v6509 = vld [vmem:[%s5157 + $0x1d2] sm:$0xff]
    %v6510 = vld [vmem:[%s5157 + $0x1e2] sm:$0xff]
    %v6511 = vld [vmem:[%s5157 + $0x1ea] sm:$0xff]
    %v6512 = vld [vmem:[%s5157 + $0x1fa] sm:$0xff]
    %v6513 = vld [vmem:[%s5157 + $0x202] sm:$0xff]
    %v6514 = vld [vmem:[%s5157 + $0x212] sm:$0xff]
    %v6515 = vld [vmem:[%s5157 + $0x21a] sm:$0xff]
    %v6516 = vld [vmem:[%s5157 + $0x22a] sm:$0xff]
    %v6517 = vld [vmem:[%s5157 + $0x232] sm:$0xff]
    %v6518 = vld [vmem:[%s5157 + $0x242] sm:$0xff]
    %v6519 = vld [vmem:[%s5157 + $0x24a] sm:$0xff]
    %v6520 = vld [vmem:[%s5157 + $0x25a] sm:$0xff]
    %v6521 = vld [vmem:[%s5157 + $0x262] sm:$0xff]
    %v6522 = vld [vmem:[%s5157 + $0x272] sm:$0xff]
    %v6523 = vld [vmem:[%s5157 + $0x27a] sm:$0xff]
    %v6524 = vld [vmem:[%s5157 + $0x28a] sm:$0xff]
    %v6525 = vld [vmem:[%s5157 + $0x292] sm:$0xff]
    %v6526 = vld [vmem:[%s5157 + $0x2a2] sm:$0xff]
    %v6527 = vld [vmem:[%s5157 + $0x2aa] sm:$0xff]
    %v6528 = vld [vmem:[%s5157 + $0x2ba] sm:$0xff]
    %v6529 = vld [vmem:[%s5157 + $0x2c2] sm:$0xff]
    %v6530 = vld [vmem:[%s5157 + $0x2d2] sm:$0xff]
    %v6531 = vld [vmem:[%s5157 + $0x2da] sm:$0xff]
    %v6532 = vld [vmem:[%s5157 + $0x2ea] sm:$0xff]
    %v6533 = vld [vmem:[%s5157 + $0x2f2] sm:$0xff]
    %v6534 = vld [vmem:[%s5157 + $0x302] sm:$0xff]
    %v6535 = vld [vmem:[%s5157 + $0x30a] sm:$0xff]
    %v6536 = vld [vmem:[%s5157 + $0x31a] sm:$0xff]
    %v6537 = vld [vmem:[%s5157 + $0x322] sm:$0xff]
    %v6538 = vld [vmem:[#allocation3] sm:$0xff]
    %v6539 = vld [vmem:[#allocation3 + $0x8] sm:$0xff]
    %v6540 = vld [vmem:[#allocation3 + $0x10] sm:$0xff]
    %v6541 = vld [vmem:[#allocation3 + $0x18] sm:$0xff]
    %v6542 = vld [vmem:[#allocation3 + $0x20] sm:$0xff]
    %v6543 = vld [vmem:[#allocation3 + $0x28] sm:$0xff]
    %v6544 = vld [vmem:[#allocation3 + $0x30] sm:$0xff]
    %v6545 = vld [vmem:[#allocation3 + $0x38] sm:$0xff]
    %v6546 = vld [vmem:[#allocation3 + $0x40] sm:$0xff]
    %v6547 = vld [vmem:[#allocation3 + $0x48] sm:$0xff]
    %v6548 = vld [vmem:[#allocation3 + $0x50] sm:$0xff]
    %v6549 = vld [vmem:[#allocation3 + $0x58] sm:$0xff]
    %v6550 = vld [vmem:[#allocation3 + $0x60] sm:$0xff]
    %v6551 = vld [vmem:[#allocation3 + $0x68] sm:$0xff]
    %v6552 = vld [vmem:[#allocation3 + $0x70] sm:$0xff]
    %v6553 = vld [vmem:[#allocation3 + $0x78] sm:$0xff]
    %v6554 = vld [vmem:[#allocation3 + $0x80] sm:$0xff]
    %v6555 = vld [vmem:[#allocation3 + $0x88] sm:$0xff]
    %v6556 = vld [vmem:[#allocation3 + $0x90] sm:$0xff]
    %v6557 = vld [vmem:[#allocation3 + $0x98] sm:$0xff]
    %v6558 = vld [vmem:[#allocation3 + $0xa0] sm:$0xff]
    %v6559 = vld [vmem:[#allocation3 + $0xa8] sm:$0xff]
    %v6560 = vld [vmem:[#allocation3 + $0xb0] sm:$0xff]
    %v6561 = vld [vmem:[#allocation3 + $0xb8] sm:$0xff]
    %v6562 = vld [vmem:[#allocation3 + $0xc0] sm:$0xff]
    %v6563 = vld [vmem:[#allocation3 + $0xc8] sm:$0xff]
    %v6564 = vld [vmem:[#allocation3 + $0xd0] sm:$0xff]
    %v6565 = vld [vmem:[#allocation3 + $0xd8] sm:$0xff]
    %v6566 = vld [vmem:[#allocation3 + $0xe0] sm:$0xff]
    %v6567 = vld [vmem:[#allocation3 + $0xe8] sm:$0xff]
    %v6568 = vld [vmem:[#allocation3 + $0xf0] sm:$0xff]
    %v6569 = vld [vmem:[#allocation3 + $0xf8] sm:$0xff]
    %v6570 = vld [vmem:[#allocation3 + $0x100] sm:$0xff]
    %v6571 = vld [vmem:[#allocation3 + $0x108] sm:$0xff]
    %v6572 = vld [vmem:[#allocation3 + $0x110] sm:$0xff]
    %v6573 = vld [vmem:[#allocation3 + $0x118] sm:$0xff]
    %v6574 = vld [vmem:[#allocation3 + $0x120] sm:$0xff]
    %v6575 = vld [vmem:[#allocation3 + $0x128] sm:$0xff]
    %v6576 = vld [vmem:[#allocation3 + $0x130] sm:$0xff]
    %v6577 = vld [vmem:[#allocation3 + $0x138] sm:$0xff]
    %v6578 = vld [vmem:[#allocation3 + $0x140] sm:$0xff]
    %v6579 = vld [vmem:[#allocation3 + $0x148] sm:$0xff]
    %v6580 = vld [vmem:[#allocation3 + $0x150] sm:$0xff]
    %v6581 = vld [vmem:[#allocation3 + $0x158] sm:$0xff]
    %v6582 = vld [vmem:[#allocation3 + $0x160] sm:$0xff]
    %v6583 = vld [vmem:[#allocation3 + $0x168] sm:$0xff]
    %v6584 = vld [vmem:[#allocation3 + $0x170] sm:$0xff]
    %v6585 = vld [vmem:[#allocation3 + $0x178] sm:$0xff]
    %v6586 = vld [vmem:[#allocation3 + $0x180] sm:$0xff]
    %v6587 = vld [vmem:[#allocation3 + $0x188] sm:$0xff]
    %v6588 = vld [vmem:[#allocation3 + $0x190] sm:$0xff]
    %v6589 = vld [vmem:[#allocation3 + $0x198] sm:$0xff]
    %v6590 = vld [vmem:[#allocation3 + $0x1a0] sm:$0xff]
    %v6591 = vld [vmem:[#allocation3 + $0x1a8] sm:$0xff]
    %v6592 = vld [vmem:[#allocation3 + $0x1b0] sm:$0xff]
    %v6593 = vld [vmem:[#allocation3 + $0x1b8] sm:$0xff]
    %v6594 = vld [vmem:[#allocation3 + $0x1c0] sm:$0xff]
    %v6595 = vld [vmem:[#allocation3 + $0x1c8] sm:$0xff]
    %v6596 = vld [vmem:[#allocation3 + $0x1d0] sm:$0xff]
    %v6597 = vld [vmem:[#allocation3 + $0x1d8] sm:$0xff]
    %v6598 = vld [vmem:[#allocation3 + $0x1e0] sm:$0xff]
    %v6599 = vld [vmem:[#allocation3 + $0x1e8] sm:$0xff]
    %v6600 = vld [vmem:[#allocation3 + $0x1f0] sm:$0xff]
    %v6601 = vld [vmem:[#allocation3 + $0x1f8] sm:$0xff]
    %s6602 = scalar_lea.vmem [#allocation9], 1024
    %v6603 = vld [vmem:[%s6602] sm:$0xff]
    %v6604 = vld [vmem:[%s6602 + $0x8] sm:$0xff]
    %v6605 = vld [vmem:[%s6602 + $0x10] sm:$0xff]
    %v6606 = vld [vmem:[%s6602 + $0x18] sm:$0xff]
    %v6607 = vld [vmem:[%s6602 + $0x20] sm:$0xff]
    %v6608 = vld [vmem:[%s6602 + $0x28] sm:$0xff]
    %v6609 = vld [vmem:[%s6602 + $0x30] sm:$0xff]
    %v6610 = vld [vmem:[%s6602 + $0x38] sm:$0xff]
    %v6611 = vld [vmem:[%s6602 + $0x40] sm:$0xff]
    %v6612 = vld [vmem:[%s6602 + $0x48] sm:$0xff]
    %v6613 = vld [vmem:[%s6602 + $0x50] sm:$0xff]
    %v6614 = vld [vmem:[%s6602 + $0x58] sm:$0xff]
    %v6615 = vld [vmem:[%s6602 + $0x60] sm:$0xff]
    %v6616 = vld [vmem:[%s6602 + $0x68] sm:$0xff]
    %v6617 = vld [vmem:[%s6602 + $0x70] sm:$0xff]
    %v6618 = vld [vmem:[%s6602 + $0x78] sm:$0xff]
    %6619 = vmatprep.subr.mxu0 0.0
    %6620 = vmatpush1.msra.mxu0 %v6603
    %6621 = vmatprep.subr.mxu0 0.0
    %6622 = vmatpush1.msra.mxu0 %v6604
    %6623 = vmatprep.subr.mxu0 0.0
    %6624 = vmatpush1.msra.mxu0 %v6605
    %6625 = vmatprep.subr.mxu0 0.0
    %6626 = vmatpush1.msra.mxu0 %v6606
    %6627 = vmatprep.subr.mxu0 0.0
    %6628 = vmatpush1.msra.mxu0 %v6607
    %6629 = vmatprep.subr.mxu0 0.0
    %6630 = vmatpush1.msra.mxu0 %v6608
    %6631 = vmatprep.subr.mxu0 0.0
    %6632 = vmatpush1.msra.mxu0 %v6609
    %6633 = vmatprep.subr.mxu0 0.0
    %6634 = vmatpush1.msra.mxu0 %v6610
    %6635 = vmatprep.subr.mxu0 0.0
    %6636 = vmatpush1.msra.mxu0 %v6611
    %6637 = vmatprep.subr.mxu0 0.0
    %6638 = vmatpush1.msra.mxu0 %v6612
    %6639 = vmatprep.subr.mxu0 0.0
    %6640 = vmatpush1.msra.mxu0 %v6613
    %6641 = vmatprep.subr.mxu0 0.0
    %6642 = vmatpush1.msra.mxu0 %v6614
    %6643 = vmatprep.subr.mxu0 0.0
    %6644 = vmatpush1.msra.mxu0 %v6615
    %6645 = vmatprep.subr.mxu0 0.0
    %6646 = vmatpush1.msra.mxu0 %v6616
    %6647 = vmatprep.subr.mxu0 0.0
    %6648 = vmatpush1.msra.mxu0 %v6617
    %6649 = vmatprep.subr.mxu0 0.0
    %6650 = vmatpush1.msra.mxu0 %v6618
    %6651 = vmatprep.subr.mxu0 0.0
    %6652 = vmatpush1.msra.mxu0 0.0
    %6653 = vmatprep.subr.mxu0 0.0
    %6654 = vmatpush1.msra.mxu0 0.0
    %6655 = vmatprep.subr.mxu0 0.0
    %6656 = vmatpush1.msra.mxu0 0.0
    %6657 = vmatprep.subr.mxu0 0.0
    %6658 = vmatpush1.msra.mxu0 0.0
    %6659 = vmatprep.subr.mxu0 0.0
    %6660 = vmatpush1.msra.mxu0 0.0
    %6661 = vmatprep.subr.mxu0 0.0
    %6662 = vmatpush1.msra.mxu0 0.0
    %6663 = vmatprep.subr.mxu0 0.0
    %6664 = vmatpush1.msra.mxu0 0.0
    %6665 = vmatprep.subr.mxu0 0.0
    %6666 = vmatpush1.msra.mxu0 0.0
    %6667 = vmatprep.subr.mxu0 0.0
    %6668 = vmatpush1.msra.mxu0 0.0
    %6669 = vmatprep.subr.mxu0 0.0
    %6670 = vmatpush1.msra.mxu0 0.0
    %6671 = vmatprep.subr.mxu0 0.0
    %6672 = vmatpush1.msra.mxu0 0.0
    %6673 = vmatprep.subr.mxu0 0.0
    %6674 = vmatpush1.msra.mxu0 0.0
    %6675 = vmatprep.subr.mxu0 0.0
    %6676 = vmatpush1.msra.mxu0 0.0
    %6677 = vmatprep.subr.mxu0 0.0
    %6678 = vmatpush1.msra.mxu0 0.0
    %6679 = vmatprep.subr.mxu0 0.0
    %6680 = vmatpush1.msra.mxu0 0.0
    %6681 = vmatprep.subr.mxu0 0.0
    %6682 = vmatpush1.msra.mxu0 0.0
    %6683 = vmatprep.mubr.f32.mxu0 0.0
    %6684 = vmatmul.mubr.f32.gmra.mrb[0].mxu0 %v6474
    %v6685 = vpop.f32.mrb[0].mxu0
    %v6686 = vadd.f32 0.0, %v6685
    %v6687 = vpop.f32.mrb[0].mxu0
    %6688 = vmatprep.mubr.f32.mxu0 0.0
    %6689 = vmatmul.mubr.f32.gmra.mrb[0].mxu0 %v6475
    %v6690 = vpop.f32.mrb[0].mxu0
    %v6691 = vadd.f32 0.0, %v6690
    %v6692 = vpop.f32.mrb[0].mxu0
    %6693 = vmatprep.mubr.f32.mxu0 0.0
    %6694 = vmatmul.mubr.f32.gmra.mrb[0].mxu0 %v6476
    %v6695 = vpop.f32.mrb[0].mxu0
    %v6696 = vadd.f32 0.0, %v6695
    %v6697 = vpop.f32.mrb[0].mxu0
    %6698 = vmatprep.mubr.f32.mxu0 0.0
    %6699 = vmatmul.mubr.f32.gmra.mrb[0].mxu0 %v6477
    %v6700 = vpop.f32.mrb[0].mxu0
    %v6701 = vadd.f32 0.0, %v6700
    %v6702 = vpop.f32.mrb[0].mxu0
    %6703 = vmatprep.mubr.f32.mxu0 0.0
    %6704 = vmatmul.mubr.f32.gmra.mrb[0].mxu0 %v6478
    %v6705 = vpop.f32.mrb[0].mxu0
    %v6706 = vadd.f32 0.0, %v6705
    %v6707 = vpop.f32.mrb[0].mxu0
    %6708 = vmatprep.mubr.f32.mxu0 0.0
    %6709 = vmatmul.mubr.f32.gmra.mrb[0].mxu0 %v6479
    %v6710 = vpop.f32.mrb[0].mxu0
    %v6711 = vadd.f32 0.0, %v6710
    %v6712 = vpop.f32.mrb[0].mxu0
    %6713 = vmatprep.mubr.f32.mxu0 0.0
    %6714 = vmatmul.mubr.f32.gmra.mrb[0].mxu0 %v6480
    %v6715 = vpop.f32.mrb[0].mxu0
    %v6716 = vadd.f32 0.0, %v6715
    %v6717 = vpop.f32.mrb[0].mxu0
    %6718 = vmatprep.mubr.f32.mxu0 0.0
    %6719 = vmatmul.mubr.f32.gmra.mrb[0].mxu0 %v6481
    %v6720 = vpop.f32.mrb[0].mxu0
    %v6721 = vadd.f32 0.0, %v6720
    %v6722 = vpop.f32.mrb[0].mxu0
    %6723 = vmatprep.mubr.f32.mxu0 0.0
    %6724 = vmatmul.mubr.f32.gmra.mrb[0].mxu0 %v6482
    %v6725 = vpop.f32.mrb[0].mxu0
    %v6726 = vadd.f32 0.0, %v6725
    %v6727 = vpop.f32.mrb[0].mxu0
    %6728 = vmatprep.mubr.f32.mxu0 0.0
    %6729 = vmatmul.mubr.f32.gmra.mrb[0].mxu0 %v6483
    %v6730 = vpop.f32.mrb[0].mxu0
    %v6731 = vadd.f32 0.0, %v6730
    %v6732 = vpop.f32.mrb[0].mxu0
    %6733 = vmatprep.mubr.f32.mxu0 0.0
    %6734 = vmatmul.mubr.f32.gmra.mrb[0].mxu0 %v6484
    %v6735 = vpop.f32.mrb[0].mxu0
    %v6736 = vadd.f32 0.0, %v6735
    %v6737 = vpop.f32.mrb[0].mxu0
    %6738 = vmatprep.mubr.f32.mxu0 0.0
    %6739 = vmatmul.mubr.f32.gmra.mrb[0].mxu0 %v6485
    %v6740 = vpop.f32.mrb[0].mxu0
    %v6741 = vadd.f32 0.0, %v6740
    %v6742 = vpop.f32.mrb[0].mxu0
    %6743 = vmatprep.mubr.f32.mxu0 0.0
    %6744 = vmatmul.mubr.f32.gmra.mrb[0].mxu0 %v6486
    %v6745 = vpop.f32.mrb[0].mxu0
    %v6746 = vadd.f32 0.0, %v6745
    %v6747 = vpop.f32.mrb[0].mxu0
    %6748 = vmatprep.mubr.f32.mxu0 0.0
    %6749 = vmatmul.mubr.f32.gmra.mrb[0].mxu0 %v6487
    %v6750 = vpop.f32.mrb[0].mxu0
    %v6751 = vadd.f32 0.0, %v6750
    %v6752 = vpop.f32.mrb[0].mxu0
    %6753 = vmatprep.mubr.f32.mxu0 0.0
    %6754 = vmatmul.mubr.f32.gmra.mrb[0].mxu0 %v6488
    %v6755 = vpop.f32.mrb[0].mxu0
    %v6756 = vadd.f32 0.0, %v6755
    %v6757 = vpop.f32.mrb[0].mxu0
    %6758 = vmatprep.mubr.f32.mxu0 0.0
    %6759 = vmatmul.mubr.f32.gmra.mrb[0].mxu0 %v6489
    %v6760 = vpop.f32.mrb[0].mxu0
    %v6761 = vadd.f32 0.0, %v6760
    %v6762 = vpop.f32.mrb[0].mxu0
    %6763 = vmatprep.mubr.f32.mxu0 0.0
    %6764 = vmatmul.mubr.f32.gmra.mrb[0].mxu0 %v6490
    %v6765 = vpop.f32.mrb[0].mxu0
    %v6766 = vadd.f32 0.0, %v6765
    %v6767 = vpop.f32.mrb[0].mxu0
    %6768 = vmatprep.mubr.f32.mxu0 0.0
    %6769 = vmatmul.mubr.f32.gmra.mrb[0].mxu0 %v6491
    %v6770 = vpop.f32.mrb[0].mxu0
    %v6771 = vadd.f32 0.0, %v6770
    %v6772 = vpop.f32.mrb[0].mxu0
    %6773 = vmatprep.mubr.f32.mxu0 0.0
    %6774 = vmatmul.mubr.f32.gmra.mrb[0].mxu0 %v6492
    %v6775 = vpop.f32.mrb[0].mxu0
    %v6776 = vadd.f32 0.0, %v6775
    %v6777 = vpop.f32.mrb[0].mxu0
    %6778 = vmatprep.mubr.f32.mxu0 0.0
    %6779 = vmatmul.mubr.f32.gmra.mrb[0].mxu0 %v6493
    %v6780 = vpop.f32.mrb[0].mxu0
    %v6781 = vadd.f32 0.0, %v6780
    %v6782 = vpop.f32.mrb[0].mxu0
    %6783 = vmatprep.mubr.f32.mxu0 0.0
    %6784 = vmatmul.mubr.f32.gmra.mrb[0].mxu0 %v6494
    %v6785 = vpop.f32.mrb[0].mxu0
    %v6786 = vadd.f32 0.0, %v6785
    %v6787 = vpop.f32.mrb[0].mxu0
    %6788 = vmatprep.mubr.f32.mxu0 0.0
    %6789 = vmatmul.mubr.f32.gmra.mrb[0].mxu0 %v6495
    %v6790 = vpop.f32.mrb[0].mxu0
    %v6791 = vadd.f32 0.0, %v6790
    %v6792 = vpop.f32.mrb[0].mxu0
    %6793 = vmatprep.mubr.f32.mxu0 0.0
    %6794 = vmatmul.mubr.f32.gmra.mrb[0].mxu0 %v6496
    %v6795 = vpop.f32.mrb[0].mxu0
    %v6796 = vadd.f32 0.0, %v6795
    %v6797 = vpop.f32.mrb[0].mxu0
    %6798 = vmatprep.mubr.f32.mxu0 0.0
    %6799 = vmatmul.mubr.f32.gmra.mrb[0].mxu0 %v6497
    %v6800 = vpop.f32.mrb[0].mxu0
    %v6801 = vadd.f32 0.0, %v6800
    %v6802 = vpop.f32.mrb[0].mxu0
    %6803 = vmatprep.mubr.f32.mxu0 0.0
    %6804 = vmatmul.mubr.f32.gmra.mrb[0].mxu0 %v6498
    %v6805 = vpop.f32.mrb[0].mxu0
    %v6806 = vadd.f32 0.0, %v6805
    %v6807 = vpop.f32.mrb[0].mxu0
    %6808 = vmatprep.mubr.f32.mxu0 0.0
    %6809 = vmatmul.mubr.f32.gmra.mrb[0].mxu0 %v6499
    %v6810 = vpop.f32.mrb[0].mxu0
    %v6811 = vadd.f32 0.0, %v6810
    %v6812 = vpop.f32.mrb[0].mxu0
    %6813 = vmatprep.mubr.f32.mxu0 0.0
    %6814 = vmatmul.mubr.f32.gmra.mrb[0].mxu0 %v6500
    %v6815 = vpop.f32.mrb[0].mxu0
    %v6816 = vadd.f32 0.0, %v6815
    %v6817 = vpop.f32.mrb[0].mxu0
    %6818 = vmatprep.mubr.f32.mxu0 0.0
    %6819 = vmatmul.mubr.f32.gmra.mrb[0].mxu0 %v6501
    %v6820 = vpop.f32.mrb[0].mxu0
    %v6821 = vadd.f32 0.0, %v6820
    %v6822 = vpop.f32.mrb[0].mxu0
    %6823 = vmatprep.mubr.f32.mxu0 0.0
    %6824 = vmatmul.mubr.f32.gmra.mrb[0].mxu0 %v6502
    %v6825 = vpop.f32.mrb[0].mxu0
    %v6826 = vadd.f32 0.0, %v6825
    %v6827 = vpop.f32.mrb[0].mxu0
    %6828 = vmatprep.mubr.f32.mxu0 0.0
    %6829 = vmatmul.mubr.f32.gmra.mrb[0].mxu0 %v6503
    %v6830 = vpop.f32.mrb[0].mxu0
    %v6831 = vadd.f32 0.0, %v6830
    %v6832 = vpop.f32.mrb[0].mxu0
    %6833 = vmatprep.mubr.f32.mxu0 0.0
    %6834 = vmatmul.mubr.f32.gmra.mrb[0].mxu0 %v6504
    %v6835 = vpop.f32.mrb[0].mxu0
    %v6836 = vadd.f32 0.0, %v6835
    %v6837 = vpop.f32.mrb[0].mxu0
    %6838 = vmatprep.mubr.f32.mxu0 0.0
    %6839 = vmatmul.mubr.f32.gmra.mrb[0].mxu0 %v6505
    %v6840 = vpop.f32.mrb[0].mxu0
    %v6841 = vadd.f32 0.0, %v6840
    %v6842 = vpop.f32.mrb[0].mxu0
    %6843 = vmatprep.mubr.f32.mxu0 0.0
    %6844 = vmatmul.mubr.f32.gmra.mrb[0].mxu0 %v6506
    %v6845 = vpop.f32.mrb[0].mxu0
    %v6846 = vadd.f32 0.0, %v6845
    %v6847 = vpop.f32.mrb[0].mxu0
    %6848 = vmatprep.mubr.f32.mxu0 0.0
    %6849 = vmatmul.mubr.f32.gmra.mrb[0].mxu0 %v6507
    %v6850 = vpop.f32.mrb[0].mxu0
    %v6851 = vadd.f32 0.0, %v6850
    %v6852 = vpop.f32.mrb[0].mxu0
    %6853 = vmatprep.mubr.f32.mxu0 0.0
    %6854 = vmatmul.mubr.f32.gmra.mrb[0].mxu0 %v6508
    %v6855 = vpop.f32.mrb[0].mxu0
    %v6856 = vadd.f32 0.0, %v6855
    %v6857 = vpop.f32.mrb[0].mxu0
    %6858 = vmatprep.mubr.f32.mxu0 0.0
    %6859 = vmatmul.mubr.f32.gmra.mrb[0].mxu0 %v6509
    %v6860 = vpop.f32.mrb[0].mxu0
    %v6861 = vadd.f32 0.0, %v6860
    %v6862 = vpop.f32.mrb[0].mxu0
    %6863 = vmatprep.mubr.f32.mxu0 0.0
    %6864 = vmatmul.mubr.f32.gmra.mrb[0].mxu0 %v6510
    %v6865 = vpop.f32.mrb[0].mxu0
    %v6866 = vadd.f32 0.0, %v6865
    %v6867 = vpop.f32.mrb[0].mxu0
    %6868 = vmatprep.mubr.f32.mxu0 0.0
    %6869 = vmatmul.mubr.f32.gmra.mrb[0].mxu0 %v6511
    %v6870 = vpop.f32.mrb[0].mxu0
    %v6871 = vadd.f32 0.0, %v6870
    %v6872 = vpop.f32.mrb[0].mxu0
    %6873 = vmatprep.mubr.f32.mxu0 0.0
    %6874 = vmatmul.mubr.f32.gmra.mrb[0].mxu0 %v6512
    %v6875 = vpop.f32.mrb[0].mxu0
    %v6876 = vadd.f32 0.0, %v6875
    %v6877 = vpop.f32.mrb[0].mxu0
    %6878 = vmatprep.mubr.f32.mxu0 0.0
    %6879 = vmatmul.mubr.f32.gmra.mrb[0].mxu0 %v6513
    %v6880 = vpop.f32.mrb[0].mxu0
    %v6881 = vadd.f32 0.0, %v6880
    %v6882 = vpop.f32.mrb[0].mxu0
    %6883 = vmatprep.mubr.f32.mxu0 0.0
    %6884 = vmatmul.mubr.f32.gmra.mrb[0].mxu0 %v6514
    %v6885 = vpop.f32.mrb[0].mxu0
    %v6886 = vadd.f32 0.0, %v6885
    %v6887 = vpop.f32.mrb[0].mxu0
    %6888 = vmatprep.mubr.f32.mxu0 0.0
    %6889 = vmatmul.mubr.f32.gmra.mrb[0].mxu0 %v6515
    %v6890 = vpop.f32.mrb[0].mxu0
    %v6891 = vadd.f32 0.0, %v6890
    %v6892 = vpop.f32.mrb[0].mxu0
    %6893 = vmatprep.mubr.f32.mxu0 0.0
    %6894 = vmatmul.mubr.f32.gmra.mrb[0].mxu0 %v6516
    %v6895 = vpop.f32.mrb[0].mxu0
    %v6896 = vadd.f32 0.0, %v6895
    %v6897 = vpop.f32.mrb[0].mxu0
    %6898 = vmatprep.mubr.f32.mxu0 0.0
    %6899 = vmatmul.mubr.f32.gmra.mrb[0].mxu0 %v6517
    %v6900 = vpop.f32.mrb[0].mxu0
    %v6901 = vadd.f32 0.0, %v6900
    %v6902 = vpop.f32.mrb[0].mxu0
    %6903 = vmatprep.mubr.f32.mxu0 0.0
    %6904 = vmatmul.mubr.f32.gmra.mrb[0].mxu0 %v6518
    %v6905 = vpop.f32.mrb[0].mxu0
    %v6906 = vadd.f32 0.0, %v6905
    %v6907 = vpop.f32.mrb[0].mxu0
    %6908 = vmatprep.mubr.f32.mxu0 0.0
    %6909 = vmatmul.mubr.f32.gmra.mrb[0].mxu0 %v6519
    %v6910 = vpop.f32.mrb[0].mxu0
    %v6911 = vadd.f32 0.0, %v6910
    %v6912 = vpop.f32.mrb[0].mxu0
    %6913 = vmatprep.mubr.f32.mxu0 0.0
    %6914 = vmatmul.mubr.f32.gmra.mrb[0].mxu0 %v6520
    %v6915 = vpop.f32.mrb[0].mxu0
    %v6916 = vadd.f32 0.0, %v6915
    %v6917 = vpop.f32.mrb[0].mxu0
    %6918 = vmatprep.mubr.f32.mxu0 0.0
    %6919 = vmatmul.mubr.f32.gmra.mrb[0].mxu0 %v6521
    %v6920 = vpop.f32.mrb[0].mxu0
    %v6921 = vadd.f32 0.0, %v6920
    %v6922 = vpop.f32.mrb[0].mxu0
    %6923 = vmatprep.mubr.f32.mxu0 0.0
    %6924 = vmatmul.mubr.f32.gmra.mrb[0].mxu0 %v6522
    %v6925 = vpop.f32.mrb[0].mxu0
    %v6926 = vadd.f32 0.0, %v6925
    %v6927 = vpop.f32.mrb[0].mxu0
    %6928 = vmatprep.mubr.f32.mxu0 0.0
    %6929 = vmatmul.mubr.f32.gmra.mrb[0].mxu0 %v6523
    %v6930 = vpop.f32.mrb[0].mxu0
    %v6931 = vadd.f32 0.0, %v6930
    %v6932 = vpop.f32.mrb[0].mxu0
    %6933 = vmatprep.mubr.f32.mxu0 0.0
    %6934 = vmatmul.mubr.f32.gmra.mrb[0].mxu0 %v6524
    %v6935 = vpop.f32.mrb[0].mxu0
    %v6936 = vadd.f32 0.0, %v6935
    %v6937 = vpop.f32.mrb[0].mxu0
    %6938 = vmatprep.mubr.f32.mxu0 0.0
    %6939 = vmatmul.mubr.f32.gmra.mrb[0].mxu0 %v6525
    %v6940 = vpop.f32.mrb[0].mxu0
    %v6941 = vadd.f32 0.0, %v6940
    %v6942 = vpop.f32.mrb[0].mxu0
    %6943 = vmatprep.mubr.f32.mxu0 0.0
    %6944 = vmatmul.mubr.f32.gmra.mrb[0].mxu0 %v6526
    %v6945 = vpop.f32.mrb[0].mxu0
    %v6946 = vadd.f32 0.0, %v6945
    %v6947 = vpop.f32.mrb[0].mxu0
    %6948 = vmatprep.mubr.f32.mxu0 0.0
    %6949 = vmatmul.mubr.f32.gmra.mrb[0].mxu0 %v6527
    %v6950 = vpop.f32.mrb[0].mxu0
    %v6951 = vadd.f32 0.0, %v6950
    %v6952 = vpop.f32.mrb[0].mxu0
    %6953 = vmatprep.mubr.f32.mxu0 0.0
    %6954 = vmatmul.mubr.f32.gmra.mrb[0].mxu0 %v6528
    %v6955 = vpop.f32.mrb[0].mxu0
    %v6956 = vadd.f32 0.0, %v6955
    %v6957 = vpop.f32.mrb[0].mxu0
    %6958 = vmatprep.mubr.f32.mxu0 0.0
    %6959 = vmatmul.mubr.f32.gmra.mrb[0].mxu0 %v6529
    %v6960 = vpop.f32.mrb[0].mxu0
    %v6961 = vadd.f32 0.0, %v6960
    %v6962 = vpop.f32.mrb[0].mxu0
    %6963 = vmatprep.mubr.f32.mxu0 0.0
    %6964 = vmatmul.mubr.f32.gmra.mrb[0].mxu0 %v6530
    %v6965 = vpop.f32.mrb[0].mxu0
    %v6966 = vadd.f32 0.0, %v6965
    %v6967 = vpop.f32.mrb[0].mxu0
    %6968 = vmatprep.mubr.f32.mxu0 0.0
    %6969 = vmatmul.mubr.f32.gmra.mrb[0].mxu0 %v6531
    %v6970 = vpop.f32.mrb[0].mxu0
    %v6971 = vadd.f32 0.0, %v6970
    %v6972 = vpop.f32.mrb[0].mxu0
    %6973 = vmatprep.mubr.f32.mxu0 0.0
    %6974 = vmatmul.mubr.f32.gmra.mrb[0].mxu0 %v6532
    %v6975 = vpop.f32.mrb[0].mxu0
    %v6976 = vadd.f32 0.0, %v6975
    %v6977 = vpop.f32.mrb[0].mxu0
    %6978 = vmatprep.mubr.f32.mxu0 0.0
    %6979 = vmatmul.mubr.f32.gmra.mrb[0].mxu0 %v6533
    %v6980 = vpop.f32.mrb[0].mxu0
    %v6981 = vadd.f32 0.0, %v6980
    %v6982 = vpop.f32.mrb[0].mxu0
    %6983 = vmatprep.mubr.f32.mxu0 0.0
    %6984 = vmatmul.mubr.f32.gmra.mrb[0].mxu0 %v6534
    %v6985 = vpop.f32.mrb[0].mxu0
    %v6986 = vadd.f32 0.0, %v6985
    %v6987 = vpop.f32.mrb[0].mxu0
    %6988 = vmatprep.mubr.f32.mxu0 0.0
    %6989 = vmatmul.mubr.f32.gmra.mrb[0].mxu0 %v6535
    %v6990 = vpop.f32.mrb[0].mxu0
    %v6991 = vadd.f32 0.0, %v6990
    %v6992 = vpop.f32.mrb[0].mxu0
    %6993 = vmatprep.mubr.f32.mxu0 0.0
    %6994 = vmatmul.mubr.f32.gmra.mrb[0].mxu0 %v6536
    %v6995 = vpop.f32.mrb[0].mxu0
    %v6996 = vadd.f32 0.0, %v6995
    %v6997 = vpop.f32.mrb[0].mxu0
    %6998 = vmatprep.mubr.f32.mxu0 0.0
    %6999 = vmatmul.mubr.f32.gmra.mrb[0].mxu0 %v6537
    %v7000 = vpop.f32.mrb[0].mxu0
    %v7001 = vadd.f32 0.0, %v7000
    %v7002 = vpop.f32.mrb[0].mxu0
    %7003 = vdwg.mxu0
    %v7004 = vadd.f32 %v6538, %v6686
    %v7005 = vadd.f32 %v6539, %v6691
    %v7006 = vadd.f32 %v6540, %v6696
    %v7007 = vadd.f32 %v6541, %v6701
    %v7008 = vadd.f32 %v6542, %v6706
    %v7009 = vadd.f32 %v6543, %v6711
    %v7010 = vadd.f32 %v6544, %v6716
    %v7011 = vadd.f32 %v6545, %v6721
    %v7012 = vadd.f32 %v6546, %v6726
    %v7013 = vadd.f32 %v6547, %v6731
    %v7014 = vadd.f32 %v6548, %v6736
    %v7015 = vadd.f32 %v6549, %v6741
    %v7016 = vadd.f32 %v6550, %v6746
    %v7017 = vadd.f32 %v6551, %v6751
    %v7018 = vadd.f32 %v6552, %v6756
    %v7019 = vadd.f32 %v6553, %v6761
    %v7020 = vadd.f32 %v6554, %v6766
    %v7021 = vadd.f32 %v6555, %v6771
    %v7022 = vadd.f32 %v6556, %v6776
    %v7023 = vadd.f32 %v6557, %v6781
    %v7024 = vadd.f32 %v6558, %v6786
    %v7025 = vadd.f32 %v6559, %v6791
    %v7026 = vadd.f32 %v6560, %v6796
    %v7027 = vadd.f32 %v6561, %v6801
    %v7028 = vadd.f32 %v6562, %v6806
    %v7029 = vadd.f32 %v6563, %v6811
    %v7030 = vadd.f32 %v6564, %v6816
    %v7031 = vadd.f32 %v6565, %v6821
    %v7032 = vadd.f32 %v6566, %v6826
    %v7033 = vadd.f32 %v6567, %v6831
    %v7034 = vadd.f32 %v6568, %v6836
    %v7035 = vadd.f32 %v6569, %v6841
    %v7036 = vadd.f32 %v6570, %v6846
    %v7037 = vadd.f32 %v6571, %v6851
    %v7038 = vadd.f32 %v6572, %v6856
    %v7039 = vadd.f32 %v6573, %v6861
    %v7040 = vadd.f32 %v6574, %v6866
    %v7041 = vadd.f32 %v6575, %v6871
    %v7042 = vadd.f32 %v6576, %v6876
    %v7043 = vadd.f32 %v6577, %v6881
    %v7044 = vadd.f32 %v6578, %v6886
    %v7045 = vadd.f32 %v6579, %v6891
    %v7046 = vadd.f32 %v6580, %v6896
    %v7047 = vadd.f32 %v6581, %v6901
    %v7048 = vadd.f32 %v6582, %v6906
    %v7049 = vadd.f32 %v6583, %v6911
    %v7050 = vadd.f32 %v6584, %v6916
    %v7051 = vadd.f32 %v6585, %v6921
    %v7052 = vadd.f32 %v6586, %v6926
    %v7053 = vadd.f32 %v6587, %v6931
    %v7054 = vadd.f32 %v6588, %v6936
    %v7055 = vadd.f32 %v6589, %v6941
    %v7056 = vadd.f32 %v6590, %v6946
    %v7057 = vadd.f32 %v6591, %v6951
    %v7058 = vadd.f32 %v6592, %v6956
    %v7059 = vadd.f32 %v6593, %v6961
    %v7060 = vadd.f32 %v6594, %v6966
    %v7061 = vadd.f32 %v6595, %v6971
    %v7062 = vadd.f32 %v6596, %v6976
    %v7063 = vadd.f32 %v6597, %v6981
    %v7064 = vadd.f32 %v6598, %v6986
    %v7065 = vadd.f32 %v6599, %v6991
    %v7066 = vadd.f32 %v6600, %v6996
    %v7067 = vadd.f32 %v6601, %v7001
    %7068 = vst [vmem:[#allocation3] sm:$0xff] %v7004
    %7069 = vst [vmem:[#allocation3 + $0x8] sm:$0xff] %v7005
    %7070 = vst [vmem:[#allocation3 + $0x10] sm:$0xff] %v7006
    %7071 = vst [vmem:[#allocation3 + $0x18] sm:$0xff] %v7007
    %7072 = vst [vmem:[#allocation3 + $0x20] sm:$0xff] %v7008
    %7073 = vst [vmem:[#allocation3 + $0x28] sm:$0xff] %v7009
    %7074 = vst [vmem:[#allocation3 + $0x30] sm:$0xff] %v7010
    %7075 = vst [vmem:[#allocation3 + $0x38] sm:$0xff] %v7011
    %7076 = vst [vmem:[#allocation3 + $0x40] sm:$0xff] %v7012
    %7077 = vst [vmem:[#allocation3 + $0x48] sm:$0xff] %v7013
    %7078 = vst [vmem:[#allocation3 + $0x50] sm:$0xff] %v7014
    %7079 = vst [vmem:[#allocation3 + $0x58] sm:$0xff] %v7015
    %7080 = vst [vmem:[#allocation3 + $0x60] sm:$0xff] %v7016
    %7081 = vst [vmem:[#allocation3 + $0x68] sm:$0xff] %v7017
    %7082 = vst [vmem:[#allocation3 + $0x70] sm:$0xff] %v7018
    %7083 = vst [vmem:[#allocation3 + $0x78] sm:$0xff] %v7019
    %7084 = vst [vmem:[#allocation3 + $0x80] sm:$0xff] %v7020
    %7085 = vst [vmem:[#allocation3 + $0x88] sm:$0xff] %v7021
    %7086 = vst [vmem:[#allocation3 + $0x90] sm:$0xff] %v7022
    %7087 = vst [vmem:[#allocation3 + $0x98] sm:$0xff] %v7023
    %7088 = vst [vmem:[#allocation3 + $0xa0] sm:$0xff] %v7024
    %7089 = vst [vmem:[#allocation3 + $0xa8] sm:$0xff] %v7025
    %7090 = vst [vmem:[#allocation3 + $0xb0] sm:$0xff] %v7026
    %7091 = vst [vmem:[#allocation3 + $0xb8] sm:$0xff] %v7027
    %7092 = vst [vmem:[#allocation3 + $0xc0] sm:$0xff] %v7028
    %7093 = vst [vmem:[#allocation3 + $0xc8] sm:$0xff] %v7029
    %7094 = vst [vmem:[#allocation3 + $0xd0] sm:$0xff] %v7030
    %7095 = vst [vmem:[#allocation3 + $0xd8] sm:$0xff] %v7031
    %7096 = vst [vmem:[#allocation3 + $0xe0] sm:$0xff] %v7032
    %7097 = vst [vmem:[#allocation3 + $0xe8] sm:$0xff] %v7033
    %7098 = vst [vmem:[#allocation3 + $0xf0] sm:$0xff] %v7034
    %7099 = vst [vmem:[#allocation3 + $0xf8] sm:$0xff] %v7035
    %7100 = vst [vmem:[#allocation3 + $0x100] sm:$0xff] %v7036
    %7101 = vst [vmem:[#allocation3 + $0x108] sm:$0xff] %v7037
    %7102 = vst [vmem:[#allocation3 + $0x110] sm:$0xff] %v7038
    %7103 = vst [vmem:[#allocation3 + $0x118] sm:$0xff] %v7039
    %7104 = vst [vmem:[#allocation3 + $0x120] sm:$0xff] %v7040
    %7105 = vst [vmem:[#allocation3 + $0x128] sm:$0xff] %v7041
    %7106 = vst [vmem:[#allocation3 + $0x130] sm:$0xff] %v7042
    %7107 = vst [vmem:[#allocation3 + $0x138] sm:$0xff] %v7043
    %7108 = vst [vmem:[#allocation3 + $0x140] sm:$0xff] %v7044
    %7109 = vst [vmem:[#allocation3 + $0x148] sm:$0xff] %v7045
    %7110 = vst [vmem:[#allocation3 + $0x150] sm:$0xff] %v7046
    %7111 = vst [vmem:[#allocation3 + $0x158] sm:$0xff] %v7047
    %7112 = vst [vmem:[#allocation3 + $0x160] sm:$0xff] %v7048
    %7113 = vst [vmem:[#allocation3 + $0x168] sm:$0xff] %v7049
    %7114 = vst [vmem:[#allocation3 + $0x170] sm:$0xff] %v7050
    %7115 = vst [vmem:[#allocation3 + $0x178] sm:$0xff] %v7051
    %7116 = vst [vmem:[#allocation3 + $0x180] sm:$0xff] %v7052
    %7117 = vst [vmem:[#allocation3 + $0x188] sm:$0xff] %v7053
    %7118 = vst [vmem:[#allocation3 + $0x190] sm:$0xff] %v7054
    %7119 = vst [vmem:[#allocation3 + $0x198] sm:$0xff] %v7055
    %7120 = vst [vmem:[#allocation3 + $0x1a0] sm:$0xff] %v7056
    %7121 = vst [vmem:[#allocation3 + $0x1a8] sm:$0xff] %v7057
    %7122 = vst [vmem:[#allocation3 + $0x1b0] sm:$0xff] %v7058
    %7123 = vst [vmem:[#allocation3 + $0x1b8] sm:$0xff] %v7059
    %7124 = vst [vmem:[#allocation3 + $0x1c0] sm:$0xff] %v7060
    %7125 = vst [vmem:[#allocation3 + $0x1c8] sm:$0xff] %v7061
    %7126 = vst [vmem:[#allocation3 + $0x1d0] sm:$0xff] %v7062
    %7127 = vst [vmem:[#allocation3 + $0x1d8] sm:$0xff] %v7063
    %7128 = vst [vmem:[#allocation3 + $0x1e0] sm:$0xff] %v7064
    %7129 = vst [vmem:[#allocation3 + $0x1e8] sm:$0xff] %v7065
    %7130 = vst [vmem:[#allocation3 + $0x1f0] sm:$0xff] %v7066
    %7131 = vst [vmem:[#allocation3 + $0x1f8] sm:$0xff] %v7067
    %v7132 = vld [vmem:[#allocation3] sm:$0xff]
    %v7133 = vld [vmem:[#allocation3 + $0x8] sm:$0xff]
    %v7134 = vld [vmem:[#allocation3 + $0x10] sm:$0xff]
    %v7135 = vld [vmem:[#allocation3 + $0x18] sm:$0xff]
    %v7136 = vld [vmem:[#allocation3 + $0x20] sm:$0xff]
    %v7137 = vld [vmem:[#allocation3 + $0x28] sm:$0xff]
    %v7138 = vld [vmem:[#allocation3 + $0x30] sm:$0xff]
    %v7139 = vld [vmem:[#allocation3 + $0x38] sm:$0xff]
    %v7140 = vld [vmem:[#allocation3 + $0x40] sm:$0xff]
    %v7141 = vld [vmem:[#allocation3 + $0x48] sm:$0xff]
    %v7142 = vld [vmem:[#allocation3 + $0x50] sm:$0xff]
    %v7143 = vld [vmem:[#allocation3 + $0x58] sm:$0xff]
    %v7144 = vld [vmem:[#allocation3 + $0x60] sm:$0xff]
    %v7145 = vld [vmem:[#allocation3 + $0x68] sm:$0xff]
    %v7146 = vld [vmem:[#allocation3 + $0x70] sm:$0xff]
    %v7147 = vld [vmem:[#allocation3 + $0x78] sm:$0xff]
    %v7148 = vld [vmem:[#allocation3 + $0x80] sm:$0xff]
    %v7149 = vld [vmem:[#allocation3 + $0x88] sm:$0xff]
    %v7150 = vld [vmem:[#allocation3 + $0x90] sm:$0xff]
    %v7151 = vld [vmem:[#allocation3 + $0x98] sm:$0xff]
    %v7152 = vld [vmem:[#allocation3 + $0xa0] sm:$0xff]
    %v7153 = vld [vmem:[#allocation3 + $0xa8] sm:$0xff]
    %v7154 = vld [vmem:[#allocation3 + $0xb0] sm:$0xff]
    %v7155 = vld [vmem:[#allocation3 + $0xb8] sm:$0xff]
    %v7156 = vld [vmem:[#allocation3 + $0xc0] sm:$0xff]
    %v7157 = vld [vmem:[#allocation3 + $0xc8] sm:$0xff]
    %v7158 = vld [vmem:[#allocation3 + $0xd0] sm:$0xff]
    %v7159 = vld [vmem:[#allocation3 + $0xd8] sm:$0xff]
    %v7160 = vld [vmem:[#allocation3 + $0xe0] sm:$0xff]
    %v7161 = vld [vmem:[#allocation3 + $0xe8] sm:$0xff]
    %v7162 = vld [vmem:[#allocation3 + $0xf0] sm:$0xff]
    %v7163 = vld [vmem:[#allocation3 + $0xf8] sm:$0xff]
    %v7164 = vld [vmem:[#allocation3 + $0x100] sm:$0xff]
    %v7165 = vld [vmem:[#allocation3 + $0x108] sm:$0xff]
    %v7166 = vld [vmem:[#allocation3 + $0x110] sm:$0xff]
    %v7167 = vld [vmem:[#allocation3 + $0x118] sm:$0xff]
    %v7168 = vld [vmem:[#allocation3 + $0x120] sm:$0xff]
    %v7169 = vld [vmem:[#allocation3 + $0x128] sm:$0xff]
    %v7170 = vld [vmem:[#allocation3 + $0x130] sm:$0xff]
    %v7171 = vld [vmem:[#allocation3 + $0x138] sm:$0xff]
    %v7172 = vld [vmem:[#allocation3 + $0x140] sm:$0xff]
    %v7173 = vld [vmem:[#allocation3 + $0x148] sm:$0xff]
    %v7174 = vld [vmem:[#allocation3 + $0x150] sm:$0xff]
    %v7175 = vld [vmem:[#allocation3 + $0x158] sm:$0xff]
    %v7176 = vld [vmem:[#allocation3 + $0x160] sm:$0xff]
    %v7177 = vld [vmem:[#allocation3 + $0x168] sm:$0xff]
    %v7178 = vld [vmem:[#allocation3 + $0x170] sm:$0xff]
    %v7179 = vld [vmem:[#allocation3 + $0x178] sm:$0xff]
    %v7180 = vld [vmem:[#allocation3 + $0x180] sm:$0xff]
    %v7181 = vld [vmem:[#allocation3 + $0x188] sm:$0xff]
    %v7182 = vld [vmem:[#allocation3 + $0x190] sm:$0xff]
    %v7183 = vld [vmem:[#allocation3 + $0x198] sm:$0xff]
    %v7184 = vld [vmem:[#allocation3 + $0x1a0] sm:$0xff]
    %v7185 = vld [vmem:[#allocation3 + $0x1a8] sm:$0xff]
    %v7186 = vld [vmem:[#allocation3 + $0x1b0] sm:$0xff]
    %v7187 = vld [vmem:[#allocation3 + $0x1b8] sm:$0xff]
    %v7188 = vld [vmem:[#allocation3 + $0x1c0] sm:$0xff]
    %v7189 = vld [vmem:[#allocation3 + $0x1c8] sm:$0xff]
    %v7190 = vld [vmem:[#allocation3 + $0x1d0] sm:$0xff]
    %v7191 = vld [vmem:[#allocation3 + $0x1d8] sm:$0xff]
    %v7192 = vld [vmem:[#allocation3 + $0x1e0] sm:$0xff]
    %v7193 = vld [vmem:[#allocation3 + $0x1e8] sm:$0xff]
    %v7194 = vld [vmem:[#allocation3 + $0x1f0] sm:$0xff]
    %v7195 = vld [vmem:[#allocation3 + $0x1f8] sm:$0xff]
    %v7196 = vld [vmem:[%s6] sm:$0x1]
    %v7197 = vld [vmem:[%s7] sm:$0x1]
    %v7198 = vadd.f32 %v7132, %v7133
    %v7199 = vadd.f32 %v7198, %v7134
    %v7200 = vadd.f32 %v7199, %v7135
    %v7201 = vadd.f32 %v7200, %v7136
    %v7202 = vadd.f32 %v7201, %v7137
    %v7203 = vadd.f32 %v7202, %v7138
    %v7204 = vadd.f32 %v7203, %v7139
    %v7205 = vadd.f32 %v7204, %v7140
    %v7206 = vadd.f32 %v7205, %v7141
    %v7207 = vadd.f32 %v7206, %v7142
    %v7208 = vadd.f32 %v7207, %v7143
    %v7209 = vadd.f32 %v7208, %v7144
    %v7210 = vadd.f32 %v7209, %v7145
    %v7211 = vadd.f32 %v7210, %v7146
    %v7212 = vadd.f32 %v7211, %v7147
    %v7213 = vadd.f32 %v7212, %v7148
    %v7214 = vadd.f32 %v7213, %v7149
    %v7215 = vadd.f32 %v7214, %v7150
    %v7216 = vadd.f32 %v7215, %v7151
    %v7217 = vadd.f32 %v7216, %v7152
    %v7218 = vadd.f32 %v7217, %v7153
    %v7219 = vadd.f32 %v7218, %v7154
    %v7220 = vadd.f32 %v7219, %v7155
    %v7221 = vadd.f32 %v7220, %v7156
    %v7222 = vadd.f32 %v7221, %v7157
    %v7223 = vadd.f32 %v7222, %v7158
    %v7224 = vadd.f32 %v7223, %v7159
    %v7225 = vadd.f32 %v7224, %v7160
    %v7226 = vadd.f32 %v7225, %v7161
    %v7227 = vadd.f32 %v7226, %v7162
    %v7228 = vadd.f32 %v7227, %v7163
    %v7229 = vadd.f32 %v7228, %v7164
    %v7230 = vadd.f32 %v7229, %v7165
    %v7231 = vadd.f32 %v7230, %v7166
    %v7232 = vadd.f32 %v7231, %v7167
    %v7233 = vadd.f32 %v7232, %v7168
    %v7234 = vadd.f32 %v7233, %v7169
    %v7235 = vadd.f32 %v7234, %v7170
    %v7236 = vadd.f32 %v7235, %v7171
    %v7237 = vadd.f32 %v7236, %v7172
    %v7238 = vadd.f32 %v7237, %v7173
    %v7239 = vadd.f32 %v7238, %v7174
    %v7240 = vadd.f32 %v7239, %v7175
    %v7241 = vadd.f32 %v7240, %v7176
    %v7242 = vadd.f32 %v7241, %v7177
    %v7243 = vadd.f32 %v7242, %v7178
    %v7244 = vadd.f32 %v7243, %v7179
    %v7245 = vadd.f32 %v7244, %v7180
    %v7246 = vadd.f32 %v7245, %v7181
    %v7247 = vadd.f32 %v7246, %v7182
    %v7248 = vadd.f32 %v7247, %v7183
    %v7249 = vadd.f32 %v7248, %v7184
    %v7250 = vadd.f32 %v7249, %v7185
    %v7251 = vadd.f32 %v7250, %v7186
    %v7252 = vadd.f32 %v7251, %v7187
    %v7253 = vadd.f32 %v7252, %v7188
    %v7254 = vadd.f32 %v7253, %v7189
    %v7255 = vadd.f32 %v7254, %v7190
    %v7256 = vadd.f32 %v7255, %v7191
    %v7257 = vadd.f32 %v7256, %v7192
    %v7258 = vadd.f32 %v7257, %v7193
    %v7259 = vadd.f32 %v7258, %v7194
    %v7260 = vadd.f32 %v7259, %v7195
    %v7261 = vrot.slane %v7260, 4
    %v7262 = vadd.f32 %v7260, %v7261
    %v7263 = vrot.slane %v7262, 2
    %v7264 = vadd.f32 %v7262, %v7263
    %v7265 = vrot.slane %v7264, 1
    %v7266 = vadd.f32 %v7264, %v7265
    %v7267 = vmul.f32 %v7132, %v7132
    %v7268 = vmul.f32 %v7133, %v7133
    %v7269 = vmul.f32 %v7134, %v7134
    %v7270 = vmul.f32 %v7135, %v7135
    %v7271 = vmul.f32 %v7136, %v7136
    %v7272 = vmul.f32 %v7137, %v7137
    %v7273 = vmul.f32 %v7138, %v7138
    %v7274 = vmul.f32 %v7139, %v7139
    %v7275 = vmul.f32 %v7140, %v7140
    %v7276 = vmul.f32 %v7141, %v7141
    %v7277 = vmul.f32 %v7142, %v7142
    %v7278 = vmul.f32 %v7143, %v7143
    %v7279 = vmul.f32 %v7144, %v7144
    %v7280 = vmul.f32 %v7145, %v7145
    %v7281 = vmul.f32 %v7146, %v7146
    %v7282 = vmul.f32 %v7147, %v7147
    %v7283 = vmul.f32 %v7148, %v7148
    %v7284 = vmul.f32 %v7149, %v7149
    %v7285 = vmul.f32 %v7150, %v7150
    %v7286 = vmul.f32 %v7151, %v7151
    %v7287 = vmul.f32 %v7152, %v7152
    %v7288 = vmul.f32 %v7153, %v7153
    %v7289 = vmul.f32 %v7154, %v7154
    %v7290 = vmul.f32 %v7155, %v7155
    %v7291 = vmul.f32 %v7156, %v7156
    %v7292 = vmul.f32 %v7157, %v7157
    %v7293 = vmul.f32 %v7158, %v7158
    %v7294 = vmul.f32 %v7159, %v7159
    %v7295 = vmul.f32 %v7160, %v7160
    %v7296 = vmul.f32 %v7161, %v7161
    %v7297 = vmul.f32 %v7162, %v7162
    %v7298 = vmul.f32 %v7163, %v7163
    %v7299 = vmul.f32 %v7164, %v7164
    %v7300 = vmul.f32 %v7165, %v7165
    %v7301 = vmul.f32 %v7166, %v7166
    %v7302 = vmul.f32 %v7167, %v7167
    %v7303 = vmul.f32 %v7168, %v7168
    %v7304 = vmul.f32 %v7169, %v7169
    %v7305 = vmul.f32 %v7170, %v7170
    %v7306 = vmul.f32 %v7171, %v7171
    %v7307 = vmul.f32 %v7172, %v7172
    %v7308 = vmul.f32 %v7173, %v7173
    %v7309 = vmul.f32 %v7174, %v7174
    %v7310 = vmul.f32 %v7175, %v7175
    %v7311 = vmul.f32 %v7176, %v7176
    %v7312 = vmul.f32 %v7177, %v7177
    %v7313 = vmul.f32 %v7178, %v7178
    %v7314 = vmul.f32 %v7179, %v7179
    %v7315 = vmul.f32 %v7180, %v7180
    %v7316 = vmul.f32 %v7181, %v7181
    %v7317 = vmul.f32 %v7182, %v7182
    %v7318 = vmul.f32 %v7183, %v7183
    %v7319 = vmul.f32 %v7184, %v7184
    %v7320 = vmul.f32 %v7185, %v7185
    %v7321 = vmul.f32 %v7186, %v7186
    %v7322 = vmul.f32 %v7187, %v7187
    %v7323 = vmul.f32 %v7188, %v7188
    %v7324 = vmul.f32 %v7189, %v7189
    %v7325 = vmul.f32 %v7190, %v7190
    %v7326 = vmul.f32 %v7191, %v7191
    %v7327 = vmul.f32 %v7192, %v7192
    %v7328 = vmul.f32 %v7193, %v7193
    %v7329 = vmul.f32 %v7194, %v7194
    %v7330 = vmul.f32 %v7195, %v7195
    %v7331 = vadd.f32 %v7267, %v7268
    %v7332 = vadd.f32 %v7331, %v7269
    %v7333 = vadd.f32 %v7332, %v7270
    %v7334 = vadd.f32 %v7333, %v7271
    %v7335 = vadd.f32 %v7334, %v7272
    %v7336 = vadd.f32 %v7335, %v7273
    %v7337 = vadd.f32 %v7336, %v7274
    %v7338 = vadd.f32 %v7337, %v7275
    %v7339 = vadd.f32 %v7338, %v7276
    %v7340 = vadd.f32 %v7339, %v7277
    %v7341 = vadd.f32 %v7340, %v7278
    %v7342 = vadd.f32 %v7341, %v7279
    %v7343 = vadd.f32 %v7342, %v7280
    %v7344 = vadd.f32 %v7343, %v7281
    %v7345 = vadd.f32 %v7344, %v7282
    %v7346 = vadd.f32 %v7345, %v7283
    %v7347 = vadd.f32 %v7346, %v7284
    %v7348 = vadd.f32 %v7347, %v7285
    %v7349 = vadd.f32 %v7348, %v7286
    %v7350 = vadd.f32 %v7349, %v7287
    %v7351 = vadd.f32 %v7350, %v7288
    %v7352 = vadd.f32 %v7351, %v7289
    %v7353 = vadd.f32 %v7352, %v7290
    %v7354 = vadd.f32 %v7353, %v7291
    %v7355 = vadd.f32 %v7354, %v7292
    %v7356 = vadd.f32 %v7355, %v7293
    %v7357 = vadd.f32 %v7356, %v7294
    %v7358 = vadd.f32 %v7357, %v7295
    %v7359 = vadd.f32 %v7358, %v7296
    %v7360 = vadd.f32 %v7359, %v7297
    %v7361 = vadd.f32 %v7360, %v7298
    %v7362 = vadd.f32 %v7361, %v7299
    %v7363 = vadd.f32 %v7362, %v7300
    %v7364 = vadd.f32 %v7363, %v7301
    %v7365 = vadd.f32 %v7364, %v7302
    %v7366 = vadd.f32 %v7365, %v7303
    %v7367 = vadd.f32 %v7366, %v7304
    %v7368 = vadd.f32 %v7367, %v7305
    %v7369 = vadd.f32 %v7368, %v7306
    %v7370 = vadd.f32 %v7369, %v7307
    %v7371 = vadd.f32 %v7370, %v7308
    %v7372 = vadd.f32 %v7371, %v7309
    %v7373 = vadd.f32 %v7372, %v7310
    %v7374 = vadd.f32 %v7373, %v7311
    %v7375 = vadd.f32 %v7374, %v7312
    %v7376 = vadd.f32 %v7375, %v7313
    %v7377 = vadd.f32 %v7376, %v7314
    %v7378 = vadd.f32 %v7377, %v7315
    %v7379 = vadd.f32 %v7378, %v7316
    %v7380 = vadd.f32 %v7379, %v7317
    %v7381 = vadd.f32 %v7380, %v7318
    %v7382 = vadd.f32 %v7381, %v7319
    %v7383 = vadd.f32 %v7382, %v7320
    %v7384 = vadd.f32 %v7383, %v7321
    %v7385 = vadd.f32 %v7384, %v7322
    %v7386 = vadd.f32 %v7385, %v7323
    %v7387 = vadd.f32 %v7386, %v7324
    %v7388 = vadd.f32 %v7387, %v7325
    %v7389 = vadd.f32 %v7388, %v7326
    %v7390 = vadd.f32 %v7389, %v7327
    %v7391 = vadd.f32 %v7390, %v7328
    %v7392 = vadd.f32 %v7391, %v7329
    %v7393 = vadd.f32 %v7392, %v7330
    %v7394 = vrot.slane %v7393, 4
    %v7395 = vadd.f32 %v7393, %v7394
    %v7396 = vrot.slane %v7395, 2
    %v7397 = vadd.f32 %v7395, %v7396
    %v7398 = vrot.slane %v7397, 1
    %v7399 = vadd.f32 %v7397, %v7398
    %v7400 = vmul.f32 %v7266, 0.001953125
    %v7401 = vmul.f32 %v7399, 0.001953125
    %v7402 = vmul.f32 %v7400, %v7400
    %v7403 = vsub.f32 %v7401, %v7402
    %v7404 = vadd.f32 %v7403, 1e-05
    %v7405 = vrsqrt.pop %v7404
    %v7406 = vmul.f32 %v7196, %v7405
    %v7407 = vmul.f32 %v7400, %v7406
    %v7408 = vsub.f32 %v7197, %v7407
    %v7410 = vlaneseq
    %v7411 = vshrl.u32 %v7410, 7
    %v7412 = vsub.s32 0, %v7411
    %v7413 = vrot.slane %v7406, %v7412
    %v7415 = vmul.f32 %v7132, %v7413
    %v7416 = vmul.f32 %v7133, %v7413
    %v7417 = vmul.f32 %v7134, %v7413
    %v7418 = vmul.f32 %v7135, %v7413
    %v7419 = vmul.f32 %v7136, %v7413
    %v7420 = vmul.f32 %v7137, %v7413
    %v7421 = vmul.f32 %v7138, %v7413
    %v7422 = vmul.f32 %v7139, %v7413
    %v7423 = vmul.f32 %v7140, %v7413
    %v7424 = vmul.f32 %v7141, %v7413
    %v7425 = vmul.f32 %v7142, %v7413
    %v7426 = vmul.f32 %v7143, %v7413
    %v7427 = vmul.f32 %v7144, %v7413
    %v7428 = vmul.f32 %v7145, %v7413
    %v7429 = vmul.f32 %v7146, %v7413
    %v7430 = vmul.f32 %v7147, %v7413
    %v7431 = vmul.f32 %v7148, %v7413
    %v7432 = vmul.f32 %v7149, %v7413
    %v7433 = vmul.f32 %v7150, %v7413
    %v7434 = vmul.f32 %v7151, %v7413
    %v7435 = vmul.f32 %v7152, %v7413
    %v7436 = vmul.f32 %v7153, %v7413
    %v7437 = vmul.f32 %v7154, %v7413
    %v7438 = vmul.f32 %v7155, %v7413
    %v7439 = vmul.f32 %v7156, %v7413
    %v7440 = vmul.f32 %v7157, %v7413
    %v7441 = vmul.f32 %v7158, %v7413
    %v7442 = vmul.f32 %v7159, %v7413
    %v7443 = vmul.f32 %v7160, %v7413
    %v7444 = vmul.f32 %v7161, %v7413
    %v7445 = vmul.f32 %v7162, %v7413
    %v7446 = vmul.f32 %v7163, %v7413
    %v7447 = vmul.f32 %v7164, %v7413
    %v7448 = vmul.f32 %v7165, %v7413
    %v7449 = vmul.f32 %v7166, %v7413
    %v7450 = vmul.f32 %v7167, %v7413
    %v7451 = vmul.f32 %v7168, %v7413
    %v7452 = vmul.f32 %v7169, %v7413
    %v7453 = vmul.f32 %v7170, %v7413
    %v7454 = vmul.f32 %v7171, %v7413
    %v7455 = vmul.f32 %v7172, %v7413
    %v7456 = vmul.f32 %v7173, %v7413
    %v7457 = vmul.f32 %v7174, %v7413
    %v7458 = vmul.f32 %v7175, %v7413
    %v7459 = vmul.f32 %v7176, %v7413
    %v7460 = vmul.f32 %v7177, %v7413
    %v7461 = vmul.f32 %v7178, %v7413
    %v7462 = vmul.f32 %v7179, %v7413
    %v7463 = vmul.f32 %v7180, %v7413
    %v7464 = vmul.f32 %v7181, %v7413
    %v7465 = vmul.f32 %v7182, %v7413
    %v7466 = vmul.f32 %v7183, %v7413
    %v7467 = vmul.f32 %v7184, %v7413
    %v7468 = vmul.f32 %v7185, %v7413
    %v7469 = vmul.f32 %v7186, %v7413
    %v7470 = vmul.f32 %v7187, %v7413
    %v7471 = vmul.f32 %v7188, %v7413
    %v7472 = vmul.f32 %v7189, %v7413
    %v7473 = vmul.f32 %v7190, %v7413
    %v7474 = vmul.f32 %v7191, %v7413
    %v7475 = vmul.f32 %v7192, %v7413
    %v7476 = vmul.f32 %v7193, %v7413
    %v7477 = vmul.f32 %v7194, %v7413
    %v7478 = vmul.f32 %v7195, %v7413
    %v7480 = vlaneseq
    %v7481 = vshrl.u32 %v7480, 7
    %v7482 = vsub.s32 0, %v7481
    %v7483 = vrot.slane %v7408, %v7482
    %v7485 = vadd.f32 %v7415, %v7483
    %v7486 = vadd.f32 %v7416, %v7483
    %v7487 = vadd.f32 %v7417, %v7483
    %v7488 = vadd.f32 %v7418, %v7483
    %v7489 = vadd.f32 %v7419, %v7483
    %v7490 = vadd.f32 %v7420, %v7483
    %v7491 = vadd.f32 %v7421, %v7483
    %v7492 = vadd.f32 %v7422, %v7483
    %v7493 = vadd.f32 %v7423, %v7483
    %v7494 = vadd.f32 %v7424, %v7483
    %v7495 = vadd.f32 %v7425, %v7483
    %v7496 = vadd.f32 %v7426, %v7483
    %v7497 = vadd.f32 %v7427, %v7483
    %v7498 = vadd.f32 %v7428, %v7483
    %v7499 = vadd.f32 %v7429, %v7483
    %v7500 = vadd.f32 %v7430, %v7483
    %v7501 = vadd.f32 %v7431, %v7483
    %v7502 = vadd.f32 %v7432, %v7483
    %v7503 = vadd.f32 %v7433, %v7483
    %v7504 = vadd.f32 %v7434, %v7483
    %v7505 = vadd.f32 %v7435, %v7483
    %v7506 = vadd.f32 %v7436, %v7483
    %v7507 = vadd.f32 %v7437, %v7483
    %v7508 = vadd.f32 %v7438, %v7483
    %v7509 = vadd.f32 %v7439, %v7483
    %v7510 = vadd.f32 %v7440, %v7483
    %v7511 = vadd.f32 %v7441, %v7483
    %v7512 = vadd.f32 %v7442, %v7483
    %v7513 = vadd.f32 %v7443, %v7483
    %v7514 = vadd.f32 %v7444, %v7483
    %v7515 = vadd.f32 %v7445, %v7483
    %v7516 = vadd.f32 %v7446, %v7483
    %v7517 = vadd.f32 %v7447, %v7483
    %v7518 = vadd.f32 %v7448, %v7483
    %v7519 = vadd.f32 %v7449, %v7483
    %v7520 = vadd.f32 %v7450, %v7483
    %v7521 = vadd.f32 %v7451, %v7483
    %v7522 = vadd.f32 %v7452, %v7483
    %v7523 = vadd.f32 %v7453, %v7483
    %v7524 = vadd.f32 %v7454, %v7483
    %v7525 = vadd.f32 %v7455, %v7483
    %v7526 = vadd.f32 %v7456, %v7483
    %v7527 = vadd.f32 %v7457, %v7483
    %v7528 = vadd.f32 %v7458, %v7483
    %v7529 = vadd.f32 %v7459, %v7483
    %v7530 = vadd.f32 %v7460, %v7483
    %v7531 = vadd.f32 %v7461, %v7483
    %v7532 = vadd.f32 %v7462, %v7483
    %v7533 = vadd.f32 %v7463, %v7483
    %v7534 = vadd.f32 %v7464, %v7483
    %v7535 = vadd.f32 %v7465, %v7483
    %v7536 = vadd.f32 %v7466, %v7483
    %v7537 = vadd.f32 %v7467, %v7483
    %v7538 = vadd.f32 %v7468, %v7483
    %v7539 = vadd.f32 %v7469, %v7483
    %v7540 = vadd.f32 %v7470, %v7483
    %v7541 = vadd.f32 %v7471, %v7483
    %v7542 = vadd.f32 %v7472, %v7483
    %v7543 = vadd.f32 %v7473, %v7483
    %v7544 = vadd.f32 %v7474, %v7483
    %v7545 = vadd.f32 %v7475, %v7483
    %v7546 = vadd.f32 %v7476, %v7483
    %v7547 = vadd.f32 %v7477, %v7483
    %v7548 = vadd.f32 %v7478, %v7483
    %v7549 = vmax.f32 %v7485, 0.0
    %v7550 = vmax.f32 %v7486, 0.0
    %v7551 = vmax.f32 %v7487, 0.0
    %v7552 = vmax.f32 %v7488, 0.0
    %v7553 = vmax.f32 %v7489, 0.0
    %v7554 = vmax.f32 %v7490, 0.0
    %v7555 = vmax.f32 %v7491, 0.0
    %v7556 = vmax.f32 %v7492, 0.0
    %v7557 = vmax.f32 %v7493, 0.0
    %v7558 = vmax.f32 %v7494, 0.0
    %v7559 = vmax.f32 %v7495, 0.0
    %v7560 = vmax.f32 %v7496, 0.0
    %v7561 = vmax.f32 %v7497, 0.0
    %v7562 = vmax.f32 %v7498, 0.0
    %v7563 = vmax.f32 %v7499, 0.0
    %v7564 = vmax.f32 %v7500, 0.0
    %v7565 = vmax.f32 %v7501, 0.0
    %v7566 = vmax.f32 %v7502, 0.0
    %v7567 = vmax.f32 %v7503, 0.0
    %v7568 = vmax.f32 %v7504, 0.0
    %v7569 = vmax.f32 %v7505, 0.0
    %v7570 = vmax.f32 %v7506, 0.0
    %v7571 = vmax.f32 %v7507, 0.0
    %v7572 = vmax.f32 %v7508, 0.0
    %v7573 = vmax.f32 %v7509, 0.0
    %v7574 = vmax.f32 %v7510, 0.0
    %v7575 = vmax.f32 %v7511, 0.0
    %v7576 = vmax.f32 %v7512, 0.0
    %v7577 = vmax.f32 %v7513, 0.0
    %v7578 = vmax.f32 %v7514, 0.0
    %v7579 = vmax.f32 %v7515, 0.0
    %v7580 = vmax.f32 %v7516, 0.0
    %v7581 = vmax.f32 %v7517, 0.0
    %v7582 = vmax.f32 %v7518, 0.0
    %v7583 = vmax.f32 %v7519, 0.0
    %v7584 = vmax.f32 %v7520, 0.0
    %v7585 = vmax.f32 %v7521, 0.0
    %v7586 = vmax.f32 %v7522, 0.0
    %v7587 = vmax.f32 %v7523, 0.0
    %v7588 = vmax.f32 %v7524, 0.0
    %v7589 = vmax.f32 %v7525, 0.0
    %v7590 = vmax.f32 %v7526, 0.0
    %v7591 = vmax.f32 %v7527, 0.0
    %v7592 = vmax.f32 %v7528, 0.0
    %v7593 = vmax.f32 %v7529, 0.0
    %v7594 = vmax.f32 %v7530, 0.0
    %v7595 = vmax.f32 %v7531, 0.0
    %v7596 = vmax.f32 %v7532, 0.0
    %v7597 = vmax.f32 %v7533, 0.0
    %v7598 = vmax.f32 %v7534, 0.0
    %v7599 = vmax.f32 %v7535, 0.0
    %v7600 = vmax.f32 %v7536, 0.0
    %v7601 = vmax.f32 %v7537, 0.0
    %v7602 = vmax.f32 %v7538, 0.0
    %v7603 = vmax.f32 %v7539, 0.0
    %v7604 = vmax.f32 %v7540, 0.0
    %v7605 = vmax.f32 %v7541, 0.0
    %v7606 = vmax.f32 %v7542, 0.0
    %v7607 = vmax.f32 %v7543, 0.0
    %v7608 = vmax.f32 %v7544, 0.0
    %v7609 = vmax.f32 %v7545, 0.0
    %v7610 = vmax.f32 %v7546, 0.0
    %v7611 = vmax.f32 %v7547, 0.0
    %v7612 = vmax.f32 %v7548, 0.0
    %v7613 = vld [vmem:[#allocation10] sm:$0xff]
    %v7614 = vld [vmem:[#allocation10 + $0x8] sm:$0xff]
    %v7615 = vld [vmem:[#allocation10 + $0x10] sm:$0xff]
    %v7616 = vld [vmem:[#allocation10 + $0x18] sm:$0xff]
    %v7617 = vld [vmem:[#allocation10 + $0x20] sm:$0xff]
    %v7618 = vld [vmem:[#allocation10 + $0x28] sm:$0xff]
    %v7619 = vld [vmem:[#allocation10 + $0x30] sm:$0xff]
    %v7620 = vld [vmem:[#allocation10 + $0x38] sm:$0xff]
    %v7621 = vld [vmem:[#allocation10 + $0x40] sm:$0xff]
    %v7622 = vld [vmem:[#allocation10 + $0x48] sm:$0xff]
    %v7623 = vld [vmem:[#allocation10 + $0x50] sm:$0xff]
    %v7624 = vld [vmem:[#allocation10 + $0x58] sm:$0xff]
    %v7625 = vld [vmem:[#allocation10 + $0x60] sm:$0xff]
    %v7626 = vld [vmem:[#allocation10 + $0x68] sm:$0xff]
    %v7627 = vld [vmem:[#allocation10 + $0x70] sm:$0xff]
    %v7628 = vld [vmem:[#allocation10 + $0x78] sm:$0xff]
    %7629 = vmatprep.subr.mxu0 0.0
    %7630 = vmatpush1.msra.mxu0 %v7613
    %7631 = vmatprep.subr.mxu0 0.0
    %7632 = vmatpush1.msra.mxu0 %v7614
    %7633 = vmatprep.subr.mxu0 0.0
    %7634 = vmatpush1.msra.mxu0 %v7615
    %7635 = vmatprep.subr.mxu0 0.0
    %7636 = vmatpush1.msra.mxu0 %v7616
    %7637 = vmatprep.subr.mxu0 0.0
    %7638 = vmatpush1.msra.mxu0 %v7617
    %7639 = vmatprep.subr.mxu0 0.0
    %7640 = vmatpush1.msra.mxu0 %v7618
    %7641 = vmatprep.subr.mxu0 0.0
    %7642 = vmatpush1.msra.mxu0 %v7619
    %7643 = vmatprep.subr.mxu0 0.0
    %7644 = vmatpush1.msra.mxu0 %v7620
    %7645 = vmatprep.subr.mxu0 0.0
    %7646 = vmatpush1.msra.mxu0 %v7621
    %7647 = vmatprep.subr.mxu0 0.0
    %7648 = vmatpush1.msra.mxu0 %v7622
    %7649 = vmatprep.subr.mxu0 0.0
    %7650 = vmatpush1.msra.mxu0 %v7623
    %7651 = vmatprep.subr.mxu0 0.0
    %7652 = vmatpush1.msra.mxu0 %v7624
    %7653 = vmatprep.subr.mxu0 0.0
    %7654 = vmatpush1.msra.mxu0 %v7625
    %7655 = vmatprep.subr.mxu0 0.0
    %7656 = vmatpush1.msra.mxu0 %v7626
    %7657 = vmatprep.subr.mxu0 0.0
    %7658 = vmatpush1.msra.mxu0 %v7627
    %7659 = vmatprep.subr.mxu0 0.0
    %7660 = vmatpush1.msra.mxu0 %v7628
    %7661 = vmatprep.subr.mxu0 0.0
    %7662 = vmatpush1.msra.mxu0 0.0
    %7663 = vmatprep.subr.mxu0 0.0
    %7664 = vmatpush1.msra.mxu0 0.0
    %7665 = vmatprep.subr.mxu0 0.0
    %7666 = vmatpush1.msra.mxu0 0.0
    %7667 = vmatprep.subr.mxu0 0.0
    %7668 = vmatpush1.msra.mxu0 0.0
    %7669 = vmatprep.subr.mxu0 0.0
    %7670 = vmatpush1.msra.mxu0 0.0
    %7671 = vmatprep.subr.mxu0 0.0
    %7672 = vmatpush1.msra.mxu0 0.0
    %7673 = vmatprep.subr.mxu0 0.0
    %7674 = vmatpush1.msra.mxu0 0.0
    %7675 = vmatprep.subr.mxu0 0.0
    %7676 = vmatpush1.msra.mxu0 0.0
    %7677 = vmatprep.subr.mxu0 0.0
    %7678 = vmatpush1.msra.mxu0 0.0
    %7679 = vmatprep.subr.mxu0 0.0
    %7680 = vmatpush1.msra.mxu0 0.0
    %7681 = vmatprep.subr.mxu0 0.0
    %7682 = vmatpush1.msra.mxu0 0.0
    %7683 = vmatprep.subr.mxu0 0.0
    %7684 = vmatpush1.msra.mxu0 0.0
    %7685 = vmatprep.subr.mxu0 0.0
    %7686 = vmatpush1.msra.mxu0 0.0
    %7687 = vmatprep.subr.mxu0 0.0
    %7688 = vmatpush1.msra.mxu0 0.0
    %7689 = vmatprep.subr.mxu0 0.0
    %7690 = vmatpush1.msra.mxu0 0.0
    %7691 = vmatprep.subr.mxu0 0.0
    %7692 = vmatpush1.msra.mxu0 0.0
    %7693 = vmatprep.mubr.f32.mxu0 0.0
    %7694 = vmatmul.mubr.f32.gmra.mrb[0].mxu0 %v7549
    %v7695 = vpop.f32.mrb[0].mxu0
    %v7696 = vadd.f32 0.0, %v7695
    %v7697 = vpop.f32.mrb[0].mxu0
    %7698 = vmatprep.mubr.f32.mxu0 0.0
    %7699 = vmatmul.mubr.f32.gmra.mrb[0].mxu0 %v7550
    %v7700 = vpop.f32.mrb[0].mxu0
    %v7701 = vadd.f32 0.0, %v7700
    %v7702 = vpop.f32.mrb[0].mxu0
    %7703 = vmatprep.mubr.f32.mxu0 0.0
    %7704 = vmatmul.mubr.f32.gmra.mrb[0].mxu0 %v7551
    %v7705 = vpop.f32.mrb[0].mxu0
    %v7706 = vadd.f32 0.0, %v7705
    %v7707 = vpop.f32.mrb[0].mxu0
    %7708 = vmatprep.mubr.f32.mxu0 0.0
    %7709 = vmatmul.mubr.f32.gmra.mrb[0].mxu0 %v7552
    %v7710 = vpop.f32.mrb[0].mxu0
    %v7711 = vadd.f32 0.0, %v7710
    %v7712 = vpop.f32.mrb[0].mxu0
    %7713 = vmatprep.mubr.f32.mxu0 0.0
    %7714 = vmatmul.mubr.f32.gmra.mrb[0].mxu0 %v7553
    %v7715 = vpop.f32.mrb[0].mxu0
    %v7716 = vadd.f32 0.0, %v7715
    %v7717 = vpop.f32.mrb[0].mxu0
    %7718 = vmatprep.mubr.f32.mxu0 0.0
    %7719 = vmatmul.mubr.f32.gmra.mrb[0].mxu0 %v7554
    %v7720 = vpop.f32.mrb[0].mxu0
    %v7721 = vadd.f32 0.0, %v7720
    %v7722 = vpop.f32.mrb[0].mxu0
    %7723 = vmatprep.mubr.f32.mxu0 0.0
    %7724 = vmatmul.mubr.f32.gmra.mrb[0].mxu0 %v7555
    %v7725 = vpop.f32.mrb[0].mxu0
    %v7726 = vadd.f32 0.0, %v7725
    %v7727 = vpop.f32.mrb[0].mxu0
    %7728 = vmatprep.mubr.f32.mxu0 0.0
    %7729 = vmatmul.mubr.f32.gmra.mrb[0].mxu0 %v7556
    %v7730 = vpop.f32.mrb[0].mxu0
    %v7731 = vadd.f32 0.0, %v7730
    %v7732 = vpop.f32.mrb[0].mxu0
    %7733 = vmatprep.mubr.f32.mxu0 0.0
    %7734 = vmatmul.mubr.f32.gmra.mrb[0].mxu0 %v7557
    %v7735 = vpop.f32.mrb[0].mxu0
    %v7736 = vadd.f32 0.0, %v7735
    %v7737 = vpop.f32.mrb[0].mxu0
    %7738 = vmatprep.mubr.f32.mxu0 0.0
    %7739 = vmatmul.mubr.f32.gmra.mrb[0].mxu0 %v7558
    %v7740 = vpop.f32.mrb[0].mxu0
    %v7741 = vadd.f32 0.0, %v7740
    %v7742 = vpop.f32.mrb[0].mxu0
    %7743 = vmatprep.mubr.f32.mxu0 0.0
    %7744 = vmatmul.mubr.f32.gmra.mrb[0].mxu0 %v7559
    %v7745 = vpop.f32.mrb[0].mxu0
    %v7746 = vadd.f32 0.0, %v7745
    %v7747 = vpop.f32.mrb[0].mxu0
    %7748 = vmatprep.mubr.f32.mxu0 0.0
    %7749 = vmatmul.mubr.f32.gmra.mrb[0].mxu0 %v7560
    %v7750 = vpop.f32.mrb[0].mxu0
    %v7751 = vadd.f32 0.0, %v7750
    %v7752 = vpop.f32.mrb[0].mxu0
    %7753 = vmatprep.mubr.f32.mxu0 0.0
    %7754 = vmatmul.mubr.f32.gmra.mrb[0].mxu0 %v7561
    %v7755 = vpop.f32.mrb[0].mxu0
    %v7756 = vadd.f32 0.0, %v7755
    %v7757 = vpop.f32.mrb[0].mxu0
    %7758 = vmatprep.mubr.f32.mxu0 0.0
    %7759 = vmatmul.mubr.f32.gmra.mrb[0].mxu0 %v7562
    %v7760 = vpop.f32.mrb[0].mxu0
    %v7761 = vadd.f32 0.0, %v7760
    %v7762 = vpop.f32.mrb[0].mxu0
    %7763 = vmatprep.mubr.f32.mxu0 0.0
    %7764 = vmatmul.mubr.f32.gmra.mrb[0].mxu0 %v7563
    %v7765 = vpop.f32.mrb[0].mxu0
    %v7766 = vadd.f32 0.0, %v7765
    %v7767 = vpop.f32.mrb[0].mxu0
    %7768 = vmatprep.mubr.f32.mxu0 0.0
    %7769 = vmatmul.mubr.f32.gmra.mrb[0].mxu0 %v7564
    %v7770 = vpop.f32.mrb[0].mxu0
    %v7771 = vadd.f32 0.0, %v7770
    %v7772 = vpop.f32.mrb[0].mxu0
    %7773 = vmatprep.mubr.f32.mxu0 0.0
    %7774 = vmatmul.mubr.f32.gmra.mrb[0].mxu0 %v7565
    %v7775 = vpop.f32.mrb[0].mxu0
    %v7776 = vadd.f32 0.0, %v7775
    %v7777 = vpop.f32.mrb[0].mxu0
    %7778 = vmatprep.mubr.f32.mxu0 0.0
    %7779 = vmatmul.mubr.f32.gmra.mrb[0].mxu0 %v7566
    %v7780 = vpop.f32.mrb[0].mxu0
    %v7781 = vadd.f32 0.0, %v7780
    %v7782 = vpop.f32.mrb[0].mxu0
    %7783 = vmatprep.mubr.f32.mxu0 0.0
    %7784 = vmatmul.mubr.f32.gmra.mrb[0].mxu0 %v7567
    %v7785 = vpop.f32.mrb[0].mxu0
    %v7786 = vadd.f32 0.0, %v7785
    %v7787 = vpop.f32.mrb[0].mxu0
    %7788 = vmatprep.mubr.f32.mxu0 0.0
    %7789 = vmatmul.mubr.f32.gmra.mrb[0].mxu0 %v7568
    %v7790 = vpop.f32.mrb[0].mxu0
    %v7791 = vadd.f32 0.0, %v7790
    %v7792 = vpop.f32.mrb[0].mxu0
    %7793 = vmatprep.mubr.f32.mxu0 0.0
    %7794 = vmatmul.mubr.f32.gmra.mrb[0].mxu0 %v7569
    %v7795 = vpop.f32.mrb[0].mxu0
    %v7796 = vadd.f32 0.0, %v7795
    %v7797 = vpop.f32.mrb[0].mxu0
    %7798 = vmatprep.mubr.f32.mxu0 0.0
    %7799 = vmatmul.mubr.f32.gmra.mrb[0].mxu0 %v7570
    %v7800 = vpop.f32.mrb[0].mxu0
    %v7801 = vadd.f32 0.0, %v7800
    %v7802 = vpop.f32.mrb[0].mxu0
    %7803 = vmatprep.mubr.f32.mxu0 0.0
    %7804 = vmatmul.mubr.f32.gmra.mrb[0].mxu0 %v7571
    %v7805 = vpop.f32.mrb[0].mxu0
    %v7806 = vadd.f32 0.0, %v7805
    %v7807 = vpop.f32.mrb[0].mxu0
    %7808 = vmatprep.mubr.f32.mxu0 0.0
    %7809 = vmatmul.mubr.f32.gmra.mrb[0].mxu0 %v7572
    %v7810 = vpop.f32.mrb[0].mxu0
    %v7811 = vadd.f32 0.0, %v7810
    %v7812 = vpop.f32.mrb[0].mxu0
    %7813 = vmatprep.mubr.f32.mxu0 0.0
    %7814 = vmatmul.mubr.f32.gmra.mrb[0].mxu0 %v7573
    %v7815 = vpop.f32.mrb[0].mxu0
    %v7816 = vadd.f32 0.0, %v7815
    %v7817 = vpop.f32.mrb[0].mxu0
    %7818 = vmatprep.mubr.f32.mxu0 0.0
    %7819 = vmatmul.mubr.f32.gmra.mrb[0].mxu0 %v7574
    %v7820 = vpop.f32.mrb[0].mxu0
    %v7821 = vadd.f32 0.0, %v7820
    %v7822 = vpop.f32.mrb[0].mxu0
    %7823 = vmatprep.mubr.f32.mxu0 0.0
    %7824 = vmatmul.mubr.f32.gmra.mrb[0].mxu0 %v7575
    %v7825 = vpop.f32.mrb[0].mxu0
    %v7826 = vadd.f32 0.0, %v7825
    %v7827 = vpop.f32.mrb[0].mxu0
    %7828 = vmatprep.mubr.f32.mxu0 0.0
    %7829 = vmatmul.mubr.f32.gmra.mrb[0].mxu0 %v7576
    %v7830 = vpop.f32.mrb[0].mxu0
    %v7831 = vadd.f32 0.0, %v7830
    %v7832 = vpop.f32.mrb[0].mxu0
    %7833 = vmatprep.mubr.f32.mxu0 0.0
    %7834 = vmatmul.mubr.f32.gmra.mrb[0].mxu0 %v7577
    %v7835 = vpop.f32.mrb[0].mxu0
    %v7836 = vadd.f32 0.0, %v7835
    %v7837 = vpop.f32.mrb[0].mxu0
    %7838 = vmatprep.mubr.f32.mxu0 0.0
    %7839 = vmatmul.mubr.f32.gmra.mrb[0].mxu0 %v7578
    %v7840 = vpop.f32.mrb[0].mxu0
    %v7841 = vadd.f32 0.0, %v7840
    %v7842 = vpop.f32.mrb[0].mxu0
    %7843 = vmatprep.mubr.f32.mxu0 0.0
    %7844 = vmatmul.mubr.f32.gmra.mrb[0].mxu0 %v7579
    %v7845 = vpop.f32.mrb[0].mxu0
    %v7846 = vadd.f32 0.0, %v7845
    %v7847 = vpop.f32.mrb[0].mxu0
    %7848 = vmatprep.mubr.f32.mxu0 0.0
    %7849 = vmatmul.mubr.f32.gmra.mrb[0].mxu0 %v7580
    %v7850 = vpop.f32.mrb[0].mxu0
    %v7851 = vadd.f32 0.0, %v7850
    %v7852 = vpop.f32.mrb[0].mxu0
    %7853 = vmatprep.mubr.f32.mxu0 0.0
    %7854 = vmatmul.mubr.f32.gmra.mrb[0].mxu0 %v7581
    %v7855 = vpop.f32.mrb[0].mxu0
    %v7856 = vadd.f32 0.0, %v7855
    %v7857 = vpop.f32.mrb[0].mxu0
    %7858 = vmatprep.mubr.f32.mxu0 0.0
    %7859 = vmatmul.mubr.f32.gmra.mrb[0].mxu0 %v7582
    %v7860 = vpop.f32.mrb[0].mxu0
    %v7861 = vadd.f32 0.0, %v7860
    %v7862 = vpop.f32.mrb[0].mxu0
    %7863 = vmatprep.mubr.f32.mxu0 0.0
    %7864 = vmatmul.mubr.f32.gmra.mrb[0].mxu0 %v7583
    %v7865 = vpop.f32.mrb[0].mxu0
    %v7866 = vadd.f32 0.0, %v7865
    %v7867 = vpop.f32.mrb[0].mxu0
    %7868 = vmatprep.mubr.f32.mxu0 0.0
    %7869 = vmatmul.mubr.f32.gmra.mrb[0].mxu0 %v7584
    %v7870 = vpop.f32.mrb[0].mxu0
    %v7871 = vadd.f32 0.0, %v7870
    %v7872 = vpop.f32.mrb[0].mxu0
    %7873 = vmatprep.mubr.f32.mxu0 0.0
    %7874 = vmatmul.mubr.f32.gmra.mrb[0].mxu0 %v7585
    %v7875 = vpop.f32.mrb[0].mxu0
    %v7876 = vadd.f32 0.0, %v7875
    %v7877 = vpop.f32.mrb[0].mxu0
    %7878 = vmatprep.mubr.f32.mxu0 0.0
    %7879 = vmatmul.mubr.f32.gmra.mrb[0].mxu0 %v7586
    %v7880 = vpop.f32.mrb[0].mxu0
    %v7881 = vadd.f32 0.0, %v7880
    %v7882 = vpop.f32.mrb[0].mxu0
    %7883 = vmatprep.mubr.f32.mxu0 0.0
    %7884 = vmatmul.mubr.f32.gmra.mrb[0].mxu0 %v7587
    %v7885 = vpop.f32.mrb[0].mxu0
    %v7886 = vadd.f32 0.0, %v7885
    %v7887 = vpop.f32.mrb[0].mxu0
    %7888 = vmatprep.mubr.f32.mxu0 0.0
    %7889 = vmatmul.mubr.f32.gmra.mrb[0].mxu0 %v7588
    %v7890 = vpop.f32.mrb[0].mxu0
    %v7891 = vadd.f32 0.0, %v7890
    %v7892 = vpop.f32.mrb[0].mxu0
    %7893 = vmatprep.mubr.f32.mxu0 0.0
    %7894 = vmatmul.mubr.f32.gmra.mrb[0].mxu0 %v7589
    %v7895 = vpop.f32.mrb[0].mxu0
    %v7896 = vadd.f32 0.0, %v7895
    %v7897 = vpop.f32.mrb[0].mxu0
    %7898 = vmatprep.mubr.f32.mxu0 0.0
    %7899 = vmatmul.mubr.f32.gmra.mrb[0].mxu0 %v7590
    %v7900 = vpop.f32.mrb[0].mxu0
    %v7901 = vadd.f32 0.0, %v7900
    %v7902 = vpop.f32.mrb[0].mxu0
    %7903 = vmatprep.mubr.f32.mxu0 0.0
    %7904 = vmatmul.mubr.f32.gmra.mrb[0].mxu0 %v7591
    %v7905 = vpop.f32.mrb[0].mxu0
    %v7906 = vadd.f32 0.0, %v7905
    %v7907 = vpop.f32.mrb[0].mxu0
    %7908 = vmatprep.mubr.f32.mxu0 0.0
    %7909 = vmatmul.mubr.f32.gmra.mrb[0].mxu0 %v7592
    %v7910 = vpop.f32.mrb[0].mxu0
    %v7911 = vadd.f32 0.0, %v7910
    %v7912 = vpop.f32.mrb[0].mxu0
    %7913 = vmatprep.mubr.f32.mxu0 0.0
    %7914 = vmatmul.mubr.f32.gmra.mrb[0].mxu0 %v7593
    %v7915 = vpop.f32.mrb[0].mxu0
    %v7916 = vadd.f32 0.0, %v7915
    %v7917 = vpop.f32.mrb[0].mxu0
    %7918 = vmatprep.mubr.f32.mxu0 0.0
    %7919 = vmatmul.mubr.f32.gmra.mrb[0].mxu0 %v7594
    %v7920 = vpop.f32.mrb[0].mxu0
    %v7921 = vadd.f32 0.0, %v7920
    %v7922 = vpop.f32.mrb[0].mxu0
    %7923 = vmatprep.mubr.f32.mxu0 0.0
    %7924 = vmatmul.mubr.f32.gmra.mrb[0].mxu0 %v7595
    %v7925 = vpop.f32.mrb[0].mxu0
    %v7926 = vadd.f32 0.0, %v7925
    %v7927 = vpop.f32.mrb[0].mxu0
    %7928 = vmatprep.mubr.f32.mxu0 0.0
    %7929 = vmatmul.mubr.f32.gmra.mrb[0].mxu0 %v7596
    %v7930 = vpop.f32.mrb[0].mxu0
    %v7931 = vadd.f32 0.0, %v7930
    %v7932 = vpop.f32.mrb[0].mxu0
    %7933 = vmatprep.mubr.f32.mxu0 0.0
    %7934 = vmatmul.mubr.f32.gmra.mrb[0].mxu0 %v7597
    %v7935 = vpop.f32.mrb[0].mxu0
    %v7936 = vadd.f32 0.0, %v7935
    %v7937 = vpop.f32.mrb[0].mxu0
    %7938 = vmatprep.mubr.f32.mxu0 0.0
    %7939 = vmatmul.mubr.f32.gmra.mrb[0].mxu0 %v7598
    %v7940 = vpop.f32.mrb[0].mxu0
    %v7941 = vadd.f32 0.0, %v7940
    %v7942 = vpop.f32.mrb[0].mxu0
    %7943 = vmatprep.mubr.f32.mxu0 0.0
    %7944 = vmatmul.mubr.f32.gmra.mrb[0].mxu0 %v7599
    %v7945 = vpop.f32.mrb[0].mxu0
    %v7946 = vadd.f32 0.0, %v7945
    %v7947 = vpop.f32.mrb[0].mxu0
    %7948 = vmatprep.mubr.f32.mxu0 0.0
    %7949 = vmatmul.mubr.f32.gmra.mrb[0].mxu0 %v7600
    %v7950 = vpop.f32.mrb[0].mxu0
    %v7951 = vadd.f32 0.0, %v7950
    %v7952 = vpop.f32.mrb[0].mxu0
    %7953 = vmatprep.mubr.f32.mxu0 0.0
    %7954 = vmatmul.mubr.f32.gmra.mrb[0].mxu0 %v7601
    %v7955 = vpop.f32.mrb[0].mxu0
    %v7956 = vadd.f32 0.0, %v7955
    %v7957 = vpop.f32.mrb[0].mxu0
    %7958 = vmatprep.mubr.f32.mxu0 0.0
    %7959 = vmatmul.mubr.f32.gmra.mrb[0].mxu0 %v7602
    %v7960 = vpop.f32.mrb[0].mxu0
    %v7961 = vadd.f32 0.0, %v7960
    %v7962 = vpop.f32.mrb[0].mxu0
    %7963 = vmatprep.mubr.f32.mxu0 0.0
    %7964 = vmatmul.mubr.f32.gmra.mrb[0].mxu0 %v7603
    %v7965 = vpop.f32.mrb[0].mxu0
    %v7966 = vadd.f32 0.0, %v7965
    %v7967 = vpop.f32.mrb[0].mxu0
    %7968 = vmatprep.mubr.f32.mxu0 0.0
    %7969 = vmatmul.mubr.f32.gmra.mrb[0].mxu0 %v7604
    %v7970 = vpop.f32.mrb[0].mxu0
    %v7971 = vadd.f32 0.0, %v7970
    %v7972 = vpop.f32.mrb[0].mxu0
    %7973 = vmatprep.mubr.f32.mxu0 0.0
    %7974 = vmatmul.mubr.f32.gmra.mrb[0].mxu0 %v7605
    %v7975 = vpop.f32.mrb[0].mxu0
    %v7976 = vadd.f32 0.0, %v7975
    %v7977 = vpop.f32.mrb[0].mxu0
    %7978 = vmatprep.mubr.f32.mxu0 0.0
    %7979 = vmatmul.mubr.f32.gmra.mrb[0].mxu0 %v7606
    %v7980 = vpop.f32.mrb[0].mxu0
    %v7981 = vadd.f32 0.0, %v7980
    %v7982 = vpop.f32.mrb[0].mxu0
    %7983 = vmatprep.mubr.f32.mxu0 0.0
    %7984 = vmatmul.mubr.f32.gmra.mrb[0].mxu0 %v7607
    %v7985 = vpop.f32.mrb[0].mxu0
    %v7986 = vadd.f32 0.0, %v7985
    %v7987 = vpop.f32.mrb[0].mxu0
    %7988 = vmatprep.mubr.f32.mxu0 0.0
    %7989 = vmatmul.mubr.f32.gmra.mrb[0].mxu0 %v7608
    %v7990 = vpop.f32.mrb[0].mxu0
    %v7991 = vadd.f32 0.0, %v7990
    %v7992 = vpop.f32.mrb[0].mxu0
    %7993 = vmatprep.mubr.f32.mxu0 0.0
    %7994 = vmatmul.mubr.f32.gmra.mrb[0].mxu0 %v7609
    %v7995 = vpop.f32.mrb[0].mxu0
    %v7996 = vadd.f32 0.0, %v7995
    %v7997 = vpop.f32.mrb[0].mxu0
    %7998 = vmatprep.mubr.f32.mxu0 0.0
    %7999 = vmatmul.mubr.f32.gmra.mrb[0].mxu0 %v7610
    %v8000 = vpop.f32.mrb[0].mxu0
    %v8001 = vadd.f32 0.0, %v8000
    %v8002 = vpop.f32.mrb[0].mxu0
    %8003 = vmatprep.mubr.f32.mxu0 0.0
    %8004 = vmatmul.mubr.f32.gmra.mrb[0].mxu0 %v7611
    %v8005 = vpop.f32.mrb[0].mxu0
    %v8006 = vadd.f32 0.0, %v8005
    %v8007 = vpop.f32.mrb[0].mxu0
    %8008 = vmatprep.mubr.f32.mxu0 0.0
    %8009 = vmatmul.mubr.f32.gmra.mrb[0].mxu0 %v7612
    %v8010 = vpop.f32.mrb[0].mxu0
    %v8011 = vadd.f32 0.0, %v8010
    %v8012 = vpop.f32.mrb[0].mxu0
    %8013 = vdwg.mxu0
    %v8014 = vld [vmem:[%s8] sm:$0x1]
    %v8015 = vld [vmem:[%s9] sm:$0x1]
    %v8016 = vadd.f32 %v7696, %v7701
    %v8017 = vadd.f32 %v8016, %v7706
    %v8018 = vadd.f32 %v8017, %v7711
    %v8019 = vadd.f32 %v8018, %v7716
    %v8020 = vadd.f32 %v8019, %v7721
    %v8021 = vadd.f32 %v8020, %v7726
    %v8022 = vadd.f32 %v8021, %v7731
    %v8023 = vadd.f32 %v8022, %v7736
    %v8024 = vadd.f32 %v8023, %v7741
    %v8025 = vadd.f32 %v8024, %v7746
    %v8026 = vadd.f32 %v8025, %v7751
    %v8027 = vadd.f32 %v8026, %v7756
    %v8028 = vadd.f32 %v8027, %v7761
    %v8029 = vadd.f32 %v8028, %v7766
    %v8030 = vadd.f32 %v8029, %v7771
    %v8031 = vadd.f32 %v8030, %v7776
    %v8032 = vadd.f32 %v8031, %v7781
    %v8033 = vadd.f32 %v8032, %v7786
    %v8034 = vadd.f32 %v8033, %v7791
    %v8035 = vadd.f32 %v8034, %v7796
    %v8036 = vadd.f32 %v8035, %v7801
    %v8037 = vadd.f32 %v8036, %v7806
    %v8038 = vadd.f32 %v8037, %v7811
    %v8039 = vadd.f32 %v8038, %v7816
    %v8040 = vadd.f32 %v8039, %v7821
    %v8041 = vadd.f32 %v8040, %v7826
    %v8042 = vadd.f32 %v8041, %v7831
    %v8043 = vadd.f32 %v8042, %v7836
    %v8044 = vadd.f32 %v8043, %v7841
    %v8045 = vadd.f32 %v8044, %v7846
    %v8046 = vadd.f32 %v8045, %v7851
    %v8047 = vadd.f32 %v8046, %v7856
    %v8048 = vadd.f32 %v8047, %v7861
    %v8049 = vadd.f32 %v8048, %v7866
    %v8050 = vadd.f32 %v8049, %v7871
    %v8051 = vadd.f32 %v8050, %v7876
    %v8052 = vadd.f32 %v8051, %v7881
    %v8053 = vadd.f32 %v8052, %v7886
    %v8054 = vadd.f32 %v8053, %v7891
    %v8055 = vadd.f32 %v8054, %v7896
    %v8056 = vadd.f32 %v8055, %v7901
    %v8057 = vadd.f32 %v8056, %v7906
    %v8058 = vadd.f32 %v8057, %v7911
    %v8059 = vadd.f32 %v8058, %v7916
    %v8060 = vadd.f32 %v8059, %v7921
    %v8061 = vadd.f32 %v8060, %v7926
    %v8062 = vadd.f32 %v8061, %v7931
    %v8063 = vadd.f32 %v8062, %v7936
    %v8064 = vadd.f32 %v8063, %v7941
    %v8065 = vadd.f32 %v8064, %v7946
    %v8066 = vadd.f32 %v8065, %v7951
    %v8067 = vadd.f32 %v8066, %v7956
    %v8068 = vadd.f32 %v8067, %v7961
    %v8069 = vadd.f32 %v8068, %v7966
    %v8070 = vadd.f32 %v8069, %v7971
    %v8071 = vadd.f32 %v8070, %v7976
    %v8072 = vadd.f32 %v8071, %v7981
    %v8073 = vadd.f32 %v8072, %v7986
    %v8074 = vadd.f32 %v8073, %v7991
    %v8075 = vadd.f32 %v8074, %v7996
    %v8076 = vadd.f32 %v8075, %v8001
    %v8077 = vadd.f32 %v8076, %v8006
    %v8078 = vadd.f32 %v8077, %v8011
    %v8079 = vrot.slane %v8078, 4
    %v8080 = vadd.f32 %v8078, %v8079
    %v8081 = vrot.slane %v8080, 2
    %v8082 = vadd.f32 %v8080, %v8081
    %v8083 = vrot.slane %v8082, 1
    %v8084 = vadd.f32 %v8082, %v8083
    %v8085 = vmul.f32 %v7696, %v7696
    %v8086 = vmul.f32 %v7701, %v7701
    %v8087 = vmul.f32 %v7706, %v7706
    %v8088 = vmul.f32 %v7711, %v7711
    %v8089 = vmul.f32 %v7716, %v7716
    %v8090 = vmul.f32 %v7721, %v7721
    %v8091 = vmul.f32 %v7726, %v7726
    %v8092 = vmul.f32 %v7731, %v7731
    %v8093 = vmul.f32 %v7736, %v7736
    %v8094 = vmul.f32 %v7741, %v7741
    %v8095 = vmul.f32 %v7746, %v7746
    %v8096 = vmul.f32 %v7751, %v7751
    %v8097 = vmul.f32 %v7756, %v7756
    %v8098 = vmul.f32 %v7761, %v7761
    %v8099 = vmul.f32 %v7766, %v7766
    %v8100 = vmul.f32 %v7771, %v7771
    %v8101 = vmul.f32 %v7776, %v7776
    %v8102 = vmul.f32 %v7781, %v7781
    %v8103 = vmul.f32 %v7786, %v7786
    %v8104 = vmul.f32 %v7791, %v7791
    %v8105 = vmul.f32 %v7796, %v7796
    %v8106 = vmul.f32 %v7801, %v7801
    %v8107 = vmul.f32 %v7806, %v7806
    %v8108 = vmul.f32 %v7811, %v7811
    %v8109 = vmul.f32 %v7816, %v7816
    %v8110 = vmul.f32 %v7821, %v7821
    %v8111 = vmul.f32 %v7826, %v7826
    %v8112 = vmul.f32 %v7831, %v7831
    %v8113 = vmul.f32 %v7836, %v7836
    %v8114 = vmul.f32 %v7841, %v7841
    %v8115 = vmul.f32 %v7846, %v7846
    %v8116 = vmul.f32 %v7851, %v7851
    %v8117 = vmul.f32 %v7856, %v7856
    %v8118 = vmul.f32 %v7861, %v7861
    %v8119 = vmul.f32 %v7866, %v7866
    %v8120 = vmul.f32 %v7871, %v7871
    %v8121 = vmul.f32 %v7876, %v7876
    %v8122 = vmul.f32 %v7881, %v7881
    %v8123 = vmul.f32 %v7886, %v7886
    %v8124 = vmul.f32 %v7891, %v7891
    %v8125 = vmul.f32 %v7896, %v7896
    %v8126 = vmul.f32 %v7901, %v7901
    %v8127 = vmul.f32 %v7906, %v7906
    %v8128 = vmul.f32 %v7911, %v7911
    %v8129 = vmul.f32 %v7916, %v7916
    %v8130 = vmul.f32 %v7921, %v7921
    %v8131 = vmul.f32 %v7926, %v7926
    %v8132 = vmul.f32 %v7931, %v7931
    %v8133 = vmul.f32 %v7936, %v7936
    %v8134 = vmul.f32 %v7941, %v7941
    %v8135 = vmul.f32 %v7946, %v7946
    %v8136 = vmul.f32 %v7951, %v7951
    %v8137 = vmul.f32 %v7956, %v7956
    %v8138 = vmul.f32 %v7961, %v7961
    %v8139 = vmul.f32 %v7966, %v7966
    %v8140 = vmul.f32 %v7971, %v7971
    %v8141 = vmul.f32 %v7976, %v7976
    %v8142 = vmul.f32 %v7981, %v7981
    %v8143 = vmul.f32 %v7986, %v7986
    %v8144 = vmul.f32 %v7991, %v7991
    %v8145 = vmul.f32 %v7996, %v7996
    %v8146 = vmul.f32 %v8001, %v8001
    %v8147 = vmul.f32 %v8006, %v8006
    %v8148 = vmul.f32 %v8011, %v8011
    %v8149 = vadd.f32 %v8085, %v8086
    %v8150 = vadd.f32 %v8149, %v8087
    %v8151 = vadd.f32 %v8150, %v8088
    %v8152 = vadd.f32 %v8151, %v8089
    %v8153 = vadd.f32 %v8152, %v8090
    %v8154 = vadd.f32 %v8153, %v8091
    %v8155 = vadd.f32 %v8154, %v8092
    %v8156 = vadd.f32 %v8155, %v8093
    %v8157 = vadd.f32 %v8156, %v8094
    %v8158 = vadd.f32 %v8157, %v8095
    %v8159 = vadd.f32 %v8158, %v8096
    %v8160 = vadd.f32 %v8159, %v8097
    %v8161 = vadd.f32 %v8160, %v8098
    %v8162 = vadd.f32 %v8161, %v8099
    %v8163 = vadd.f32 %v8162, %v8100
    %v8164 = vadd.f32 %v8163, %v8101
    %v8165 = vadd.f32 %v8164, %v8102
    %v8166 = vadd.f32 %v8165, %v8103
    %v8167 = vadd.f32 %v8166, %v8104
    %v8168 = vadd.f32 %v8167, %v8105
    %v8169 = vadd.f32 %v8168, %v8106
    %v8170 = vadd.f32 %v8169, %v8107
    %v8171 = vadd.f32 %v8170, %v8108
    %v8172 = vadd.f32 %v8171, %v8109
    %v8173 = vadd.f32 %v8172, %v8110
    %v8174 = vadd.f32 %v8173, %v8111
    %v8175 = vadd.f32 %v8174, %v8112
    %v8176 = vadd.f32 %v8175, %v8113
    %v8177 = vadd.f32 %v8176, %v8114
    %v8178 = vadd.f32 %v8177, %v8115
    %v8179 = vadd.f32 %v8178, %v8116
    %v8180 = vadd.f32 %v8179, %v8117
    %v8181 = vadd.f32 %v8180, %v8118
    %v8182 = vadd.f32 %v8181, %v8119
    %v8183 = vadd.f32 %v8182, %v8120
    %v8184 = vadd.f32 %v8183, %v8121
    %v8185 = vadd.f32 %v8184, %v8122
    %v8186 = vadd.f32 %v8185, %v8123
    %v8187 = vadd.f32 %v8186, %v8124
    %v8188 = vadd.f32 %v8187, %v8125
    %v8189 = vadd.f32 %v8188, %v8126
    %v8190 = vadd.f32 %v8189, %v8127
    %v8191 = vadd.f32 %v8190, %v8128
    %v8192 = vadd.f32 %v8191, %v8129
    %v8193 = vadd.f32 %v8192, %v8130
    %v8194 = vadd.f32 %v8193, %v8131
    %v8195 = vadd.f32 %v8194, %v8132
    %v8196 = vadd.f32 %v8195, %v8133
    %v8197 = vadd.f32 %v8196, %v8134
    %v8198 = vadd.f32 %v8197, %v8135
    %v8199 = vadd.f32 %v8198, %v8136
    %v8200 = vadd.f32 %v8199, %v8137
    %v8201 = vadd.f32 %v8200, %v8138
    %v8202 = vadd.f32 %v8201, %v8139
    %v8203 = vadd.f32 %v8202, %v8140
    %v8204 = vadd.f32 %v8203, %v8141
    %v8205 = vadd.f32 %v8204, %v8142
    %v8206 = vadd.f32 %v8205, %v8143
    %v8207 = vadd.f32 %v8206, %v8144
    %v8208 = vadd.f32 %v8207, %v8145
    %v8209 = vadd.f32 %v8208, %v8146
    %v8210 = vadd.f32 %v8209, %v8147
    %v8211 = vadd.f32 %v8210, %v8148
    %v8212 = vrot.slane %v8211, 4
    %v8213 = vadd.f32 %v8211, %v8212
    %v8214 = vrot.slane %v8213, 2
    %v8215 = vadd.f32 %v8213, %v8214
    %v8216 = vrot.slane %v8215, 1
    %v8217 = vadd.f32 %v8215, %v8216
    %v8218 = vmul.f32 %v8084, 0.001953125
    %v8219 = vmul.f32 %v8217, 0.001953125
    %v8220 = vmul.f32 %v8218, %v8218
    %v8221 = vsub.f32 %v8219, %v8220
    %v8222 = vadd.f32 %v8221, 1e-05
    %v8223 = vrsqrt.pop %v8222
    %v8224 = vmul.f32 %v8014, %v8223
    %v8225 = vmul.f32 %v8218, %v8224
    %v8226 = vsub.f32 %v8015, %v8225
    %v8228 = vlaneseq
    %v8229 = vshrl.u32 %v8228, 7
    %v8230 = vsub.s32 0, %v8229
    %v8231 = vrot.slane %v8224, %v8230
    %v8233 = vmul.f32 %v7696, %v8231
    %v8234 = vmul.f32 %v7701, %v8231
    %v8235 = vmul.f32 %v7706, %v8231
    %v8236 = vmul.f32 %v7711, %v8231
    %v8237 = vmul.f32 %v7716, %v8231
    %v8238 = vmul.f32 %v7721, %v8231
    %v8239 = vmul.f32 %v7726, %v8231
    %v8240 = vmul.f32 %v7731, %v8231
    %v8241 = vmul.f32 %v7736, %v8231
    %v8242 = vmul.f32 %v7741, %v8231
    %v8243 = vmul.f32 %v7746, %v8231
    %v8244 = vmul.f32 %v7751, %v8231
    %v8245 = vmul.f32 %v7756, %v8231
    %v8246 = vmul.f32 %v7761, %v8231
    %v8247 = vmul.f32 %v7766, %v8231
    %v8248 = vmul.f32 %v7771, %v8231
    %v8249 = vmul.f32 %v7776, %v8231
    %v8250 = vmul.f32 %v7781, %v8231
    %v8251 = vmul.f32 %v7786, %v8231
    %v8252 = vmul.f32 %v7791, %v8231
    %v8253 = vmul.f32 %v7796, %v8231
    %v8254 = vmul.f32 %v7801, %v8231
    %v8255 = vmul.f32 %v7806, %v8231
    %v8256 = vmul.f32 %v7811, %v8231
    %v8257 = vmul.f32 %v7816, %v8231
    %v8258 = vmul.f32 %v7821, %v8231
    %v8259 = vmul.f32 %v7826, %v8231
    %v8260 = vmul.f32 %v7831, %v8231
    %v8261 = vmul.f32 %v7836, %v8231
    %v8262 = vmul.f32 %v7841, %v8231
    %v8263 = vmul.f32 %v7846, %v8231
    %v8264 = vmul.f32 %v7851, %v8231
    %v8265 = vmul.f32 %v7856, %v8231
    %v8266 = vmul.f32 %v7861, %v8231
    %v8267 = vmul.f32 %v7866, %v8231
    %v8268 = vmul.f32 %v7871, %v8231
    %v8269 = vmul.f32 %v7876, %v8231
    %v8270 = vmul.f32 %v7881, %v8231
    %v8271 = vmul.f32 %v7886, %v8231
    %v8272 = vmul.f32 %v7891, %v8231
    %v8273 = vmul.f32 %v7896, %v8231
    %v8274 = vmul.f32 %v7901, %v8231
    %v8275 = vmul.f32 %v7906, %v8231
    %v8276 = vmul.f32 %v7911, %v8231
    %v8277 = vmul.f32 %v7916, %v8231
    %v8278 = vmul.f32 %v7921, %v8231
    %v8279 = vmul.f32 %v7926, %v8231
    %v8280 = vmul.f32 %v7931, %v8231
    %v8281 = vmul.f32 %v7936, %v8231
    %v8282 = vmul.f32 %v7941, %v8231
    %v8283 = vmul.f32 %v7946, %v8231
    %v8284 = vmul.f32 %v7951, %v8231
    %v8285 = vmul.f32 %v7956, %v8231
    %v8286 = vmul.f32 %v7961, %v8231
    %v8287 = vmul.f32 %v7966, %v8231
    %v8288 = vmul.f32 %v7971, %v8231
    %v8289 = vmul.f32 %v7976, %v8231
    %v8290 = vmul.f32 %v7981, %v8231
    %v8291 = vmul.f32 %v7986, %v8231
    %v8292 = vmul.f32 %v7991, %v8231
    %v8293 = vmul.f32 %v7996, %v8231
    %v8294 = vmul.f32 %v8001, %v8231
    %v8295 = vmul.f32 %v8006, %v8231
    %v8296 = vmul.f32 %v8011, %v8231
    %v8298 = vlaneseq
    %v8299 = vshrl.u32 %v8298, 7
    %v8300 = vsub.s32 0, %v8299
    %v8301 = vrot.slane %v8226, %v8300
    %v8303 = vadd.f32 %v8233, %v8301
    %v8304 = vadd.f32 %v8234, %v8301
    %v8305 = vadd.f32 %v8235, %v8301
    %v8306 = vadd.f32 %v8236, %v8301
    %v8307 = vadd.f32 %v8237, %v8301
    %v8308 = vadd.f32 %v8238, %v8301
    %v8309 = vadd.f32 %v8239, %v8301
    %v8310 = vadd.f32 %v8240, %v8301
    %v8311 = vadd.f32 %v8241, %v8301
    %v8312 = vadd.f32 %v8242, %v8301
    %v8313 = vadd.f32 %v8243, %v8301
    %v8314 = vadd.f32 %v8244, %v8301
    %v8315 = vadd.f32 %v8245, %v8301
    %v8316 = vadd.f32 %v8246, %v8301
    %v8317 = vadd.f32 %v8247, %v8301
    %v8318 = vadd.f32 %v8248, %v8301
    %v8319 = vadd.f32 %v8249, %v8301
    %v8320 = vadd.f32 %v8250, %v8301
    %v8321 = vadd.f32 %v8251, %v8301
    %v8322 = vadd.f32 %v8252, %v8301
    %v8323 = vadd.f32 %v8253, %v8301
    %v8324 = vadd.f32 %v8254, %v8301
    %v8325 = vadd.f32 %v8255, %v8301
    %v8326 = vadd.f32 %v8256, %v8301
    %v8327 = vadd.f32 %v8257, %v8301
    %v8328 = vadd.f32 %v8258, %v8301
    %v8329 = vadd.f32 %v8259, %v8301
    %v8330 = vadd.f32 %v8260, %v8301
    %v8331 = vadd.f32 %v8261, %v8301
    %v8332 = vadd.f32 %v8262, %v8301
    %v8333 = vadd.f32 %v8263, %v8301
    %v8334 = vadd.f32 %v8264, %v8301
    %v8335 = vadd.f32 %v8265, %v8301
    %v8336 = vadd.f32 %v8266, %v8301
    %v8337 = vadd.f32 %v8267, %v8301
    %v8338 = vadd.f32 %v8268, %v8301
    %v8339 = vadd.f32 %v8269, %v8301
    %v8340 = vadd.f32 %v8270, %v8301
    %v8341 = vadd.f32 %v8271, %v8301
    %v8342 = vadd.f32 %v8272, %v8301
    %v8343 = vadd.f32 %v8273, %v8301
    %v8344 = vadd.f32 %v8274, %v8301
    %v8345 = vadd.f32 %v8275, %v8301
    %v8346 = vadd.f32 %v8276, %v8301
    %v8347 = vadd.f32 %v8277, %v8301
    %v8348 = vadd.f32 %v8278, %v8301
    %v8349 = vadd.f32 %v8279, %v8301
    %v8350 = vadd.f32 %v8280, %v8301
    %v8351 = vadd.f32 %v8281, %v8301
    %v8352 = vadd.f32 %v8282, %v8301
    %v8353 = vadd.f32 %v8283, %v8301
    %v8354 = vadd.f32 %v8284, %v8301
    %v8355 = vadd.f32 %v8285, %v8301
    %v8356 = vadd.f32 %v8286, %v8301
    %v8357 = vadd.f32 %v8287, %v8301
    %v8358 = vadd.f32 %v8288, %v8301
    %v8359 = vadd.f32 %v8289, %v8301
    %v8360 = vadd.f32 %v8290, %v8301
    %v8361 = vadd.f32 %v8291, %v8301
    %v8362 = vadd.f32 %v8292, %v8301
    %v8363 = vadd.f32 %v8293, %v8301
    %v8364 = vadd.f32 %v8294, %v8301
    %v8365 = vadd.f32 %v8295, %v8301
    %v8366 = vadd.f32 %v8296, %v8301
    %v8367 = vadd.f32 %v8303, %v91
    %v8368 = vadd.f32 %v8304, %v92
    %v8369 = vadd.f32 %v8305, %v93
    %v8370 = vadd.f32 %v8306, %v94
    %v8371 = vadd.f32 %v8307, %v95
    %v8372 = vadd.f32 %v8308, %v96
    %v8373 = vadd.f32 %v8309, %v97
    %v8374 = vadd.f32 %v8310, %v98
    %v8375 = vadd.f32 %v8311, %v99
    %v8376 = vadd.f32 %v8312, %v100
    %v8377 = vadd.f32 %v8313, %v101
    %v8378 = vadd.f32 %v8314, %v102
    %v8379 = vadd.f32 %v8315, %v103
    %v8380 = vadd.f32 %v8316, %v104
    %v8381 = vadd.f32 %v8317, %v105
    %v8382 = vadd.f32 %v8318, %v106
    %v8383 = vadd.f32 %v8319, %v107
    %v8384 = vadd.f32 %v8320, %v108
    %v8385 = vadd.f32 %v8321, %v109
    %v8386 = vadd.f32 %v8322, %v110
    %v8387 = vadd.f32 %v8323, %v111
    %v8388 = vadd.f32 %v8324, %v112
    %v8389 = vadd.f32 %v8325, %v113
    %v8390 = vadd.f32 %v8326, %v114
    %v8391 = vadd.f32 %v8327, %v115
    %v8392 = vadd.f32 %v8328, %v116
    %v8393 = vadd.f32 %v8329, %v117
    %v8394 = vadd.f32 %v8330, %v118
    %v8395 = vadd.f32 %v8331, %v119
    %v8396 = vadd.f32 %v8332, %v120
    %v8397 = vadd.f32 %v8333, %v121
    %v8398 = vadd.f32 %v8334, %v122
    %v8399 = vadd.f32 %v8335, %v123
    %v8400 = vadd.f32 %v8336, %v124
    %v8401 = vadd.f32 %v8337, %v125
    %v8402 = vadd.f32 %v8338, %v126
    %v8403 = vadd.f32 %v8339, %v127
    %v8404 = vadd.f32 %v8340, %v128
    %v8405 = vadd.f32 %v8341, %v129
    %v8406 = vadd.f32 %v8342, %v130
    %v8407 = vadd.f32 %v8343, %v131
    %v8408 = vadd.f32 %v8344, %v132
    %v8409 = vadd.f32 %v8345, %v133
    %v8410 = vadd.f32 %v8346, %v134
    %v8411 = vadd.f32 %v8347, %v135
    %v8412 = vadd.f32 %v8348, %v136
    %v8413 = vadd.f32 %v8349, %v137
    %v8414 = vadd.f32 %v8350, %v138
    %v8415 = vadd.f32 %v8351, %v139
    %v8416 = vadd.f32 %v8352, %v140
    %v8417 = vadd.f32 %v8353, %v141
    %v8418 = vadd.f32 %v8354, %v142
    %v8419 = vadd.f32 %v8355, %v143
    %v8420 = vadd.f32 %v8356, %v144
    %v8421 = vadd.f32 %v8357, %v145
    %v8422 = vadd.f32 %v8358, %v146
    %v8423 = vadd.f32 %v8359, %v147
    %v8424 = vadd.f32 %v8360, %v148
    %v8425 = vadd.f32 %v8361, %v149
    %v8426 = vadd.f32 %v8362, %v150
    %v8427 = vadd.f32 %v8363, %v151
    %v8428 = vadd.f32 %v8364, %v152
    %v8429 = vadd.f32 %v8365, %v153
    %v8430 = vadd.f32 %v8366, %v154
    %v8431 = vmax.f32 %v8367, 0.0
    %v8432 = vmax.f32 %v8368, 0.0
    %v8433 = vmax.f32 %v8369, 0.0
    %v8434 = vmax.f32 %v8370, 0.0
    %v8435 = vmax.f32 %v8371, 0.0
    %v8436 = vmax.f32 %v8372, 0.0
    %v8437 = vmax.f32 %v8373, 0.0
    %v8438 = vmax.f32 %v8374, 0.0
    %v8439 = vmax.f32 %v8375, 0.0
    %v8440 = vmax.f32 %v8376, 0.0
    %v8441 = vmax.f32 %v8377, 0.0
    %v8442 = vmax.f32 %v8378, 0.0
    %v8443 = vmax.f32 %v8379, 0.0
    %v8444 = vmax.f32 %v8380, 0.0
    %v8445 = vmax.f32 %v8381, 0.0
    %v8446 = vmax.f32 %v8382, 0.0
    %v8447 = vmax.f32 %v8383, 0.0
    %v8448 = vmax.f32 %v8384, 0.0
    %v8449 = vmax.f32 %v8385, 0.0
    %v8450 = vmax.f32 %v8386, 0.0
    %v8451 = vmax.f32 %v8387, 0.0
    %v8452 = vmax.f32 %v8388, 0.0
    %v8453 = vmax.f32 %v8389, 0.0
    %v8454 = vmax.f32 %v8390, 0.0
    %v8455 = vmax.f32 %v8391, 0.0
    %v8456 = vmax.f32 %v8392, 0.0
    %v8457 = vmax.f32 %v8393, 0.0
    %v8458 = vmax.f32 %v8394, 0.0
    %v8459 = vmax.f32 %v8395, 0.0
    %v8460 = vmax.f32 %v8396, 0.0
    %v8461 = vmax.f32 %v8397, 0.0
    %v8462 = vmax.f32 %v8398, 0.0
    %v8463 = vmax.f32 %v8399, 0.0
    %v8464 = vmax.f32 %v8400, 0.0
    %v8465 = vmax.f32 %v8401, 0.0
    %v8466 = vmax.f32 %v8402, 0.0
    %v8467 = vmax.f32 %v8403, 0.0
    %v8468 = vmax.f32 %v8404, 0.0
    %v8469 = vmax.f32 %v8405, 0.0
    %v8470 = vmax.f32 %v8406, 0.0
    %v8471 = vmax.f32 %v8407, 0.0
    %v8472 = vmax.f32 %v8408, 0.0
    %v8473 = vmax.f32 %v8409, 0.0
    %v8474 = vmax.f32 %v8410, 0.0
    %v8475 = vmax.f32 %v8411, 0.0
    %v8476 = vmax.f32 %v8412, 0.0
    %v8477 = vmax.f32 %v8413, 0.0
    %v8478 = vmax.f32 %v8414, 0.0
    %v8479 = vmax.f32 %v8415, 0.0
    %v8480 = vmax.f32 %v8416, 0.0
    %v8481 = vmax.f32 %v8417, 0.0
    %v8482 = vmax.f32 %v8418, 0.0
    %v8483 = vmax.f32 %v8419, 0.0
    %v8484 = vmax.f32 %v8420, 0.0
    %v8485 = vmax.f32 %v8421, 0.0
    %v8486 = vmax.f32 %v8422, 0.0
    %v8487 = vmax.f32 %v8423, 0.0
    %v8488 = vmax.f32 %v8424, 0.0
    %v8489 = vmax.f32 %v8425, 0.0
    %v8490 = vmax.f32 %v8426, 0.0
    %v8491 = vmax.f32 %v8427, 0.0
    %v8492 = vmax.f32 %v8428, 0.0
    %v8493 = vmax.f32 %v8429, 0.0
    %v8494 = vmax.f32 %v8430, 0.0
    %8495 = vst [vmem:[#allocation12] sm:$0xff] %v8431
    %8496 = vst [vmem:[#allocation12 + $0x8] sm:$0xff] %v8432
    %8497 = vst [vmem:[#allocation12 + $0x10] sm:$0xff] %v8433
    %8498 = vst [vmem:[#allocation12 + $0x18] sm:$0xff] %v8434
    %8499 = vst [vmem:[#allocation12 + $0x20] sm:$0xff] %v8435
    %8500 = vst [vmem:[#allocation12 + $0x28] sm:$0xff] %v8436
    %8501 = vst [vmem:[#allocation12 + $0x30] sm:$0xff] %v8437
    %8502 = vst [vmem:[#allocation12 + $0x38] sm:$0xff] %v8438
    %8503 = vst [vmem:[#allocation12 + $0x40] sm:$0xff] %v8439
    %8504 = vst [vmem:[#allocation12 + $0x48] sm:$0xff] %v8440
    %8505 = vst [vmem:[#allocation12 + $0x50] sm:$0xff] %v8441
    %8506 = vst [vmem:[#allocation12 + $0x58] sm:$0xff] %v8442
    %8507 = vst [vmem:[#allocation12 + $0x60] sm:$0xff] %v8443
    %8508 = vst [vmem:[#allocation12 + $0x68] sm:$0xff] %v8444
    %8509 = vst [vmem:[#allocation12 + $0x70] sm:$0xff] %v8445
    %8510 = vst [vmem:[#allocation12 + $0x78] sm:$0xff] %v8446
    %8511 = vst [vmem:[#allocation12 + $0x80] sm:$0xff] %v8447
    %8512 = vst [vmem:[#allocation12 + $0x88] sm:$0xff] %v8448
    %8513 = vst [vmem:[#allocation12 + $0x90] sm:$0xff] %v8449
    %8514 = vst [vmem:[#allocation12 + $0x98] sm:$0xff] %v8450
    %8515 = vst [vmem:[#allocation12 + $0xa0] sm:$0xff] %v8451
    %8516 = vst [vmem:[#allocation12 + $0xa8] sm:$0xff] %v8452
    %8517 = vst [vmem:[#allocation12 + $0xb0] sm:$0xff] %v8453
    %8518 = vst [vmem:[#allocation12 + $0xb8] sm:$0xff] %v8454
    %8519 = vst [vmem:[#allocation12 + $0xc0] sm:$0xff] %v8455
    %8520 = vst [vmem:[#allocation12 + $0xc8] sm:$0xff] %v8456
    %8521 = vst [vmem:[#allocation12 + $0xd0] sm:$0xff] %v8457
    %8522 = vst [vmem:[#allocation12 + $0xd8] sm:$0xff] %v8458
    %8523 = vst [vmem:[#allocation12 + $0xe0] sm:$0xff] %v8459
    %8524 = vst [vmem:[#allocation12 + $0xe8] sm:$0xff] %v8460
    %8525 = vst [vmem:[#allocation12 + $0xf0] sm:$0xff] %v8461
    %8526 = vst [vmem:[#allocation12 + $0xf8] sm:$0xff] %v8462
    %8527 = vst [vmem:[#allocation12 + $0x100] sm:$0xff] %v8463
    %8528 = vst [vmem:[#allocation12 + $0x108] sm:$0xff] %v8464
    %8529 = vst [vmem:[#allocation12 + $0x110] sm:$0xff] %v8465
    %8530 = vst [vmem:[#allocation12 + $0x118] sm:$0xff] %v8466
    %8531 = vst [vmem:[#allocation12 + $0x120] sm:$0xff] %v8467
    %8532 = vst [vmem:[#allocation12 + $0x128] sm:$0xff] %v8468
    %8533 = vst [vmem:[#allocation12 + $0x130] sm:$0xff] %v8469
    %8534 = vst [vmem:[#allocation12 + $0x138] sm:$0xff] %v8470
    %8535 = vst [vmem:[#allocation12 + $0x140] sm:$0xff] %v8471
    %8536 = vst [vmem:[#allocation12 + $0x148] sm:$0xff] %v8472
    %8537 = vst [vmem:[#allocation12 + $0x150] sm:$0xff] %v8473
    %8538 = vst [vmem:[#allocation12 + $0x158] sm:$0xff] %v8474
    %8539 = vst [vmem:[#allocation12 + $0x160] sm:$0xff] %v8475
    %8540 = vst [vmem:[#allocation12 + $0x168] sm:$0xff] %v8476
    %8541 = vst [vmem:[#allocation12 + $0x170] sm:$0xff] %v8477
    %8542 = vst [vmem:[#allocation12 + $0x178] sm:$0xff] %v8478
    %8543 = vst [vmem:[#allocation12 + $0x180] sm:$0xff] %v8479
    %8544 = vst [vmem:[#allocation12 + $0x188] sm:$0xff] %v8480
    %8545 = vst [vmem:[#allocation12 + $0x190] sm:$0xff] %v8481
    %8546 = vst [vmem:[#allocation12 + $0x198] sm:$0xff] %v8482
    %8547 = vst [vmem:[#allocation12 + $0x1a0] sm:$0xff] %v8483
    %8548 = vst [vmem:[#allocation12 + $0x1a8] sm:$0xff] %v8484
    %8549 = vst [vmem:[#allocation12 + $0x1b0] sm:$0xff] %v8485
    %8550 = vst [vmem:[#allocation12 + $0x1b8] sm:$0xff] %v8486
    %8551 = vst [vmem:[#allocation12 + $0x1c0] sm:$0xff] %v8487
    %8552 = vst [vmem:[#allocation12 + $0x1c8] sm:$0xff] %v8488
    %8553 = vst [vmem:[#allocation12 + $0x1d0] sm:$0xff] %v8489
    %8554 = vst [vmem:[#allocation12 + $0x1d8] sm:$0xff] %v8490
    %8555 = vst [vmem:[#allocation12 + $0x1e0] sm:$0xff] %v8491
    %8556 = vst [vmem:[#allocation12 + $0x1e8] sm:$0xff] %v8492
    %8557 = vst [vmem:[#allocation12 + $0x1f0] sm:$0xff] %v8493
    %8558 = vst [vmem:[#allocation12 + $0x1f8] sm:$0xff] %v8494
    // Predicated region
    $region58: #{tpu_custom_call.1} parent=1 // pred_check
      _
    $region59: #{tpu_custom_call.1} parent=1 // pred_check_branch
      %8560 = sbr.rel (0) target = $region61
    $region60: #{tpu_custom_call.1} parent=1 // pred_region
      %s8562 = ssub.s32 8192, 8192
      %8563 = vsyncadd [#allocation6], %s8562
      %s8564 = sshll.u32 [#allocation12], 4
      %s8565 = int_to_ptr.vmem [resolvable:$true] %s8564
      %8570 = dma.vmem_to_hbm [thread:$0]  %s8565, 8192, %s10, [#allocation6], 128, 128, 8
    $region61: #{tpu_custom_call.1} parent=1 // pred_fallthru
      _
    // Predicated region
    $region62: #{tpu_custom_call.1} parent=1 // pred_check
      _
    $region63: #{tpu_custom_call.1} parent=1 // pred_check_branch
      %8572 = sbr.rel (0) target = $region65
    $region64: #{tpu_custom_call.1} parent=1 // pred_region
      %8573 = dma.done [#allocation6], 8192
    $region65: #{tpu_custom_call.1} parent=1 // pred_fallthru
      _
    %8574 = vsyncpa [#allocation5], 1
    %8575 = vsyncpa [#allocation8], 1
    %8576 = vsyncpa [#allocation11], 1
    %8577 = vsyncpa [#allocation6], 1

</llo_original>
